<compile_context>
chip_gen: v7x
topology: tpu7x:2x2x1
jax: 0.10.0
libtpu: 0.0.40
codegen_flags: <defaults>
</compile_context>

<pallas_src>
import functools

import jax
import jax.numpy as jnp
from jax.experimental import pallas as pl
from jax.experimental.pallas import tpu as pltpu


_NP = 128  # lane-dense padded output-channel count carried between stages


# ---------------------------------------------------------------------------
# Pallas kernel: fused 2-GEMM 3x3/stride-2 conv + bias + SiLU over an M tile
# ---------------------------------------------------------------------------
def _conv_gemm_silu_kernel(a_ref, b_ref, wa_ref, wb_ref, bias_ref, o_ref):
    # a_ref:  [TM, 6*Cp] bf16   b_ref:  [TM, 3*Cp] bf16
    # wa_ref: [6*Cp, NP] bf16   wb_ref: [3*Cp, NP] bf16
    # bias_ref: [1, NP] f32     o_ref:  [TM, NP] bf16
    acc = jnp.dot(a_ref[...], wa_ref[...], preferred_element_type=jnp.float32)
    acc = acc + jnp.dot(b_ref[...], wb_ref[...],
                        preferred_element_type=jnp.float32)
    z = acc + bias_ref[...]
    o_ref[...] = (z * jax.nn.sigmoid(z)).astype(o_ref.dtype)   # SiLU


# ---------------------------------------------------------------------------
# Glue: pre-shifted space-to-depth tap stacks (all alignment done in XLA)
# ---------------------------------------------------------------------------
def _space_to_depth_taps(x_nhwc):
    """x: [B,H,W,Cp] bf16 -> (A [B*Ho*Wo, 6*Cp], B [B*Ho*Wo, 3*Cp], Ho, Wo).

    Tap t = 3*di + dj of a 3x3 / stride-2 / pad-1 conv:
      t = 0..5 (di in {0,1}) -> A channel block t
      t = 6..8 (di = 2)      -> B channel block t-6 (rows pre-shifted by one)
    """
    B, H, W, C = x_nhwc.shape
    Ho, Wo = H // 2, W // 2
    xp = jnp.pad(x_nhwc, ((0, 0), (1, 1), (1, 1), (0, 0)))
    planes = []
    for r0 in (0, 1):                       # even / odd padded rows
        rows = xp[:, r0::2, :, :]           # [B, Ho+1, W+2, C]
        for c0 in (0, 1, 2):                # column tap offsets (stride 2)
            planes.append(rows[:, :, c0:c0 + 2 * Wo:2, :])   # [B, Ho+1, Wo, C]
    a = jnp.concatenate([p[:, :Ho] for p in planes], axis=-1)          # taps 0..5
    b = jnp.concatenate([p[:, 1:Ho + 1] for p in planes[:3]], axis=-1)  # taps 6..8
    M = B * Ho * Wo
    return a.reshape(M, 6 * C), b.reshape(M, 3 * C), Ho, Wo


def _pick_tm(M, target=256):
    """Largest multiple-of-8 divisor of M that is <= target (or M itself)."""
    if M <= target:
        return M
    best = None
    for t in range(8, target + 1, 8):
        if M % t == 0:
            best = t
    return best if best is not None else M


def conv_silu_stage(x_nhwc, w_oihw, bias, tm_target=256):
    """3x3 conv (stride 2, pad 1) + bias + SiLU.

    x_nhwc: [B,H,W,Cp] bf16, real input channels in [:Cin], rest exactly zero.
    Returns [B, H/2, W/2, _NP] bf16, real output channels in [:Cout], rest zero.
    """
    Cout, Cin, kh, kw = w_oihw.shape
    B, H, W, Cp = x_nhwc.shape
    assert (kh, kw) == (3, 3) and Cin <= Cp and H % 2 == 0 and W % 2 == 0
    assert Cout <= _NP

    a_arr, b_arr, Ho, Wo = _space_to_depth_taps(x_nhwc)
    M = B * Ho * Wo
    KA, KB = 6 * Cp, 3 * Cp

    # per-tap weights [9, Cin, Cout] with t = 3*di + dj, zero-padded & regrouped
    w_taps = jnp.transpose(w_oihw, (2, 3, 1, 0)).reshape(9, Cin, Cout)
    w_taps = jnp.pad(w_taps, ((0, 0), (0, Cp - Cin), (0, _NP - Cout)))
    w_taps = w_taps.astype(jnp.bfloat16)
    wa = w_taps[:6].reshape(KA, _NP)
    wb = w_taps[6:].reshape(KB, _NP)
    b_pad = jnp.pad(bias, (0, _NP - Cout)).reshape(1, _NP).astype(jnp.float32)

    TM = _pick_tm(M, tm_target)

    out = pl.pallas_call(
        _conv_gemm_silu_kernel,
        out_shape=jax.ShapeDtypeStruct((M, _NP), jnp.bfloat16),
        grid_spec=pltpu.PrefetchScalarGridSpec(
            num_scalar_prefetch=0,
            grid=(M // TM,),
            in_specs=[
                pl.BlockSpec((TM, KA), lambda m: (m, 0)),
                pl.BlockSpec((TM, KB), lambda m: (m, 0)),
                pl.BlockSpec((KA, _NP), lambda m: (0, 0)),
                pl.BlockSpec((KB, _NP), lambda m: (0, 0)),
                pl.BlockSpec((1, _NP), lambda m: (0, 0)),
            ],
            out_specs=pl.BlockSpec((TM, _NP), lambda m: (m, 0)),
        ),
        compiler_params=pltpu.CompilerParams(
            dimension_semantics=("parallel",),
            vmem_limit_bytes=32 * 1024 * 1024),
    )(a_arr, b_arr, wa, wb, b_pad)

    return out.reshape(B, Ho, Wo, _NP)


# ---------------------------------------------------------------------------
# Backbone: params + forward (NCHW in, list of 3 NCHW pyramid feats out)
# ---------------------------------------------------------------------------
def init_backbone_params(in_channels=3):
    """Deterministic synthetic parameters.  feat_dims = (32, 64, 128)."""
    # TODO(synk): build_yolo_free pretrained weights cannot be loaded here;
    # a deterministic synthetic conv stack provides the same pyramid contract.
    stage_chs = [16, 32, 32, 64, 128]   # strides 2, 4, 8, 16, 32
    params = []
    c_in = in_channels
    for idx, c_out in enumerate(stage_chs):
        kw_key, _ = jax.random.split(jax.random.PRNGKey(idx))
        fan_in = c_in * 3 * 3
        w = jax.random.normal(kw_key, (c_out, c_in, 3, 3), jnp.float32)
        w = w * jnp.sqrt(2.0 / fan_in)
        b = jnp.full((c_out,), 0.01, jnp.float32)
        params.append((w, b))
        c_in = c_out
    return params


def backbone_2d_forward(x_nchw, params):
    """Mirrors Backbone2D.forward: NCHW in, 3-level NCHW pyramid out."""
    x = jnp.transpose(x_nchw, (0, 2, 3, 1)).astype(jnp.bfloat16)   # NHWC bf16
    c_in = x.shape[-1]
    cp0 = ((c_in + 7) // 8) * 8
    x = jnp.pad(x, ((0, 0), (0, 0), (0, 0), (0, cp0 - c_in)))      # stage-0 pad
    feats = []
    for i, (w, b) in enumerate(params):
        # Channel-padded (128-lane) activations are carried between stages;
        # padded lanes stay exactly zero (zero weight/bias padding + SiLU(0)=0).
        x = conv_silu_stage(x, w, b)
        if i >= 2:                       # strides 8, 16, 32
            feats.append(x[..., :w.shape[0]])
    return [jnp.transpose(f, (0, 3, 1, 2)).astype(jnp.float32) for f in feats]


# ---------------------------------------------------------------------------
# Pure-JAX reference (f32) for correctness
# ---------------------------------------------------------------------------
def _ref_forward(x_nchw, params):
    x = x_nchw
    feats = []
    for i, (w, b) in enumerate(params):
        y = jax.lax.conv_general_dilated(
            x, w, window_strides=(2, 2), padding=((1, 1), (1, 1)),
            dimension_numbers=("NCHW", "OIHW", "NCHW"))
        y = y + b.reshape(1, -1, 1, 1)
        x = y * jax.nn.sigmoid(y)
        if i >= 2:
            feats.append(x)
    return feats


if __name__ == "__main__":
    key = jax.random.PRNGKey(0)
    B, C, H, W = 2, 3, 64, 64
    x = jax.random.normal(key, (B, C, H, W), jnp.float32)

    params = init_backbone_params(in_channels=C)

    fwd = jax.jit(functools.partial(backbone_2d_forward, params=params))
    feats = fwd(x)
    feats = [jax.block_until_ready(f) for f in feats]

    # shape contract of the 3-level pyramid (strides 8 / 16 / 32)
    assert feats[0].shape == (B, 32, H // 8, W // 8)
    assert feats[1].shape == (B, 64, H // 16, W // 16)
    assert feats[2].shape == (B, 128, H // 32, W // 32)

    # numerical check vs f32 reference (tolerance loosened for bf16 pipeline)
    refs = _ref_forward(x, params)
    for got, ref in zip(feats, refs):
        rel = jnp.linalg.norm(got - ref) / (jnp.linalg.norm(ref) + 1e-6)
        assert rel < 2.5e-2, f"relative Frobenius error too high: {rel}"
        assert jnp.allclose(got, ref, atol=1e-1, rtol=1e-1)

    print("KERNEL_OK")
</pallas_src>

<mosaic_0001>
module attributes {stable_mosaic.version = 11 : i64} {
  func.func @_conv_gemm_silu_kernel(%arg0: i32, %arg1: memref<256x48xbf16, #tpu.memory_space<vmem>>, %arg2: memref<256x24xbf16, #tpu.memory_space<vmem>>, %arg3: memref<48x128xbf16, #tpu.memory_space<vmem>>, %arg4: memref<24x128xbf16, #tpu.memory_space<vmem>>, %arg5: memref<1x128xf32, #tpu.memory_space<vmem>>, %arg6: memref<256x128xbf16, #tpu.memory_space<vmem>>) attributes {dimension_semantics = [#tpu.dimension_semantics<parallel>], iteration_bounds = array<i64: 8>, scalar_prefetch = 0 : i64, scratch_operands = 0 : i64, tpu.core_type = #tpu.core_type<tc>, window_params = [{transform_indices = @transform_0, window_bounds = array<i64: 256, 48>}, {transform_indices = @transform_1, window_bounds = array<i64: 256, 24>}, {pipeline_mode = #tpu.pipeline_mode<synchronous>, transform_indices = @transform_2, window_bounds = array<i64: 48, 128>}, {pipeline_mode = #tpu.pipeline_mode<synchronous>, transform_indices = @transform_3, window_bounds = array<i64: 24, 128>}, {pipeline_mode = #tpu.pipeline_mode<synchronous>, transform_indices = @transform_4, window_bounds = array<i64: 1, 128>}, {transform_indices = @transform_5, window_bounds = array<i64: 256, 128>}]} {
    %c0 = arith.constant 0 : index
    %c0_0 = arith.constant 0 : index
    %0 = vector.load %arg1[%c0, %c0_0] : memref<256x48xbf16, #tpu.memory_space<vmem>>, vector<256x48xbf16>
    %c0_1 = arith.constant 0 : index
    %c0_2 = arith.constant 0 : index
    %1 = vector.load %arg3[%c0_1, %c0_2] : memref<48x128xbf16, #tpu.memory_space<vmem>>, vector<48x128xbf16>
    %cst = arith.constant dense<0.000000e+00> : vector<256x128xf32>
    %2 = tpu.matmul %0, %1, %cst {dimension_numbers = #tpu.dot_dimension_numbers<[1], [0], [0], [1], [0, 0, 1, 1], [], []>} : vector<256x48xbf16>, vector<48x128xbf16>, vector<256x128xf32> -> vector<256x128xf32>
    %c0_3 = arith.constant 0 : index
    %c0_4 = arith.constant 0 : index
    %3 = vector.load %arg2[%c0_3, %c0_4] : memref<256x24xbf16, #tpu.memory_space<vmem>>, vector<256x24xbf16>
    %c0_5 = arith.constant 0 : index
    %c0_6 = arith.constant 0 : index
    %4 = vector.load %arg4[%c0_5, %c0_6] : memref<24x128xbf16, #tpu.memory_space<vmem>>, vector<24x128xbf16>
    %cst_7 = arith.constant dense<0.000000e+00> : vector<256x128xf32>
    %5 = tpu.matmul %3, %4, %cst_7 {dimension_numbers = #tpu.dot_dimension_numbers<[1], [0], [0], [1], [0, 0, 1, 1], [], []>} : vector<256x24xbf16>, vector<24x128xbf16>, vector<256x128xf32> -> vector<256x128xf32>
    %6 = arith.addf %2, %5 : vector<256x128xf32>
    %c0_8 = arith.constant 0 : index
    %c0_9 = arith.constant 0 : index
    %7 = vector.load %arg5[%c0_8, %c0_9] : memref<1x128xf32, #tpu.memory_space<vmem>>, vector<1x128xf32>
    %8 = vector.broadcast %7 : vector<1x128xf32> to vector<256x128xf32>
    %9 = arith.addf %6, %8 : vector<256x128xf32>
    %10 = arith.negf %9 : vector<256x128xf32>
    %11 = math.exp %10 : vector<256x128xf32>
    %cst_10 = arith.constant 1.000000e+00 : f32
    %12 = vector.broadcast %cst_10 : f32 to vector<256x128xf32>
    %13 = arith.addf %12, %11 : vector<256x128xf32>
    %14 = arith.divf %12, %13 : vector<256x128xf32>
    %15 = arith.mulf %9, %14 : vector<256x128xf32>
    %16 = arith.truncf %15 : vector<256x128xf32> to vector<256x128xbf16>
    %c0_11 = arith.constant 0 : index
    %c0_12 = arith.constant 0 : index
    %17 = vector.load %arg6[%c0_11, %c0_12] : memref<256x128xbf16, #tpu.memory_space<vmem>>, vector<256x128xbf16>
    tpu.vector_store %arg6[%c0_11, %c0_12], %16 {strides = array<i32>} : memref<256x128xbf16, #tpu.memory_space<vmem>>, vector<256x128xbf16>,
    return
  }
  func.func @transform_0(%arg0: i32) -> (i32, i32) {
    %c0_i32 = arith.constant 0 : i32
    %c0_i32_0 = arith.constant 0 : i32
    return %arg0, %c0_i32 : i32, i32
  }
  func.func @transform_1(%arg0: i32) -> (i32, i32) {
    %c0_i32 = arith.constant 0 : i32
    %c0_i32_0 = arith.constant 0 : i32
    return %arg0, %c0_i32 : i32, i32
  }
  func.func @transform_2(%arg0: i32) -> (i32, i32) {
    %c0_i32 = arith.constant 0 : i32
    %c0_i32_0 = arith.constant 0 : i32
    %c0_i32_1 = arith.constant 0 : i32
    return %c0_i32, %c0_i32_0 : i32, i32
  }
  func.func @transform_3(%arg0: i32) -> (i32, i32) {
    %c0_i32 = arith.constant 0 : i32
    %c0_i32_0 = arith.constant 0 : i32
    %c0_i32_1 = arith.constant 0 : i32
    return %c0_i32, %c0_i32_0 : i32, i32
  }
  func.func @transform_4(%arg0: i32) -> (i32, i32) {
    %c0_i32 = arith.constant 0 : i32
    %c0_i32_0 = arith.constant 0 : i32
    %c0_i32_1 = arith.constant 0 : i32
    return %c0_i32, %c0_i32_0 : i32, i32
  }
  func.func @transform_5(%arg0: i32) -> (i32, i32) {
    %c0_i32 = arith.constant 0 : i32
    %c0_i32_0 = arith.constant 0 : i32
    return %arg0, %c0_i32 : i32, i32
  }
}

module attributes {stable_mosaic.version = 11 : i64} {
  func.func @_conv_gemm_silu_kernel(%arg0: i32, %arg1: memref<256x768xbf16, #tpu.memory_space<vmem>>, %arg2: memref<256x384xbf16, #tpu.memory_space<vmem>>, %arg3: memref<768x128xbf16, #tpu.memory_space<vmem>>, %arg4: memref<384x128xbf16, #tpu.memory_space<vmem>>, %arg5: memref<1x128xf32, #tpu.memory_space<vmem>>, %arg6: memref<256x128xbf16, #tpu.memory_space<vmem>>) attributes {dimension_semantics = [#tpu.dimension_semantics<parallel>], iteration_bounds = array<i64: 2>, scalar_prefetch = 0 : i64, scratch_operands = 0 : i64, tpu.core_type = #tpu.core_type<tc>, window_params = [{transform_indices = @transform_0, window_bounds = array<i64: 256, 768>}, {transform_indices = @transform_1, window_bounds = array<i64: 256, 384>}, {pipeline_mode = #tpu.pipeline_mode<synchronous>, transform_indices = @transform_2, window_bounds = array<i64: 768, 128>}, {pipeline_mode = #tpu.pipeline_mode<synchronous>, transform_indices = @transform_3, window_bounds = array<i64: 384, 128>}, {pipeline_mode = #tpu.pipeline_mode<synchronous>, transform_indices = @transform_4, window_bounds = array<i64: 1, 128>}, {transform_indices = @transform_5, window_bounds = array<i64: 256, 128>}]} {
    %c0 = arith.constant 0 : index
    %c0_0 = arith.constant 0 : index
    %0 = vector.load %arg1[%c0, %c0_0] : memref<256x768xbf16, #tpu.memory_space<vmem>>, vector<256x768xbf16>
    %c0_1 = arith.constant 0 : index
    %c0_2 = arith.constant 0 : index
    %1 = vector.load %arg3[%c0_1, %c0_2] : memref<768x128xbf16, #tpu.memory_space<vmem>>, vector<768x128xbf16>
    %cst = arith.constant dense<0.000000e+00> : vector<256x128xf32>
    %2 = tpu.matmul %0, %1, %cst {dimension_numbers = #tpu.dot_dimension_numbers<[1], [0], [0], [1], [0, 0, 1, 1], [], []>} : vector<256x768xbf16>, vector<768x128xbf16>, vector<256x128xf32> -> vector<256x128xf32>
    %c0_3 = arith.constant 0 : index
    %c0_4 = arith.constant 0 : index
    %3 = vector.load %arg2[%c0_3, %c0_4] : memref<256x384xbf16, #tpu.memory_space<vmem>>, vector<256x384xbf16>
    %c0_5 = arith.constant 0 : index
    %c0_6 = arith.constant 0 : index
    %4 = vector.load %arg4[%c0_5, %c0_6] : memref<384x128xbf16, #tpu.memory_space<vmem>>, vector<384x128xbf16>
    %cst_7 = arith.constant dense<0.000000e+00> : vector<256x128xf32>
    %5 = tpu.matmul %3, %4, %cst_7 {dimension_numbers = #tpu.dot_dimension_numbers<[1], [0], [0], [1], [0, 0, 1, 1], [], []>} : vector<256x384xbf16>, vector<384x128xbf16>, vector<256x128xf32> -> vector<256x128xf32>
    %6 = arith.addf %2, %5 : vector<256x128xf32>
    %c0_8 = arith.constant 0 : index
    %c0_9 = arith.constant 0 : index
    %7 = vector.load %arg5[%c0_8, %c0_9] : memref<1x128xf32, #tpu.memory_space<vmem>>, vector<1x128xf32>
    %8 = vector.broadcast %7 : vector<1x128xf32> to vector<256x128xf32>
    %9 = arith.addf %6, %8 : vector<256x128xf32>
    %10 = arith.negf %9 : vector<256x128xf32>
    %11 = math.exp %10 : vector<256x128xf32>
    %cst_10 = arith.constant 1.000000e+00 : f32
    %12 = vector.broadcast %cst_10 : f32 to vector<256x128xf32>
    %13 = arith.addf %12, %11 : vector<256x128xf32>
    %14 = arith.divf %12, %13 : vector<256x128xf32>
    %15 = arith.mulf %9, %14 : vector<256x128xf32>
    %16 = arith.truncf %15 : vector<256x128xf32> to vector<256x128xbf16>
    %c0_11 = arith.constant 0 : index
    %c0_12 = arith.constant 0 : index
    %17 = vector.load %arg6[%c0_11, %c0_12] : memref<256x128xbf16, #tpu.memory_space<vmem>>, vector<256x128xbf16>
    tpu.vector_store %arg6[%c0_11, %c0_12], %16 {strides = array<i32>} : memref<256x128xbf16, #tpu.memory_space<vmem>>, vector<256x128xbf16>,
    return
  }
  func.func @transform_0(%arg0: i32) -> (i32, i32) {
    %c0_i32 = arith.constant 0 : i32
    %c0_i32_0 = arith.constant 0 : i32
    return %arg0, %c0_i32 : i32, i32
  }
  func.func @transform_1(%arg0: i32) -> (i32, i32) {
    %c0_i32 = arith.constant 0 : i32
    %c0_i32_0 = arith.constant 0 : i32
    return %arg0, %c0_i32 : i32, i32
  }
  func.func @transform_2(%arg0: i32) -> (i32, i32) {
    %c0_i32 = arith.constant 0 : i32
    %c0_i32_0 = arith.constant 0 : i32
    %c0_i32_1 = arith.constant 0 : i32
    return %c0_i32, %c0_i32_0 : i32, i32
  }
  func.func @transform_3(%arg0: i32) -> (i32, i32) {
    %c0_i32 = arith.constant 0 : i32
    %c0_i32_0 = arith.constant 0 : i32
    %c0_i32_1 = arith.constant 0 : i32
    return %c0_i32, %c0_i32_0 : i32, i32
  }
  func.func @transform_4(%arg0: i32) -> (i32, i32) {
    %c0_i32 = arith.constant 0 : i32
    %c0_i32_0 = arith.constant 0 : i32
    %c0_i32_1 = arith.constant 0 : i32
    return %c0_i32, %c0_i32_0 : i32, i32
  }
  func.func @transform_5(%arg0: i32) -> (i32, i32) {
    %c0_i32 = arith.constant 0 : i32
    %c0_i32_0 = arith.constant 0 : i32
    return %arg0, %c0_i32 : i32, i32
  }
}

module attributes {stable_mosaic.version = 11 : i64} {
  func.func @_conv_gemm_silu_kernel(%arg0: i32, %arg1: memref<128x768xbf16, #tpu.memory_space<vmem>>, %arg2: memref<128x384xbf16, #tpu.memory_space<vmem>>, %arg3: memref<768x128xbf16, #tpu.memory_space<vmem>>, %arg4: memref<384x128xbf16, #tpu.memory_space<vmem>>, %arg5: memref<1x128xf32, #tpu.memory_space<vmem>>, %arg6: memref<128x128xbf16, #tpu.memory_space<vmem>>) attributes {dimension_semantics = [#tpu.dimension_semantics<parallel>], iteration_bounds = array<i64: 1>, scalar_prefetch = 0 : i64, scratch_operands = 0 : i64, tpu.core_type = #tpu.core_type<tc>, window_params = [{transform_indices = @transform_0, window_bounds = array<i64: 128, 768>}, {transform_indices = @transform_1, window_bounds = array<i64: 128, 384>}, {pipeline_mode = #tpu.pipeline_mode<synchronous>, transform_indices = @transform_2, window_bounds = array<i64: 768, 128>}, {pipeline_mode = #tpu.pipeline_mode<synchronous>, transform_indices = @transform_3, window_bounds = array<i64: 384, 128>}, {pipeline_mode = #tpu.pipeline_mode<synchronous>, transform_indices = @transform_4, window_bounds = array<i64: 1, 128>}, {transform_indices = @transform_5, window_bounds = array<i64: 128, 128>}]} {
    %c0 = arith.constant 0 : index
    %c0_0 = arith.constant 0 : index
    %0 = vector.load %arg1[%c0, %c0_0] : memref<128x768xbf16, #tpu.memory_space<vmem>>, vector<128x768xbf16>
    %c0_1 = arith.constant 0 : index
    %c0_2 = arith.constant 0 : index
    %1 = vector.load %arg3[%c0_1, %c0_2] : memref<768x128xbf16, #tpu.memory_space<vmem>>, vector<768x128xbf16>
    %cst = arith.constant dense<0.000000e+00> : vector<128x128xf32>
    %2 = tpu.matmul %0, %1, %cst {dimension_numbers = #tpu.dot_dimension_numbers<[1], [0], [0], [1], [0, 0, 1, 1], [], []>} : vector<128x768xbf16>, vector<768x128xbf16>, vector<128x128xf32> -> vector<128x128xf32>
    %c0_3 = arith.constant 0 : index
    %c0_4 = arith.constant 0 : index
    %3 = vector.load %arg2[%c0_3, %c0_4] : memref<128x384xbf16, #tpu.memory_space<vmem>>, vector<128x384xbf16>
    %c0_5 = arith.constant 0 : index
    %c0_6 = arith.constant 0 : index
    %4 = vector.load %arg4[%c0_5, %c0_6] : memref<384x128xbf16, #tpu.memory_space<vmem>>, vector<384x128xbf16>
    %cst_7 = arith.constant dense<0.000000e+00> : vector<128x128xf32>
    %5 = tpu.matmul %3, %4, %cst_7 {dimension_numbers = #tpu.dot_dimension_numbers<[1], [0], [0], [1], [0, 0, 1, 1], [], []>} : vector<128x384xbf16>, vector<384x128xbf16>, vector<128x128xf32> -> vector<128x128xf32>
    %6 = arith.addf %2, %5 : vector<128x128xf32>
    %c0_8 = arith.constant 0 : index
    %c0_9 = arith.constant 0 : index
    %7 = vector.load %arg5[%c0_8, %c0_9] : memref<1x128xf32, #tpu.memory_space<vmem>>, vector<1x128xf32>
    %8 = vector.broadcast %7 : vector<1x128xf32> to vector<128x128xf32>
    %9 = arith.addf %6, %8 : vector<128x128xf32>
    %10 = arith.negf %9 : vector<128x128xf32>
    %11 = math.exp %10 : vector<128x128xf32>
    %cst_10 = arith.constant 1.000000e+00 : f32
    %12 = vector.broadcast %cst_10 : f32 to vector<128x128xf32>
    %13 = arith.addf %12, %11 : vector<128x128xf32>
    %14 = arith.divf %12, %13 : vector<128x128xf32>
    %15 = arith.mulf %9, %14 : vector<128x128xf32>
    %16 = arith.truncf %15 : vector<128x128xf32> to vector<128x128xbf16>
    %c0_11 = arith.constant 0 : index
    %c0_12 = arith.constant 0 : index
    %17 = vector.load %arg6[%c0_11, %c0_12] : memref<128x128xbf16, #tpu.memory_space<vmem>>, vector<128x128xbf16>
    tpu.vector_store %arg6[%c0_11, %c0_12], %16 {strides = array<i32>} : memref<128x128xbf16, #tpu.memory_space<vmem>>, vector<128x128xbf16>,
    return
  }
  func.func @transform_0(%arg0: i32) -> (i32, i32) {
    %c0_i32 = arith.constant 0 : i32
    %c0_i32_0 = arith.constant 0 : i32
    return %arg0, %c0_i32 : i32, i32
  }
  func.func @transform_1(%arg0: i32) -> (i32, i32) {
    %c0_i32 = arith.constant 0 : i32
    %c0_i32_0 = arith.constant 0 : i32
    return %arg0, %c0_i32 : i32, i32
  }
  func.func @transform_2(%arg0: i32) -> (i32, i32) {
    %c0_i32 = arith.constant 0 : i32
    %c0_i32_0 = arith.constant 0 : i32
    %c0_i32_1 = arith.constant 0 : i32
    return %c0_i32, %c0_i32_0 : i32, i32
  }
  func.func @transform_3(%arg0: i32) -> (i32, i32) {
    %c0_i32 = arith.constant 0 : i32
    %c0_i32_0 = arith.constant 0 : i32
    %c0_i32_1 = arith.constant 0 : i32
    return %c0_i32, %c0_i32_0 : i32, i32
  }
  func.func @transform_4(%arg0: i32) -> (i32, i32) {
    %c0_i32 = arith.constant 0 : i32
    %c0_i32_0 = arith.constant 0 : i32
    %c0_i32_1 = arith.constant 0 : i32
    return %c0_i32, %c0_i32_0 : i32, i32
  }
  func.func @transform_5(%arg0: i32) -> (i32, i32) {
    %c0_i32 = arith.constant 0 : i32
    %c0_i32_0 = arith.constant 0 : i32
    return %arg0, %c0_i32 : i32, i32
  }
}

module attributes {stable_mosaic.version = 11 : i64} {
  func.func @_conv_gemm_silu_kernel(%arg0: i32, %arg1: memref<32x768xbf16, #tpu.memory_space<vmem>>, %arg2: memref<32x384xbf16, #tpu.memory_space<vmem>>, %arg3: memref<768x128xbf16, #tpu.memory_space<vmem>>, %arg4: memref<384x128xbf16, #tpu.memory_space<vmem>>, %arg5: memref<1x128xf32, #tpu.memory_space<vmem>>, %arg6: memref<32x128xbf16, #tpu.memory_space<vmem>>) attributes {dimension_semantics = [#tpu.dimension_semantics<parallel>], iteration_bounds = array<i64: 1>, scalar_prefetch = 0 : i64, scratch_operands = 0 : i64, tpu.core_type = #tpu.core_type<tc>, window_params = [{transform_indices = @transform_0, window_bounds = array<i64: 32, 768>}, {transform_indices = @transform_1, window_bounds = array<i64: 32, 384>}, {pipeline_mode = #tpu.pipeline_mode<synchronous>, transform_indices = @transform_2, window_bounds = array<i64: 768, 128>}, {pipeline_mode = #tpu.pipeline_mode<synchronous>, transform_indices = @transform_3, window_bounds = array<i64: 384, 128>}, {pipeline_mode = #tpu.pipeline_mode<synchronous>, transform_indices = @transform_4, window_bounds = array<i64: 1, 128>}, {transform_indices = @transform_5, window_bounds = array<i64: 32, 128>}]} {
    %c0 = arith.constant 0 : index
    %c0_0 = arith.constant 0 : index
    %0 = vector.load %arg1[%c0, %c0_0] : memref<32x768xbf16, #tpu.memory_space<vmem>>, vector<32x768xbf16>
    %c0_1 = arith.constant 0 : index
    %c0_2 = arith.constant 0 : index
    %1 = vector.load %arg3[%c0_1, %c0_2] : memref<768x128xbf16, #tpu.memory_space<vmem>>, vector<768x128xbf16>
    %cst = arith.constant dense<0.000000e+00> : vector<32x128xf32>
    %2 = tpu.matmul %0, %1, %cst {dimension_numbers = #tpu.dot_dimension_numbers<[1], [0], [0], [1], [0, 0, 1, 1], [], []>} : vector<32x768xbf16>, vector<768x128xbf16>, vector<32x128xf32> -> vector<32x128xf32>
    %c0_3 = arith.constant 0 : index
    %c0_4 = arith.constant 0 : index
    %3 = vector.load %arg2[%c0_3, %c0_4] : memref<32x384xbf16, #tpu.memory_space<vmem>>, vector<32x384xbf16>
    %c0_5 = arith.constant 0 : index
    %c0_6 = arith.constant 0 : index
    %4 = vector.load %arg4[%c0_5, %c0_6] : memref<384x128xbf16, #tpu.memory_space<vmem>>, vector<384x128xbf16>
    %cst_7 = arith.constant dense<0.000000e+00> : vector<32x128xf32>
    %5 = tpu.matmul %3, %4, %cst_7 {dimension_numbers = #tpu.dot_dimension_numbers<[1], [0], [0], [1], [0, 0, 1, 1], [], []>} : vector<32x384xbf16>, vector<384x128xbf16>, vector<32x128xf32> -> vector<32x128xf32>
    %6 = arith.addf %2, %5 : vector<32x128xf32>
    %c0_8 = arith.constant 0 : index
    %c0_9 = arith.constant 0 : index
    %7 = vector.load %arg5[%c0_8, %c0_9] : memref<1x128xf32, #tpu.memory_space<vmem>>, vector<1x128xf32>
    %8 = vector.broadcast %7 : vector<1x128xf32> to vector<32x128xf32>
    %9 = arith.addf %6, %8 : vector<32x128xf32>
    %10 = arith.negf %9 : vector<32x128xf32>
    %11 = math.exp %10 : vector<32x128xf32>
    %cst_10 = arith.constant 1.000000e+00 : f32
    %12 = vector.broadcast %cst_10 : f32 to vector<32x128xf32>
    %13 = arith.addf %12, %11 : vector<32x128xf32>
    %14 = arith.divf %12, %13 : vector<32x128xf32>
    %15 = arith.mulf %9, %14 : vector<32x128xf32>
    %16 = arith.truncf %15 : vector<32x128xf32> to vector<32x128xbf16>
    %c0_11 = arith.constant 0 : index
    %c0_12 = arith.constant 0 : index
    %17 = vector.load %arg6[%c0_11, %c0_12] : memref<32x128xbf16, #tpu.memory_space<vmem>>, vector<32x128xbf16>
    tpu.vector_store %arg6[%c0_11, %c0_12], %16 {strides = array<i32>} : memref<32x128xbf16, #tpu.memory_space<vmem>>, vector<32x128xbf16>,
    return
  }
  func.func @transform_0(%arg0: i32) -> (i32, i32) {
    %c0_i32 = arith.constant 0 : i32
    %c0_i32_0 = arith.constant 0 : i32
    return %arg0, %c0_i32 : i32, i32
  }
  func.func @transform_1(%arg0: i32) -> (i32, i32) {
    %c0_i32 = arith.constant 0 : i32
    %c0_i32_0 = arith.constant 0 : i32
    return %arg0, %c0_i32 : i32, i32
  }
  func.func @transform_2(%arg0: i32) -> (i32, i32) {
    %c0_i32 = arith.constant 0 : i32
    %c0_i32_0 = arith.constant 0 : i32
    %c0_i32_1 = arith.constant 0 : i32
    return %c0_i32, %c0_i32_0 : i32, i32
  }
  func.func @transform_3(%arg0: i32) -> (i32, i32) {
    %c0_i32 = arith.constant 0 : i32
    %c0_i32_0 = arith.constant 0 : i32
    %c0_i32_1 = arith.constant 0 : i32
    return %c0_i32, %c0_i32_0 : i32, i32
  }
  func.func @transform_4(%arg0: i32) -> (i32, i32) {
    %c0_i32 = arith.constant 0 : i32
    %c0_i32_0 = arith.constant 0 : i32
    %c0_i32_1 = arith.constant 0 : i32
    return %c0_i32, %c0_i32_0 : i32, i32
  }
  func.func @transform_5(%arg0: i32) -> (i32, i32) {
    %c0_i32 = arith.constant 0 : i32
    %c0_i32_0 = arith.constant 0 : i32
    return %arg0, %c0_i32 : i32, i32
  }
}

module attributes {stable_mosaic.version = 11 : i64} {
  func.func @_conv_gemm_silu_kernel(%arg0: i32, %arg1: memref<8x768xbf16, #tpu.memory_space<vmem>>, %arg2: memref<8x384xbf16, #tpu.memory_space<vmem>>, %arg3: memref<768x128xbf16, #tpu.memory_space<vmem>>, %arg4: memref<384x128xbf16, #tpu.memory_space<vmem>>, %arg5: memref<1x128xf32, #tpu.memory_space<vmem>>, %arg6: memref<8x128xbf16, #tpu.memory_space<vmem>>) attributes {dimension_semantics = [#tpu.dimension_semantics<parallel>], iteration_bounds = array<i64: 1>, scalar_prefetch = 0 : i64, scratch_operands = 0 : i64, tpu.core_type = #tpu.core_type<tc>, window_params = [{transform_indices = @transform_0, window_bounds = array<i64: 8, 768>}, {transform_indices = @transform_1, window_bounds = array<i64: 8, 384>}, {pipeline_mode = #tpu.pipeline_mode<synchronous>, transform_indices = @transform_2, window_bounds = array<i64: 768, 128>}, {pipeline_mode = #tpu.pipeline_mode<synchronous>, transform_indices = @transform_3, window_bounds = array<i64: 384, 128>}, {pipeline_mode = #tpu.pipeline_mode<synchronous>, transform_indices = @transform_4, window_bounds = array<i64: 1, 128>}, {transform_indices = @transform_5, window_bounds = array<i64: 8, 128>}]} {
    %c0 = arith.constant 0 : index
    %c0_0 = arith.constant 0 : index
    %0 = vector.load %arg1[%c0, %c0_0] : memref<8x768xbf16, #tpu.memory_space<vmem>>, vector<8x768xbf16>
    %c0_1 = arith.constant 0 : index
    %c0_2 = arith.constant 0 : index
    %1 = vector.load %arg3[%c0_1, %c0_2] : memref<768x128xbf16, #tpu.memory_space<vmem>>, vector<768x128xbf16>
    %cst = arith.constant dense<0.000000e+00> : vector<8x128xf32>
    %2 = tpu.matmul %0, %1, %cst {dimension_numbers = #tpu.dot_dimension_numbers<[1], [0], [0], [1], [0, 0, 1, 1], [], []>} : vector<8x768xbf16>, vector<768x128xbf16>, vector<8x128xf32> -> vector<8x128xf32>
    %c0_3 = arith.constant 0 : index
    %c0_4 = arith.constant 0 : index
    %3 = vector.load %arg2[%c0_3, %c0_4] : memref<8x384xbf16, #tpu.memory_space<vmem>>, vector<8x384xbf16>
    %c0_5 = arith.constant 0 : index
    %c0_6 = arith.constant 0 : index
    %4 = vector.load %arg4[%c0_5, %c0_6] : memref<384x128xbf16, #tpu.memory_space<vmem>>, vector<384x128xbf16>
    %cst_7 = arith.constant dense<0.000000e+00> : vector<8x128xf32>
    %5 = tpu.matmul %3, %4, %cst_7 {dimension_numbers = #tpu.dot_dimension_numbers<[1], [0], [0], [1], [0, 0, 1, 1], [], []>} : vector<8x384xbf16>, vector<384x128xbf16>, vector<8x128xf32> -> vector<8x128xf32>
    %6 = arith.addf %2, %5 : vector<8x128xf32>
    %c0_8 = arith.constant 0 : index
    %c0_9 = arith.constant 0 : index
    %7 = vector.load %arg5[%c0_8, %c0_9] : memref<1x128xf32, #tpu.memory_space<vmem>>, vector<1x128xf32>
    %8 = vector.broadcast %7 : vector<1x128xf32> to vector<8x128xf32>
    %9 = arith.addf %6, %8 : vector<8x128xf32>
    %10 = arith.negf %9 : vector<8x128xf32>
    %11 = math.exp %10 : vector<8x128xf32>
    %cst_10 = arith.constant 1.000000e+00 : f32
    %12 = vector.broadcast %cst_10 : f32 to vector<8x128xf32>
    %13 = arith.addf %12, %11 : vector<8x128xf32>
    %14 = arith.divf %12, %13 : vector<8x128xf32>
    %15 = arith.mulf %9, %14 : vector<8x128xf32>
    %16 = arith.truncf %15 : vector<8x128xf32> to vector<8x128xbf16>
    %c0_11 = arith.constant 0 : index
    %c0_12 = arith.constant 0 : index
    %17 = vector.load %arg6[%c0_11, %c0_12] : memref<8x128xbf16, #tpu.memory_space<vmem>>, vector<8x128xbf16>
    tpu.vector_store %arg6[%c0_11, %c0_12], %16 {strides = array<i32>} : memref<8x128xbf16, #tpu.memory_space<vmem>>, vector<8x128xbf16>,
    return
  }
  func.func @transform_0(%arg0: i32) -> (i32, i32) {
    %c0_i32 = arith.constant 0 : i32
    %c0_i32_0 = arith.constant 0 : i32
    return %arg0, %c0_i32 : i32, i32
  }
  func.func @transform_1(%arg0: i32) -> (i32, i32) {
    %c0_i32 = arith.constant 0 : i32
    %c0_i32_0 = arith.constant 0 : i32
    return %arg0, %c0_i32 : i32, i32
  }
  func.func @transform_2(%arg0: i32) -> (i32, i32) {
    %c0_i32 = arith.constant 0 : i32
    %c0_i32_0 = arith.constant 0 : i32
    %c0_i32_1 = arith.constant 0 : i32
    return %c0_i32, %c0_i32_0 : i32, i32
  }
  func.func @transform_3(%arg0: i32) -> (i32, i32) {
    %c0_i32 = arith.constant 0 : i32
    %c0_i32_0 = arith.constant 0 : i32
    %c0_i32_1 = arith.constant 0 : i32
    return %c0_i32, %c0_i32_0 : i32, i32
  }
  func.func @transform_4(%arg0: i32) -> (i32, i32) {
    %c0_i32 = arith.constant 0 : i32
    %c0_i32_0 = arith.constant 0 : i32
    %c0_i32_1 = arith.constant 0 : i32
    return %c0_i32, %c0_i32_0 : i32, i32
  }
  func.func @transform_5(%arg0: i32) -> (i32, i32) {
    %c0_i32 = arith.constant 0 : i32
    %c0_i32_0 = arith.constant 0 : i32
    return %arg0, %c0_i32 : i32, i32
  }
}

</mosaic_0001>

<llo_original>
// kernel: backbone_2d_forward.5
$region0: #{backbone_2d_forward.5}
  #allocation0 [shape = 'u32[]', space=smem, size = 0x4, offset = 0x4, fixed_abs, tag = 'smem constant byte address 0x4 - core index']
  #allocation1 [shape = 'u32[144,128]{1,0:T(1,128)}', space=vmem, size = 0x12000, scoped, tag = 'internal scratch']
  %s0 = inlined_call_operand.vmem [shape: bf16[2048,48], index: 0, kind: input, shape index: {}]
  %s1 = inlined_call_operand.vmem [shape: bf16[2048,24], index: 1, kind: input, shape index: {}]
  %s2 = inlined_call_operand.vmem [shape: bf16[48,128], index: 2, kind: input, shape index: {}]
  %s3 = inlined_call_operand.vmem [shape: bf16[24,128], index: 3, kind: input, shape index: {}]
  %s4 = inlined_call_operand.vmem [shape: f32[1,128], index: 4, kind: input, shape index: {}]
  %s5 = inlined_call_operand.vmem [shape: bf16[2048,128], index: 5, kind: output, shape index: {}]
  %s6 = sld [smem:[#allocation0]]
  $region53: #{backbone_2d_forward.5} parent=0
    _
  %s8 = ssub.s32 1, %s6
  %s9 = scalar_select 0, %s8, %s6
  loop: start=0, step=1, limit=10
  $region2: #{backbone_2d_forward.5} parent=0 // loop_pre_header
    _
  $region3: #{backbone_2d_forward.5} parent=0 // loop_header
    %s11 = sphi 0, %s15
    %p12 = scmp.ge.s32.totalorder %s11, 10
    %s21 = sphi 0, %s23
    %s24 = sphi 0, %s21
    %s25 = sphi 0, %s24
    %s41 = sphi 0, %s25
    %s47 = sphi 0, %s49
    %s50 = sphi 0, %s47
    %s51 = sphi 0, %s50
    %s67 = sphi 0, %s51
    %s71 = sphi 0, %s71
    %s73 = sphi 0, %s71
    %s74 = sphi 0, %s73
    %s88 = sphi 0, %s74
    %s92 = sphi 0, %s92
    %s94 = sphi 0, %s92
    %s95 = sphi 0, %s94
    %s109 = sphi 0, %s95
    %s113 = sphi 0, %s113
    %s115 = sphi 0, %s113
    %s116 = sphi 0, %s115
    %s130 = sphi 0, %s116
    %s136 = sphi 0, %s138
    %s139 = sphi 0, %s136
    %s140 = sphi 0, %s139
    %s156 = sphi 0, %s140
  $region4: #{backbone_2d_forward.5} parent=0 // loop_header_branch
    %14 = sbr.rel (%p12) target = $region8
  $region5: #{backbone_2d_forward.5} parent=0 // loop_body
    %s16 = ssub.s32 %s11, 1
    %s17 = ssub.s32 %s11, 2
    %s18 = sadd.s32 %s11, 1
    %s19 = ssub.s32 %s11, %s18
    %p20 = scmp.eq.s32.totalorder %s19, 0
    %s22 = sadd.s32 %s21, 1
    %s23 = scalar_select %p20, %s21, %s22
    %p26 = pneg %p20
    %p27 = scmp.eq.s32.totalorder %s11, 7
    %p28 = por %p26, %p27
    %p29 = scmp.ne.s32.totalorder %s21, %s24
    %p30 = scmp.eq.s32.totalorder %s11, 0
    %p31 = por %p29, %p30
    %p32 = scmp.ne.s32.totalorder %s21, %s24
    %p33 = scmp.eq.s32.totalorder %s16, 7
    %p34 = por %p32, %p33
    %p35 = scmp.ne.s32.totalorder %s24, %s25
    %p36 = scmp.eq.s32.totalorder %s16, 0
    %p37 = por %p35, %p36
    %p38 = scmp.ne.s32.totalorder %s24, %s25
    %p39 = scmp.eq.s32.totalorder %s17, 7
    %p40 = por %p38, %p39
    %p42 = scmp.ne.s32.totalorder %s25, %s41
    %p43 = scmp.eq.s32.totalorder %s17, 0
    %p44 = por %p42, %p43
    %s45 = ssub.s32 %s11, %s18
    %p46 = scmp.eq.s32.totalorder %s45, 0
    %s48 = sadd.s32 %s47, 1
    %s49 = scalar_select %p46, %s47, %s48
    %p52 = pneg %p46
    %p53 = scmp.eq.s32.totalorder %s11, 7
    %p54 = por %p52, %p53
    %p55 = scmp.ne.s32.totalorder %s47, %s50
    %p56 = scmp.eq.s32.totalorder %s11, 0
    %p57 = por %p55, %p56
    %p58 = scmp.ne.s32.totalorder %s47, %s50
    %p59 = scmp.eq.s32.totalorder %s16, 7
    %p60 = por %p58, %p59
    %p61 = scmp.ne.s32.totalorder %s50, %s51
    %p62 = scmp.eq.s32.totalorder %s16, 0
    %p63 = por %p61, %p62
    %p64 = scmp.ne.s32.totalorder %s50, %s51
    %p65 = scmp.eq.s32.totalorder %s17, 7
    %p66 = por %p64, %p65
    %p68 = scmp.ne.s32.totalorder %s51, %s67
    %p69 = scmp.eq.s32.totalorder %s17, 0
    %p70 = por %p68, %p69
    %s72 = sadd.s32 %s71, 1
    %p75 = scmp.eq.s32.totalorder %s11, 7
    %p76 = scmp.ne.s32.totalorder %s71, %s73
    %p77 = scmp.eq.s32.totalorder %s11, 0
    %p78 = por %p76, %p77
    %p79 = scmp.ne.s32.totalorder %s71, %s73
    %p80 = scmp.eq.s32.totalorder %s16, 7
    %p81 = por %p79, %p80
    %p82 = scmp.ne.s32.totalorder %s73, %s74
    %p83 = scmp.eq.s32.totalorder %s16, 0
    %p84 = por %p82, %p83
    %p85 = scmp.ne.s32.totalorder %s73, %s74
    %p86 = scmp.eq.s32.totalorder %s17, 7
    %p87 = por %p85, %p86
    %p89 = scmp.ne.s32.totalorder %s74, %s88
    %p90 = scmp.eq.s32.totalorder %s17, 0
    %p91 = por %p89, %p90
    %s93 = sadd.s32 %s92, 1
    %p96 = scmp.eq.s32.totalorder %s11, 7
    %p97 = scmp.ne.s32.totalorder %s92, %s94
    %p98 = scmp.eq.s32.totalorder %s11, 0
    %p99 = por %p97, %p98
    %p100 = scmp.ne.s32.totalorder %s92, %s94
    %p101 = scmp.eq.s32.totalorder %s16, 7
    %p102 = por %p100, %p101
    %p103 = scmp.ne.s32.totalorder %s94, %s95
    %p104 = scmp.eq.s32.totalorder %s16, 0
    %p105 = por %p103, %p104
    %p106 = scmp.ne.s32.totalorder %s94, %s95
    %p107 = scmp.eq.s32.totalorder %s17, 7
    %p108 = por %p106, %p107
    %p110 = scmp.ne.s32.totalorder %s95, %s109
    %p111 = scmp.eq.s32.totalorder %s17, 0
    %p112 = por %p110, %p111
    %s114 = sadd.s32 %s113, 1
    %p117 = scmp.eq.s32.totalorder %s11, 7
    %p118 = scmp.ne.s32.totalorder %s113, %s115
    %p119 = scmp.eq.s32.totalorder %s11, 0
    %p120 = por %p118, %p119
    %p121 = scmp.ne.s32.totalorder %s113, %s115
    %p122 = scmp.eq.s32.totalorder %s16, 7
    %p123 = por %p121, %p122
    %p124 = scmp.ne.s32.totalorder %s115, %s116
    %p125 = scmp.eq.s32.totalorder %s16, 0
    %p126 = por %p124, %p125
    %p127 = scmp.ne.s32.totalorder %s115, %s116
    %p128 = scmp.eq.s32.totalorder %s17, 7
    %p129 = por %p127, %p128
    %p131 = scmp.ne.s32.totalorder %s116, %s130
    %p132 = scmp.eq.s32.totalorder %s17, 0
    %p133 = por %p131, %p132
    %s134 = ssub.s32 %s11, %s18
    %p135 = scmp.eq.s32.totalorder %s134, 0
    %s137 = sadd.s32 %s136, 1
    %s138 = scalar_select %p135, %s136, %s137
    %p141 = pneg %p135
    %p142 = scmp.eq.s32.totalorder %s11, 7
    %p143 = por %p141, %p142
    %p144 = scmp.ne.s32.totalorder %s136, %s139
    %p145 = scmp.eq.s32.totalorder %s11, 0
    %p146 = por %p144, %p145
    %p147 = scmp.ne.s32.totalorder %s136, %s139
    %p148 = scmp.eq.s32.totalorder %s16, 7
    %p149 = por %p147, %p148
    %p150 = scmp.ne.s32.totalorder %s139, %s140
    %p151 = scmp.eq.s32.totalorder %s16, 0
    %p152 = por %p150, %p151
    %p153 = scmp.ne.s32.totalorder %s139, %s140
    %p154 = scmp.eq.s32.totalorder %s17, 7
    %p155 = por %p153, %p154
    %p157 = scmp.ne.s32.totalorder %s140, %s156
    %p158 = scmp.eq.s32.totalorder %s17, 0
    %p159 = por %p157, %p158
    %p160 = scmp.le.s32.totalorder 1, %s11
    %p161 = scmp.lt.s32.totalorder %s11, 9
    %p162 = pnand %p160, %p161
    %p163 = pneg %p162
    // Predicated region
    $region9: #{backbone_2d_forward.5} parent=5 // pred_check
      _
    $region10: #{backbone_2d_forward.5} parent=5 // pred_check_branch
      %165 = sbr.rel (%p162) target = $region12
    $region11: #{backbone_2d_forward.5} parent=5 // pred_region
      %s166 = ssub.s32 %s11, 1
      // Predicated region
      $region13: #{backbone_2d_forward.5} parent=11 // pred_check
        %p167 = pneg %p84
      $region14: #{backbone_2d_forward.5} parent=11 // pred_check_branch
        %169 = sbr.rel (%p167) target = $region16
      $region15: #{backbone_2d_forward.5} parent=11 // pred_region
        _
      $region16: #{backbone_2d_forward.5} parent=11 // pred_fallthru
        _
      // Predicated region
      $region17: #{backbone_2d_forward.5} parent=11 // pred_check
        %p170 = pneg %p105
      $region18: #{backbone_2d_forward.5} parent=11 // pred_check_branch
        %172 = sbr.rel (%p170) target = $region20
      $region19: #{backbone_2d_forward.5} parent=11 // pred_region
        _
      $region20: #{backbone_2d_forward.5} parent=11 // pred_fallthru
        _
      // Predicated region
      $region21: #{backbone_2d_forward.5} parent=11 // pred_check
        %p173 = pneg %p126
      $region22: #{backbone_2d_forward.5} parent=11 // pred_check_branch
        %175 = sbr.rel (%p173) target = $region24
      $region23: #{backbone_2d_forward.5} parent=11 // pred_region
        _
      $region24: #{backbone_2d_forward.5} parent=11 // pred_fallthru
        _
    $region12: #{backbone_2d_forward.5} parent=5 // pred_fallthru
      _
    %p176 = scmp.lt.s32.totalorder %s11, 8
    // Predicated region
    $region25: #{backbone_2d_forward.5} parent=5 // pred_check
      %p177 = pneg %p176
    $region26: #{backbone_2d_forward.5} parent=5 // pred_check_branch
      %179 = sbr.rel (%p177) target = $region28
    $region27: #{backbone_2d_forward.5} parent=5 // pred_region
      // Predicated region
      $region29: #{backbone_2d_forward.5} parent=27 // pred_check
        %p180 = pneg %p31
      $region30: #{backbone_2d_forward.5} parent=27 // pred_check_branch
        %182 = sbr.rel (%p180) target = $region32
      $region31: #{backbone_2d_forward.5} parent=27 // pred_region
        %s183 = smul.u32 32, %s11
        %p184 = scmp.lt.s32.totalorder %s183, 255
        %s185 = scalar_select %p184, %s183, 255
        %s186 = smul.addr %s185, 4
        %s187 = scalar_lea.vmem %s0, %s186
        %s188 = smul.u32 32, %s11
      $region32: #{backbone_2d_forward.5} parent=27 // pred_fallthru
        _
      // Predicated region
      $region33: #{backbone_2d_forward.5} parent=27 // pred_check
        %p189 = pneg %p57
      $region34: #{backbone_2d_forward.5} parent=27 // pred_check_branch
        %191 = sbr.rel (%p189) target = $region36
      $region35: #{backbone_2d_forward.5} parent=27 // pred_region
        %s192 = smul.u32 32, %s11
        %p193 = scmp.lt.s32.totalorder %s192, 255
        %s194 = scalar_select %p193, %s192, 255
        %s195 = smul.addr %s194, 4
        %s196 = scalar_lea.vmem %s1, %s195
        %s197 = smul.u32 32, %s11
      $region36: #{backbone_2d_forward.5} parent=27 // pred_fallthru
        _
    $region28: #{backbone_2d_forward.5} parent=5 // pred_fallthru
      _
    %p198 = scmp.le.s32.totalorder 1, %s11
    %p199 = scmp.lt.s32.totalorder %s11, 9
    %p200 = pnand %p198, %p199
    %p201 = pneg %p200
    // Predicated region
    $region37: #{backbone_2d_forward.5} parent=5 // pred_check
      _
    $region38: #{backbone_2d_forward.5} parent=5 // pred_check_branch
      %203 = sbr.rel (%p200) target = $region40
    $region39: #{backbone_2d_forward.5} parent=5 // pred_region
      %s204 = ssub.s32 %s11, 1
      %s205 = smul.u32 32, %s16
      %p206 = scmp.lt.s32.totalorder %s205, 255
      %s207 = scalar_select %p206, %s205, 255
      %s208 = smul.addr %s207, 4
      %s209 = scalar_lea.vmem %s0, %s208
      %p210 = pneg %p37
      %p211 = pneg %p34
      %s212 = smul.u32 32, %s16
      %p213 = scmp.lt.s32.totalorder %s212, 255
      %s214 = scalar_select %p213, %s212, 255
      %s215 = smul.addr %s214, 4
      %s216 = scalar_lea.vmem %s1, %s215
      %p217 = pneg %p63
      %p218 = pneg %p60
      %p219 = pneg %p84
      %p220 = pneg %p81
      %p221 = pneg %p105
      %p222 = pneg %p102
      %p223 = pneg %p126
      %p224 = pneg %p123
      %p225 = pneg %p152
      %p226 = pneg %p149
      %s227 = smul.u32 32, %s16
      %p228 = scmp.lt.s32.totalorder %s227, 255
      %s229 = scalar_select %p228, %s227, 255
      %s230 = smul.addr %s229, 4
      %s231 = scalar_lea.vmem %s5, %s230
      %s232 = smul.u32 32, %s16
      %p233 = scmp.lt.s32.totalorder %s232, 255
      %s234 = scalar_select %p233, %s232, 255
      %s235 = smul.addr %s234, 4
      %s236 = scalar_lea.vmem %s0, %s235
      %s237 = smul.u32 32, %s16
      %s238 = smul.u32 32, %s16
      %p239 = scmp.lt.s32.totalorder %s238, 255
      %s240 = scalar_select %p239, %s238, 255
      %s241 = smul.addr %s240, 4
      %s242 = scalar_lea.vmem %s1, %s241
      %s243 = smul.u32 32, %s16
      %s244 = smul.u32 32, %s16
      %p245 = scmp.lt.s32.totalorder %s244, 255
      %s246 = scalar_select %p245, %s244, 255
      %s247 = smul.addr %s246, 4
      %s248 = scalar_lea.vmem %s5, %s247
      %s249 = smul.u32 32, %s16
      %v251 = vld [vmem:[%s236] sm:$0xf]
      %v252 = vld [vmem:[%s236 + $0x4] sm:$0xf]
      %v253 = vld [vmem:[%s236 + $0x8] sm:$0xf]
      %v254 = vld [vmem:[%s236 + $0xc] sm:$0xf]
      %v255 = vld [vmem:[%s236 + $0x10] sm:$0xf]
      %v256 = vld [vmem:[%s236 + $0x14] sm:$0xf]
      %v257 = vld [vmem:[%s236 + $0x18] sm:$0xf]
      %v258 = vld [vmem:[%s236 + $0x1c] sm:$0xf]
      %v259 = vld [vmem:[%s236 + $0x20] sm:$0xf]
      %v260 = vld [vmem:[%s236 + $0x24] sm:$0xf]
      %v261 = vld [vmem:[%s236 + $0x28] sm:$0xf]
      %v262 = vld [vmem:[%s236 + $0x2c] sm:$0xf]
      %v263 = vld [vmem:[%s236 + $0x30] sm:$0xf]
      %v264 = vld [vmem:[%s236 + $0x34] sm:$0xf]
      %v265 = vld [vmem:[%s236 + $0x38] sm:$0xf]
      %v266 = vld [vmem:[%s236 + $0x3c] sm:$0xf]
      %v267 = vld [vmem:[%s236 + $0x40] sm:$0xf]
      %v268 = vld [vmem:[%s236 + $0x44] sm:$0xf]
      %v269 = vld [vmem:[%s236 + $0x48] sm:$0xf]
      %v270 = vld [vmem:[%s236 + $0x4c] sm:$0xf]
      %v271 = vld [vmem:[%s236 + $0x50] sm:$0xf]
      %v272 = vld [vmem:[%s236 + $0x54] sm:$0xf]
      %v273 = vld [vmem:[%s236 + $0x58] sm:$0xf]
      %v274 = vld [vmem:[%s236 + $0x5c] sm:$0xf]
      %v275 = vld [vmem:[%s236 + $0x60] sm:$0xf]
      %v276 = vld [vmem:[%s236 + $0x64] sm:$0xf]
      %v277 = vld [vmem:[%s236 + $0x68] sm:$0xf]
      %v278 = vld [vmem:[%s236 + $0x6c] sm:$0xf]
      %v279 = vld [vmem:[%s236 + $0x70] sm:$0xf]
      %v280 = vld [vmem:[%s236 + $0x74] sm:$0xf]
      %v281 = vld [vmem:[%s236 + $0x78] sm:$0xf]
      %v282 = vld [vmem:[%s236 + $0x7c] sm:$0xf]
      %v283 = vld [vmem:[%s2] sm:$0xf]
      %v284 = vld [vmem:[%s2 + $0x4] sm:$0xf]
      %v285 = vld [vmem:[%s2 + $0x8] sm:$0xf]
      %v286 = vld [vmem:[%s2 + $0xc] sm:$0xf]
      %v287 = vld [vmem:[%s2 + $0x10] sm:$0xf]
      %v288 = vld [vmem:[%s2 + $0x14] sm:$0xf]
      %v289 = vld [vmem:[%s242] sm:$0xf]
      %v290 = vld [vmem:[%s242 + $0x4] sm:$0xf]
      %v291 = vld [vmem:[%s242 + $0x8] sm:$0xf]
      %v292 = vld [vmem:[%s242 + $0xc] sm:$0xf]
      %v293 = vld [vmem:[%s242 + $0x10] sm:$0xf]
      %v294 = vld [vmem:[%s242 + $0x14] sm:$0xf]
      %v295 = vld [vmem:[%s242 + $0x18] sm:$0xf]
      %v296 = vld [vmem:[%s242 + $0x1c] sm:$0xf]
      %v297 = vld [vmem:[%s242 + $0x20] sm:$0xf]
      %v298 = vld [vmem:[%s242 + $0x24] sm:$0xf]
      %v299 = vld [vmem:[%s242 + $0x28] sm:$0xf]
      %v300 = vld [vmem:[%s242 + $0x2c] sm:$0xf]
      %v301 = vld [vmem:[%s242 + $0x30] sm:$0xf]
      %v302 = vld [vmem:[%s242 + $0x34] sm:$0xf]
      %v303 = vld [vmem:[%s242 + $0x38] sm:$0xf]
      %v304 = vld [vmem:[%s242 + $0x3c] sm:$0xf]
      %v305 = vld [vmem:[%s242 + $0x40] sm:$0xf]
      %v306 = vld [vmem:[%s242 + $0x44] sm:$0xf]
      %v307 = vld [vmem:[%s242 + $0x48] sm:$0xf]
      %v308 = vld [vmem:[%s242 + $0x4c] sm:$0xf]
      %v309 = vld [vmem:[%s242 + $0x50] sm:$0xf]
      %v310 = vld [vmem:[%s242 + $0x54] sm:$0xf]
      %v311 = vld [vmem:[%s242 + $0x58] sm:$0xf]
      %v312 = vld [vmem:[%s242 + $0x5c] sm:$0xf]
      %v313 = vld [vmem:[%s242 + $0x60] sm:$0xf]
      %v314 = vld [vmem:[%s242 + $0x64] sm:$0xf]
      %v315 = vld [vmem:[%s242 + $0x68] sm:$0xf]
      %v316 = vld [vmem:[%s242 + $0x6c] sm:$0xf]
      %v317 = vld [vmem:[%s242 + $0x70] sm:$0xf]
      %v318 = vld [vmem:[%s242 + $0x74] sm:$0xf]
      %v319 = vld [vmem:[%s242 + $0x78] sm:$0xf]
      %v320 = vld [vmem:[%s242 + $0x7c] sm:$0xf]
      %v321 = vld [vmem:[%s3] sm:$0xf]
      %v322 = vld [vmem:[%s3 + $0x4] sm:$0xf]
      %v323 = vld [vmem:[%s3 + $0x8] sm:$0xf]
      %v356 = vunpack.c.l.b16 %v289
      %v357 = vunpack.c.l.b16 %v290
      %v358 = vunpack.c.l.b16 %v291
      %v359 = vunpack.c.l.b16 %v292
      %v360 = vunpack.c.l.b16 %v293
      %v361 = vunpack.c.l.b16 %v294
      %v362 = vunpack.c.l.b16 %v295
      %v363 = vunpack.c.l.b16 %v296
      %v364 = vunpack.c.l.b16 %v297
      %v365 = vunpack.c.l.b16 %v298
      %v366 = vunpack.c.l.b16 %v299
      %v367 = vunpack.c.l.b16 %v300
      %v368 = vunpack.c.l.b16 %v301
      %v369 = vunpack.c.l.b16 %v302
      %v370 = vunpack.c.l.b16 %v303
      %v371 = vunpack.c.l.b16 %v304
      %v372 = vunpack.c.l.b16 %v305
      %v373 = vunpack.c.l.b16 %v306
      %v374 = vunpack.c.l.b16 %v307
      %v375 = vunpack.c.l.b16 %v308
      %v376 = vunpack.c.l.b16 %v309
      %v377 = vunpack.c.l.b16 %v310
      %v378 = vunpack.c.l.b16 %v311
      %v379 = vunpack.c.l.b16 %v312
      %v380 = vunpack.c.l.b16 %v313
      %v381 = vunpack.c.l.b16 %v314
      %v382 = vunpack.c.l.b16 %v315
      %v383 = vunpack.c.l.b16 %v316
      %v384 = vunpack.c.l.b16 %v317
      %v385 = vunpack.c.l.b16 %v318
      %v386 = vunpack.c.l.b16 %v319
      %v387 = vunpack.c.l.b16 %v320
      %v388 = vpack.c.b16 %v357, %v356
      %v389 = vpack.c.b16 %v359, %v358
      %v390 = vpack.c.b16 %v361, %v360
      %v391 = vpack.c.b16 %v363, %v362
      %v392 = vpack.c.b16 %v365, %v364
      %v393 = vpack.c.b16 %v367, %v366
      %v394 = vpack.c.b16 %v369, %v368
      %v395 = vpack.c.b16 %v371, %v370
      %v396 = vpack.c.b16 %v373, %v372
      %v397 = vpack.c.b16 %v375, %v374
      %v398 = vpack.c.b16 %v377, %v376
      %v399 = vpack.c.b16 %v379, %v378
      %v400 = vpack.c.b16 %v381, %v380
      %v401 = vpack.c.b16 %v383, %v382
      %v402 = vpack.c.b16 %v385, %v384
      %v403 = vpack.c.b16 %v387, %v386
      %v407 = vunpack.c.l.b16 %v321
      %v408 = vunpack.c.l.b16 %v322
      %v409 = vunpack.c.l.b16 %v323
      %v410 = vpack.c.b16 %v408, %v407
      %v411 = vpack.c.b16 %v409, %v409
      %vm413 = vcmask 195584
      %v415 = vsel %vm413, %v388, 0
      %v418 = vsel %vm413, %v389, 0
      %v421 = vsel %vm413, %v390, 0
      %v424 = vsel %vm413, %v391, 0
      %v427 = vsel %vm413, %v392, 0
      %v430 = vsel %vm413, %v393, 0
      %v433 = vsel %vm413, %v394, 0
      %v436 = vsel %vm413, %v395, 0
      %v439 = vsel %vm413, %v396, 0
      %v442 = vsel %vm413, %v397, 0
      %v445 = vsel %vm413, %v398, 0
      %v448 = vsel %vm413, %v399, 0
      %v451 = vsel %vm413, %v400, 0
      %v454 = vsel %vm413, %v401, 0
      %v457 = vsel %vm413, %v402, 0
      %v460 = vsel %vm413, %v403, 0
      %vm462 = vcmask 1043456
      %v464 = vsel %vm462, %v411, 0
      %466 = vmatprep.subr.bf16.mxu0 0
      %467 = vmatpush1.bf16.msra.mxu0 %v410
      %468 = vmatprep.subr.bf16.mxu0 0
      %469 = vmatpush1.bf16.msra.mxu0 %v464
      %470 = vmatprep.subr.bf16.mxu0 0
      %471 = vmatpush1.bf16.msra.mxu0 0
      %472 = vmatprep.subr.bf16.mxu0 0
      %473 = vmatpush1.bf16.msra.mxu0 0
      %474 = vmatprep.subr.bf16.mxu0 0
      %475 = vmatpush1.bf16.msra.mxu0 0
      %476 = vmatprep.subr.bf16.mxu0 0
      %477 = vmatpush1.bf16.msra.mxu0 0
      %478 = vmatprep.subr.bf16.mxu0 0
      %479 = vmatpush1.bf16.msra.mxu0 0
      %480 = vmatprep.subr.bf16.mxu0 0
      %481 = vmatpush1.bf16.msra.mxu0 0
      %482 = vmatprep.subr.bf16.mxu0 0
      %483 = vmatpush1.bf16.msra.mxu0 0
      %484 = vmatprep.subr.bf16.mxu0 0
      %485 = vmatpush1.bf16.msra.mxu0 0
      %486 = vmatprep.subr.bf16.mxu0 0
      %487 = vmatpush1.bf16.msra.mxu0 0
      %488 = vmatprep.subr.bf16.mxu0 0
      %489 = vmatpush1.bf16.msra.mxu0 0
      %490 = vmatprep.subr.bf16.mxu0 0
      %491 = vmatpush1.bf16.msra.mxu0 0
      %492 = vmatprep.subr.bf16.mxu0 0
      %493 = vmatpush1.bf16.msra.mxu0 0
      %494 = vmatprep.subr.bf16.mxu0 0
      %495 = vmatpush1.bf16.msra.mxu0 0
      %496 = vmatprep.subr.bf16.mxu0 0
      %497 = vmatpush1.bf16.msra.mxu0 0
      %498 = vmatprep.mubr.bf16.mxu0 0
      %499 = vmatmul.mubr.bf16.gmra.mrb[0].mxu0 %v415
      %v500 = vpop.f32.mrb[0].mxu0
      %v501 = vadd.f32 0.0, %v500
      %v502 = vpop.f32.mrb[0].mxu0
      %v503 = vpop.f32.mrb[0].mxu0
      %v504 = vadd.f32 0.0, %v503
      %v505 = vpop.f32.mrb[0].mxu0
      %506 = vmatprep.mubr.bf16.mxu0 0
      %507 = vmatmul.mubr.bf16.gmra.mrb[0].mxu0 %v418
      %v508 = vpop.f32.mrb[0].mxu0
      %v509 = vadd.f32 0.0, %v508
      %v510 = vpop.f32.mrb[0].mxu0
      %v511 = vpop.f32.mrb[0].mxu0
      %v512 = vadd.f32 0.0, %v511
      %v513 = vpop.f32.mrb[0].mxu0
      %514 = vmatprep.mubr.bf16.mxu0 0
      %515 = vmatmul.mubr.bf16.gmra.mrb[0].mxu0 %v421
      %v516 = vpop.f32.mrb[0].mxu0
      %v517 = vadd.f32 0.0, %v516
      %v518 = vpop.f32.mrb[0].mxu0
      %v519 = vpop.f32.mrb[0].mxu0
      %v520 = vadd.f32 0.0, %v519
      %v521 = vpop.f32.mrb[0].mxu0
      %522 = vmatprep.mubr.bf16.mxu0 0
      %523 = vmatmul.mubr.bf16.gmra.mrb[0].mxu0 %v424
      %v524 = vpop.f32.mrb[0].mxu0
      %v525 = vadd.f32 0.0, %v524
      %v526 = vpop.f32.mrb[0].mxu0
      %v527 = vpop.f32.mrb[0].mxu0
      %v528 = vadd.f32 0.0, %v527
      %v529 = vpop.f32.mrb[0].mxu0
      %530 = vmatprep.mubr.bf16.mxu0 0
      %531 = vmatmul.mubr.bf16.gmra.mrb[0].mxu0 %v427
      %v532 = vpop.f32.mrb[0].mxu0
      %v533 = vadd.f32 0.0, %v532
      %v534 = vpop.f32.mrb[0].mxu0
      %v535 = vpop.f32.mrb[0].mxu0
      %v536 = vadd.f32 0.0, %v535
      %v537 = vpop.f32.mrb[0].mxu0
      %538 = vmatprep.mubr.bf16.mxu0 0
      %539 = vmatmul.mubr.bf16.gmra.mrb[0].mxu0 %v430
      %v540 = vpop.f32.mrb[0].mxu0
      %v541 = vadd.f32 0.0, %v540
      %v542 = vpop.f32.mrb[0].mxu0
      %v543 = vpop.f32.mrb[0].mxu0
      %v544 = vadd.f32 0.0, %v543
      %v545 = vpop.f32.mrb[0].mxu0
      %546 = vmatprep.mubr.bf16.mxu0 0
      %547 = vmatmul.mubr.bf16.gmra.mrb[0].mxu0 %v433
      %v548 = vpop.f32.mrb[0].mxu0
      %v549 = vadd.f32 0.0, %v548
      %v550 = vpop.f32.mrb[0].mxu0
      %v551 = vpop.f32.mrb[0].mxu0
      %v552 = vadd.f32 0.0, %v551
      %v553 = vpop.f32.mrb[0].mxu0
      %554 = vmatprep.mubr.bf16.mxu0 0
      %555 = vmatmul.mubr.bf16.gmra.mrb[0].mxu0 %v436
      %v556 = vpop.f32.mrb[0].mxu0
      %v557 = vadd.f32 0.0, %v556
      %v558 = vpop.f32.mrb[0].mxu0
      %v559 = vpop.f32.mrb[0].mxu0
      %v560 = vadd.f32 0.0, %v559
      %v561 = vpop.f32.mrb[0].mxu0
      %562 = vmatprep.mubr.bf16.mxu0 0
      %563 = vmatmul.mubr.bf16.gmra.mrb[0].mxu0 %v439
      %v564 = vpop.f32.mrb[0].mxu0
      %v565 = vadd.f32 0.0, %v564
      %v566 = vpop.f32.mrb[0].mxu0
      %v567 = vpop.f32.mrb[0].mxu0
      %v568 = vadd.f32 0.0, %v567
      %v569 = vpop.f32.mrb[0].mxu0
      %570 = vmatprep.mubr.bf16.mxu0 0
      %571 = vmatmul.mubr.bf16.gmra.mrb[0].mxu0 %v442
      %v572 = vpop.f32.mrb[0].mxu0
      %v573 = vadd.f32 0.0, %v572
      %v574 = vpop.f32.mrb[0].mxu0
      %v575 = vpop.f32.mrb[0].mxu0
      %v576 = vadd.f32 0.0, %v575
      %v577 = vpop.f32.mrb[0].mxu0
      %578 = vmatprep.mubr.bf16.mxu0 0
      %579 = vmatmul.mubr.bf16.gmra.mrb[0].mxu0 %v445
      %v580 = vpop.f32.mrb[0].mxu0
      %v581 = vadd.f32 0.0, %v580
      %v582 = vpop.f32.mrb[0].mxu0
      %v583 = vpop.f32.mrb[0].mxu0
      %v584 = vadd.f32 0.0, %v583
      %v585 = vpop.f32.mrb[0].mxu0
      %586 = vmatprep.mubr.bf16.mxu0 0
      %587 = vmatmul.mubr.bf16.gmra.mrb[0].mxu0 %v448
      %v588 = vpop.f32.mrb[0].mxu0
      %v589 = vadd.f32 0.0, %v588
      %v590 = vpop.f32.mrb[0].mxu0
      %v591 = vpop.f32.mrb[0].mxu0
      %v592 = vadd.f32 0.0, %v591
      %v593 = vpop.f32.mrb[0].mxu0
      %594 = vmatprep.mubr.bf16.mxu0 0
      %595 = vmatmul.mubr.bf16.gmra.mrb[0].mxu0 %v451
      %v596 = vpop.f32.mrb[0].mxu0
      %v597 = vadd.f32 0.0, %v596
      %v598 = vpop.f32.mrb[0].mxu0
      %v599 = vpop.f32.mrb[0].mxu0
      %v600 = vadd.f32 0.0, %v599
      %v601 = vpop.f32.mrb[0].mxu0
      %602 = vmatprep.mubr.bf16.mxu0 0
      %603 = vmatmul.mubr.bf16.gmra.mrb[0].mxu0 %v454
      %v604 = vpop.f32.mrb[0].mxu0
      %v605 = vadd.f32 0.0, %v604
      %v606 = vpop.f32.mrb[0].mxu0
      %v607 = vpop.f32.mrb[0].mxu0
      %v608 = vadd.f32 0.0, %v607
      %v609 = vpop.f32.mrb[0].mxu0
      %610 = vmatprep.mubr.bf16.mxu0 0
      %611 = vmatmul.mubr.bf16.gmra.mrb[0].mxu0 %v457
      %v612 = vpop.f32.mrb[0].mxu0
      %v613 = vadd.f32 0.0, %v612
      %v614 = vpop.f32.mrb[0].mxu0
      %v615 = vpop.f32.mrb[0].mxu0
      %v616 = vadd.f32 0.0, %v615
      %v617 = vpop.f32.mrb[0].mxu0
      %618 = vmatprep.mubr.bf16.mxu0 0
      %619 = vmatmul.mubr.bf16.gmra.mrb[0].mxu0 %v460
      %v620 = vpop.f32.mrb[0].mxu0
      %v621 = vadd.f32 0.0, %v620
      %v622 = vpop.f32.mrb[0].mxu0
      %v623 = vpop.f32.mrb[0].mxu0
      %v624 = vadd.f32 0.0, %v623
      %v625 = vpop.f32.mrb[0].mxu0
      %626 = vdwg.mxu0
      %v659 = vunpack.c.l.b16 %v251
      %v660 = vunpack.c.l.b16 %v252
      %v661 = vunpack.c.l.b16 %v253
      %v662 = vunpack.c.l.b16 %v254
      %v663 = vunpack.c.l.b16 %v255
      %v664 = vunpack.c.l.b16 %v256
      %v665 = vunpack.c.l.b16 %v257
      %v666 = vunpack.c.l.b16 %v258
      %v667 = vunpack.c.l.b16 %v259
      %v668 = vunpack.c.l.b16 %v260
      %v669 = vunpack.c.l.b16 %v261
      %v670 = vunpack.c.l.b16 %v262
      %v671 = vunpack.c.l.b16 %v263
      %v672 = vunpack.c.l.b16 %v264
      %v673 = vunpack.c.l.b16 %v265
      %v674 = vunpack.c.l.b16 %v266
      %v675 = vunpack.c.l.b16 %v267
      %v676 = vunpack.c.l.b16 %v268
      %v677 = vunpack.c.l.b16 %v269
      %v678 = vunpack.c.l.b16 %v270
      %v679 = vunpack.c.l.b16 %v271
      %v680 = vunpack.c.l.b16 %v272
      %v681 = vunpack.c.l.b16 %v273
      %v682 = vunpack.c.l.b16 %v274
      %v683 = vunpack.c.l.b16 %v275
      %v684 = vunpack.c.l.b16 %v276
      %v685 = vunpack.c.l.b16 %v277
      %v686 = vunpack.c.l.b16 %v278
      %v687 = vunpack.c.l.b16 %v279
      %v688 = vunpack.c.l.b16 %v280
      %v689 = vunpack.c.l.b16 %v281
      %v690 = vunpack.c.l.b16 %v282
      %v691 = vpack.c.b16 %v660, %v659
      %v692 = vpack.c.b16 %v662, %v661
      %v693 = vpack.c.b16 %v664, %v663
      %v694 = vpack.c.b16 %v666, %v665
      %v695 = vpack.c.b16 %v668, %v667
      %v696 = vpack.c.b16 %v670, %v669
      %v697 = vpack.c.b16 %v672, %v671
      %v698 = vpack.c.b16 %v674, %v673
      %v699 = vpack.c.b16 %v676, %v675
      %v700 = vpack.c.b16 %v678, %v677
      %v701 = vpack.c.b16 %v680, %v679
      %v702 = vpack.c.b16 %v682, %v681
      %v703 = vpack.c.b16 %v684, %v683
      %v704 = vpack.c.b16 %v686, %v685
      %v705 = vpack.c.b16 %v688, %v687
      %v706 = vpack.c.b16 %v690, %v689
      %v713 = vunpack.c.l.b16 %v283
      %v714 = vunpack.c.l.b16 %v284
      %v715 = vunpack.c.l.b16 %v285
      %v716 = vunpack.c.l.b16 %v286
      %v717 = vunpack.c.l.b16 %v287
      %v718 = vunpack.c.l.b16 %v288
      %v719 = vpack.c.b16 %v714, %v713
      %v720 = vpack.c.b16 %v716, %v715
      %v721 = vpack.c.b16 %v718, %v717
      %vm725 = vcmask 392192
      %v727 = vsel %vm725, %v691, 0
      %v730 = vsel %vm725, %v692, 0
      %v733 = vsel %vm725, %v693, 0
      %v736 = vsel %vm725, %v694, 0
      %v739 = vsel %vm725, %v695, 0
      %v742 = vsel %vm725, %v696, 0
      %v745 = vsel %vm725, %v697, 0
      %v748 = vsel %vm725, %v698, 0
      %v751 = vsel %vm725, %v699, 0
      %v754 = vsel %vm725, %v700, 0
      %v757 = vsel %vm725, %v701, 0
      %v760 = vsel %vm725, %v702, 0
      %v763 = vsel %vm725, %v703, 0
      %v766 = vsel %vm725, %v704, 0
      %v769 = vsel %vm725, %v705, 0
      %v772 = vsel %vm725, %v706, 0
      %774 = vmatprep.subr.bf16.mxu0 0
      %775 = vmatpush1.bf16.msra.mxu0 %v719
      %776 = vmatprep.subr.bf16.mxu0 0
      %777 = vmatpush1.bf16.msra.mxu0 %v720
      %778 = vmatprep.subr.bf16.mxu0 0
      %779 = vmatpush1.bf16.msra.mxu0 %v721
      %780 = vmatprep.subr.bf16.mxu0 0
      %781 = vmatpush1.bf16.msra.mxu0 0
      %782 = vmatprep.subr.bf16.mxu0 0
      %783 = vmatpush1.bf16.msra.mxu0 0
      %784 = vmatprep.subr.bf16.mxu0 0
      %785 = vmatpush1.bf16.msra.mxu0 0
      %786 = vmatprep.subr.bf16.mxu0 0
      %787 = vmatpush1.bf16.msra.mxu0 0
      %788 = vmatprep.subr.bf16.mxu0 0
      %789 = vmatpush1.bf16.msra.mxu0 0
      %790 = vmatprep.subr.bf16.mxu0 0
      %791 = vmatpush1.bf16.msra.mxu0 0
      %792 = vmatprep.subr.bf16.mxu0 0
      %793 = vmatpush1.bf16.msra.mxu0 0
      %794 = vmatprep.subr.bf16.mxu0 0
      %795 = vmatpush1.bf16.msra.mxu0 0
      %796 = vmatprep.subr.bf16.mxu0 0
      %797 = vmatpush1.bf16.msra.mxu0 0
      %798 = vmatprep.subr.bf16.mxu0 0
      %799 = vmatpush1.bf16.msra.mxu0 0
      %800 = vmatprep.subr.bf16.mxu0 0
      %801 = vmatpush1.bf16.msra.mxu0 0
      %802 = vmatprep.subr.bf16.mxu0 0
      %803 = vmatpush1.bf16.msra.mxu0 0
      %804 = vmatprep.subr.bf16.mxu0 0
      %805 = vmatpush1.bf16.msra.mxu0 0
      %806 = vmatprep.mubr.bf16.mxu0 0
      %807 = vmatmul.mubr.bf16.gmra.mrb[0].mxu0 %v727
      %v808 = vpop.f32.mrb[0].mxu0
      %v809 = vadd.f32 %v501, %v808
      %v810 = vpop.f32.mrb[0].mxu0
      %v811 = vpop.f32.mrb[0].mxu0
      %v812 = vadd.f32 %v504, %v811
      %v813 = vpop.f32.mrb[0].mxu0
      %814 = vmatprep.mubr.bf16.mxu0 0
      %815 = vmatmul.mubr.bf16.gmra.mrb[0].mxu0 %v730
      %v816 = vpop.f32.mrb[0].mxu0
      %v817 = vadd.f32 %v509, %v816
      %v818 = vpop.f32.mrb[0].mxu0
      %v819 = vpop.f32.mrb[0].mxu0
      %v820 = vadd.f32 %v512, %v819
      %v821 = vpop.f32.mrb[0].mxu0
      %822 = vmatprep.mubr.bf16.mxu0 0
      %823 = vmatmul.mubr.bf16.gmra.mrb[0].mxu0 %v733
      %v824 = vpop.f32.mrb[0].mxu0
      %v825 = vadd.f32 %v517, %v824
      %v826 = vpop.f32.mrb[0].mxu0
      %v827 = vpop.f32.mrb[0].mxu0
      %v828 = vadd.f32 %v520, %v827
      %v829 = vpop.f32.mrb[0].mxu0
      %830 = vmatprep.mubr.bf16.mxu0 0
      %831 = vmatmul.mubr.bf16.gmra.mrb[0].mxu0 %v736
      %v832 = vpop.f32.mrb[0].mxu0
      %v833 = vadd.f32 %v525, %v832
      %v834 = vpop.f32.mrb[0].mxu0
      %v835 = vpop.f32.mrb[0].mxu0
      %v836 = vadd.f32 %v528, %v835
      %v837 = vpop.f32.mrb[0].mxu0
      %838 = vmatprep.mubr.bf16.mxu0 0
      %839 = vmatmul.mubr.bf16.gmra.mrb[0].mxu0 %v739
      %v840 = vpop.f32.mrb[0].mxu0
      %v841 = vadd.f32 %v533, %v840
      %v842 = vpop.f32.mrb[0].mxu0
      %v843 = vpop.f32.mrb[0].mxu0
      %v844 = vadd.f32 %v536, %v843
      %v845 = vpop.f32.mrb[0].mxu0
      %846 = vmatprep.mubr.bf16.mxu0 0
      %847 = vmatmul.mubr.bf16.gmra.mrb[0].mxu0 %v742
      %v848 = vpop.f32.mrb[0].mxu0
      %v849 = vadd.f32 %v541, %v848
      %v850 = vpop.f32.mrb[0].mxu0
      %v851 = vpop.f32.mrb[0].mxu0
      %v852 = vadd.f32 %v544, %v851
      %v853 = vpop.f32.mrb[0].mxu0
      %854 = vmatprep.mubr.bf16.mxu0 0
      %855 = vmatmul.mubr.bf16.gmra.mrb[0].mxu0 %v745
      %v856 = vpop.f32.mrb[0].mxu0
      %v857 = vadd.f32 %v549, %v856
      %v858 = vpop.f32.mrb[0].mxu0
      %v859 = vpop.f32.mrb[0].mxu0
      %v860 = vadd.f32 %v552, %v859
      %v861 = vpop.f32.mrb[0].mxu0
      %862 = vmatprep.mubr.bf16.mxu0 0
      %863 = vmatmul.mubr.bf16.gmra.mrb[0].mxu0 %v748
      %v864 = vpop.f32.mrb[0].mxu0
      %v865 = vadd.f32 %v557, %v864
      %v866 = vpop.f32.mrb[0].mxu0
      %v867 = vpop.f32.mrb[0].mxu0
      %v868 = vadd.f32 %v560, %v867
      %v869 = vpop.f32.mrb[0].mxu0
      %870 = vmatprep.mubr.bf16.mxu0 0
      %871 = vmatmul.mubr.bf16.gmra.mrb[0].mxu0 %v751
      %v872 = vpop.f32.mrb[0].mxu0
      %v873 = vadd.f32 %v565, %v872
      %v874 = vpop.f32.mrb[0].mxu0
      %v875 = vpop.f32.mrb[0].mxu0
      %v876 = vadd.f32 %v568, %v875
      %v877 = vpop.f32.mrb[0].mxu0
      %878 = vmatprep.mubr.bf16.mxu0 0
      %879 = vmatmul.mubr.bf16.gmra.mrb[0].mxu0 %v754
      %v880 = vpop.f32.mrb[0].mxu0
      %v881 = vadd.f32 %v573, %v880
      %v882 = vpop.f32.mrb[0].mxu0
      %v883 = vpop.f32.mrb[0].mxu0
      %v884 = vadd.f32 %v576, %v883
      %v885 = vpop.f32.mrb[0].mxu0
      %886 = vmatprep.mubr.bf16.mxu0 0
      %887 = vmatmul.mubr.bf16.gmra.mrb[0].mxu0 %v757
      %v888 = vpop.f32.mrb[0].mxu0
      %v889 = vadd.f32 %v581, %v888
      %v890 = vpop.f32.mrb[0].mxu0
      %v891 = vpop.f32.mrb[0].mxu0
      %v892 = vadd.f32 %v584, %v891
      %v893 = vpop.f32.mrb[0].mxu0
      %894 = vmatprep.mubr.bf16.mxu0 0
      %895 = vmatmul.mubr.bf16.gmra.mrb[0].mxu0 %v760
      %v896 = vpop.f32.mrb[0].mxu0
      %v897 = vadd.f32 %v589, %v896
      %v898 = vpop.f32.mrb[0].mxu0
      %v899 = vpop.f32.mrb[0].mxu0
      %v900 = vadd.f32 %v592, %v899
      %v901 = vpop.f32.mrb[0].mxu0
      %902 = vmatprep.mubr.bf16.mxu0 0
      %903 = vmatmul.mubr.bf16.gmra.mrb[0].mxu0 %v763
      %v904 = vpop.f32.mrb[0].mxu0
      %v905 = vadd.f32 %v597, %v904
      %v906 = vpop.f32.mrb[0].mxu0
      %v907 = vpop.f32.mrb[0].mxu0
      %v908 = vadd.f32 %v600, %v907
      %v909 = vpop.f32.mrb[0].mxu0
      %910 = vmatprep.mubr.bf16.mxu0 0
      %911 = vmatmul.mubr.bf16.gmra.mrb[0].mxu0 %v766
      %v912 = vpop.f32.mrb[0].mxu0
      %v913 = vadd.f32 %v605, %v912
      %v914 = vpop.f32.mrb[0].mxu0
      %v915 = vpop.f32.mrb[0].mxu0
      %v916 = vadd.f32 %v608, %v915
      %v917 = vpop.f32.mrb[0].mxu0
      %918 = vmatprep.mubr.bf16.mxu0 0
      %919 = vmatmul.mubr.bf16.gmra.mrb[0].mxu0 %v769
      %v920 = vpop.f32.mrb[0].mxu0
      %v921 = vadd.f32 %v613, %v920
      %v922 = vpop.f32.mrb[0].mxu0
      %v923 = vpop.f32.mrb[0].mxu0
      %v924 = vadd.f32 %v616, %v923
      %v925 = vpop.f32.mrb[0].mxu0
      %926 = vmatprep.mubr.bf16.mxu0 0
      %927 = vmatmul.mubr.bf16.gmra.mrb[0].mxu0 %v772
      %v928 = vpop.f32.mrb[0].mxu0
      %v929 = vadd.f32 %v621, %v928
      %v930 = vpop.f32.mrb[0].mxu0
      %v931 = vpop.f32.mrb[0].mxu0
      %v932 = vadd.f32 %v624, %v931
      %v933 = vpop.f32.mrb[0].mxu0
      %934 = vdwg.mxu0
      %v935 = vld [vmem:[%s4] sm:$0x1]
      %v937 = vlaneseq
      %v938 = vshrl.u32 %v937, 7
      %v939 = vsub.s32 0, %v938
      %v940 = vrot.slane %v935, %v939
      %v942 = vadd.f32 %v809, %v940
      %v943 = vadd.f32 %v812, %v940
      %v944 = vadd.f32 %v817, %v940
      %v945 = vadd.f32 %v820, %v940
      %v946 = vadd.f32 %v825, %v940
      %v947 = vadd.f32 %v828, %v940
      %v948 = vadd.f32 %v833, %v940
      %v949 = vadd.f32 %v836, %v940
      %v950 = vadd.f32 %v841, %v940
      %v951 = vadd.f32 %v844, %v940
      %v952 = vadd.f32 %v849, %v940
      %v953 = vadd.f32 %v852, %v940
      %v954 = vadd.f32 %v857, %v940
      %v955 = vadd.f32 %v860, %v940
      %v956 = vadd.f32 %v865, %v940
      %v957 = vadd.f32 %v868, %v940
      %v958 = vadd.f32 %v873, %v940
      %v959 = vadd.f32 %v876, %v940
      %v960 = vadd.f32 %v881, %v940
      %v961 = vadd.f32 %v884, %v940
      %v962 = vadd.f32 %v889, %v940
      %v963 = vadd.f32 %v892, %v940
      %v964 = vadd.f32 %v897, %v940
      %v965 = vadd.f32 %v900, %v940
      %v966 = vadd.f32 %v905, %v940
      %v967 = vadd.f32 %v908, %v940
      %v968 = vadd.f32 %v913, %v940
      %v969 = vadd.f32 %v916, %v940
      %v970 = vadd.f32 %v921, %v940
      %v971 = vadd.f32 %v924, %v940
      %v972 = vadd.f32 %v929, %v940
      %v973 = vadd.f32 %v932, %v940
      %v974 = vxor.u32 %v942, 2147483648
      %v975 = vxor.u32 %v943, 2147483648
      %v976 = vxor.u32 %v944, 2147483648
      %v977 = vxor.u32 %v945, 2147483648
      %v978 = vxor.u32 %v946, 2147483648
      %v979 = vxor.u32 %v947, 2147483648
      %v980 = vxor.u32 %v948, 2147483648
      %v981 = vxor.u32 %v949, 2147483648
      %v982 = vxor.u32 %v950, 2147483648
      %v983 = vxor.u32 %v951, 2147483648
      %v984 = vxor.u32 %v952, 2147483648
      %v985 = vxor.u32 %v953, 2147483648
      %v986 = vxor.u32 %v954, 2147483648
      %v987 = vxor.u32 %v955, 2147483648
      %v988 = vxor.u32 %v956, 2147483648
      %v989 = vxor.u32 %v957, 2147483648
      %v990 = vxor.u32 %v958, 2147483648
      %v991 = vxor.u32 %v959, 2147483648
      %v992 = vxor.u32 %v960, 2147483648
      %v993 = vxor.u32 %v961, 2147483648
      %v994 = vxor.u32 %v962, 2147483648
      %v995 = vxor.u32 %v963, 2147483648
      %v996 = vxor.u32 %v964, 2147483648
      %v997 = vxor.u32 %v965, 2147483648
      %v998 = vxor.u32 %v966, 2147483648
      %v999 = vxor.u32 %v967, 2147483648
      %v1000 = vxor.u32 %v968, 2147483648
      %v1001 = vxor.u32 %v969, 2147483648
      %v1002 = vxor.u32 %v970, 2147483648
      %v1003 = vxor.u32 %v971, 2147483648
      %v1004 = vxor.u32 %v972, 2147483648
      %v1005 = vxor.u32 %v973, 2147483648
      %v1006 = vmul.f32 %v974, 1.442695
      %v1007 = vpow.pop %v1006
      %v1008 = vmul.f32 %v975, 1.442695
      %v1009 = vpow.pop %v1008
      %v1010 = vmul.f32 %v976, 1.442695
      %v1011 = vpow.pop %v1010
      %v1012 = vmul.f32 %v977, 1.442695
      %v1013 = vpow.pop %v1012
      %v1014 = vmul.f32 %v978, 1.442695
      %v1015 = vpow.pop %v1014
      %v1016 = vmul.f32 %v979, 1.442695
      %v1017 = vpow.pop %v1016
      %v1018 = vmul.f32 %v980, 1.442695
      %v1019 = vpow.pop %v1018
      %v1020 = vmul.f32 %v981, 1.442695
      %v1021 = vpow.pop %v1020
      %v1022 = vmul.f32 %v982, 1.442695
      %v1023 = vpow.pop %v1022
      %v1024 = vmul.f32 %v983, 1.442695
      %v1025 = vpow.pop %v1024
      %v1026 = vmul.f32 %v984, 1.442695
      %v1027 = vpow.pop %v1026
      %v1028 = vmul.f32 %v985, 1.442695
      %v1029 = vpow.pop %v1028
      %v1030 = vmul.f32 %v986, 1.442695
      %v1031 = vpow.pop %v1030
      %v1032 = vmul.f32 %v987, 1.442695
      %v1033 = vpow.pop %v1032
      %v1034 = vmul.f32 %v988, 1.442695
      %v1035 = vpow.pop %v1034
      %v1036 = vmul.f32 %v989, 1.442695
      %v1037 = vpow.pop %v1036
      %v1038 = vmul.f32 %v990, 1.442695
      %v1039 = vpow.pop %v1038
      %v1040 = vmul.f32 %v991, 1.442695
      %v1041 = vpow.pop %v1040
      %v1042 = vmul.f32 %v992, 1.442695
      %v1043 = vpow.pop %v1042
      %v1044 = vmul.f32 %v993, 1.442695
      %v1045 = vpow.pop %v1044
      %v1046 = vmul.f32 %v994, 1.442695
      %v1047 = vpow.pop %v1046
      %v1048 = vmul.f32 %v995, 1.442695
      %v1049 = vpow.pop %v1048
      %v1050 = vmul.f32 %v996, 1.442695
      %v1051 = vpow.pop %v1050
      %v1052 = vmul.f32 %v997, 1.442695
      %v1053 = vpow.pop %v1052
      %v1054 = vmul.f32 %v998, 1.442695
      %v1055 = vpow.pop %v1054
      %v1056 = vmul.f32 %v999, 1.442695
      %v1057 = vpow.pop %v1056
      %v1058 = vmul.f32 %v1000, 1.442695
      %v1059 = vpow.pop %v1058
      %v1060 = vmul.f32 %v1001, 1.442695
      %v1061 = vpow.pop %v1060
      %v1062 = vmul.f32 %v1002, 1.442695
      %v1063 = vpow.pop %v1062
      %v1064 = vmul.f32 %v1003, 1.442695
      %v1065 = vpow.pop %v1064
      %v1066 = vmul.f32 %v1004, 1.442695
      %v1067 = vpow.pop %v1066
      %v1068 = vmul.f32 %v1005, 1.442695
      %v1069 = vpow.pop %v1068
      %v1070 = vadd.f32 %v1007, 1.0
      %v1071 = vadd.f32 %v1009, 1.0
      %v1072 = vadd.f32 %v1011, 1.0
      %v1073 = vadd.f32 %v1013, 1.0
      %v1074 = vadd.f32 %v1015, 1.0
      %v1075 = vadd.f32 %v1017, 1.0
      %v1076 = vadd.f32 %v1019, 1.0
      %v1077 = vadd.f32 %v1021, 1.0
      %v1078 = vadd.f32 %v1023, 1.0
      %v1079 = vadd.f32 %v1025, 1.0
      %v1080 = vadd.f32 %v1027, 1.0
      %v1081 = vadd.f32 %v1029, 1.0
      %v1082 = vadd.f32 %v1031, 1.0
      %v1083 = vadd.f32 %v1033, 1.0
      %v1084 = vadd.f32 %v1035, 1.0
      %v1085 = vadd.f32 %v1037, 1.0
      %v1086 = vadd.f32 %v1039, 1.0
      %v1087 = vadd.f32 %v1041, 1.0
      %v1088 = vadd.f32 %v1043, 1.0
      %v1089 = vadd.f32 %v1045, 1.0
      %v1090 = vadd.f32 %v1047, 1.0
      %v1091 = vadd.f32 %v1049, 1.0
      %v1092 = vadd.f32 %v1051, 1.0
      %v1093 = vadd.f32 %v1053, 1.0
      %v1094 = vadd.f32 %v1055, 1.0
      %v1095 = vadd.f32 %v1057, 1.0
      %v1096 = vadd.f32 %v1059, 1.0
      %v1097 = vadd.f32 %v1061, 1.0
      %v1098 = vadd.f32 %v1063, 1.0
      %v1099 = vadd.f32 %v1065, 1.0
      %v1100 = vadd.f32 %v1067, 1.0
      %v1101 = vadd.f32 %v1069, 1.0
      %v1102 = vrcp.pop %v1070
      %v1103 = vmul.f32 1.0, %v1102
      %v1104 = vrcp.pop %v1071
      %v1105 = vmul.f32 1.0, %v1104
      %v1106 = vrcp.pop %v1072
      %v1107 = vmul.f32 1.0, %v1106
      %v1108 = vrcp.pop %v1073
      %v1109 = vmul.f32 1.0, %v1108
      %v1110 = vrcp.pop %v1074
      %v1111 = vmul.f32 1.0, %v1110
      %v1112 = vrcp.pop %v1075
      %v1113 = vmul.f32 1.0, %v1112
      %v1114 = vrcp.pop %v1076
      %v1115 = vmul.f32 1.0, %v1114
      %v1116 = vrcp.pop %v1077
      %v1117 = vmul.f32 1.0, %v1116
      %v1118 = vrcp.pop %v1078
      %v1119 = vmul.f32 1.0, %v1118
      %v1120 = vrcp.pop %v1079
      %v1121 = vmul.f32 1.0, %v1120
      %v1122 = vrcp.pop %v1080
      %v1123 = vmul.f32 1.0, %v1122
      %v1124 = vrcp.pop %v1081
      %v1125 = vmul.f32 1.0, %v1124
      %v1126 = vrcp.pop %v1082
      %v1127 = vmul.f32 1.0, %v1126
      %v1128 = vrcp.pop %v1083
      %v1129 = vmul.f32 1.0, %v1128
      %v1130 = vrcp.pop %v1084
      %v1131 = vmul.f32 1.0, %v1130
      %v1132 = vrcp.pop %v1085
      %v1133 = vmul.f32 1.0, %v1132
      %v1134 = vrcp.pop %v1086
      %v1135 = vmul.f32 1.0, %v1134
      %v1136 = vrcp.pop %v1087
      %v1137 = vmul.f32 1.0, %v1136
      %v1138 = vrcp.pop %v1088
      %v1139 = vmul.f32 1.0, %v1138
      %v1140 = vrcp.pop %v1089
      %v1141 = vmul.f32 1.0, %v1140
      %v1142 = vrcp.pop %v1090
      %v1143 = vmul.f32 1.0, %v1142
      %v1144 = vrcp.pop %v1091
      %v1145 = vmul.f32 1.0, %v1144
      %v1146 = vrcp.pop %v1092
      %v1147 = vmul.f32 1.0, %v1146
      %v1148 = vrcp.pop %v1093
      %v1149 = vmul.f32 1.0, %v1148
      %v1150 = vrcp.pop %v1094
      %v1151 = vmul.f32 1.0, %v1150
      %v1152 = vrcp.pop %v1095
      %v1153 = vmul.f32 1.0, %v1152
      %v1154 = vrcp.pop %v1096
      %v1155 = vmul.f32 1.0, %v1154
      %v1156 = vrcp.pop %v1097
      %v1157 = vmul.f32 1.0, %v1156
      %v1158 = vrcp.pop %v1098
      %v1159 = vmul.f32 1.0, %v1158
      %v1160 = vrcp.pop %v1099
      %v1161 = vmul.f32 1.0, %v1160
      %v1162 = vrcp.pop %v1100
      %v1163 = vmul.f32 1.0, %v1162
      %v1164 = vrcp.pop %v1101
      %v1165 = vmul.f32 1.0, %v1164
      %v1166 = vmul.f32 %v942, %v1103
      %v1167 = vmul.f32 %v943, %v1105
      %v1168 = vmul.f32 %v944, %v1107
      %v1169 = vmul.f32 %v945, %v1109
      %v1170 = vmul.f32 %v946, %v1111
      %v1171 = vmul.f32 %v947, %v1113
      %v1172 = vmul.f32 %v948, %v1115
      %v1173 = vmul.f32 %v949, %v1117
      %v1174 = vmul.f32 %v950, %v1119
      %v1175 = vmul.f32 %v951, %v1121
      %v1176 = vmul.f32 %v952, %v1123
      %v1177 = vmul.f32 %v953, %v1125
      %v1178 = vmul.f32 %v954, %v1127
      %v1179 = vmul.f32 %v955, %v1129
      %v1180 = vmul.f32 %v956, %v1131
      %v1181 = vmul.f32 %v957, %v1133
      %v1182 = vmul.f32 %v958, %v1135
      %v1183 = vmul.f32 %v959, %v1137
      %v1184 = vmul.f32 %v960, %v1139
      %v1185 = vmul.f32 %v961, %v1141
      %v1186 = vmul.f32 %v962, %v1143
      %v1187 = vmul.f32 %v963, %v1145
      %v1188 = vmul.f32 %v964, %v1147
      %v1189 = vmul.f32 %v965, %v1149
      %v1190 = vmul.f32 %v966, %v1151
      %v1191 = vmul.f32 %v967, %v1153
      %v1192 = vmul.f32 %v968, %v1155
      %v1193 = vmul.f32 %v969, %v1157
      %v1194 = vmul.f32 %v970, %v1159
      %v1195 = vmul.f32 %v971, %v1161
      %v1196 = vmul.f32 %v972, %v1163
      %v1197 = vmul.f32 %v973, %v1165
      %v1198 = vpack.c.bf16 %v1167, %v1166
      %v1199 = vpack.c.bf16 %v1169, %v1168
      %v1200 = vpack.c.bf16 %v1171, %v1170
      %v1201 = vpack.c.bf16 %v1173, %v1172
      %v1202 = vpack.c.bf16 %v1175, %v1174
      %v1203 = vpack.c.bf16 %v1177, %v1176
      %v1204 = vpack.c.bf16 %v1179, %v1178
      %v1205 = vpack.c.bf16 %v1181, %v1180
      %v1206 = vpack.c.bf16 %v1183, %v1182
      %v1207 = vpack.c.bf16 %v1185, %v1184
      %v1208 = vpack.c.bf16 %v1187, %v1186
      %v1209 = vpack.c.bf16 %v1189, %v1188
      %v1210 = vpack.c.bf16 %v1191, %v1190
      %v1211 = vpack.c.bf16 %v1193, %v1192
      %v1212 = vpack.c.bf16 %v1195, %v1194
      %v1213 = vpack.c.bf16 %v1197, %v1196
      %v1230 = vunpack.c.l.b16 %v1198
      %v1231 = vunpack.c.h.b16 %v1198
      %v1232 = vunpack.c.l.b16 %v1199
      %v1233 = vunpack.c.h.b16 %v1199
      %v1234 = vunpack.c.l.b16 %v1200
      %v1235 = vunpack.c.h.b16 %v1200
      %v1236 = vunpack.c.l.b16 %v1201
      %v1237 = vunpack.c.h.b16 %v1201
      %v1238 = vunpack.c.l.b16 %v1202
      %v1239 = vunpack.c.h.b16 %v1202
      %v1240 = vunpack.c.l.b16 %v1203
      %v1241 = vunpack.c.h.b16 %v1203
      %v1242 = vunpack.c.l.b16 %v1204
      %v1243 = vunpack.c.h.b16 %v1204
      %v1244 = vunpack.c.l.b16 %v1205
      %v1245 = vunpack.c.h.b16 %v1205
      %v1246 = vunpack.c.l.b16 %v1206
      %v1247 = vunpack.c.h.b16 %v1206
      %v1248 = vunpack.c.l.b16 %v1207
      %v1249 = vunpack.c.h.b16 %v1207
      %v1250 = vunpack.c.l.b16 %v1208
      %v1251 = vunpack.c.h.b16 %v1208
      %v1252 = vunpack.c.l.b16 %v1209
      %v1253 = vunpack.c.h.b16 %v1209
      %v1254 = vunpack.c.l.b16 %v1210
      %v1255 = vunpack.c.h.b16 %v1210
      %v1256 = vunpack.c.l.b16 %v1211
      %v1257 = vunpack.c.h.b16 %v1211
      %v1258 = vunpack.c.l.b16 %v1212
      %v1259 = vunpack.c.h.b16 %v1212
      %v1260 = vunpack.c.l.b16 %v1213
      %v1261 = vunpack.c.h.b16 %v1213
      %v1262 = vpack.c.b16 %v1230, %v1230
      %v1263 = vpack.c.b16 %v1231, %v1231
      %v1264 = vpack.c.b16 %v1232, %v1232
      %v1265 = vpack.c.b16 %v1233, %v1233
      %v1266 = vpack.c.b16 %v1234, %v1234
      %v1267 = vpack.c.b16 %v1235, %v1235
      %v1268 = vpack.c.b16 %v1236, %v1236
      %v1269 = vpack.c.b16 %v1237, %v1237
      %v1270 = vpack.c.b16 %v1238, %v1238
      %v1271 = vpack.c.b16 %v1239, %v1239
      %v1272 = vpack.c.b16 %v1240, %v1240
      %v1273 = vpack.c.b16 %v1241, %v1241
      %v1274 = vpack.c.b16 %v1242, %v1242
      %v1275 = vpack.c.b16 %v1243, %v1243
      %v1276 = vpack.c.b16 %v1244, %v1244
      %v1277 = vpack.c.b16 %v1245, %v1245
      %v1278 = vpack.c.b16 %v1246, %v1246
      %v1279 = vpack.c.b16 %v1247, %v1247
      %v1280 = vpack.c.b16 %v1248, %v1248
      %v1281 = vpack.c.b16 %v1249, %v1249
      %v1282 = vpack.c.b16 %v1250, %v1250
      %v1283 = vpack.c.b16 %v1251, %v1251
      %v1284 = vpack.c.b16 %v1252, %v1252
      %v1285 = vpack.c.b16 %v1253, %v1253
      %v1286 = vpack.c.b16 %v1254, %v1254
      %v1287 = vpack.c.b16 %v1255, %v1255
      %v1288 = vpack.c.b16 %v1256, %v1256
      %v1289 = vpack.c.b16 %v1257, %v1257
      %v1290 = vpack.c.b16 %v1258, %v1258
      %v1291 = vpack.c.b16 %v1259, %v1259
      %v1292 = vpack.c.b16 %v1260, %v1260
      %v1293 = vpack.c.b16 %v1261, %v1261
      %1326 = vst [vmem:[%s248] sm:$0xf] %v1262
      %1327 = vst [vmem:[%s248 + $0x4] sm:$0xf] %v1263
      %1328 = vst [vmem:[%s248 + $0x8] sm:$0xf] %v1264
      %1329 = vst [vmem:[%s248 + $0xc] sm:$0xf] %v1265
      %1330 = vst [vmem:[%s248 + $0x10] sm:$0xf] %v1266
      %1331 = vst [vmem:[%s248 + $0x14] sm:$0xf] %v1267
      %1332 = vst [vmem:[%s248 + $0x18] sm:$0xf] %v1268
      %1333 = vst [vmem:[%s248 + $0x1c] sm:$0xf] %v1269
      %1334 = vst [vmem:[%s248 + $0x20] sm:$0xf] %v1270
      %1335 = vst [vmem:[%s248 + $0x24] sm:$0xf] %v1271
      %1336 = vst [vmem:[%s248 + $0x28] sm:$0xf] %v1272
      %1337 = vst [vmem:[%s248 + $0x2c] sm:$0xf] %v1273
      %1338 = vst [vmem:[%s248 + $0x30] sm:$0xf] %v1274
      %1339 = vst [vmem:[%s248 + $0x34] sm:$0xf] %v1275
      %1340 = vst [vmem:[%s248 + $0x38] sm:$0xf] %v1276
      %1341 = vst [vmem:[%s248 + $0x3c] sm:$0xf] %v1277
      %1342 = vst [vmem:[%s248 + $0x40] sm:$0xf] %v1278
      %1343 = vst [vmem:[%s248 + $0x44] sm:$0xf] %v1279
      %1344 = vst [vmem:[%s248 + $0x48] sm:$0xf] %v1280
      %1345 = vst [vmem:[%s248 + $0x4c] sm:$0xf] %v1281
      %1346 = vst [vmem:[%s248 + $0x50] sm:$0xf] %v1282
      %1347 = vst [vmem:[%s248 + $0x54] sm:$0xf] %v1283
      %1348 = vst [vmem:[%s248 + $0x58] sm:$0xf] %v1284
      %1349 = vst [vmem:[%s248 + $0x5c] sm:$0xf] %v1285
      %1350 = vst [vmem:[%s248 + $0x60] sm:$0xf] %v1286
      %1351 = vst [vmem:[%s248 + $0x64] sm:$0xf] %v1287
      %1352 = vst [vmem:[%s248 + $0x68] sm:$0xf] %v1288
      %1353 = vst [vmem:[%s248 + $0x6c] sm:$0xf] %v1289
      %1354 = vst [vmem:[%s248 + $0x70] sm:$0xf] %v1290
      %1355 = vst [vmem:[%s248 + $0x74] sm:$0xf] %v1291
      %1356 = vst [vmem:[%s248 + $0x78] sm:$0xf] %v1292
      %1357 = vst [vmem:[%s248 + $0x7c] sm:$0xf] %v1293
      %s1358 = smul.u32 32, %s16
      %p1359 = scmp.lt.s32.totalorder %s1358, 255
      %s1360 = scalar_select %p1359, %s1358, 255
      %s1361 = smul.addr %s1360, 4
      %s1362 = scalar_lea.vmem %s5, %s1361
      // Predicated region
      $region41: #{backbone_2d_forward.5} parent=39 // pred_check
        %p1363 = pneg %p149
      $region42: #{backbone_2d_forward.5} parent=39 // pred_check_branch
        %1365 = sbr.rel (%p1363) target = $region44
      $region43: #{backbone_2d_forward.5} parent=39 // pred_region
        %s1366 = smul.u32 32, %s16
      $region44: #{backbone_2d_forward.5} parent=39 // pred_fallthru
        _
    $region40: #{backbone_2d_forward.5} parent=5 // pred_fallthru
      _
    %p1367 = scmp.le.s32.totalorder 2, %s11
    // Predicated region
    $region45: #{backbone_2d_forward.5} parent=5 // pred_check
      %p1368 = pneg %p1367
    $region46: #{backbone_2d_forward.5} parent=5 // pred_check_branch
      %1370 = sbr.rel (%p1368) target = $region48
    $region47: #{backbone_2d_forward.5} parent=5 // pred_region
      %s1371 = ssub.s32 %s11, 2
      // Predicated region
      $region49: #{backbone_2d_forward.5} parent=47 // pred_check
        %p1372 = pneg %p155
      $region50: #{backbone_2d_forward.5} parent=47 // pred_check_branch
        %1374 = sbr.rel (%p1372) target = $region52
      $region51: #{backbone_2d_forward.5} parent=47 // pred_region
        %s1375 = smul.u32 32, %s17
        %p1376 = scmp.lt.s32.totalorder %s1375, 255
        %s1377 = scalar_select %p1376, %s1375, 255
        %s1378 = smul.addr %s1377, 4
        %s1379 = scalar_lea.vmem %s5, %s1378
      $region52: #{backbone_2d_forward.5} parent=47 // pred_fallthru
        _
    $region48: #{backbone_2d_forward.5} parent=5 // pred_fallthru
      _
  $region6: #{backbone_2d_forward.5} parent=0 // loop_footer
    %s15 = sadd.s32 1, %s11
  $region7: #{backbone_2d_forward.5} parent=0 // loop_footer_branch
    %10 = sbr.rel target = $region3
  $region8: #{backbone_2d_forward.5} parent=0 // loop_exit
    _

// kernel: backbone_2d_forward.6
$region0: #{backbone_2d_forward.6}
  #allocation0 [shape = 'u32[]', space=smem, size = 0x4, offset = 0x4, fixed_abs, tag = 'smem constant byte address 0x4 - core index']
  #allocation1 [shape = 'u32[144,128]{1,0:T(1,128)}', space=vmem, size = 0x12000, scoped, tag = 'internal scratch']
  %s0 = inlined_call_operand.vmem [shape: bf16[512,768], index: 0, kind: input, shape index: {}]
  %s1 = inlined_call_operand.vmem [shape: bf16[512,384], index: 1, kind: input, shape index: {}]
  %s2 = inlined_call_operand.vmem [shape: bf16[768,128], index: 2, kind: input, shape index: {}]
  %s3 = inlined_call_operand.vmem [shape: bf16[384,128], index: 3, kind: input, shape index: {}]
  %s4 = inlined_call_operand.vmem [shape: f32[1,128], index: 4, kind: input, shape index: {}]
  %s5 = inlined_call_operand.vmem [shape: bf16[512,128], index: 5, kind: output, shape index: {}]
  %s6 = sld [smem:[#allocation0]]
  $region53: #{backbone_2d_forward.6} parent=0
    _
  %s8 = ssub.s32 1, %s6
  %s9 = scalar_select 0, %s8, %s6
  loop: start=0, step=1, limit=4
  $region2: #{backbone_2d_forward.6} parent=0 // loop_pre_header
    _
  $region3: #{backbone_2d_forward.6} parent=0 // loop_header
    %s11 = sphi 0, %s15
    %p12 = scmp.ge.s32.totalorder %s11, 4
    %s21 = sphi 0, %s23
    %s24 = sphi 0, %s21
    %s25 = sphi 0, %s24
    %s41 = sphi 0, %s25
    %s47 = sphi 0, %s49
    %s50 = sphi 0, %s47
    %s51 = sphi 0, %s50
    %s67 = sphi 0, %s51
    %s71 = sphi 0, %s71
    %s73 = sphi 0, %s71
    %s74 = sphi 0, %s73
    %s88 = sphi 0, %s74
    %s92 = sphi 0, %s92
    %s94 = sphi 0, %s92
    %s95 = sphi 0, %s94
    %s109 = sphi 0, %s95
    %s113 = sphi 0, %s113
    %s115 = sphi 0, %s113
    %s116 = sphi 0, %s115
    %s130 = sphi 0, %s116
    %s136 = sphi 0, %s138
    %s139 = sphi 0, %s136
    %s140 = sphi 0, %s139
    %s156 = sphi 0, %s140
  $region4: #{backbone_2d_forward.6} parent=0 // loop_header_branch
    %14 = sbr.rel (%p12) target = $region8
  $region5: #{backbone_2d_forward.6} parent=0 // loop_body
    %s16 = ssub.s32 %s11, 1
    %s17 = ssub.s32 %s11, 2
    %s18 = sadd.s32 %s11, 1
    %s19 = ssub.s32 %s11, %s18
    %p20 = scmp.eq.s32.totalorder %s19, 0
    %s22 = sadd.s32 %s21, 1
    %s23 = scalar_select %p20, %s21, %s22
    %p26 = pneg %p20
    %p27 = scmp.eq.s32.totalorder %s11, 1
    %p28 = por %p26, %p27
    %p29 = scmp.ne.s32.totalorder %s21, %s24
    %p30 = scmp.eq.s32.totalorder %s11, 0
    %p31 = por %p29, %p30
    %p32 = scmp.ne.s32.totalorder %s21, %s24
    %p33 = scmp.eq.s32.totalorder %s16, 1
    %p34 = por %p32, %p33
    %p35 = scmp.ne.s32.totalorder %s24, %s25
    %p36 = scmp.eq.s32.totalorder %s16, 0
    %p37 = por %p35, %p36
    %p38 = scmp.ne.s32.totalorder %s24, %s25
    %p39 = scmp.eq.s32.totalorder %s17, 1
    %p40 = por %p38, %p39
    %p42 = scmp.ne.s32.totalorder %s25, %s41
    %p43 = scmp.eq.s32.totalorder %s17, 0
    %p44 = por %p42, %p43
    %s45 = ssub.s32 %s11, %s18
    %p46 = scmp.eq.s32.totalorder %s45, 0
    %s48 = sadd.s32 %s47, 1
    %s49 = scalar_select %p46, %s47, %s48
    %p52 = pneg %p46
    %p53 = scmp.eq.s32.totalorder %s11, 1
    %p54 = por %p52, %p53
    %p55 = scmp.ne.s32.totalorder %s47, %s50
    %p56 = scmp.eq.s32.totalorder %s11, 0
    %p57 = por %p55, %p56
    %p58 = scmp.ne.s32.totalorder %s47, %s50
    %p59 = scmp.eq.s32.totalorder %s16, 1
    %p60 = por %p58, %p59
    %p61 = scmp.ne.s32.totalorder %s50, %s51
    %p62 = scmp.eq.s32.totalorder %s16, 0
    %p63 = por %p61, %p62
    %p64 = scmp.ne.s32.totalorder %s50, %s51
    %p65 = scmp.eq.s32.totalorder %s17, 1
    %p66 = por %p64, %p65
    %p68 = scmp.ne.s32.totalorder %s51, %s67
    %p69 = scmp.eq.s32.totalorder %s17, 0
    %p70 = por %p68, %p69
    %s72 = sadd.s32 %s71, 1
    %p75 = scmp.eq.s32.totalorder %s11, 1
    %p76 = scmp.ne.s32.totalorder %s71, %s73
    %p77 = scmp.eq.s32.totalorder %s11, 0
    %p78 = por %p76, %p77
    %p79 = scmp.ne.s32.totalorder %s71, %s73
    %p80 = scmp.eq.s32.totalorder %s16, 1
    %p81 = por %p79, %p80
    %p82 = scmp.ne.s32.totalorder %s73, %s74
    %p83 = scmp.eq.s32.totalorder %s16, 0
    %p84 = por %p82, %p83
    %p85 = scmp.ne.s32.totalorder %s73, %s74
    %p86 = scmp.eq.s32.totalorder %s17, 1
    %p87 = por %p85, %p86
    %p89 = scmp.ne.s32.totalorder %s74, %s88
    %p90 = scmp.eq.s32.totalorder %s17, 0
    %p91 = por %p89, %p90
    %s93 = sadd.s32 %s92, 1
    %p96 = scmp.eq.s32.totalorder %s11, 1
    %p97 = scmp.ne.s32.totalorder %s92, %s94
    %p98 = scmp.eq.s32.totalorder %s11, 0
    %p99 = por %p97, %p98
    %p100 = scmp.ne.s32.totalorder %s92, %s94
    %p101 = scmp.eq.s32.totalorder %s16, 1
    %p102 = por %p100, %p101
    %p103 = scmp.ne.s32.totalorder %s94, %s95
    %p104 = scmp.eq.s32.totalorder %s16, 0
    %p105 = por %p103, %p104
    %p106 = scmp.ne.s32.totalorder %s94, %s95
    %p107 = scmp.eq.s32.totalorder %s17, 1
    %p108 = por %p106, %p107
    %p110 = scmp.ne.s32.totalorder %s95, %s109
    %p111 = scmp.eq.s32.totalorder %s17, 0
    %p112 = por %p110, %p111
    %s114 = sadd.s32 %s113, 1
    %p117 = scmp.eq.s32.totalorder %s11, 1
    %p118 = scmp.ne.s32.totalorder %s113, %s115
    %p119 = scmp.eq.s32.totalorder %s11, 0
    %p120 = por %p118, %p119
    %p121 = scmp.ne.s32.totalorder %s113, %s115
    %p122 = scmp.eq.s32.totalorder %s16, 1
    %p123 = por %p121, %p122
    %p124 = scmp.ne.s32.totalorder %s115, %s116
    %p125 = scmp.eq.s32.totalorder %s16, 0
    %p126 = por %p124, %p125
    %p127 = scmp.ne.s32.totalorder %s115, %s116
    %p128 = scmp.eq.s32.totalorder %s17, 1
    %p129 = por %p127, %p128
    %p131 = scmp.ne.s32.totalorder %s116, %s130
    %p132 = scmp.eq.s32.totalorder %s17, 0
    %p133 = por %p131, %p132
    %s134 = ssub.s32 %s11, %s18
    %p135 = scmp.eq.s32.totalorder %s134, 0
    %s137 = sadd.s32 %s136, 1
    %s138 = scalar_select %p135, %s136, %s137
    %p141 = pneg %p135
    %p142 = scmp.eq.s32.totalorder %s11, 1
    %p143 = por %p141, %p142
    %p144 = scmp.ne.s32.totalorder %s136, %s139
    %p145 = scmp.eq.s32.totalorder %s11, 0
    %p146 = por %p144, %p145
    %p147 = scmp.ne.s32.totalorder %s136, %s139
    %p148 = scmp.eq.s32.totalorder %s16, 1
    %p149 = por %p147, %p148
    %p150 = scmp.ne.s32.totalorder %s139, %s140
    %p151 = scmp.eq.s32.totalorder %s16, 0
    %p152 = por %p150, %p151
    %p153 = scmp.ne.s32.totalorder %s139, %s140
    %p154 = scmp.eq.s32.totalorder %s17, 1
    %p155 = por %p153, %p154
    %p157 = scmp.ne.s32.totalorder %s140, %s156
    %p158 = scmp.eq.s32.totalorder %s17, 0
    %p159 = por %p157, %p158
    %p160 = scmp.le.s32.totalorder 1, %s11
    %p161 = scmp.lt.s32.totalorder %s11, 3
    %p162 = pnand %p160, %p161
    %p163 = pneg %p162
    // Predicated region
    $region9: #{backbone_2d_forward.6} parent=5 // pred_check
      _
    $region10: #{backbone_2d_forward.6} parent=5 // pred_check_branch
      %165 = sbr.rel (%p162) target = $region12
    $region11: #{backbone_2d_forward.6} parent=5 // pred_region
      %s166 = ssub.s32 %s11, 1
      // Predicated region
      $region13: #{backbone_2d_forward.6} parent=11 // pred_check
        %p167 = pneg %p84
      $region14: #{backbone_2d_forward.6} parent=11 // pred_check_branch
        %169 = sbr.rel (%p167) target = $region16
      $region15: #{backbone_2d_forward.6} parent=11 // pred_region
        _
      $region16: #{backbone_2d_forward.6} parent=11 // pred_fallthru
        _
      // Predicated region
      $region17: #{backbone_2d_forward.6} parent=11 // pred_check
        %p170 = pneg %p105
      $region18: #{backbone_2d_forward.6} parent=11 // pred_check_branch
        %172 = sbr.rel (%p170) target = $region20
      $region19: #{backbone_2d_forward.6} parent=11 // pred_region
        _
      $region20: #{backbone_2d_forward.6} parent=11 // pred_fallthru
        _
      // Predicated region
      $region21: #{backbone_2d_forward.6} parent=11 // pred_check
        %p173 = pneg %p126
      $region22: #{backbone_2d_forward.6} parent=11 // pred_check_branch
        %175 = sbr.rel (%p173) target = $region24
      $region23: #{backbone_2d_forward.6} parent=11 // pred_region
        _
      $region24: #{backbone_2d_forward.6} parent=11 // pred_fallthru
        _
    $region12: #{backbone_2d_forward.6} parent=5 // pred_fallthru
      _
    %p176 = scmp.lt.s32.totalorder %s11, 2
    // Predicated region
    $region25: #{backbone_2d_forward.6} parent=5 // pred_check
      %p177 = pneg %p176
    $region26: #{backbone_2d_forward.6} parent=5 // pred_check_branch
      %179 = sbr.rel (%p177) target = $region28
    $region27: #{backbone_2d_forward.6} parent=5 // pred_region
      // Predicated region
      $region29: #{backbone_2d_forward.6} parent=27 // pred_check
        %p180 = pneg %p31
      $region30: #{backbone_2d_forward.6} parent=27 // pred_check_branch
        %182 = sbr.rel (%p180) target = $region32
      $region31: #{backbone_2d_forward.6} parent=27 // pred_region
        %s183 = smul.u32 32, %s11
        %p184 = scmp.lt.s32.totalorder %s183, 63
        %s185 = scalar_select %p184, %s183, 63
        %s186 = smul.addr %s185, 6
        %s187 = smul.addr %s186, 4
        %s188 = scalar_lea.vmem %s0, %s187
        %s189 = smul.u32 32, %s11
      $region32: #{backbone_2d_forward.6} parent=27 // pred_fallthru
        _
      // Predicated region
      $region33: #{backbone_2d_forward.6} parent=27 // pred_check
        %p190 = pneg %p57
      $region34: #{backbone_2d_forward.6} parent=27 // pred_check_branch
        %192 = sbr.rel (%p190) target = $region36
      $region35: #{backbone_2d_forward.6} parent=27 // pred_region
        %s193 = smul.u32 32, %s11
        %p194 = scmp.lt.s32.totalorder %s193, 63
        %s195 = scalar_select %p194, %s193, 63
        %s196 = smul.addr %s195, 3
        %s197 = smul.addr %s196, 4
        %s198 = scalar_lea.vmem %s1, %s197
        %s199 = smul.u32 32, %s11
      $region36: #{backbone_2d_forward.6} parent=27 // pred_fallthru
        _
    $region28: #{backbone_2d_forward.6} parent=5 // pred_fallthru
      _
    %p200 = scmp.le.s32.totalorder 1, %s11
    %p201 = scmp.lt.s32.totalorder %s11, 3
    %p202 = pnand %p200, %p201
    %p203 = pneg %p202
    // Predicated region
    $region37: #{backbone_2d_forward.6} parent=5 // pred_check
      _
    $region38: #{backbone_2d_forward.6} parent=5 // pred_check_branch
      %205 = sbr.rel (%p202) target = $region40
    $region39: #{backbone_2d_forward.6} parent=5 // pred_region
      %s206 = ssub.s32 %s11, 1
      %s207 = smul.u32 32, %s16
      %p208 = scmp.lt.s32.totalorder %s207, 63
      %s209 = scalar_select %p208, %s207, 63
      %s210 = smul.addr %s209, 6
      %s211 = smul.addr %s210, 4
      %s212 = scalar_lea.vmem %s0, %s211
      %p213 = pneg %p37
      %p214 = pneg %p34
      %s215 = smul.u32 32, %s16
      %p216 = scmp.lt.s32.totalorder %s215, 63
      %s217 = scalar_select %p216, %s215, 63
      %s218 = smul.addr %s217, 3
      %s219 = smul.addr %s218, 4
      %s220 = scalar_lea.vmem %s1, %s219
      %p221 = pneg %p63
      %p222 = pneg %p60
      %p223 = pneg %p84
      %p224 = pneg %p81
      %p225 = pneg %p105
      %p226 = pneg %p102
      %p227 = pneg %p126
      %p228 = pneg %p123
      %p229 = pneg %p152
      %p230 = pneg %p149
      %s231 = smul.u32 32, %s16
      %p232 = scmp.lt.s32.totalorder %s231, 63
      %s233 = scalar_select %p232, %s231, 63
      %s234 = smul.addr %s233, 4
      %s235 = scalar_lea.vmem %s5, %s234
      %s236 = smul.u32 32, %s16
      %p237 = scmp.lt.s32.totalorder %s236, 63
      %s238 = scalar_select %p237, %s236, 63
      %s239 = smul.addr %s238, 6
      %s240 = smul.addr %s239, 4
      %s241 = scalar_lea.vmem %s0, %s240
      %s242 = smul.u32 32, %s16
      %s243 = smul.u32 32, %s16
      %p244 = scmp.lt.s32.totalorder %s243, 63
      %s245 = scalar_select %p244, %s243, 63
      %s246 = smul.addr %s245, 3
      %s247 = smul.addr %s246, 4
      %s248 = scalar_lea.vmem %s1, %s247
      %s249 = smul.u32 32, %s16
      %s250 = smul.u32 32, %s16
      %p251 = scmp.lt.s32.totalorder %s250, 63
      %s252 = scalar_select %p251, %s250, 63
      %s253 = smul.addr %s252, 4
      %s254 = scalar_lea.vmem %s5, %s253
      %s255 = smul.u32 32, %s16
      %v257 = vld [vmem:[%s241] sm:$0xff]
      %v258 = vld [vmem:[%s241 + $0x8] sm:$0xff]
      %v259 = vld [vmem:[%s241 + $0x10] sm:$0xff]
      %v260 = vld [vmem:[%s241 + $0x18] sm:$0xff]
      %v261 = vld [vmem:[%s241 + $0x20] sm:$0xff]
      %v262 = vld [vmem:[%s241 + $0x28] sm:$0xff]
      %v263 = vld [vmem:[%s241 + $0x30] sm:$0xff]
      %v264 = vld [vmem:[%s241 + $0x38] sm:$0xff]
      %v265 = vld [vmem:[%s241 + $0x40] sm:$0xff]
      %v266 = vld [vmem:[%s241 + $0x48] sm:$0xff]
      %v267 = vld [vmem:[%s241 + $0x50] sm:$0xff]
      %v268 = vld [vmem:[%s241 + $0x58] sm:$0xff]
      %v269 = vld [vmem:[%s241 + $0x60] sm:$0xff]
      %v270 = vld [vmem:[%s241 + $0x68] sm:$0xff]
      %v271 = vld [vmem:[%s241 + $0x70] sm:$0xff]
      %v272 = vld [vmem:[%s241 + $0x78] sm:$0xff]
      %v273 = vld [vmem:[%s241 + $0x80] sm:$0xff]
      %v274 = vld [vmem:[%s241 + $0x88] sm:$0xff]
      %v275 = vld [vmem:[%s241 + $0x90] sm:$0xff]
      %v276 = vld [vmem:[%s241 + $0x98] sm:$0xff]
      %v277 = vld [vmem:[%s241 + $0xa0] sm:$0xff]
      %v278 = vld [vmem:[%s241 + $0xa8] sm:$0xff]
      %v279 = vld [vmem:[%s241 + $0xb0] sm:$0xff]
      %v280 = vld [vmem:[%s241 + $0xb8] sm:$0xff]
      %v281 = vld [vmem:[%s241 + $0xc0] sm:$0xff]
      %v282 = vld [vmem:[%s241 + $0xc8] sm:$0xff]
      %v283 = vld [vmem:[%s241 + $0xd0] sm:$0xff]
      %v284 = vld [vmem:[%s241 + $0xd8] sm:$0xff]
      %v285 = vld [vmem:[%s241 + $0xe0] sm:$0xff]
      %v286 = vld [vmem:[%s241 + $0xe8] sm:$0xff]
      %v287 = vld [vmem:[%s241 + $0xf0] sm:$0xff]
      %v288 = vld [vmem:[%s241 + $0xf8] sm:$0xff]
      %v289 = vld [vmem:[%s241 + $0x100] sm:$0xff]
      %v290 = vld [vmem:[%s241 + $0x108] sm:$0xff]
      %v291 = vld [vmem:[%s241 + $0x110] sm:$0xff]
      %v292 = vld [vmem:[%s241 + $0x118] sm:$0xff]
      %v293 = vld [vmem:[%s241 + $0x120] sm:$0xff]
      %v294 = vld [vmem:[%s241 + $0x128] sm:$0xff]
      %v295 = vld [vmem:[%s241 + $0x130] sm:$0xff]
      %v296 = vld [vmem:[%s241 + $0x138] sm:$0xff]
      %v297 = vld [vmem:[%s241 + $0x140] sm:$0xff]
      %v298 = vld [vmem:[%s241 + $0x148] sm:$0xff]
      %v299 = vld [vmem:[%s241 + $0x150] sm:$0xff]
      %v300 = vld [vmem:[%s241 + $0x158] sm:$0xff]
      %v301 = vld [vmem:[%s241 + $0x160] sm:$0xff]
      %v302 = vld [vmem:[%s241 + $0x168] sm:$0xff]
      %v303 = vld [vmem:[%s241 + $0x170] sm:$0xff]
      %v304 = vld [vmem:[%s241 + $0x178] sm:$0xff]
      %v305 = vld [vmem:[%s241 + $0x180] sm:$0xff]
      %v306 = vld [vmem:[%s241 + $0x188] sm:$0xff]
      %v307 = vld [vmem:[%s241 + $0x190] sm:$0xff]
      %v308 = vld [vmem:[%s241 + $0x198] sm:$0xff]
      %v309 = vld [vmem:[%s241 + $0x1a0] sm:$0xff]
      %v310 = vld [vmem:[%s241 + $0x1a8] sm:$0xff]
      %v311 = vld [vmem:[%s241 + $0x1b0] sm:$0xff]
      %v312 = vld [vmem:[%s241 + $0x1b8] sm:$0xff]
      %v313 = vld [vmem:[%s241 + $0x1c0] sm:$0xff]
      %v314 = vld [vmem:[%s241 + $0x1c8] sm:$0xff]
      %v315 = vld [vmem:[%s241 + $0x1d0] sm:$0xff]
      %v316 = vld [vmem:[%s241 + $0x1d8] sm:$0xff]
      %v317 = vld [vmem:[%s241 + $0x1e0] sm:$0xff]
      %v318 = vld [vmem:[%s241 + $0x1e8] sm:$0xff]
      %v319 = vld [vmem:[%s241 + $0x1f0] sm:$0xff]
      %v320 = vld [vmem:[%s241 + $0x1f8] sm:$0xff]
      %v321 = vld [vmem:[%s241 + $0x200] sm:$0xff]
      %v322 = vld [vmem:[%s241 + $0x208] sm:$0xff]
      %v323 = vld [vmem:[%s241 + $0x210] sm:$0xff]
      %v324 = vld [vmem:[%s241 + $0x218] sm:$0xff]
      %v325 = vld [vmem:[%s241 + $0x220] sm:$0xff]
      %v326 = vld [vmem:[%s241 + $0x228] sm:$0xff]
      %v327 = vld [vmem:[%s241 + $0x230] sm:$0xff]
      %v328 = vld [vmem:[%s241 + $0x238] sm:$0xff]
      %v329 = vld [vmem:[%s241 + $0x240] sm:$0xff]
      %v330 = vld [vmem:[%s241 + $0x248] sm:$0xff]
      %v331 = vld [vmem:[%s241 + $0x250] sm:$0xff]
      %v332 = vld [vmem:[%s241 + $0x258] sm:$0xff]
      %v333 = vld [vmem:[%s241 + $0x260] sm:$0xff]
      %v334 = vld [vmem:[%s241 + $0x268] sm:$0xff]
      %v335 = vld [vmem:[%s241 + $0x270] sm:$0xff]
      %v336 = vld [vmem:[%s241 + $0x278] sm:$0xff]
      %v337 = vld [vmem:[%s241 + $0x280] sm:$0xff]
      %v338 = vld [vmem:[%s241 + $0x288] sm:$0xff]
      %v339 = vld [vmem:[%s241 + $0x290] sm:$0xff]
      %v340 = vld [vmem:[%s241 + $0x298] sm:$0xff]
      %v341 = vld [vmem:[%s241 + $0x2a0] sm:$0xff]
      %v342 = vld [vmem:[%s241 + $0x2a8] sm:$0xff]
      %v343 = vld [vmem:[%s241 + $0x2b0] sm:$0xff]
      %v344 = vld [vmem:[%s241 + $0x2b8] sm:$0xff]
      %v345 = vld [vmem:[%s241 + $0x2c0] sm:$0xff]
      %v346 = vld [vmem:[%s241 + $0x2c8] sm:$0xff]
      %v347 = vld [vmem:[%s241 + $0x2d0] sm:$0xff]
      %v348 = vld [vmem:[%s241 + $0x2d8] sm:$0xff]
      %v349 = vld [vmem:[%s241 + $0x2e0] sm:$0xff]
      %v350 = vld [vmem:[%s241 + $0x2e8] sm:$0xff]
      %v351 = vld [vmem:[%s241 + $0x2f0] sm:$0xff]
      %v352 = vld [vmem:[%s241 + $0x2f8] sm:$0xff]
      %v353 = vld [vmem:[%s2] sm:$0xf]
      %v354 = vld [vmem:[%s2 + $0x4] sm:$0xf]
      %v355 = vld [vmem:[%s2 + $0x8] sm:$0xf]
      %v356 = vld [vmem:[%s2 + $0xc] sm:$0xf]
      %v357 = vld [vmem:[%s2 + $0x10] sm:$0xf]
      %v358 = vld [vmem:[%s2 + $0x14] sm:$0xf]
      %v359 = vld [vmem:[%s2 + $0x18] sm:$0xf]
      %v360 = vld [vmem:[%s2 + $0x1c] sm:$0xf]
      %v361 = vld [vmem:[%s2 + $0x20] sm:$0xf]
      %v362 = vld [vmem:[%s2 + $0x24] sm:$0xf]
      %v363 = vld [vmem:[%s2 + $0x28] sm:$0xf]
      %v364 = vld [vmem:[%s2 + $0x2c] sm:$0xf]
      %v365 = vld [vmem:[%s2 + $0x30] sm:$0xf]
      %v366 = vld [vmem:[%s2 + $0x34] sm:$0xf]
      %v367 = vld [vmem:[%s2 + $0x38] sm:$0xf]
      %v368 = vld [vmem:[%s2 + $0x3c] sm:$0xf]
      %v369 = vld [vmem:[%s2 + $0x40] sm:$0xf]
      %v370 = vld [vmem:[%s2 + $0x44] sm:$0xf]
      %v371 = vld [vmem:[%s2 + $0x48] sm:$0xf]
      %v372 = vld [vmem:[%s2 + $0x4c] sm:$0xf]
      %v373 = vld [vmem:[%s2 + $0x50] sm:$0xf]
      %v374 = vld [vmem:[%s2 + $0x54] sm:$0xf]
      %v375 = vld [vmem:[%s2 + $0x58] sm:$0xf]
      %v376 = vld [vmem:[%s2 + $0x5c] sm:$0xf]
      %v377 = vld [vmem:[%s2 + $0x60] sm:$0xf]
      %v378 = vld [vmem:[%s2 + $0x64] sm:$0xf]
      %v379 = vld [vmem:[%s2 + $0x68] sm:$0xf]
      %v380 = vld [vmem:[%s2 + $0x6c] sm:$0xf]
      %v381 = vld [vmem:[%s2 + $0x70] sm:$0xf]
      %v382 = vld [vmem:[%s2 + $0x74] sm:$0xf]
      %v383 = vld [vmem:[%s2 + $0x78] sm:$0xf]
      %v384 = vld [vmem:[%s2 + $0x7c] sm:$0xf]
      %v385 = vld [vmem:[%s2 + $0x80] sm:$0xf]
      %v386 = vld [vmem:[%s2 + $0x84] sm:$0xf]
      %v387 = vld [vmem:[%s2 + $0x88] sm:$0xf]
      %v388 = vld [vmem:[%s2 + $0x8c] sm:$0xf]
      %v389 = vld [vmem:[%s2 + $0x90] sm:$0xf]
      %v390 = vld [vmem:[%s2 + $0x94] sm:$0xf]
      %v391 = vld [vmem:[%s2 + $0x98] sm:$0xf]
      %v392 = vld [vmem:[%s2 + $0x9c] sm:$0xf]
      %v393 = vld [vmem:[%s2 + $0xa0] sm:$0xf]
      %v394 = vld [vmem:[%s2 + $0xa4] sm:$0xf]
      %v395 = vld [vmem:[%s2 + $0xa8] sm:$0xf]
      %v396 = vld [vmem:[%s2 + $0xac] sm:$0xf]
      %v397 = vld [vmem:[%s2 + $0xb0] sm:$0xf]
      %v398 = vld [vmem:[%s2 + $0xb4] sm:$0xf]
      %v399 = vld [vmem:[%s2 + $0xb8] sm:$0xf]
      %v400 = vld [vmem:[%s2 + $0xbc] sm:$0xf]
      %v401 = vld [vmem:[%s2 + $0xc0] sm:$0xf]
      %v402 = vld [vmem:[%s2 + $0xc4] sm:$0xf]
      %v403 = vld [vmem:[%s2 + $0xc8] sm:$0xf]
      %v404 = vld [vmem:[%s2 + $0xcc] sm:$0xf]
      %v405 = vld [vmem:[%s2 + $0xd0] sm:$0xf]
      %v406 = vld [vmem:[%s2 + $0xd4] sm:$0xf]
      %v407 = vld [vmem:[%s2 + $0xd8] sm:$0xf]
      %v408 = vld [vmem:[%s2 + $0xdc] sm:$0xf]
      %v409 = vld [vmem:[%s2 + $0xe0] sm:$0xf]
      %v410 = vld [vmem:[%s2 + $0xe4] sm:$0xf]
      %v411 = vld [vmem:[%s2 + $0xe8] sm:$0xf]
      %v412 = vld [vmem:[%s2 + $0xec] sm:$0xf]
      %v413 = vld [vmem:[%s2 + $0xf0] sm:$0xf]
      %v414 = vld [vmem:[%s2 + $0xf4] sm:$0xf]
      %v415 = vld [vmem:[%s2 + $0xf8] sm:$0xf]
      %v416 = vld [vmem:[%s2 + $0xfc] sm:$0xf]
      %v417 = vld [vmem:[%s2 + $0x100] sm:$0xf]
      %v418 = vld [vmem:[%s2 + $0x104] sm:$0xf]
      %v419 = vld [vmem:[%s2 + $0x108] sm:$0xf]
      %v420 = vld [vmem:[%s2 + $0x10c] sm:$0xf]
      %v421 = vld [vmem:[%s2 + $0x110] sm:$0xf]
      %v422 = vld [vmem:[%s2 + $0x114] sm:$0xf]
      %v423 = vld [vmem:[%s2 + $0x118] sm:$0xf]
      %v424 = vld [vmem:[%s2 + $0x11c] sm:$0xf]
      %v425 = vld [vmem:[%s2 + $0x120] sm:$0xf]
      %v426 = vld [vmem:[%s2 + $0x124] sm:$0xf]
      %v427 = vld [vmem:[%s2 + $0x128] sm:$0xf]
      %v428 = vld [vmem:[%s2 + $0x12c] sm:$0xf]
      %v429 = vld [vmem:[%s2 + $0x130] sm:$0xf]
      %v430 = vld [vmem:[%s2 + $0x134] sm:$0xf]
      %v431 = vld [vmem:[%s2 + $0x138] sm:$0xf]
      %v432 = vld [vmem:[%s2 + $0x13c] sm:$0xf]
      %v433 = vld [vmem:[%s2 + $0x140] sm:$0xf]
      %v434 = vld [vmem:[%s2 + $0x144] sm:$0xf]
      %v435 = vld [vmem:[%s2 + $0x148] sm:$0xf]
      %v436 = vld [vmem:[%s2 + $0x14c] sm:$0xf]
      %v437 = vld [vmem:[%s2 + $0x150] sm:$0xf]
      %v438 = vld [vmem:[%s2 + $0x154] sm:$0xf]
      %v439 = vld [vmem:[%s2 + $0x158] sm:$0xf]
      %v440 = vld [vmem:[%s2 + $0x15c] sm:$0xf]
      %v441 = vld [vmem:[%s2 + $0x160] sm:$0xf]
      %v442 = vld [vmem:[%s2 + $0x164] sm:$0xf]
      %v443 = vld [vmem:[%s2 + $0x168] sm:$0xf]
      %v444 = vld [vmem:[%s2 + $0x16c] sm:$0xf]
      %v445 = vld [vmem:[%s2 + $0x170] sm:$0xf]
      %v446 = vld [vmem:[%s2 + $0x174] sm:$0xf]
      %v447 = vld [vmem:[%s2 + $0x178] sm:$0xf]
      %v448 = vld [vmem:[%s2 + $0x17c] sm:$0xf]
      %v449 = vld [vmem:[%s248] sm:$0xff]
      %v450 = vld [vmem:[%s248 + $0x8] sm:$0xf]
      %v451 = vld [vmem:[%s248 + $0xc] sm:$0xff]
      %v452 = vld [vmem:[%s248 + $0x14] sm:$0xf]
      %v453 = vld [vmem:[%s248 + $0x18] sm:$0xff]
      %v454 = vld [vmem:[%s248 + $0x20] sm:$0xf]
      %v455 = vld [vmem:[%s248 + $0x24] sm:$0xff]
      %v456 = vld [vmem:[%s248 + $0x2c] sm:$0xf]
      %v457 = vld [vmem:[%s248 + $0x30] sm:$0xff]
      %v458 = vld [vmem:[%s248 + $0x38] sm:$0xf]
      %v459 = vld [vmem:[%s248 + $0x3c] sm:$0xff]
      %v460 = vld [vmem:[%s248 + $0x44] sm:$0xf]
      %v461 = vld [vmem:[%s248 + $0x48] sm:$0xff]
      %v462 = vld [vmem:[%s248 + $0x50] sm:$0xf]
      %v463 = vld [vmem:[%s248 + $0x54] sm:$0xff]
      %v464 = vld [vmem:[%s248 + $0x5c] sm:$0xf]
      %v465 = vld [vmem:[%s248 + $0x60] sm:$0xff]
      %v466 = vld [vmem:[%s248 + $0x68] sm:$0xf]
      %v467 = vld [vmem:[%s248 + $0x6c] sm:$0xff]
      %v468 = vld [vmem:[%s248 + $0x74] sm:$0xf]
      %v469 = vld [vmem:[%s248 + $0x78] sm:$0xff]
      %v470 = vld [vmem:[%s248 + $0x80] sm:$0xf]
      %v471 = vld [vmem:[%s248 + $0x84] sm:$0xff]
      %v472 = vld [vmem:[%s248 + $0x8c] sm:$0xf]
      %v473 = vld [vmem:[%s248 + $0x90] sm:$0xff]
      %v474 = vld [vmem:[%s248 + $0x98] sm:$0xf]
      %v475 = vld [vmem:[%s248 + $0x9c] sm:$0xff]
      %v476 = vld [vmem:[%s248 + $0xa4] sm:$0xf]
      %v477 = vld [vmem:[%s248 + $0xa8] sm:$0xff]
      %v478 = vld [vmem:[%s248 + $0xb0] sm:$0xf]
      %v479 = vld [vmem:[%s248 + $0xb4] sm:$0xff]
      %v480 = vld [vmem:[%s248 + $0xbc] sm:$0xf]
      %v481 = vld [vmem:[%s248 + $0xc0] sm:$0xff]
      %v482 = vld [vmem:[%s248 + $0xc8] sm:$0xf]
      %v483 = vld [vmem:[%s248 + $0xcc] sm:$0xff]
      %v484 = vld [vmem:[%s248 + $0xd4] sm:$0xf]
      %v485 = vld [vmem:[%s248 + $0xd8] sm:$0xff]
      %v486 = vld [vmem:[%s248 + $0xe0] sm:$0xf]
      %v487 = vld [vmem:[%s248 + $0xe4] sm:$0xff]
      %v488 = vld [vmem:[%s248 + $0xec] sm:$0xf]
      %v489 = vld [vmem:[%s248 + $0xf0] sm:$0xff]
      %v490 = vld [vmem:[%s248 + $0xf8] sm:$0xf]
      %v491 = vld [vmem:[%s248 + $0xfc] sm:$0xff]
      %v492 = vld [vmem:[%s248 + $0x104] sm:$0xf]
      %v493 = vld [vmem:[%s248 + $0x108] sm:$0xff]
      %v494 = vld [vmem:[%s248 + $0x110] sm:$0xf]
      %v495 = vld [vmem:[%s248 + $0x114] sm:$0xff]
      %v496 = vld [vmem:[%s248 + $0x11c] sm:$0xf]
      %v497 = vld [vmem:[%s248 + $0x120] sm:$0xff]
      %v498 = vld [vmem:[%s248 + $0x128] sm:$0xf]
      %v499 = vld [vmem:[%s248 + $0x12c] sm:$0xff]
      %v500 = vld [vmem:[%s248 + $0x134] sm:$0xf]
      %v501 = vld [vmem:[%s248 + $0x138] sm:$0xff]
      %v502 = vld [vmem:[%s248 + $0x140] sm:$0xf]
      %v503 = vld [vmem:[%s248 + $0x144] sm:$0xff]
      %v504 = vld [vmem:[%s248 + $0x14c] sm:$0xf]
      %v505 = vld [vmem:[%s248 + $0x150] sm:$0xff]
      %v506 = vld [vmem:[%s248 + $0x158] sm:$0xf]
      %v507 = vld [vmem:[%s248 + $0x15c] sm:$0xff]
      %v508 = vld [vmem:[%s248 + $0x164] sm:$0xf]
      %v509 = vld [vmem:[%s248 + $0x168] sm:$0xff]
      %v510 = vld [vmem:[%s248 + $0x170] sm:$0xf]
      %v511 = vld [vmem:[%s248 + $0x174] sm:$0xff]
      %v512 = vld [vmem:[%s248 + $0x17c] sm:$0xf]
      %v513 = vld [vmem:[%s3] sm:$0xf]
      %v514 = vld [vmem:[%s3 + $0x4] sm:$0xf]
      %v515 = vld [vmem:[%s3 + $0x8] sm:$0xf]
      %v516 = vld [vmem:[%s3 + $0xc] sm:$0xf]
      %v517 = vld [vmem:[%s3 + $0x10] sm:$0xf]
      %v518 = vld [vmem:[%s3 + $0x14] sm:$0xf]
      %v519 = vld [vmem:[%s3 + $0x18] sm:$0xf]
      %v520 = vld [vmem:[%s3 + $0x1c] sm:$0xf]
      %v521 = vld [vmem:[%s3 + $0x20] sm:$0xf]
      %v522 = vld [vmem:[%s3 + $0x24] sm:$0xf]
      %v523 = vld [vmem:[%s3 + $0x28] sm:$0xf]
      %v524 = vld [vmem:[%s3 + $0x2c] sm:$0xf]
      %v525 = vld [vmem:[%s3 + $0x30] sm:$0xf]
      %v526 = vld [vmem:[%s3 + $0x34] sm:$0xf]
      %v527 = vld [vmem:[%s3 + $0x38] sm:$0xf]
      %v528 = vld [vmem:[%s3 + $0x3c] sm:$0xf]
      %v529 = vld [vmem:[%s3 + $0x40] sm:$0xf]
      %v530 = vld [vmem:[%s3 + $0x44] sm:$0xf]
      %v531 = vld [vmem:[%s3 + $0x48] sm:$0xf]
      %v532 = vld [vmem:[%s3 + $0x4c] sm:$0xf]
      %v533 = vld [vmem:[%s3 + $0x50] sm:$0xf]
      %v534 = vld [vmem:[%s3 + $0x54] sm:$0xf]
      %v535 = vld [vmem:[%s3 + $0x58] sm:$0xf]
      %v536 = vld [vmem:[%s3 + $0x5c] sm:$0xf]
      %v537 = vld [vmem:[%s3 + $0x60] sm:$0xf]
      %v538 = vld [vmem:[%s3 + $0x64] sm:$0xf]
      %v539 = vld [vmem:[%s3 + $0x68] sm:$0xf]
      %v540 = vld [vmem:[%s3 + $0x6c] sm:$0xf]
      %v541 = vld [vmem:[%s3 + $0x70] sm:$0xf]
      %v542 = vld [vmem:[%s3 + $0x74] sm:$0xf]
      %v543 = vld [vmem:[%s3 + $0x78] sm:$0xf]
      %v544 = vld [vmem:[%s3 + $0x7c] sm:$0xf]
      %v545 = vld [vmem:[%s3 + $0x80] sm:$0xf]
      %v546 = vld [vmem:[%s3 + $0x84] sm:$0xf]
      %v547 = vld [vmem:[%s3 + $0x88] sm:$0xf]
      %v548 = vld [vmem:[%s3 + $0x8c] sm:$0xf]
      %v549 = vld [vmem:[%s3 + $0x90] sm:$0xf]
      %v550 = vld [vmem:[%s3 + $0x94] sm:$0xf]
      %v551 = vld [vmem:[%s3 + $0x98] sm:$0xf]
      %v552 = vld [vmem:[%s3 + $0x9c] sm:$0xf]
      %v553 = vld [vmem:[%s3 + $0xa0] sm:$0xf]
      %v554 = vld [vmem:[%s3 + $0xa4] sm:$0xf]
      %v555 = vld [vmem:[%s3 + $0xa8] sm:$0xf]
      %v556 = vld [vmem:[%s3 + $0xac] sm:$0xf]
      %v557 = vld [vmem:[%s3 + $0xb0] sm:$0xf]
      %v558 = vld [vmem:[%s3 + $0xb4] sm:$0xf]
      %v559 = vld [vmem:[%s3 + $0xb8] sm:$0xf]
      %v560 = vld [vmem:[%s3 + $0xbc] sm:$0xf]
      %v625 = vunpack.c.l.b16 %v449
      %v626 = vunpack.c.h.b16 %v449
      %v627 = vunpack.c.l.b16 %v450
      %v628 = vunpack.c.l.b16 %v451
      %v629 = vunpack.c.h.b16 %v451
      %v630 = vunpack.c.l.b16 %v452
      %v631 = vunpack.c.l.b16 %v453
      %v632 = vunpack.c.h.b16 %v453
      %v633 = vunpack.c.l.b16 %v454
      %v634 = vunpack.c.l.b16 %v455
      %v635 = vunpack.c.h.b16 %v455
      %v636 = vunpack.c.l.b16 %v456
      %v637 = vunpack.c.l.b16 %v457
      %v638 = vunpack.c.h.b16 %v457
      %v639 = vunpack.c.l.b16 %v458
      %v640 = vunpack.c.l.b16 %v459
      %v641 = vunpack.c.h.b16 %v459
      %v642 = vunpack.c.l.b16 %v460
      %v643 = vunpack.c.l.b16 %v461
      %v644 = vunpack.c.h.b16 %v461
      %v645 = vunpack.c.l.b16 %v462
      %v646 = vunpack.c.l.b16 %v463
      %v647 = vunpack.c.h.b16 %v463
      %v648 = vunpack.c.l.b16 %v464
      %v649 = vunpack.c.l.b16 %v465
      %v650 = vunpack.c.h.b16 %v465
      %v651 = vunpack.c.l.b16 %v466
      %v652 = vunpack.c.l.b16 %v467
      %v653 = vunpack.c.h.b16 %v467
      %v654 = vunpack.c.l.b16 %v468
      %v655 = vunpack.c.l.b16 %v469
      %v656 = vunpack.c.h.b16 %v469
      %v657 = vunpack.c.l.b16 %v470
      %v658 = vunpack.c.l.b16 %v471
      %v659 = vunpack.c.h.b16 %v471
      %v660 = vunpack.c.l.b16 %v472
      %v661 = vunpack.c.l.b16 %v473
      %v662 = vunpack.c.h.b16 %v473
      %v663 = vunpack.c.l.b16 %v474
      %v664 = vunpack.c.l.b16 %v475
      %v665 = vunpack.c.h.b16 %v475
      %v666 = vunpack.c.l.b16 %v476
      %v667 = vunpack.c.l.b16 %v477
      %v668 = vunpack.c.h.b16 %v477
      %v669 = vunpack.c.l.b16 %v478
      %v670 = vunpack.c.l.b16 %v479
      %v671 = vunpack.c.h.b16 %v479
      %v672 = vunpack.c.l.b16 %v480
      %v673 = vunpack.c.l.b16 %v481
      %v674 = vunpack.c.h.b16 %v481
      %v675 = vunpack.c.l.b16 %v482
      %v676 = vunpack.c.l.b16 %v483
      %v677 = vunpack.c.h.b16 %v483
      %v678 = vunpack.c.l.b16 %v484
      %v679 = vunpack.c.l.b16 %v485
      %v680 = vunpack.c.h.b16 %v485
      %v681 = vunpack.c.l.b16 %v486
      %v682 = vunpack.c.l.b16 %v487
      %v683 = vunpack.c.h.b16 %v487
      %v684 = vunpack.c.l.b16 %v488
      %v685 = vunpack.c.l.b16 %v489
      %v686 = vunpack.c.h.b16 %v489
      %v687 = vunpack.c.l.b16 %v490
      %v688 = vunpack.c.l.b16 %v491
      %v689 = vunpack.c.h.b16 %v491
      %v690 = vunpack.c.l.b16 %v492
      %v691 = vunpack.c.l.b16 %v493
      %v692 = vunpack.c.h.b16 %v493
      %v693 = vunpack.c.l.b16 %v494
      %v694 = vunpack.c.l.b16 %v495
      %v695 = vunpack.c.h.b16 %v495
      %v696 = vunpack.c.l.b16 %v496
      %v697 = vunpack.c.l.b16 %v497
      %v698 = vunpack.c.h.b16 %v497
      %v699 = vunpack.c.l.b16 %v498
      %v700 = vunpack.c.l.b16 %v499
      %v701 = vunpack.c.h.b16 %v499
      %v702 = vunpack.c.l.b16 %v500
      %v703 = vunpack.c.l.b16 %v501
      %v704 = vunpack.c.h.b16 %v501
      %v705 = vunpack.c.l.b16 %v502
      %v706 = vunpack.c.l.b16 %v503
      %v707 = vunpack.c.h.b16 %v503
      %v708 = vunpack.c.l.b16 %v504
      %v709 = vunpack.c.l.b16 %v505
      %v710 = vunpack.c.h.b16 %v505
      %v711 = vunpack.c.l.b16 %v506
      %v712 = vunpack.c.l.b16 %v507
      %v713 = vunpack.c.h.b16 %v507
      %v714 = vunpack.c.l.b16 %v508
      %v715 = vunpack.c.l.b16 %v509
      %v716 = vunpack.c.h.b16 %v509
      %v717 = vunpack.c.l.b16 %v510
      %v718 = vunpack.c.l.b16 %v511
      %v719 = vunpack.c.h.b16 %v511
      %v720 = vunpack.c.l.b16 %v512
      %v721 = vpack.c.b16 %v628, %v625
      %v722 = vpack.c.b16 %v629, %v626
      %v723 = vpack.c.b16 %v630, %v627
      %v724 = vpack.c.b16 %v634, %v631
      %v725 = vpack.c.b16 %v635, %v632
      %v726 = vpack.c.b16 %v636, %v633
      %v727 = vpack.c.b16 %v640, %v637
      %v728 = vpack.c.b16 %v641, %v638
      %v729 = vpack.c.b16 %v642, %v639
      %v730 = vpack.c.b16 %v646, %v643
      %v731 = vpack.c.b16 %v647, %v644
      %v732 = vpack.c.b16 %v648, %v645
      %v733 = vpack.c.b16 %v652, %v649
      %v734 = vpack.c.b16 %v653, %v650
      %v735 = vpack.c.b16 %v654, %v651
      %v736 = vpack.c.b16 %v658, %v655
      %v737 = vpack.c.b16 %v659, %v656
      %v738 = vpack.c.b16 %v660, %v657
      %v739 = vpack.c.b16 %v664, %v661
      %v740 = vpack.c.b16 %v665, %v662
      %v741 = vpack.c.b16 %v666, %v663
      %v742 = vpack.c.b16 %v670, %v667
      %v743 = vpack.c.b16 %v671, %v668
      %v744 = vpack.c.b16 %v672, %v669
      %v745 = vpack.c.b16 %v676, %v673
      %v746 = vpack.c.b16 %v677, %v674
      %v747 = vpack.c.b16 %v678, %v675
      %v748 = vpack.c.b16 %v682, %v679
      %v749 = vpack.c.b16 %v683, %v680
      %v750 = vpack.c.b16 %v684, %v681
      %v751 = vpack.c.b16 %v688, %v685
      %v752 = vpack.c.b16 %v689, %v686
      %v753 = vpack.c.b16 %v690, %v687
      %v754 = vpack.c.b16 %v694, %v691
      %v755 = vpack.c.b16 %v695, %v692
      %v756 = vpack.c.b16 %v696, %v693
      %v757 = vpack.c.b16 %v700, %v697
      %v758 = vpack.c.b16 %v701, %v698
      %v759 = vpack.c.b16 %v702, %v699
      %v760 = vpack.c.b16 %v706, %v703
      %v761 = vpack.c.b16 %v707, %v704
      %v762 = vpack.c.b16 %v708, %v705
      %v763 = vpack.c.b16 %v712, %v709
      %v764 = vpack.c.b16 %v713, %v710
      %v765 = vpack.c.b16 %v714, %v711
      %v766 = vpack.c.b16 %v718, %v715
      %v767 = vpack.c.b16 %v719, %v716
      %v768 = vpack.c.b16 %v720, %v717
      %v865 = vunpack.c.l.b16 %v513
      %v866 = vunpack.c.l.b16 %v514
      %v867 = vunpack.c.l.b16 %v515
      %v868 = vunpack.c.l.b16 %v516
      %v869 = vunpack.c.l.b16 %v517
      %v870 = vunpack.c.l.b16 %v518
      %v871 = vunpack.c.l.b16 %v519
      %v872 = vunpack.c.l.b16 %v520
      %v873 = vunpack.c.l.b16 %v521
      %v874 = vunpack.c.l.b16 %v522
      %v875 = vunpack.c.l.b16 %v523
      %v876 = vunpack.c.l.b16 %v524
      %v877 = vunpack.c.l.b16 %v525
      %v878 = vunpack.c.l.b16 %v526
      %v879 = vunpack.c.l.b16 %v527
      %v880 = vunpack.c.l.b16 %v528
      %v881 = vunpack.c.l.b16 %v529
      %v882 = vunpack.c.l.b16 %v530
      %v883 = vunpack.c.l.b16 %v531
      %v884 = vunpack.c.l.b16 %v532
      %v885 = vunpack.c.l.b16 %v533
      %v886 = vunpack.c.l.b16 %v534
      %v887 = vunpack.c.l.b16 %v535
      %v888 = vunpack.c.l.b16 %v536
      %v889 = vunpack.c.l.b16 %v537
      %v890 = vunpack.c.l.b16 %v538
      %v891 = vunpack.c.l.b16 %v539
      %v892 = vunpack.c.l.b16 %v540
      %v893 = vunpack.c.l.b16 %v541
      %v894 = vunpack.c.l.b16 %v542
      %v895 = vunpack.c.l.b16 %v543
      %v896 = vunpack.c.l.b16 %v544
      %v897 = vunpack.c.l.b16 %v545
      %v898 = vunpack.c.l.b16 %v546
      %v899 = vunpack.c.l.b16 %v547
      %v900 = vunpack.c.l.b16 %v548
      %v901 = vunpack.c.l.b16 %v549
      %v902 = vunpack.c.l.b16 %v550
      %v903 = vunpack.c.l.b16 %v551
      %v904 = vunpack.c.l.b16 %v552
      %v905 = vunpack.c.l.b16 %v553
      %v906 = vunpack.c.l.b16 %v554
      %v907 = vunpack.c.l.b16 %v555
      %v908 = vunpack.c.l.b16 %v556
      %v909 = vunpack.c.l.b16 %v557
      %v910 = vunpack.c.l.b16 %v558
      %v911 = vunpack.c.l.b16 %v559
      %v912 = vunpack.c.l.b16 %v560
      %v913 = vpack.c.b16 %v866, %v865
      %v914 = vpack.c.b16 %v868, %v867
      %v915 = vpack.c.b16 %v870, %v869
      %v916 = vpack.c.b16 %v872, %v871
      %v917 = vpack.c.b16 %v874, %v873
      %v918 = vpack.c.b16 %v876, %v875
      %v919 = vpack.c.b16 %v878, %v877
      %v920 = vpack.c.b16 %v880, %v879
      %v921 = vpack.c.b16 %v882, %v881
      %v922 = vpack.c.b16 %v884, %v883
      %v923 = vpack.c.b16 %v886, %v885
      %v924 = vpack.c.b16 %v888, %v887
      %v925 = vpack.c.b16 %v890, %v889
      %v926 = vpack.c.b16 %v892, %v891
      %v927 = vpack.c.b16 %v894, %v893
      %v928 = vpack.c.b16 %v896, %v895
      %v929 = vpack.c.b16 %v898, %v897
      %v930 = vpack.c.b16 %v900, %v899
      %v931 = vpack.c.b16 %v902, %v901
      %v932 = vpack.c.b16 %v904, %v903
      %v933 = vpack.c.b16 %v906, %v905
      %v934 = vpack.c.b16 %v908, %v907
      %v935 = vpack.c.b16 %v910, %v909
      %v936 = vpack.c.b16 %v912, %v911
      %961 = vmatprep.subr.bf16.mxu0 0
      %962 = vmatpush1.bf16.msra.mxu0 %v913
      %963 = vmatprep.subr.bf16.mxu0 0
      %964 = vmatpush1.bf16.msra.mxu0 %v914
      %965 = vmatprep.subr.bf16.mxu0 0
      %966 = vmatpush1.bf16.msra.mxu0 %v915
      %967 = vmatprep.subr.bf16.mxu0 0
      %968 = vmatpush1.bf16.msra.mxu0 %v916
      %969 = vmatprep.subr.bf16.mxu0 0
      %970 = vmatpush1.bf16.msra.mxu0 %v917
      %971 = vmatprep.subr.bf16.mxu0 0
      %972 = vmatpush1.bf16.msra.mxu0 %v918
      %973 = vmatprep.subr.bf16.mxu0 0
      %974 = vmatpush1.bf16.msra.mxu0 %v919
      %975 = vmatprep.subr.bf16.mxu0 0
      %976 = vmatpush1.bf16.msra.mxu0 %v920
      %977 = vmatprep.subr.bf16.mxu0 0
      %978 = vmatpush1.bf16.msra.mxu0 %v921
      %979 = vmatprep.subr.bf16.mxu0 0
      %980 = vmatpush1.bf16.msra.mxu0 %v922
      %981 = vmatprep.subr.bf16.mxu0 0
      %982 = vmatpush1.bf16.msra.mxu0 %v923
      %983 = vmatprep.subr.bf16.mxu0 0
      %984 = vmatpush1.bf16.msra.mxu0 %v924
      %985 = vmatprep.subr.bf16.mxu0 0
      %986 = vmatpush1.bf16.msra.mxu0 %v925
      %987 = vmatprep.subr.bf16.mxu0 0
      %988 = vmatpush1.bf16.msra.mxu0 %v926
      %989 = vmatprep.subr.bf16.mxu0 0
      %990 = vmatpush1.bf16.msra.mxu0 %v927
      %991 = vmatprep.subr.bf16.mxu0 0
      %992 = vmatpush1.bf16.msra.mxu0 %v928
      %993 = vmatprep.mubr.bf16.mxu0 %v722
      %994 = vmatmul.mubr.bf16.gmra.mrb[0].mxu0 %v721
      %v995 = vpop.f32.mrb[0].mxu0
      %v996 = vadd.f32 0.0, %v995
      %v997 = vpop.f32.mrb[0].mxu0
      %v998 = vpop.f32.mrb[0].mxu0
      %v999 = vadd.f32 0.0, %v998
      %v1000 = vpop.f32.mrb[0].mxu0
      %1001 = vmatprep.mubr.bf16.mxu0 %v725
      %1002 = vmatmul.mubr.bf16.gmra.mrb[0].mxu0 %v724
      %v1003 = vpop.f32.mrb[0].mxu0
      %v1004 = vadd.f32 0.0, %v1003
      %v1005 = vpop.f32.mrb[0].mxu0
      %v1006 = vpop.f32.mrb[0].mxu0
      %v1007 = vadd.f32 0.0, %v1006
      %v1008 = vpop.f32.mrb[0].mxu0
      %1009 = vmatprep.mubr.bf16.mxu0 %v728
      %1010 = vmatmul.mubr.bf16.gmra.mrb[0].mxu0 %v727
      %v1011 = vpop.f32.mrb[0].mxu0
      %v1012 = vadd.f32 0.0, %v1011
      %v1013 = vpop.f32.mrb[0].mxu0
      %v1014 = vpop.f32.mrb[0].mxu0
      %v1015 = vadd.f32 0.0, %v1014
      %v1016 = vpop.f32.mrb[0].mxu0
      %1017 = vmatprep.mubr.bf16.mxu0 %v731
      %1018 = vmatmul.mubr.bf16.gmra.mrb[0].mxu0 %v730
      %v1019 = vpop.f32.mrb[0].mxu0
      %v1020 = vadd.f32 0.0, %v1019
      %v1021 = vpop.f32.mrb[0].mxu0
      %v1022 = vpop.f32.mrb[0].mxu0
      %v1023 = vadd.f32 0.0, %v1022
      %v1024 = vpop.f32.mrb[0].mxu0
      %1025 = vmatprep.mubr.bf16.mxu0 %v734
      %1026 = vmatmul.mubr.bf16.gmra.mrb[0].mxu0 %v733
      %v1027 = vpop.f32.mrb[0].mxu0
      %v1028 = vadd.f32 0.0, %v1027
      %v1029 = vpop.f32.mrb[0].mxu0
      %v1030 = vpop.f32.mrb[0].mxu0
      %v1031 = vadd.f32 0.0, %v1030
      %v1032 = vpop.f32.mrb[0].mxu0
      %1033 = vmatprep.mubr.bf16.mxu0 %v737
      %1034 = vmatmul.mubr.bf16.gmra.mrb[0].mxu0 %v736
      %v1035 = vpop.f32.mrb[0].mxu0
      %v1036 = vadd.f32 0.0, %v1035
      %v1037 = vpop.f32.mrb[0].mxu0
      %v1038 = vpop.f32.mrb[0].mxu0
      %v1039 = vadd.f32 0.0, %v1038
      %v1040 = vpop.f32.mrb[0].mxu0
      %1041 = vmatprep.mubr.bf16.mxu0 %v740
      %1042 = vmatmul.mubr.bf16.gmra.mrb[0].mxu0 %v739
      %v1043 = vpop.f32.mrb[0].mxu0
      %v1044 = vadd.f32 0.0, %v1043
      %v1045 = vpop.f32.mrb[0].mxu0
      %v1046 = vpop.f32.mrb[0].mxu0
      %v1047 = vadd.f32 0.0, %v1046
      %v1048 = vpop.f32.mrb[0].mxu0
      %1049 = vmatprep.mubr.bf16.mxu0 %v743
      %1050 = vmatmul.mubr.bf16.gmra.mrb[0].mxu0 %v742
      %v1051 = vpop.f32.mrb[0].mxu0
      %v1052 = vadd.f32 0.0, %v1051
      %v1053 = vpop.f32.mrb[0].mxu0
      %v1054 = vpop.f32.mrb[0].mxu0
      %v1055 = vadd.f32 0.0, %v1054
      %v1056 = vpop.f32.mrb[0].mxu0
      %1057 = vmatprep.mubr.bf16.mxu0 %v746
      %1058 = vmatmul.mubr.bf16.gmra.mrb[0].mxu0 %v745
      %v1059 = vpop.f32.mrb[0].mxu0
      %v1060 = vadd.f32 0.0, %v1059
      %v1061 = vpop.f32.mrb[0].mxu0
      %v1062 = vpop.f32.mrb[0].mxu0
      %v1063 = vadd.f32 0.0, %v1062
      %v1064 = vpop.f32.mrb[0].mxu0
      %1065 = vmatprep.mubr.bf16.mxu0 %v749
      %1066 = vmatmul.mubr.bf16.gmra.mrb[0].mxu0 %v748
      %v1067 = vpop.f32.mrb[0].mxu0
      %v1068 = vadd.f32 0.0, %v1067
      %v1069 = vpop.f32.mrb[0].mxu0
      %v1070 = vpop.f32.mrb[0].mxu0
      %v1071 = vadd.f32 0.0, %v1070
      %v1072 = vpop.f32.mrb[0].mxu0
      %1073 = vmatprep.mubr.bf16.mxu0 %v752
      %1074 = vmatmul.mubr.bf16.gmra.mrb[0].mxu0 %v751
      %v1075 = vpop.f32.mrb[0].mxu0
      %v1076 = vadd.f32 0.0, %v1075
      %v1077 = vpop.f32.mrb[0].mxu0
      %v1078 = vpop.f32.mrb[0].mxu0
      %v1079 = vadd.f32 0.0, %v1078
      %v1080 = vpop.f32.mrb[0].mxu0
      %1081 = vmatprep.mubr.bf16.mxu0 %v755
      %1082 = vmatmul.mubr.bf16.gmra.mrb[0].mxu0 %v754
      %v1083 = vpop.f32.mrb[0].mxu0
      %v1084 = vadd.f32 0.0, %v1083
      %v1085 = vpop.f32.mrb[0].mxu0
      %v1086 = vpop.f32.mrb[0].mxu0
      %v1087 = vadd.f32 0.0, %v1086
      %v1088 = vpop.f32.mrb[0].mxu0
      %1089 = vmatprep.mubr.bf16.mxu0 %v758
      %1090 = vmatmul.mubr.bf16.gmra.mrb[0].mxu0 %v757
      %v1091 = vpop.f32.mrb[0].mxu0
      %v1092 = vadd.f32 0.0, %v1091
      %v1093 = vpop.f32.mrb[0].mxu0
      %v1094 = vpop.f32.mrb[0].mxu0
      %v1095 = vadd.f32 0.0, %v1094
      %v1096 = vpop.f32.mrb[0].mxu0
      %1097 = vmatprep.mubr.bf16.mxu0 %v761
      %1098 = vmatmul.mubr.bf16.gmra.mrb[0].mxu0 %v760
      %v1099 = vpop.f32.mrb[0].mxu0
      %v1100 = vadd.f32 0.0, %v1099
      %v1101 = vpop.f32.mrb[0].mxu0
      %v1102 = vpop.f32.mrb[0].mxu0
      %v1103 = vadd.f32 0.0, %v1102
      %v1104 = vpop.f32.mrb[0].mxu0
      %1105 = vmatprep.mubr.bf16.mxu0 %v764
      %1106 = vmatmul.mubr.bf16.gmra.mrb[0].mxu0 %v763
      %v1107 = vpop.f32.mrb[0].mxu0
      %v1108 = vadd.f32 0.0, %v1107
      %v1109 = vpop.f32.mrb[0].mxu0
      %v1110 = vpop.f32.mrb[0].mxu0
      %v1111 = vadd.f32 0.0, %v1110
      %v1112 = vpop.f32.mrb[0].mxu0
      %1113 = vmatprep.mubr.bf16.mxu0 %v767
      %1114 = vmatmul.mubr.bf16.gmra.mrb[0].mxu0 %v766
      %v1115 = vpop.f32.mrb[0].mxu0
      %v1116 = vadd.f32 0.0, %v1115
      %v1117 = vpop.f32.mrb[0].mxu0
      %v1118 = vpop.f32.mrb[0].mxu0
      %v1119 = vadd.f32 0.0, %v1118
      %v1120 = vpop.f32.mrb[0].mxu0
      %1121 = vdwg.mxu0
      %1122 = vmatprep.subr.bf16.mxu0 0
      %1123 = vmatpush1.bf16.msra.mxu0 %v929
      %1124 = vmatprep.subr.bf16.mxu0 0
      %1125 = vmatpush1.bf16.msra.mxu0 %v930
      %1126 = vmatprep.subr.bf16.mxu0 0
      %1127 = vmatpush1.bf16.msra.mxu0 %v931
      %1128 = vmatprep.subr.bf16.mxu0 0
      %1129 = vmatpush1.bf16.msra.mxu0 %v932
      %1130 = vmatprep.subr.bf16.mxu0 0
      %1131 = vmatpush1.bf16.msra.mxu0 %v933
      %1132 = vmatprep.subr.bf16.mxu0 0
      %1133 = vmatpush1.bf16.msra.mxu0 %v934
      %1134 = vmatprep.subr.bf16.mxu0 0
      %1135 = vmatpush1.bf16.msra.mxu0 %v935
      %1136 = vmatprep.subr.bf16.mxu0 0
      %1137 = vmatpush1.bf16.msra.mxu0 %v936
      %1138 = vmatprep.subr.bf16.mxu0 0
      %1139 = vmatpush1.bf16.msra.mxu0 0
      %1140 = vmatprep.subr.bf16.mxu0 0
      %1141 = vmatpush1.bf16.msra.mxu0 0
      %1142 = vmatprep.subr.bf16.mxu0 0
      %1143 = vmatpush1.bf16.msra.mxu0 0
      %1144 = vmatprep.subr.bf16.mxu0 0
      %1145 = vmatpush1.bf16.msra.mxu0 0
      %1146 = vmatprep.subr.bf16.mxu0 0
      %1147 = vmatpush1.bf16.msra.mxu0 0
      %1148 = vmatprep.subr.bf16.mxu0 0
      %1149 = vmatpush1.bf16.msra.mxu0 0
      %1150 = vmatprep.subr.bf16.mxu0 0
      %1151 = vmatpush1.bf16.msra.mxu0 0
      %1152 = vmatprep.subr.bf16.mxu0 0
      %1153 = vmatpush1.bf16.msra.mxu0 0
      %1154 = vmatprep.mubr.bf16.mxu0 0
      %1155 = vmatmul.mubr.bf16.gmra.mrb[0].mxu0 %v723
      %v1156 = vpop.f32.mrb[0].mxu0
      %v1157 = vadd.f32 %v996, %v1156
      %v1158 = vpop.f32.mrb[0].mxu0
      %v1159 = vpop.f32.mrb[0].mxu0
      %v1160 = vadd.f32 %v999, %v1159
      %v1161 = vpop.f32.mrb[0].mxu0
      %1162 = vmatprep.mubr.bf16.mxu0 0
      %1163 = vmatmul.mubr.bf16.gmra.mrb[0].mxu0 %v726
      %v1164 = vpop.f32.mrb[0].mxu0
      %v1165 = vadd.f32 %v1004, %v1164
      %v1166 = vpop.f32.mrb[0].mxu0
      %v1167 = vpop.f32.mrb[0].mxu0
      %v1168 = vadd.f32 %v1007, %v1167
      %v1169 = vpop.f32.mrb[0].mxu0
      %1170 = vmatprep.mubr.bf16.mxu0 0
      %1171 = vmatmul.mubr.bf16.gmra.mrb[0].mxu0 %v729
      %v1172 = vpop.f32.mrb[0].mxu0
      %v1173 = vadd.f32 %v1012, %v1172
      %v1174 = vpop.f32.mrb[0].mxu0
      %v1175 = vpop.f32.mrb[0].mxu0
      %v1176 = vadd.f32 %v1015, %v1175
      %v1177 = vpop.f32.mrb[0].mxu0
      %1178 = vmatprep.mubr.bf16.mxu0 0
      %1179 = vmatmul.mubr.bf16.gmra.mrb[0].mxu0 %v732
      %v1180 = vpop.f32.mrb[0].mxu0
      %v1181 = vadd.f32 %v1020, %v1180
      %v1182 = vpop.f32.mrb[0].mxu0
      %v1183 = vpop.f32.mrb[0].mxu0
      %v1184 = vadd.f32 %v1023, %v1183
      %v1185 = vpop.f32.mrb[0].mxu0
      %1186 = vmatprep.mubr.bf16.mxu0 0
      %1187 = vmatmul.mubr.bf16.gmra.mrb[0].mxu0 %v735
      %v1188 = vpop.f32.mrb[0].mxu0
      %v1189 = vadd.f32 %v1028, %v1188
      %v1190 = vpop.f32.mrb[0].mxu0
      %v1191 = vpop.f32.mrb[0].mxu0
      %v1192 = vadd.f32 %v1031, %v1191
      %v1193 = vpop.f32.mrb[0].mxu0
      %1194 = vmatprep.mubr.bf16.mxu0 0
      %1195 = vmatmul.mubr.bf16.gmra.mrb[0].mxu0 %v738
      %v1196 = vpop.f32.mrb[0].mxu0
      %v1197 = vadd.f32 %v1036, %v1196
      %v1198 = vpop.f32.mrb[0].mxu0
      %v1199 = vpop.f32.mrb[0].mxu0
      %v1200 = vadd.f32 %v1039, %v1199
      %v1201 = vpop.f32.mrb[0].mxu0
      %1202 = vmatprep.mubr.bf16.mxu0 0
      %1203 = vmatmul.mubr.bf16.gmra.mrb[0].mxu0 %v741
      %v1204 = vpop.f32.mrb[0].mxu0
      %v1205 = vadd.f32 %v1044, %v1204
      %v1206 = vpop.f32.mrb[0].mxu0
      %v1207 = vpop.f32.mrb[0].mxu0
      %v1208 = vadd.f32 %v1047, %v1207
      %v1209 = vpop.f32.mrb[0].mxu0
      %1210 = vmatprep.mubr.bf16.mxu0 0
      %1211 = vmatmul.mubr.bf16.gmra.mrb[0].mxu0 %v744
      %v1212 = vpop.f32.mrb[0].mxu0
      %v1213 = vadd.f32 %v1052, %v1212
      %v1214 = vpop.f32.mrb[0].mxu0
      %v1215 = vpop.f32.mrb[0].mxu0
      %v1216 = vadd.f32 %v1055, %v1215
      %v1217 = vpop.f32.mrb[0].mxu0
      %1218 = vmatprep.mubr.bf16.mxu0 0
      %1219 = vmatmul.mubr.bf16.gmra.mrb[0].mxu0 %v747
      %v1220 = vpop.f32.mrb[0].mxu0
      %v1221 = vadd.f32 %v1060, %v1220
      %v1222 = vpop.f32.mrb[0].mxu0
      %v1223 = vpop.f32.mrb[0].mxu0
      %v1224 = vadd.f32 %v1063, %v1223
      %v1225 = vpop.f32.mrb[0].mxu0
      %1226 = vmatprep.mubr.bf16.mxu0 0
      %1227 = vmatmul.mubr.bf16.gmra.mrb[0].mxu0 %v750
      %v1228 = vpop.f32.mrb[0].mxu0
      %v1229 = vadd.f32 %v1068, %v1228
      %v1230 = vpop.f32.mrb[0].mxu0
      %v1231 = vpop.f32.mrb[0].mxu0
      %v1232 = vadd.f32 %v1071, %v1231
      %v1233 = vpop.f32.mrb[0].mxu0
      %1234 = vmatprep.mubr.bf16.mxu0 0
      %1235 = vmatmul.mubr.bf16.gmra.mrb[0].mxu0 %v753
      %v1236 = vpop.f32.mrb[0].mxu0
      %v1237 = vadd.f32 %v1076, %v1236
      %v1238 = vpop.f32.mrb[0].mxu0
      %v1239 = vpop.f32.mrb[0].mxu0
      %v1240 = vadd.f32 %v1079, %v1239
      %v1241 = vpop.f32.mrb[0].mxu0
      %1242 = vmatprep.mubr.bf16.mxu0 0
      %1243 = vmatmul.mubr.bf16.gmra.mrb[0].mxu0 %v756
      %v1244 = vpop.f32.mrb[0].mxu0
      %v1245 = vadd.f32 %v1084, %v1244
      %v1246 = vpop.f32.mrb[0].mxu0
      %v1247 = vpop.f32.mrb[0].mxu0
      %v1248 = vadd.f32 %v1087, %v1247
      %v1249 = vpop.f32.mrb[0].mxu0
      %1250 = vmatprep.mubr.bf16.mxu0 0
      %1251 = vmatmul.mubr.bf16.gmra.mrb[0].mxu0 %v759
      %v1252 = vpop.f32.mrb[0].mxu0
      %v1253 = vadd.f32 %v1092, %v1252
      %v1254 = vpop.f32.mrb[0].mxu0
      %v1255 = vpop.f32.mrb[0].mxu0
      %v1256 = vadd.f32 %v1095, %v1255
      %v1257 = vpop.f32.mrb[0].mxu0
      %1258 = vmatprep.mubr.bf16.mxu0 0
      %1259 = vmatmul.mubr.bf16.gmra.mrb[0].mxu0 %v762
      %v1260 = vpop.f32.mrb[0].mxu0
      %v1261 = vadd.f32 %v1100, %v1260
      %v1262 = vpop.f32.mrb[0].mxu0
      %v1263 = vpop.f32.mrb[0].mxu0
      %v1264 = vadd.f32 %v1103, %v1263
      %v1265 = vpop.f32.mrb[0].mxu0
      %1266 = vmatprep.mubr.bf16.mxu0 0
      %1267 = vmatmul.mubr.bf16.gmra.mrb[0].mxu0 %v765
      %v1268 = vpop.f32.mrb[0].mxu0
      %v1269 = vadd.f32 %v1108, %v1268
      %v1270 = vpop.f32.mrb[0].mxu0
      %v1271 = vpop.f32.mrb[0].mxu0
      %v1272 = vadd.f32 %v1111, %v1271
      %v1273 = vpop.f32.mrb[0].mxu0
      %1274 = vmatprep.mubr.bf16.mxu0 0
      %1275 = vmatmul.mubr.bf16.gmra.mrb[0].mxu0 %v768
      %v1276 = vpop.f32.mrb[0].mxu0
      %v1277 = vadd.f32 %v1116, %v1276
      %v1278 = vpop.f32.mrb[0].mxu0
      %v1279 = vpop.f32.mrb[0].mxu0
      %v1280 = vadd.f32 %v1119, %v1279
      %v1281 = vpop.f32.mrb[0].mxu0
      %1282 = vdwg.mxu0
      %v1379 = vunpack.c.l.b16 %v257
      %v1380 = vunpack.c.h.b16 %v257
      %v1381 = vunpack.c.l.b16 %v258
      %v1382 = vunpack.c.h.b16 %v258
      %v1383 = vunpack.c.l.b16 %v259
      %v1384 = vunpack.c.h.b16 %v259
      %v1385 = vunpack.c.l.b16 %v260
      %v1386 = vunpack.c.h.b16 %v260
      %v1387 = vunpack.c.l.b16 %v261
      %v1388 = vunpack.c.h.b16 %v261
      %v1389 = vunpack.c.l.b16 %v262
      %v1390 = vunpack.c.h.b16 %v262
      %v1391 = vunpack.c.l.b16 %v263
      %v1392 = vunpack.c.h.b16 %v263
      %v1393 = vunpack.c.l.b16 %v264
      %v1394 = vunpack.c.h.b16 %v264
      %v1395 = vunpack.c.l.b16 %v265
      %v1396 = vunpack.c.h.b16 %v265
      %v1397 = vunpack.c.l.b16 %v266
      %v1398 = vunpack.c.h.b16 %v266
      %v1399 = vunpack.c.l.b16 %v267
      %v1400 = vunpack.c.h.b16 %v267
      %v1401 = vunpack.c.l.b16 %v268
      %v1402 = vunpack.c.h.b16 %v268
      %v1403 = vunpack.c.l.b16 %v269
      %v1404 = vunpack.c.h.b16 %v269
      %v1405 = vunpack.c.l.b16 %v270
      %v1406 = vunpack.c.h.b16 %v270
      %v1407 = vunpack.c.l.b16 %v271
      %v1408 = vunpack.c.h.b16 %v271
      %v1409 = vunpack.c.l.b16 %v272
      %v1410 = vunpack.c.h.b16 %v272
      %v1411 = vunpack.c.l.b16 %v273
      %v1412 = vunpack.c.h.b16 %v273
      %v1413 = vunpack.c.l.b16 %v274
      %v1414 = vunpack.c.h.b16 %v274
      %v1415 = vunpack.c.l.b16 %v275
      %v1416 = vunpack.c.h.b16 %v275
      %v1417 = vunpack.c.l.b16 %v276
      %v1418 = vunpack.c.h.b16 %v276
      %v1419 = vunpack.c.l.b16 %v277
      %v1420 = vunpack.c.h.b16 %v277
      %v1421 = vunpack.c.l.b16 %v278
      %v1422 = vunpack.c.h.b16 %v278
      %v1423 = vunpack.c.l.b16 %v279
      %v1424 = vunpack.c.h.b16 %v279
      %v1425 = vunpack.c.l.b16 %v280
      %v1426 = vunpack.c.h.b16 %v280
      %v1427 = vunpack.c.l.b16 %v281
      %v1428 = vunpack.c.h.b16 %v281
      %v1429 = vunpack.c.l.b16 %v282
      %v1430 = vunpack.c.h.b16 %v282
      %v1431 = vunpack.c.l.b16 %v283
      %v1432 = vunpack.c.h.b16 %v283
      %v1433 = vunpack.c.l.b16 %v284
      %v1434 = vunpack.c.h.b16 %v284
      %v1435 = vunpack.c.l.b16 %v285
      %v1436 = vunpack.c.h.b16 %v285
      %v1437 = vunpack.c.l.b16 %v286
      %v1438 = vunpack.c.h.b16 %v286
      %v1439 = vunpack.c.l.b16 %v287
      %v1440 = vunpack.c.h.b16 %v287
      %v1441 = vunpack.c.l.b16 %v288
      %v1442 = vunpack.c.h.b16 %v288
      %v1443 = vunpack.c.l.b16 %v289
      %v1444 = vunpack.c.h.b16 %v289
      %v1445 = vunpack.c.l.b16 %v290
      %v1446 = vunpack.c.h.b16 %v290
      %v1447 = vunpack.c.l.b16 %v291
      %v1448 = vunpack.c.h.b16 %v291
      %v1449 = vunpack.c.l.b16 %v292
      %v1450 = vunpack.c.h.b16 %v292
      %v1451 = vunpack.c.l.b16 %v293
      %v1452 = vunpack.c.h.b16 %v293
      %v1453 = vunpack.c.l.b16 %v294
      %v1454 = vunpack.c.h.b16 %v294
      %v1455 = vunpack.c.l.b16 %v295
      %v1456 = vunpack.c.h.b16 %v295
      %v1457 = vunpack.c.l.b16 %v296
      %v1458 = vunpack.c.h.b16 %v296
      %v1459 = vunpack.c.l.b16 %v297
      %v1460 = vunpack.c.h.b16 %v297
      %v1461 = vunpack.c.l.b16 %v298
      %v1462 = vunpack.c.h.b16 %v298
      %v1463 = vunpack.c.l.b16 %v299
      %v1464 = vunpack.c.h.b16 %v299
      %v1465 = vunpack.c.l.b16 %v300
      %v1466 = vunpack.c.h.b16 %v300
      %v1467 = vunpack.c.l.b16 %v301
      %v1468 = vunpack.c.h.b16 %v301
      %v1469 = vunpack.c.l.b16 %v302
      %v1470 = vunpack.c.h.b16 %v302
      %v1471 = vunpack.c.l.b16 %v303
      %v1472 = vunpack.c.h.b16 %v303
      %v1473 = vunpack.c.l.b16 %v304
      %v1474 = vunpack.c.h.b16 %v304
      %v1475 = vunpack.c.l.b16 %v305
      %v1476 = vunpack.c.h.b16 %v305
      %v1477 = vunpack.c.l.b16 %v306
      %v1478 = vunpack.c.h.b16 %v306
      %v1479 = vunpack.c.l.b16 %v307
      %v1480 = vunpack.c.h.b16 %v307
      %v1481 = vunpack.c.l.b16 %v308
      %v1482 = vunpack.c.h.b16 %v308
      %v1483 = vunpack.c.l.b16 %v309
      %v1484 = vunpack.c.h.b16 %v309
      %v1485 = vunpack.c.l.b16 %v310
      %v1486 = vunpack.c.h.b16 %v310
      %v1487 = vunpack.c.l.b16 %v311
      %v1488 = vunpack.c.h.b16 %v311
      %v1489 = vunpack.c.l.b16 %v312
      %v1490 = vunpack.c.h.b16 %v312
      %v1491 = vunpack.c.l.b16 %v313
      %v1492 = vunpack.c.h.b16 %v313
      %v1493 = vunpack.c.l.b16 %v314
      %v1494 = vunpack.c.h.b16 %v314
      %v1495 = vunpack.c.l.b16 %v315
      %v1496 = vunpack.c.h.b16 %v315
      %v1497 = vunpack.c.l.b16 %v316
      %v1498 = vunpack.c.h.b16 %v316
      %v1499 = vunpack.c.l.b16 %v317
      %v1500 = vunpack.c.h.b16 %v317
      %v1501 = vunpack.c.l.b16 %v318
      %v1502 = vunpack.c.h.b16 %v318
      %v1503 = vunpack.c.l.b16 %v319
      %v1504 = vunpack.c.h.b16 %v319
      %v1505 = vunpack.c.l.b16 %v320
      %v1506 = vunpack.c.h.b16 %v320
      %v1507 = vunpack.c.l.b16 %v321
      %v1508 = vunpack.c.h.b16 %v321
      %v1509 = vunpack.c.l.b16 %v322
      %v1510 = vunpack.c.h.b16 %v322
      %v1511 = vunpack.c.l.b16 %v323
      %v1512 = vunpack.c.h.b16 %v323
      %v1513 = vunpack.c.l.b16 %v324
      %v1514 = vunpack.c.h.b16 %v324
      %v1515 = vunpack.c.l.b16 %v325
      %v1516 = vunpack.c.h.b16 %v325
      %v1517 = vunpack.c.l.b16 %v326
      %v1518 = vunpack.c.h.b16 %v326
      %v1519 = vunpack.c.l.b16 %v327
      %v1520 = vunpack.c.h.b16 %v327
      %v1521 = vunpack.c.l.b16 %v328
      %v1522 = vunpack.c.h.b16 %v328
      %v1523 = vunpack.c.l.b16 %v329
      %v1524 = vunpack.c.h.b16 %v329
      %v1525 = vunpack.c.l.b16 %v330
      %v1526 = vunpack.c.h.b16 %v330
      %v1527 = vunpack.c.l.b16 %v331
      %v1528 = vunpack.c.h.b16 %v331
      %v1529 = vunpack.c.l.b16 %v332
      %v1530 = vunpack.c.h.b16 %v332
      %v1531 = vunpack.c.l.b16 %v333
      %v1532 = vunpack.c.h.b16 %v333
      %v1533 = vunpack.c.l.b16 %v334
      %v1534 = vunpack.c.h.b16 %v334
      %v1535 = vunpack.c.l.b16 %v335
      %v1536 = vunpack.c.h.b16 %v335
      %v1537 = vunpack.c.l.b16 %v336
      %v1538 = vunpack.c.h.b16 %v336
      %v1539 = vunpack.c.l.b16 %v337
      %v1540 = vunpack.c.h.b16 %v337
      %v1541 = vunpack.c.l.b16 %v338
      %v1542 = vunpack.c.h.b16 %v338
      %v1543 = vunpack.c.l.b16 %v339
      %v1544 = vunpack.c.h.b16 %v339
      %v1545 = vunpack.c.l.b16 %v340
      %v1546 = vunpack.c.h.b16 %v340
      %v1547 = vunpack.c.l.b16 %v341
      %v1548 = vunpack.c.h.b16 %v341
      %v1549 = vunpack.c.l.b16 %v342
      %v1550 = vunpack.c.h.b16 %v342
      %v1551 = vunpack.c.l.b16 %v343
      %v1552 = vunpack.c.h.b16 %v343
      %v1553 = vunpack.c.l.b16 %v344
      %v1554 = vunpack.c.h.b16 %v344
      %v1555 = vunpack.c.l.b16 %v345
      %v1556 = vunpack.c.h.b16 %v345
      %v1557 = vunpack.c.l.b16 %v346
      %v1558 = vunpack.c.h.b16 %v346
      %v1559 = vunpack.c.l.b16 %v347
      %v1560 = vunpack.c.h.b16 %v347
      %v1561 = vunpack.c.l.b16 %v348
      %v1562 = vunpack.c.h.b16 %v348
      %v1563 = vunpack.c.l.b16 %v349
      %v1564 = vunpack.c.h.b16 %v349
      %v1565 = vunpack.c.l.b16 %v350
      %v1566 = vunpack.c.h.b16 %v350
      %v1567 = vunpack.c.l.b16 %v351
      %v1568 = vunpack.c.h.b16 %v351
      %v1569 = vunpack.c.l.b16 %v352
      %v1570 = vunpack.c.h.b16 %v352
      %v1571 = vpack.c.b16 %v1385, %v1379
      %v1572 = vpack.c.b16 %v1386, %v1380
      %v1573 = vpack.c.b16 %v1387, %v1381
      %v1574 = vpack.c.b16 %v1388, %v1382
      %v1575 = vpack.c.b16 %v1389, %v1383
      %v1576 = vpack.c.b16 %v1390, %v1384
      %v1577 = vpack.c.b16 %v1397, %v1391
      %v1578 = vpack.c.b16 %v1398, %v1392
      %v1579 = vpack.c.b16 %v1399, %v1393
      %v1580 = vpack.c.b16 %v1400, %v1394
      %v1581 = vpack.c.b16 %v1401, %v1395
      %v1582 = vpack.c.b16 %v1402, %v1396
      %v1583 = vpack.c.b16 %v1409, %v1403
      %v1584 = vpack.c.b16 %v1410, %v1404
      %v1585 = vpack.c.b16 %v1411, %v1405
      %v1586 = vpack.c.b16 %v1412, %v1406
      %v1587 = vpack.c.b16 %v1413, %v1407
      %v1588 = vpack.c.b16 %v1414, %v1408
      %v1589 = vpack.c.b16 %v1421, %v1415
      %v1590 = vpack.c.b16 %v1422, %v1416
      %v1591 = vpack.c.b16 %v1423, %v1417
      %v1592 = vpack.c.b16 %v1424, %v1418
      %v1593 = vpack.c.b16 %v1425, %v1419
      %v1594 = vpack.c.b16 %v1426, %v1420
      %v1595 = vpack.c.b16 %v1433, %v1427
      %v1596 = vpack.c.b16 %v1434, %v1428
      %v1597 = vpack.c.b16 %v1435, %v1429
      %v1598 = vpack.c.b16 %v1436, %v1430
      %v1599 = vpack.c.b16 %v1437, %v1431
      %v1600 = vpack.c.b16 %v1438, %v1432
      %v1601 = vpack.c.b16 %v1445, %v1439
      %v1602 = vpack.c.b16 %v1446, %v1440
      %v1603 = vpack.c.b16 %v1447, %v1441
      %v1604 = vpack.c.b16 %v1448, %v1442
      %v1605 = vpack.c.b16 %v1449, %v1443
      %v1606 = vpack.c.b16 %v1450, %v1444
      %v1607 = vpack.c.b16 %v1457, %v1451
      %v1608 = vpack.c.b16 %v1458, %v1452
      %v1609 = vpack.c.b16 %v1459, %v1453
      %v1610 = vpack.c.b16 %v1460, %v1454
      %v1611 = vpack.c.b16 %v1461, %v1455
      %v1612 = vpack.c.b16 %v1462, %v1456
      %v1613 = vpack.c.b16 %v1469, %v1463
      %v1614 = vpack.c.b16 %v1470, %v1464
      %v1615 = vpack.c.b16 %v1471, %v1465
      %v1616 = vpack.c.b16 %v1472, %v1466
      %v1617 = vpack.c.b16 %v1473, %v1467
      %v1618 = vpack.c.b16 %v1474, %v1468
      %v1619 = vpack.c.b16 %v1481, %v1475
      %v1620 = vpack.c.b16 %v1482, %v1476
      %v1621 = vpack.c.b16 %v1483, %v1477
      %v1622 = vpack.c.b16 %v1484, %v1478
      %v1623 = vpack.c.b16 %v1485, %v1479
      %v1624 = vpack.c.b16 %v1486, %v1480
      %v1625 = vpack.c.b16 %v1493, %v1487
      %v1626 = vpack.c.b16 %v1494, %v1488
      %v1627 = vpack.c.b16 %v1495, %v1489
      %v1628 = vpack.c.b16 %v1496, %v1490
      %v1629 = vpack.c.b16 %v1497, %v1491
      %v1630 = vpack.c.b16 %v1498, %v1492
      %v1631 = vpack.c.b16 %v1505, %v1499
      %v1632 = vpack.c.b16 %v1506, %v1500
      %v1633 = vpack.c.b16 %v1507, %v1501
      %v1634 = vpack.c.b16 %v1508, %v1502
      %v1635 = vpack.c.b16 %v1509, %v1503
      %v1636 = vpack.c.b16 %v1510, %v1504
      %v1637 = vpack.c.b16 %v1517, %v1511
      %v1638 = vpack.c.b16 %v1518, %v1512
      %v1639 = vpack.c.b16 %v1519, %v1513
      %v1640 = vpack.c.b16 %v1520, %v1514
      %v1641 = vpack.c.b16 %v1521, %v1515
      %v1642 = vpack.c.b16 %v1522, %v1516
      %v1643 = vpack.c.b16 %v1529, %v1523
      %v1644 = vpack.c.b16 %v1530, %v1524
      %v1645 = vpack.c.b16 %v1531, %v1525
      %v1646 = vpack.c.b16 %v1532, %v1526
      %v1647 = vpack.c.b16 %v1533, %v1527
      %v1648 = vpack.c.b16 %v1534, %v1528
      %v1649 = vpack.c.b16 %v1541, %v1535
      %v1650 = vpack.c.b16 %v1542, %v1536
      %v1651 = vpack.c.b16 %v1543, %v1537
      %v1652 = vpack.c.b16 %v1544, %v1538
      %v1653 = vpack.c.b16 %v1545, %v1539
      %v1654 = vpack.c.b16 %v1546, %v1540
      %v1655 = vpack.c.b16 %v1553, %v1547
      %v1656 = vpack.c.b16 %v1554, %v1548
      %v1657 = vpack.c.b16 %v1555, %v1549
      %v1658 = vpack.c.b16 %v1556, %v1550
      %v1659 = vpack.c.b16 %v1557, %v1551
      %v1660 = vpack.c.b16 %v1558, %v1552
      %v1661 = vpack.c.b16 %v1565, %v1559
      %v1662 = vpack.c.b16 %v1566, %v1560
      %v1663 = vpack.c.b16 %v1567, %v1561
      %v1664 = vpack.c.b16 %v1568, %v1562
      %v1665 = vpack.c.b16 %v1569, %v1563
      %v1666 = vpack.c.b16 %v1570, %v1564
      %v1859 = vunpack.c.l.b16 %v353
      %v1860 = vunpack.c.l.b16 %v354
      %v1861 = vunpack.c.l.b16 %v355
      %v1862 = vunpack.c.l.b16 %v356
      %v1863 = vunpack.c.l.b16 %v357
      %v1864 = vunpack.c.l.b16 %v358
      %v1865 = vunpack.c.l.b16 %v359
      %v1866 = vunpack.c.l.b16 %v360
      %v1867 = vunpack.c.l.b16 %v361
      %v1868 = vunpack.c.l.b16 %v362
      %v1869 = vunpack.c.l.b16 %v363
      %v1870 = vunpack.c.l.b16 %v364
      %v1871 = vunpack.c.l.b16 %v365
      %v1872 = vunpack.c.l.b16 %v366
      %v1873 = vunpack.c.l.b16 %v367
      %v1874 = vunpack.c.l.b16 %v368
      %v1875 = vunpack.c.l.b16 %v369
      %v1876 = vunpack.c.l.b16 %v370
      %v1877 = vunpack.c.l.b16 %v371
      %v1878 = vunpack.c.l.b16 %v372
      %v1879 = vunpack.c.l.b16 %v373
      %v1880 = vunpack.c.l.b16 %v374
      %v1881 = vunpack.c.l.b16 %v375
      %v1882 = vunpack.c.l.b16 %v376
      %v1883 = vunpack.c.l.b16 %v377
      %v1884 = vunpack.c.l.b16 %v378
      %v1885 = vunpack.c.l.b16 %v379
      %v1886 = vunpack.c.l.b16 %v380
      %v1887 = vunpack.c.l.b16 %v381
      %v1888 = vunpack.c.l.b16 %v382
      %v1889 = vunpack.c.l.b16 %v383
      %v1890 = vunpack.c.l.b16 %v384
      %v1891 = vunpack.c.l.b16 %v385
      %v1892 = vunpack.c.l.b16 %v386
      %v1893 = vunpack.c.l.b16 %v387
      %v1894 = vunpack.c.l.b16 %v388
      %v1895 = vunpack.c.l.b16 %v389
      %v1896 = vunpack.c.l.b16 %v390
      %v1897 = vunpack.c.l.b16 %v391
      %v1898 = vunpack.c.l.b16 %v392
      %v1899 = vunpack.c.l.b16 %v393
      %v1900 = vunpack.c.l.b16 %v394
      %v1901 = vunpack.c.l.b16 %v395
      %v1902 = vunpack.c.l.b16 %v396
      %v1903 = vunpack.c.l.b16 %v397
      %v1904 = vunpack.c.l.b16 %v398
      %v1905 = vunpack.c.l.b16 %v399
      %v1906 = vunpack.c.l.b16 %v400
      %v1907 = vunpack.c.l.b16 %v401
      %v1908 = vunpack.c.l.b16 %v402
      %v1909 = vunpack.c.l.b16 %v403
      %v1910 = vunpack.c.l.b16 %v404
      %v1911 = vunpack.c.l.b16 %v405
      %v1912 = vunpack.c.l.b16 %v406
      %v1913 = vunpack.c.l.b16 %v407
      %v1914 = vunpack.c.l.b16 %v408
      %v1915 = vunpack.c.l.b16 %v409
      %v1916 = vunpack.c.l.b16 %v410
      %v1917 = vunpack.c.l.b16 %v411
      %v1918 = vunpack.c.l.b16 %v412
      %v1919 = vunpack.c.l.b16 %v413
      %v1920 = vunpack.c.l.b16 %v414
      %v1921 = vunpack.c.l.b16 %v415
      %v1922 = vunpack.c.l.b16 %v416
      %v1923 = vunpack.c.l.b16 %v417
      %v1924 = vunpack.c.l.b16 %v418
      %v1925 = vunpack.c.l.b16 %v419
      %v1926 = vunpack.c.l.b16 %v420
      %v1927 = vunpack.c.l.b16 %v421
      %v1928 = vunpack.c.l.b16 %v422
      %v1929 = vunpack.c.l.b16 %v423
      %v1930 = vunpack.c.l.b16 %v424
      %v1931 = vunpack.c.l.b16 %v425
      %v1932 = vunpack.c.l.b16 %v426
      %v1933 = vunpack.c.l.b16 %v427
      %v1934 = vunpack.c.l.b16 %v428
      %v1935 = vunpack.c.l.b16 %v429
      %v1936 = vunpack.c.l.b16 %v430
      %v1937 = vunpack.c.l.b16 %v431
      %v1938 = vunpack.c.l.b16 %v432
      %v1939 = vunpack.c.l.b16 %v433
      %v1940 = vunpack.c.l.b16 %v434
      %v1941 = vunpack.c.l.b16 %v435
      %v1942 = vunpack.c.l.b16 %v436
      %v1943 = vunpack.c.l.b16 %v437
      %v1944 = vunpack.c.l.b16 %v438
      %v1945 = vunpack.c.l.b16 %v439
      %v1946 = vunpack.c.l.b16 %v440
      %v1947 = vunpack.c.l.b16 %v441
      %v1948 = vunpack.c.l.b16 %v442
      %v1949 = vunpack.c.l.b16 %v443
      %v1950 = vunpack.c.l.b16 %v444
      %v1951 = vunpack.c.l.b16 %v445
      %v1952 = vunpack.c.l.b16 %v446
      %v1953 = vunpack.c.l.b16 %v447
      %v1954 = vunpack.c.l.b16 %v448
      %v1955 = vpack.c.b16 %v1860, %v1859
      %v1956 = vpack.c.b16 %v1862, %v1861
      %v1957 = vpack.c.b16 %v1864, %v1863
      %v1958 = vpack.c.b16 %v1866, %v1865
      %v1959 = vpack.c.b16 %v1868, %v1867
      %v1960 = vpack.c.b16 %v1870, %v1869
      %v1961 = vpack.c.b16 %v1872, %v1871
      %v1962 = vpack.c.b16 %v1874, %v1873
      %v1963 = vpack.c.b16 %v1876, %v1875
      %v1964 = vpack.c.b16 %v1878, %v1877
      %v1965 = vpack.c.b16 %v1880, %v1879
      %v1966 = vpack.c.b16 %v1882, %v1881
      %v1967 = vpack.c.b16 %v1884, %v1883
      %v1968 = vpack.c.b16 %v1886, %v1885
      %v1969 = vpack.c.b16 %v1888, %v1887
      %v1970 = vpack.c.b16 %v1890, %v1889
      %v1971 = vpack.c.b16 %v1892, %v1891
      %v1972 = vpack.c.b16 %v1894, %v1893
      %v1973 = vpack.c.b16 %v1896, %v1895
      %v1974 = vpack.c.b16 %v1898, %v1897
      %v1975 = vpack.c.b16 %v1900, %v1899
      %v1976 = vpack.c.b16 %v1902, %v1901
      %v1977 = vpack.c.b16 %v1904, %v1903
      %v1978 = vpack.c.b16 %v1906, %v1905
      %v1979 = vpack.c.b16 %v1908, %v1907
      %v1980 = vpack.c.b16 %v1910, %v1909
      %v1981 = vpack.c.b16 %v1912, %v1911
      %v1982 = vpack.c.b16 %v1914, %v1913
      %v1983 = vpack.c.b16 %v1916, %v1915
      %v1984 = vpack.c.b16 %v1918, %v1917
      %v1985 = vpack.c.b16 %v1920, %v1919
      %v1986 = vpack.c.b16 %v1922, %v1921
      %v1987 = vpack.c.b16 %v1924, %v1923
      %v1988 = vpack.c.b16 %v1926, %v1925
      %v1989 = vpack.c.b16 %v1928, %v1927
      %v1990 = vpack.c.b16 %v1930, %v1929
      %v1991 = vpack.c.b16 %v1932, %v1931
      %v1992 = vpack.c.b16 %v1934, %v1933
      %v1993 = vpack.c.b16 %v1936, %v1935
      %v1994 = vpack.c.b16 %v1938, %v1937
      %v1995 = vpack.c.b16 %v1940, %v1939
      %v1996 = vpack.c.b16 %v1942, %v1941
      %v1997 = vpack.c.b16 %v1944, %v1943
      %v1998 = vpack.c.b16 %v1946, %v1945
      %v1999 = vpack.c.b16 %v1948, %v1947
      %v2000 = vpack.c.b16 %v1950, %v1949
      %v2001 = vpack.c.b16 %v1952, %v1951
      %v2002 = vpack.c.b16 %v1954, %v1953
      %2051 = vmatprep.subr.bf16.mxu0 0
      %2052 = vmatpush1.bf16.msra.mxu0 %v1955
      %2053 = vmatprep.subr.bf16.mxu0 0
      %2054 = vmatpush1.bf16.msra.mxu0 %v1956
      %2055 = vmatprep.subr.bf16.mxu0 0
      %2056 = vmatpush1.bf16.msra.mxu0 %v1957
      %2057 = vmatprep.subr.bf16.mxu0 0
      %2058 = vmatpush1.bf16.msra.mxu0 %v1958
      %2059 = vmatprep.subr.bf16.mxu0 0
      %2060 = vmatpush1.bf16.msra.mxu0 %v1959
      %2061 = vmatprep.subr.bf16.mxu0 0
      %2062 = vmatpush1.bf16.msra.mxu0 %v1960
      %2063 = vmatprep.subr.bf16.mxu0 0
      %2064 = vmatpush1.bf16.msra.mxu0 %v1961
      %2065 = vmatprep.subr.bf16.mxu0 0
      %2066 = vmatpush1.bf16.msra.mxu0 %v1962
      %2067 = vmatprep.subr.bf16.mxu0 0
      %2068 = vmatpush1.bf16.msra.mxu0 %v1963
      %2069 = vmatprep.subr.bf16.mxu0 0
      %2070 = vmatpush1.bf16.msra.mxu0 %v1964
      %2071 = vmatprep.subr.bf16.mxu0 0
      %2072 = vmatpush1.bf16.msra.mxu0 %v1965
      %2073 = vmatprep.subr.bf16.mxu0 0
      %2074 = vmatpush1.bf16.msra.mxu0 %v1966
      %2075 = vmatprep.subr.bf16.mxu0 0
      %2076 = vmatpush1.bf16.msra.mxu0 %v1967
      %2077 = vmatprep.subr.bf16.mxu0 0
      %2078 = vmatpush1.bf16.msra.mxu0 %v1968
      %2079 = vmatprep.subr.bf16.mxu0 0
      %2080 = vmatpush1.bf16.msra.mxu0 %v1969
      %2081 = vmatprep.subr.bf16.mxu0 0
      %2082 = vmatpush1.bf16.msra.mxu0 %v1970
      %2083 = vmatprep.mubr.bf16.mxu0 %v1572
      %2084 = vmatmul.mubr.bf16.gmra.mrb[0].mxu0 %v1571
      %v2085 = vpop.f32.mrb[0].mxu0
      %v2086 = vadd.f32 %v1157, %v2085
      %v2087 = vpop.f32.mrb[0].mxu0
      %v2088 = vpop.f32.mrb[0].mxu0
      %v2089 = vadd.f32 %v1160, %v2088
      %v2090 = vpop.f32.mrb[0].mxu0
      %2091 = vmatprep.mubr.bf16.mxu0 %v1578
      %2092 = vmatmul.mubr.bf16.gmra.mrb[0].mxu0 %v1577
      %v2093 = vpop.f32.mrb[0].mxu0
      %v2094 = vadd.f32 %v1165, %v2093
      %v2095 = vpop.f32.mrb[0].mxu0
      %v2096 = vpop.f32.mrb[0].mxu0
      %v2097 = vadd.f32 %v1168, %v2096
      %v2098 = vpop.f32.mrb[0].mxu0
      %2099 = vmatprep.mubr.bf16.mxu0 %v1584
      %2100 = vmatmul.mubr.bf16.gmra.mrb[0].mxu0 %v1583
      %v2101 = vpop.f32.mrb[0].mxu0
      %v2102 = vadd.f32 %v1173, %v2101
      %v2103 = vpop.f32.mrb[0].mxu0
      %v2104 = vpop.f32.mrb[0].mxu0
      %v2105 = vadd.f32 %v1176, %v2104
      %v2106 = vpop.f32.mrb[0].mxu0
      %2107 = vmatprep.mubr.bf16.mxu0 %v1590
      %2108 = vmatmul.mubr.bf16.gmra.mrb[0].mxu0 %v1589
      %v2109 = vpop.f32.mrb[0].mxu0
      %v2110 = vadd.f32 %v1181, %v2109
      %v2111 = vpop.f32.mrb[0].mxu0
      %v2112 = vpop.f32.mrb[0].mxu0
      %v2113 = vadd.f32 %v1184, %v2112
      %v2114 = vpop.f32.mrb[0].mxu0
      %2115 = vmatprep.mubr.bf16.mxu0 %v1596
      %2116 = vmatmul.mubr.bf16.gmra.mrb[0].mxu0 %v1595
      %v2117 = vpop.f32.mrb[0].mxu0
      %v2118 = vadd.f32 %v1189, %v2117
      %v2119 = vpop.f32.mrb[0].mxu0
      %v2120 = vpop.f32.mrb[0].mxu0
      %v2121 = vadd.f32 %v1192, %v2120
      %v2122 = vpop.f32.mrb[0].mxu0
      %2123 = vmatprep.mubr.bf16.mxu0 %v1602
      %2124 = vmatmul.mubr.bf16.gmra.mrb[0].mxu0 %v1601
      %v2125 = vpop.f32.mrb[0].mxu0
      %v2126 = vadd.f32 %v1197, %v2125
      %v2127 = vpop.f32.mrb[0].mxu0
      %v2128 = vpop.f32.mrb[0].mxu0
      %v2129 = vadd.f32 %v1200, %v2128
      %v2130 = vpop.f32.mrb[0].mxu0
      %2131 = vmatprep.mubr.bf16.mxu0 %v1608
      %2132 = vmatmul.mubr.bf16.gmra.mrb[0].mxu0 %v1607
      %v2133 = vpop.f32.mrb[0].mxu0
      %v2134 = vadd.f32 %v1205, %v2133
      %v2135 = vpop.f32.mrb[0].mxu0
      %v2136 = vpop.f32.mrb[0].mxu0
      %v2137 = vadd.f32 %v1208, %v2136
      %v2138 = vpop.f32.mrb[0].mxu0
      %2139 = vmatprep.mubr.bf16.mxu0 %v1614
      %2140 = vmatmul.mubr.bf16.gmra.mrb[0].mxu0 %v1613
      %v2141 = vpop.f32.mrb[0].mxu0
      %v2142 = vadd.f32 %v1213, %v2141
      %v2143 = vpop.f32.mrb[0].mxu0
      %v2144 = vpop.f32.mrb[0].mxu0
      %v2145 = vadd.f32 %v1216, %v2144
      %v2146 = vpop.f32.mrb[0].mxu0
      %2147 = vmatprep.mubr.bf16.mxu0 %v1620
      %2148 = vmatmul.mubr.bf16.gmra.mrb[0].mxu0 %v1619
      %v2149 = vpop.f32.mrb[0].mxu0
      %v2150 = vadd.f32 %v1221, %v2149
      %v2151 = vpop.f32.mrb[0].mxu0
      %v2152 = vpop.f32.mrb[0].mxu0
      %v2153 = vadd.f32 %v1224, %v2152
      %v2154 = vpop.f32.mrb[0].mxu0
      %2155 = vmatprep.mubr.bf16.mxu0 %v1626
      %2156 = vmatmul.mubr.bf16.gmra.mrb[0].mxu0 %v1625
      %v2157 = vpop.f32.mrb[0].mxu0
      %v2158 = vadd.f32 %v1229, %v2157
      %v2159 = vpop.f32.mrb[0].mxu0
      %v2160 = vpop.f32.mrb[0].mxu0
      %v2161 = vadd.f32 %v1232, %v2160
      %v2162 = vpop.f32.mrb[0].mxu0
      %2163 = vmatprep.mubr.bf16.mxu0 %v1632
      %2164 = vmatmul.mubr.bf16.gmra.mrb[0].mxu0 %v1631
      %v2165 = vpop.f32.mrb[0].mxu0
      %v2166 = vadd.f32 %v1237, %v2165
      %v2167 = vpop.f32.mrb[0].mxu0
      %v2168 = vpop.f32.mrb[0].mxu0
      %v2169 = vadd.f32 %v1240, %v2168
      %v2170 = vpop.f32.mrb[0].mxu0
      %2171 = vmatprep.mubr.bf16.mxu0 %v1638
      %2172 = vmatmul.mubr.bf16.gmra.mrb[0].mxu0 %v1637
      %v2173 = vpop.f32.mrb[0].mxu0
      %v2174 = vadd.f32 %v1245, %v2173
      %v2175 = vpop.f32.mrb[0].mxu0
      %v2176 = vpop.f32.mrb[0].mxu0
      %v2177 = vadd.f32 %v1248, %v2176
      %v2178 = vpop.f32.mrb[0].mxu0
      %2179 = vmatprep.mubr.bf16.mxu0 %v1644
      %2180 = vmatmul.mubr.bf16.gmra.mrb[0].mxu0 %v1643
      %v2181 = vpop.f32.mrb[0].mxu0
      %v2182 = vadd.f32 %v1253, %v2181
      %v2183 = vpop.f32.mrb[0].mxu0
      %v2184 = vpop.f32.mrb[0].mxu0
      %v2185 = vadd.f32 %v1256, %v2184
      %v2186 = vpop.f32.mrb[0].mxu0
      %2187 = vmatprep.mubr.bf16.mxu0 %v1650
      %2188 = vmatmul.mubr.bf16.gmra.mrb[0].mxu0 %v1649
      %v2189 = vpop.f32.mrb[0].mxu0
      %v2190 = vadd.f32 %v1261, %v2189
      %v2191 = vpop.f32.mrb[0].mxu0
      %v2192 = vpop.f32.mrb[0].mxu0
      %v2193 = vadd.f32 %v1264, %v2192
      %v2194 = vpop.f32.mrb[0].mxu0
      %2195 = vmatprep.mubr.bf16.mxu0 %v1656
      %2196 = vmatmul.mubr.bf16.gmra.mrb[0].mxu0 %v1655
      %v2197 = vpop.f32.mrb[0].mxu0
      %v2198 = vadd.f32 %v1269, %v2197
      %v2199 = vpop.f32.mrb[0].mxu0
      %v2200 = vpop.f32.mrb[0].mxu0
      %v2201 = vadd.f32 %v1272, %v2200
      %v2202 = vpop.f32.mrb[0].mxu0
      %2203 = vmatprep.mubr.bf16.mxu0 %v1662
      %2204 = vmatmul.mubr.bf16.gmra.mrb[0].mxu0 %v1661
      %v2205 = vpop.f32.mrb[0].mxu0
      %v2206 = vadd.f32 %v1277, %v2205
      %v2207 = vpop.f32.mrb[0].mxu0
      %v2208 = vpop.f32.mrb[0].mxu0
      %v2209 = vadd.f32 %v1280, %v2208
      %v2210 = vpop.f32.mrb[0].mxu0
      %2211 = vdwg.mxu0
      %2212 = vmatprep.subr.bf16.mxu0 0
      %2213 = vmatpush1.bf16.msra.mxu0 %v1971
      %2214 = vmatprep.subr.bf16.mxu0 0
      %2215 = vmatpush1.bf16.msra.mxu0 %v1972
      %2216 = vmatprep.subr.bf16.mxu0 0
      %2217 = vmatpush1.bf16.msra.mxu0 %v1973
      %2218 = vmatprep.subr.bf16.mxu0 0
      %2219 = vmatpush1.bf16.msra.mxu0 %v1974
      %2220 = vmatprep.subr.bf16.mxu0 0
      %2221 = vmatpush1.bf16.msra.mxu0 %v1975
      %2222 = vmatprep.subr.bf16.mxu0 0
      %2223 = vmatpush1.bf16.msra.mxu0 %v1976
      %2224 = vmatprep.subr.bf16.mxu0 0
      %2225 = vmatpush1.bf16.msra.mxu0 %v1977
      %2226 = vmatprep.subr.bf16.mxu0 0
      %2227 = vmatpush1.bf16.msra.mxu0 %v1978
      %2228 = vmatprep.subr.bf16.mxu0 0
      %2229 = vmatpush1.bf16.msra.mxu0 %v1979
      %2230 = vmatprep.subr.bf16.mxu0 0
      %2231 = vmatpush1.bf16.msra.mxu0 %v1980
      %2232 = vmatprep.subr.bf16.mxu0 0
      %2233 = vmatpush1.bf16.msra.mxu0 %v1981
      %2234 = vmatprep.subr.bf16.mxu0 0
      %2235 = vmatpush1.bf16.msra.mxu0 %v1982
      %2236 = vmatprep.subr.bf16.mxu0 0
      %2237 = vmatpush1.bf16.msra.mxu0 %v1983
      %2238 = vmatprep.subr.bf16.mxu0 0
      %2239 = vmatpush1.bf16.msra.mxu0 %v1984
      %2240 = vmatprep.subr.bf16.mxu0 0
      %2241 = vmatpush1.bf16.msra.mxu0 %v1985
      %2242 = vmatprep.subr.bf16.mxu0 0
      %2243 = vmatpush1.bf16.msra.mxu0 %v1986
      %2244 = vmatprep.mubr.bf16.mxu0 %v1574
      %2245 = vmatmul.mubr.bf16.gmra.mrb[0].mxu0 %v1573
      %v2246 = vpop.f32.mrb[0].mxu0
      %v2247 = vadd.f32 %v2086, %v2246
      %v2248 = vpop.f32.mrb[0].mxu0
      %v2249 = vpop.f32.mrb[0].mxu0
      %v2250 = vadd.f32 %v2089, %v2249
      %v2251 = vpop.f32.mrb[0].mxu0
      %2252 = vmatprep.mubr.bf16.mxu0 %v1580
      %2253 = vmatmul.mubr.bf16.gmra.mrb[0].mxu0 %v1579
      %v2254 = vpop.f32.mrb[0].mxu0
      %v2255 = vadd.f32 %v2094, %v2254
      %v2256 = vpop.f32.mrb[0].mxu0
      %v2257 = vpop.f32.mrb[0].mxu0
      %v2258 = vadd.f32 %v2097, %v2257
      %v2259 = vpop.f32.mrb[0].mxu0
      %2260 = vmatprep.mubr.bf16.mxu0 %v1586
      %2261 = vmatmul.mubr.bf16.gmra.mrb[0].mxu0 %v1585
      %v2262 = vpop.f32.mrb[0].mxu0
      %v2263 = vadd.f32 %v2102, %v2262
      %v2264 = vpop.f32.mrb[0].mxu0
      %v2265 = vpop.f32.mrb[0].mxu0
      %v2266 = vadd.f32 %v2105, %v2265
      %v2267 = vpop.f32.mrb[0].mxu0
      %2268 = vmatprep.mubr.bf16.mxu0 %v1592
      %2269 = vmatmul.mubr.bf16.gmra.mrb[0].mxu0 %v1591
      %v2270 = vpop.f32.mrb[0].mxu0
      %v2271 = vadd.f32 %v2110, %v2270
      %v2272 = vpop.f32.mrb[0].mxu0
      %v2273 = vpop.f32.mrb[0].mxu0
      %v2274 = vadd.f32 %v2113, %v2273
      %v2275 = vpop.f32.mrb[0].mxu0
      %2276 = vmatprep.mubr.bf16.mxu0 %v1598
      %2277 = vmatmul.mubr.bf16.gmra.mrb[0].mxu0 %v1597
      %v2278 = vpop.f32.mrb[0].mxu0
      %v2279 = vadd.f32 %v2118, %v2278
      %v2280 = vpop.f32.mrb[0].mxu0
      %v2281 = vpop.f32.mrb[0].mxu0
      %v2282 = vadd.f32 %v2121, %v2281
      %v2283 = vpop.f32.mrb[0].mxu0
      %2284 = vmatprep.mubr.bf16.mxu0 %v1604
      %2285 = vmatmul.mubr.bf16.gmra.mrb[0].mxu0 %v1603
      %v2286 = vpop.f32.mrb[0].mxu0
      %v2287 = vadd.f32 %v2126, %v2286
      %v2288 = vpop.f32.mrb[0].mxu0
      %v2289 = vpop.f32.mrb[0].mxu0
      %v2290 = vadd.f32 %v2129, %v2289
      %v2291 = vpop.f32.mrb[0].mxu0
      %2292 = vmatprep.mubr.bf16.mxu0 %v1610
      %2293 = vmatmul.mubr.bf16.gmra.mrb[0].mxu0 %v1609
      %v2294 = vpop.f32.mrb[0].mxu0
      %v2295 = vadd.f32 %v2134, %v2294
      %v2296 = vpop.f32.mrb[0].mxu0
      %v2297 = vpop.f32.mrb[0].mxu0
      %v2298 = vadd.f32 %v2137, %v2297
      %v2299 = vpop.f32.mrb[0].mxu0
      %2300 = vmatprep.mubr.bf16.mxu0 %v1616
      %2301 = vmatmul.mubr.bf16.gmra.mrb[0].mxu0 %v1615
      %v2302 = vpop.f32.mrb[0].mxu0
      %v2303 = vadd.f32 %v2142, %v2302
      %v2304 = vpop.f32.mrb[0].mxu0
      %v2305 = vpop.f32.mrb[0].mxu0
      %v2306 = vadd.f32 %v2145, %v2305
      %v2307 = vpop.f32.mrb[0].mxu0
      %2308 = vmatprep.mubr.bf16.mxu0 %v1622
      %2309 = vmatmul.mubr.bf16.gmra.mrb[0].mxu0 %v1621
      %v2310 = vpop.f32.mrb[0].mxu0
      %v2311 = vadd.f32 %v2150, %v2310
      %v2312 = vpop.f32.mrb[0].mxu0
      %v2313 = vpop.f32.mrb[0].mxu0
      %v2314 = vadd.f32 %v2153, %v2313
      %v2315 = vpop.f32.mrb[0].mxu0
      %2316 = vmatprep.mubr.bf16.mxu0 %v1628
      %2317 = vmatmul.mubr.bf16.gmra.mrb[0].mxu0 %v1627
      %v2318 = vpop.f32.mrb[0].mxu0
      %v2319 = vadd.f32 %v2158, %v2318
      %v2320 = vpop.f32.mrb[0].mxu0
      %v2321 = vpop.f32.mrb[0].mxu0
      %v2322 = vadd.f32 %v2161, %v2321
      %v2323 = vpop.f32.mrb[0].mxu0
      %2324 = vmatprep.mubr.bf16.mxu0 %v1634
      %2325 = vmatmul.mubr.bf16.gmra.mrb[0].mxu0 %v1633
      %v2326 = vpop.f32.mrb[0].mxu0
      %v2327 = vadd.f32 %v2166, %v2326
      %v2328 = vpop.f32.mrb[0].mxu0
      %v2329 = vpop.f32.mrb[0].mxu0
      %v2330 = vadd.f32 %v2169, %v2329
      %v2331 = vpop.f32.mrb[0].mxu0
      %2332 = vmatprep.mubr.bf16.mxu0 %v1640
      %2333 = vmatmul.mubr.bf16.gmra.mrb[0].mxu0 %v1639
      %v2334 = vpop.f32.mrb[0].mxu0
      %v2335 = vadd.f32 %v2174, %v2334
      %v2336 = vpop.f32.mrb[0].mxu0
      %v2337 = vpop.f32.mrb[0].mxu0
      %v2338 = vadd.f32 %v2177, %v2337
      %v2339 = vpop.f32.mrb[0].mxu0
      %2340 = vmatprep.mubr.bf16.mxu0 %v1646
      %2341 = vmatmul.mubr.bf16.gmra.mrb[0].mxu0 %v1645
      %v2342 = vpop.f32.mrb[0].mxu0
      %v2343 = vadd.f32 %v2182, %v2342
      %v2344 = vpop.f32.mrb[0].mxu0
      %v2345 = vpop.f32.mrb[0].mxu0
      %v2346 = vadd.f32 %v2185, %v2345
      %v2347 = vpop.f32.mrb[0].mxu0
      %2348 = vmatprep.mubr.bf16.mxu0 %v1652
      %2349 = vmatmul.mubr.bf16.gmra.mrb[0].mxu0 %v1651
      %v2350 = vpop.f32.mrb[0].mxu0
      %v2351 = vadd.f32 %v2190, %v2350
      %v2352 = vpop.f32.mrb[0].mxu0
      %v2353 = vpop.f32.mrb[0].mxu0
      %v2354 = vadd.f32 %v2193, %v2353
      %v2355 = vpop.f32.mrb[0].mxu0
      %2356 = vmatprep.mubr.bf16.mxu0 %v1658
      %2357 = vmatmul.mubr.bf16.gmra.mrb[0].mxu0 %v1657
      %v2358 = vpop.f32.mrb[0].mxu0
      %v2359 = vadd.f32 %v2198, %v2358
      %v2360 = vpop.f32.mrb[0].mxu0
      %v2361 = vpop.f32.mrb[0].mxu0
      %v2362 = vadd.f32 %v2201, %v2361
      %v2363 = vpop.f32.mrb[0].mxu0
      %2364 = vmatprep.mubr.bf16.mxu0 %v1664
      %2365 = vmatmul.mubr.bf16.gmra.mrb[0].mxu0 %v1663
      %v2366 = vpop.f32.mrb[0].mxu0
      %v2367 = vadd.f32 %v2206, %v2366
      %v2368 = vpop.f32.mrb[0].mxu0
      %v2369 = vpop.f32.mrb[0].mxu0
      %v2370 = vadd.f32 %v2209, %v2369
      %v2371 = vpop.f32.mrb[0].mxu0
      %2372 = vdwg.mxu0
      %2373 = vmatprep.subr.bf16.mxu0 0
      %2374 = vmatpush1.bf16.msra.mxu0 %v1987
      %2375 = vmatprep.subr.bf16.mxu0 0
      %2376 = vmatpush1.bf16.msra.mxu0 %v1988
      %2377 = vmatprep.subr.bf16.mxu0 0
      %2378 = vmatpush1.bf16.msra.mxu0 %v1989
      %2379 = vmatprep.subr.bf16.mxu0 0
      %2380 = vmatpush1.bf16.msra.mxu0 %v1990
      %2381 = vmatprep.subr.bf16.mxu0 0
      %2382 = vmatpush1.bf16.msra.mxu0 %v1991
      %2383 = vmatprep.subr.bf16.mxu0 0
      %2384 = vmatpush1.bf16.msra.mxu0 %v1992
      %2385 = vmatprep.subr.bf16.mxu0 0
      %2386 = vmatpush1.bf16.msra.mxu0 %v1993
      %2387 = vmatprep.subr.bf16.mxu0 0
      %2388 = vmatpush1.bf16.msra.mxu0 %v1994
      %2389 = vmatprep.subr.bf16.mxu0 0
      %2390 = vmatpush1.bf16.msra.mxu0 %v1995
      %2391 = vmatprep.subr.bf16.mxu0 0
      %2392 = vmatpush1.bf16.msra.mxu0 %v1996
      %2393 = vmatprep.subr.bf16.mxu0 0
      %2394 = vmatpush1.bf16.msra.mxu0 %v1997
      %2395 = vmatprep.subr.bf16.mxu0 0
      %2396 = vmatpush1.bf16.msra.mxu0 %v1998
      %2397 = vmatprep.subr.bf16.mxu0 0
      %2398 = vmatpush1.bf16.msra.mxu0 %v1999
      %2399 = vmatprep.subr.bf16.mxu0 0
      %2400 = vmatpush1.bf16.msra.mxu0 %v2000
      %2401 = vmatprep.subr.bf16.mxu0 0
      %2402 = vmatpush1.bf16.msra.mxu0 %v2001
      %2403 = vmatprep.subr.bf16.mxu0 0
      %2404 = vmatpush1.bf16.msra.mxu0 %v2002
      %2405 = vmatprep.mubr.bf16.mxu0 %v1576
      %2406 = vmatmul.mubr.bf16.gmra.mrb[0].mxu0 %v1575
      %v2407 = vpop.f32.mrb[0].mxu0
      %v2408 = vadd.f32 %v2247, %v2407
      %v2409 = vpop.f32.mrb[0].mxu0
      %v2410 = vpop.f32.mrb[0].mxu0
      %v2411 = vadd.f32 %v2250, %v2410
      %v2412 = vpop.f32.mrb[0].mxu0
      %2413 = vmatprep.mubr.bf16.mxu0 %v1582
      %2414 = vmatmul.mubr.bf16.gmra.mrb[0].mxu0 %v1581
      %v2415 = vpop.f32.mrb[0].mxu0
      %v2416 = vadd.f32 %v2255, %v2415
      %v2417 = vpop.f32.mrb[0].mxu0
      %v2418 = vpop.f32.mrb[0].mxu0
      %v2419 = vadd.f32 %v2258, %v2418
      %v2420 = vpop.f32.mrb[0].mxu0
      %2421 = vmatprep.mubr.bf16.mxu0 %v1588
      %2422 = vmatmul.mubr.bf16.gmra.mrb[0].mxu0 %v1587
      %v2423 = vpop.f32.mrb[0].mxu0
      %v2424 = vadd.f32 %v2263, %v2423
      %v2425 = vpop.f32.mrb[0].mxu0
      %v2426 = vpop.f32.mrb[0].mxu0
      %v2427 = vadd.f32 %v2266, %v2426
      %v2428 = vpop.f32.mrb[0].mxu0
      %2429 = vmatprep.mubr.bf16.mxu0 %v1594
      %2430 = vmatmul.mubr.bf16.gmra.mrb[0].mxu0 %v1593
      %v2431 = vpop.f32.mrb[0].mxu0
      %v2432 = vadd.f32 %v2271, %v2431
      %v2433 = vpop.f32.mrb[0].mxu0
      %v2434 = vpop.f32.mrb[0].mxu0
      %v2435 = vadd.f32 %v2274, %v2434
      %v2436 = vpop.f32.mrb[0].mxu0
      %2437 = vmatprep.mubr.bf16.mxu0 %v1600
      %2438 = vmatmul.mubr.bf16.gmra.mrb[0].mxu0 %v1599
      %v2439 = vpop.f32.mrb[0].mxu0
      %v2440 = vadd.f32 %v2279, %v2439
      %v2441 = vpop.f32.mrb[0].mxu0
      %v2442 = vpop.f32.mrb[0].mxu0
      %v2443 = vadd.f32 %v2282, %v2442
      %v2444 = vpop.f32.mrb[0].mxu0
      %2445 = vmatprep.mubr.bf16.mxu0 %v1606
      %2446 = vmatmul.mubr.bf16.gmra.mrb[0].mxu0 %v1605
      %v2447 = vpop.f32.mrb[0].mxu0
      %v2448 = vadd.f32 %v2287, %v2447
      %v2449 = vpop.f32.mrb[0].mxu0
      %v2450 = vpop.f32.mrb[0].mxu0
      %v2451 = vadd.f32 %v2290, %v2450
      %v2452 = vpop.f32.mrb[0].mxu0
      %2453 = vmatprep.mubr.bf16.mxu0 %v1612
      %2454 = vmatmul.mubr.bf16.gmra.mrb[0].mxu0 %v1611
      %v2455 = vpop.f32.mrb[0].mxu0
      %v2456 = vadd.f32 %v2295, %v2455
      %v2457 = vpop.f32.mrb[0].mxu0
      %v2458 = vpop.f32.mrb[0].mxu0
      %v2459 = vadd.f32 %v2298, %v2458
      %v2460 = vpop.f32.mrb[0].mxu0
      %2461 = vmatprep.mubr.bf16.mxu0 %v1618
      %2462 = vmatmul.mubr.bf16.gmra.mrb[0].mxu0 %v1617
      %v2463 = vpop.f32.mrb[0].mxu0
      %v2464 = vadd.f32 %v2303, %v2463
      %v2465 = vpop.f32.mrb[0].mxu0
      %v2466 = vpop.f32.mrb[0].mxu0
      %v2467 = vadd.f32 %v2306, %v2466
      %v2468 = vpop.f32.mrb[0].mxu0
      %2469 = vmatprep.mubr.bf16.mxu0 %v1624
      %2470 = vmatmul.mubr.bf16.gmra.mrb[0].mxu0 %v1623
      %v2471 = vpop.f32.mrb[0].mxu0
      %v2472 = vadd.f32 %v2311, %v2471
      %v2473 = vpop.f32.mrb[0].mxu0
      %v2474 = vpop.f32.mrb[0].mxu0
      %v2475 = vadd.f32 %v2314, %v2474
      %v2476 = vpop.f32.mrb[0].mxu0
      %2477 = vmatprep.mubr.bf16.mxu0 %v1630
      %2478 = vmatmul.mubr.bf16.gmra.mrb[0].mxu0 %v1629
      %v2479 = vpop.f32.mrb[0].mxu0
      %v2480 = vadd.f32 %v2319, %v2479
      %v2481 = vpop.f32.mrb[0].mxu0
      %v2482 = vpop.f32.mrb[0].mxu0
      %v2483 = vadd.f32 %v2322, %v2482
      %v2484 = vpop.f32.mrb[0].mxu0
      %2485 = vmatprep.mubr.bf16.mxu0 %v1636
      %2486 = vmatmul.mubr.bf16.gmra.mrb[0].mxu0 %v1635
      %v2487 = vpop.f32.mrb[0].mxu0
      %v2488 = vadd.f32 %v2327, %v2487
      %v2489 = vpop.f32.mrb[0].mxu0
      %v2490 = vpop.f32.mrb[0].mxu0
      %v2491 = vadd.f32 %v2330, %v2490
      %v2492 = vpop.f32.mrb[0].mxu0
      %2493 = vmatprep.mubr.bf16.mxu0 %v1642
      %2494 = vmatmul.mubr.bf16.gmra.mrb[0].mxu0 %v1641
      %v2495 = vpop.f32.mrb[0].mxu0
      %v2496 = vadd.f32 %v2335, %v2495
      %v2497 = vpop.f32.mrb[0].mxu0
      %v2498 = vpop.f32.mrb[0].mxu0
      %v2499 = vadd.f32 %v2338, %v2498
      %v2500 = vpop.f32.mrb[0].mxu0
      %2501 = vmatprep.mubr.bf16.mxu0 %v1648
      %2502 = vmatmul.mubr.bf16.gmra.mrb[0].mxu0 %v1647
      %v2503 = vpop.f32.mrb[0].mxu0
      %v2504 = vadd.f32 %v2343, %v2503
      %v2505 = vpop.f32.mrb[0].mxu0
      %v2506 = vpop.f32.mrb[0].mxu0
      %v2507 = vadd.f32 %v2346, %v2506
      %v2508 = vpop.f32.mrb[0].mxu0
      %2509 = vmatprep.mubr.bf16.mxu0 %v1654
      %2510 = vmatmul.mubr.bf16.gmra.mrb[0].mxu0 %v1653
      %v2511 = vpop.f32.mrb[0].mxu0
      %v2512 = vadd.f32 %v2351, %v2511
      %v2513 = vpop.f32.mrb[0].mxu0
      %v2514 = vpop.f32.mrb[0].mxu0
      %v2515 = vadd.f32 %v2354, %v2514
      %v2516 = vpop.f32.mrb[0].mxu0
      %2517 = vmatprep.mubr.bf16.mxu0 %v1660
      %2518 = vmatmul.mubr.bf16.gmra.mrb[0].mxu0 %v1659
      %v2519 = vpop.f32.mrb[0].mxu0
      %v2520 = vadd.f32 %v2359, %v2519
      %v2521 = vpop.f32.mrb[0].mxu0
      %v2522 = vpop.f32.mrb[0].mxu0
      %v2523 = vadd.f32 %v2362, %v2522
      %v2524 = vpop.f32.mrb[0].mxu0
      %2525 = vmatprep.mubr.bf16.mxu0 %v1666
      %2526 = vmatmul.mubr.bf16.gmra.mrb[0].mxu0 %v1665
      %v2527 = vpop.f32.mrb[0].mxu0
      %v2528 = vadd.f32 %v2367, %v2527
      %v2529 = vpop.f32.mrb[0].mxu0
      %v2530 = vpop.f32.mrb[0].mxu0
      %v2531 = vadd.f32 %v2370, %v2530
      %v2532 = vpop.f32.mrb[0].mxu0
      %2533 = vdwg.mxu0
      %v2534 = vld [vmem:[%s4] sm:$0x1]
      %v2536 = vlaneseq
      %v2537 = vshrl.u32 %v2536, 7
      %v2538 = vsub.s32 0, %v2537
      %v2539 = vrot.slane %v2534, %v2538
      %v2541 = vadd.f32 %v2408, %v2539
      %v2542 = vadd.f32 %v2411, %v2539
      %v2543 = vadd.f32 %v2416, %v2539
      %v2544 = vadd.f32 %v2419, %v2539
      %v2545 = vadd.f32 %v2424, %v2539
      %v2546 = vadd.f32 %v2427, %v2539
      %v2547 = vadd.f32 %v2432, %v2539
      %v2548 = vadd.f32 %v2435, %v2539
      %v2549 = vadd.f32 %v2440, %v2539
      %v2550 = vadd.f32 %v2443, %v2539
      %v2551 = vadd.f32 %v2448, %v2539
      %v2552 = vadd.f32 %v2451, %v2539
      %v2553 = vadd.f32 %v2456, %v2539
      %v2554 = vadd.f32 %v2459, %v2539
      %v2555 = vadd.f32 %v2464, %v2539
      %v2556 = vadd.f32 %v2467, %v2539
      %v2557 = vadd.f32 %v2472, %v2539
      %v2558 = vadd.f32 %v2475, %v2539
      %v2559 = vadd.f32 %v2480, %v2539
      %v2560 = vadd.f32 %v2483, %v2539
      %v2561 = vadd.f32 %v2488, %v2539
      %v2562 = vadd.f32 %v2491, %v2539
      %v2563 = vadd.f32 %v2496, %v2539
      %v2564 = vadd.f32 %v2499, %v2539
      %v2565 = vadd.f32 %v2504, %v2539
      %v2566 = vadd.f32 %v2507, %v2539
      %v2567 = vadd.f32 %v2512, %v2539
      %v2568 = vadd.f32 %v2515, %v2539
      %v2569 = vadd.f32 %v2520, %v2539
      %v2570 = vadd.f32 %v2523, %v2539
      %v2571 = vadd.f32 %v2528, %v2539
      %v2572 = vadd.f32 %v2531, %v2539
      %v2573 = vxor.u32 %v2541, 2147483648
      %v2574 = vxor.u32 %v2542, 2147483648
      %v2575 = vxor.u32 %v2543, 2147483648
      %v2576 = vxor.u32 %v2544, 2147483648
      %v2577 = vxor.u32 %v2545, 2147483648
      %v2578 = vxor.u32 %v2546, 2147483648
      %v2579 = vxor.u32 %v2547, 2147483648
      %v2580 = vxor.u32 %v2548, 2147483648
      %v2581 = vxor.u32 %v2549, 2147483648
      %v2582 = vxor.u32 %v2550, 2147483648
      %v2583 = vxor.u32 %v2551, 2147483648
      %v2584 = vxor.u32 %v2552, 2147483648
      %v2585 = vxor.u32 %v2553, 2147483648
      %v2586 = vxor.u32 %v2554, 2147483648
      %v2587 = vxor.u32 %v2555, 2147483648
      %v2588 = vxor.u32 %v2556, 2147483648
      %v2589 = vxor.u32 %v2557, 2147483648
      %v2590 = vxor.u32 %v2558, 2147483648
      %v2591 = vxor.u32 %v2559, 2147483648
      %v2592 = vxor.u32 %v2560, 2147483648
      %v2593 = vxor.u32 %v2561, 2147483648
      %v2594 = vxor.u32 %v2562, 2147483648
      %v2595 = vxor.u32 %v2563, 2147483648
      %v2596 = vxor.u32 %v2564, 2147483648
      %v2597 = vxor.u32 %v2565, 2147483648
      %v2598 = vxor.u32 %v2566, 2147483648
      %v2599 = vxor.u32 %v2567, 2147483648
      %v2600 = vxor.u32 %v2568, 2147483648
      %v2601 = vxor.u32 %v2569, 2147483648
      %v2602 = vxor.u32 %v2570, 2147483648
      %v2603 = vxor.u32 %v2571, 2147483648
      %v2604 = vxor.u32 %v2572, 2147483648
      %v2605 = vmul.f32 %v2573, 1.442695
      %v2606 = vpow.pop %v2605
      %v2607 = vmul.f32 %v2574, 1.442695
      %v2608 = vpow.pop %v2607
      %v2609 = vmul.f32 %v2575, 1.442695
      %v2610 = vpow.pop %v2609
      %v2611 = vmul.f32 %v2576, 1.442695
      %v2612 = vpow.pop %v2611
      %v2613 = vmul.f32 %v2577, 1.442695
      %v2614 = vpow.pop %v2613
      %v2615 = vmul.f32 %v2578, 1.442695
      %v2616 = vpow.pop %v2615
      %v2617 = vmul.f32 %v2579, 1.442695
      %v2618 = vpow.pop %v2617
      %v2619 = vmul.f32 %v2580, 1.442695
      %v2620 = vpow.pop %v2619
      %v2621 = vmul.f32 %v2581, 1.442695
      %v2622 = vpow.pop %v2621
      %v2623 = vmul.f32 %v2582, 1.442695
      %v2624 = vpow.pop %v2623
      %v2625 = vmul.f32 %v2583, 1.442695
      %v2626 = vpow.pop %v2625
      %v2627 = vmul.f32 %v2584, 1.442695
      %v2628 = vpow.pop %v2627
      %v2629 = vmul.f32 %v2585, 1.442695
      %v2630 = vpow.pop %v2629
      %v2631 = vmul.f32 %v2586, 1.442695
      %v2632 = vpow.pop %v2631
      %v2633 = vmul.f32 %v2587, 1.442695
      %v2634 = vpow.pop %v2633
      %v2635 = vmul.f32 %v2588, 1.442695
      %v2636 = vpow.pop %v2635
      %v2637 = vmul.f32 %v2589, 1.442695
      %v2638 = vpow.pop %v2637
      %v2639 = vmul.f32 %v2590, 1.442695
      %v2640 = vpow.pop %v2639
      %v2641 = vmul.f32 %v2591, 1.442695
      %v2642 = vpow.pop %v2641
      %v2643 = vmul.f32 %v2592, 1.442695
      %v2644 = vpow.pop %v2643
      %v2645 = vmul.f32 %v2593, 1.442695
      %v2646 = vpow.pop %v2645
      %v2647 = vmul.f32 %v2594, 1.442695
      %v2648 = vpow.pop %v2647
      %v2649 = vmul.f32 %v2595, 1.442695
      %v2650 = vpow.pop %v2649
      %v2651 = vmul.f32 %v2596, 1.442695
      %v2652 = vpow.pop %v2651
      %v2653 = vmul.f32 %v2597, 1.442695
      %v2654 = vpow.pop %v2653
      %v2655 = vmul.f32 %v2598, 1.442695
      %v2656 = vpow.pop %v2655
      %v2657 = vmul.f32 %v2599, 1.442695
      %v2658 = vpow.pop %v2657
      %v2659 = vmul.f32 %v2600, 1.442695
      %v2660 = vpow.pop %v2659
      %v2661 = vmul.f32 %v2601, 1.442695
      %v2662 = vpow.pop %v2661
      %v2663 = vmul.f32 %v2602, 1.442695
      %v2664 = vpow.pop %v2663
      %v2665 = vmul.f32 %v2603, 1.442695
      %v2666 = vpow.pop %v2665
      %v2667 = vmul.f32 %v2604, 1.442695
      %v2668 = vpow.pop %v2667
      %v2669 = vadd.f32 %v2606, 1.0
      %v2670 = vadd.f32 %v2608, 1.0
      %v2671 = vadd.f32 %v2610, 1.0
      %v2672 = vadd.f32 %v2612, 1.0
      %v2673 = vadd.f32 %v2614, 1.0
      %v2674 = vadd.f32 %v2616, 1.0
      %v2675 = vadd.f32 %v2618, 1.0
      %v2676 = vadd.f32 %v2620, 1.0
      %v2677 = vadd.f32 %v2622, 1.0
      %v2678 = vadd.f32 %v2624, 1.0
      %v2679 = vadd.f32 %v2626, 1.0
      %v2680 = vadd.f32 %v2628, 1.0
      %v2681 = vadd.f32 %v2630, 1.0
      %v2682 = vadd.f32 %v2632, 1.0
      %v2683 = vadd.f32 %v2634, 1.0
      %v2684 = vadd.f32 %v2636, 1.0
      %v2685 = vadd.f32 %v2638, 1.0
      %v2686 = vadd.f32 %v2640, 1.0
      %v2687 = vadd.f32 %v2642, 1.0
      %v2688 = vadd.f32 %v2644, 1.0
      %v2689 = vadd.f32 %v2646, 1.0
      %v2690 = vadd.f32 %v2648, 1.0
      %v2691 = vadd.f32 %v2650, 1.0
      %v2692 = vadd.f32 %v2652, 1.0
      %v2693 = vadd.f32 %v2654, 1.0
      %v2694 = vadd.f32 %v2656, 1.0
      %v2695 = vadd.f32 %v2658, 1.0
      %v2696 = vadd.f32 %v2660, 1.0
      %v2697 = vadd.f32 %v2662, 1.0
      %v2698 = vadd.f32 %v2664, 1.0
      %v2699 = vadd.f32 %v2666, 1.0
      %v2700 = vadd.f32 %v2668, 1.0
      %v2701 = vrcp.pop %v2669
      %v2702 = vmul.f32 1.0, %v2701
      %v2703 = vrcp.pop %v2670
      %v2704 = vmul.f32 1.0, %v2703
      %v2705 = vrcp.pop %v2671
      %v2706 = vmul.f32 1.0, %v2705
      %v2707 = vrcp.pop %v2672
      %v2708 = vmul.f32 1.0, %v2707
      %v2709 = vrcp.pop %v2673
      %v2710 = vmul.f32 1.0, %v2709
      %v2711 = vrcp.pop %v2674
      %v2712 = vmul.f32 1.0, %v2711
      %v2713 = vrcp.pop %v2675
      %v2714 = vmul.f32 1.0, %v2713
      %v2715 = vrcp.pop %v2676
      %v2716 = vmul.f32 1.0, %v2715
      %v2717 = vrcp.pop %v2677
      %v2718 = vmul.f32 1.0, %v2717
      %v2719 = vrcp.pop %v2678
      %v2720 = vmul.f32 1.0, %v2719
      %v2721 = vrcp.pop %v2679
      %v2722 = vmul.f32 1.0, %v2721
      %v2723 = vrcp.pop %v2680
      %v2724 = vmul.f32 1.0, %v2723
      %v2725 = vrcp.pop %v2681
      %v2726 = vmul.f32 1.0, %v2725
      %v2727 = vrcp.pop %v2682
      %v2728 = vmul.f32 1.0, %v2727
      %v2729 = vrcp.pop %v2683
      %v2730 = vmul.f32 1.0, %v2729
      %v2731 = vrcp.pop %v2684
      %v2732 = vmul.f32 1.0, %v2731
      %v2733 = vrcp.pop %v2685
      %v2734 = vmul.f32 1.0, %v2733
      %v2735 = vrcp.pop %v2686
      %v2736 = vmul.f32 1.0, %v2735
      %v2737 = vrcp.pop %v2687
      %v2738 = vmul.f32 1.0, %v2737
      %v2739 = vrcp.pop %v2688
      %v2740 = vmul.f32 1.0, %v2739
      %v2741 = vrcp.pop %v2689
      %v2742 = vmul.f32 1.0, %v2741
      %v2743 = vrcp.pop %v2690
      %v2744 = vmul.f32 1.0, %v2743
      %v2745 = vrcp.pop %v2691
      %v2746 = vmul.f32 1.0, %v2745
      %v2747 = vrcp.pop %v2692
      %v2748 = vmul.f32 1.0, %v2747
      %v2749 = vrcp.pop %v2693
      %v2750 = vmul.f32 1.0, %v2749
      %v2751 = vrcp.pop %v2694
      %v2752 = vmul.f32 1.0, %v2751
      %v2753 = vrcp.pop %v2695
      %v2754 = vmul.f32 1.0, %v2753
      %v2755 = vrcp.pop %v2696
      %v2756 = vmul.f32 1.0, %v2755
      %v2757 = vrcp.pop %v2697
      %v2758 = vmul.f32 1.0, %v2757
      %v2759 = vrcp.pop %v2698
      %v2760 = vmul.f32 1.0, %v2759
      %v2761 = vrcp.pop %v2699
      %v2762 = vmul.f32 1.0, %v2761
      %v2763 = vrcp.pop %v2700
      %v2764 = vmul.f32 1.0, %v2763
      %v2765 = vmul.f32 %v2541, %v2702
      %v2766 = vmul.f32 %v2542, %v2704
      %v2767 = vmul.f32 %v2543, %v2706
      %v2768 = vmul.f32 %v2544, %v2708
      %v2769 = vmul.f32 %v2545, %v2710
      %v2770 = vmul.f32 %v2546, %v2712
      %v2771 = vmul.f32 %v2547, %v2714
      %v2772 = vmul.f32 %v2548, %v2716
      %v2773 = vmul.f32 %v2549, %v2718
      %v2774 = vmul.f32 %v2550, %v2720
      %v2775 = vmul.f32 %v2551, %v2722
      %v2776 = vmul.f32 %v2552, %v2724
      %v2777 = vmul.f32 %v2553, %v2726
      %v2778 = vmul.f32 %v2554, %v2728
      %v2779 = vmul.f32 %v2555, %v2730
      %v2780 = vmul.f32 %v2556, %v2732
      %v2781 = vmul.f32 %v2557, %v2734
      %v2782 = vmul.f32 %v2558, %v2736
      %v2783 = vmul.f32 %v2559, %v2738
      %v2784 = vmul.f32 %v2560, %v2740
      %v2785 = vmul.f32 %v2561, %v2742
      %v2786 = vmul.f32 %v2562, %v2744
      %v2787 = vmul.f32 %v2563, %v2746
      %v2788 = vmul.f32 %v2564, %v2748
      %v2789 = vmul.f32 %v2565, %v2750
      %v2790 = vmul.f32 %v2566, %v2752
      %v2791 = vmul.f32 %v2567, %v2754
      %v2792 = vmul.f32 %v2568, %v2756
      %v2793 = vmul.f32 %v2569, %v2758
      %v2794 = vmul.f32 %v2570, %v2760
      %v2795 = vmul.f32 %v2571, %v2762
      %v2796 = vmul.f32 %v2572, %v2764
      %v2797 = vpack.c.bf16 %v2766, %v2765
      %v2798 = vpack.c.bf16 %v2768, %v2767
      %v2799 = vpack.c.bf16 %v2770, %v2769
      %v2800 = vpack.c.bf16 %v2772, %v2771
      %v2801 = vpack.c.bf16 %v2774, %v2773
      %v2802 = vpack.c.bf16 %v2776, %v2775
      %v2803 = vpack.c.bf16 %v2778, %v2777
      %v2804 = vpack.c.bf16 %v2780, %v2779
      %v2805 = vpack.c.bf16 %v2782, %v2781
      %v2806 = vpack.c.bf16 %v2784, %v2783
      %v2807 = vpack.c.bf16 %v2786, %v2785
      %v2808 = vpack.c.bf16 %v2788, %v2787
      %v2809 = vpack.c.bf16 %v2790, %v2789
      %v2810 = vpack.c.bf16 %v2792, %v2791
      %v2811 = vpack.c.bf16 %v2794, %v2793
      %v2812 = vpack.c.bf16 %v2796, %v2795
      %v2829 = vunpack.c.l.b16 %v2797
      %v2830 = vunpack.c.h.b16 %v2797
      %v2831 = vunpack.c.l.b16 %v2798
      %v2832 = vunpack.c.h.b16 %v2798
      %v2833 = vunpack.c.l.b16 %v2799
      %v2834 = vunpack.c.h.b16 %v2799
      %v2835 = vunpack.c.l.b16 %v2800
      %v2836 = vunpack.c.h.b16 %v2800
      %v2837 = vunpack.c.l.b16 %v2801
      %v2838 = vunpack.c.h.b16 %v2801
      %v2839 = vunpack.c.l.b16 %v2802
      %v2840 = vunpack.c.h.b16 %v2802
      %v2841 = vunpack.c.l.b16 %v2803
      %v2842 = vunpack.c.h.b16 %v2803
      %v2843 = vunpack.c.l.b16 %v2804
      %v2844 = vunpack.c.h.b16 %v2804
      %v2845 = vunpack.c.l.b16 %v2805
      %v2846 = vunpack.c.h.b16 %v2805
      %v2847 = vunpack.c.l.b16 %v2806
      %v2848 = vunpack.c.h.b16 %v2806
      %v2849 = vunpack.c.l.b16 %v2807
      %v2850 = vunpack.c.h.b16 %v2807
      %v2851 = vunpack.c.l.b16 %v2808
      %v2852 = vunpack.c.h.b16 %v2808
      %v2853 = vunpack.c.l.b16 %v2809
      %v2854 = vunpack.c.h.b16 %v2809
      %v2855 = vunpack.c.l.b16 %v2810
      %v2856 = vunpack.c.h.b16 %v2810
      %v2857 = vunpack.c.l.b16 %v2811
      %v2858 = vunpack.c.h.b16 %v2811
      %v2859 = vunpack.c.l.b16 %v2812
      %v2860 = vunpack.c.h.b16 %v2812
      %v2861 = vpack.c.b16 %v2829, %v2829
      %v2862 = vpack.c.b16 %v2830, %v2830
      %v2863 = vpack.c.b16 %v2831, %v2831
      %v2864 = vpack.c.b16 %v2832, %v2832
      %v2865 = vpack.c.b16 %v2833, %v2833
      %v2866 = vpack.c.b16 %v2834, %v2834
      %v2867 = vpack.c.b16 %v2835, %v2835
      %v2868 = vpack.c.b16 %v2836, %v2836
      %v2869 = vpack.c.b16 %v2837, %v2837
      %v2870 = vpack.c.b16 %v2838, %v2838
      %v2871 = vpack.c.b16 %v2839, %v2839
      %v2872 = vpack.c.b16 %v2840, %v2840
      %v2873 = vpack.c.b16 %v2841, %v2841
      %v2874 = vpack.c.b16 %v2842, %v2842
      %v2875 = vpack.c.b16 %v2843, %v2843
      %v2876 = vpack.c.b16 %v2844, %v2844
      %v2877 = vpack.c.b16 %v2845, %v2845
      %v2878 = vpack.c.b16 %v2846, %v2846
      %v2879 = vpack.c.b16 %v2847, %v2847
      %v2880 = vpack.c.b16 %v2848, %v2848
      %v2881 = vpack.c.b16 %v2849, %v2849
      %v2882 = vpack.c.b16 %v2850, %v2850
      %v2883 = vpack.c.b16 %v2851, %v2851
      %v2884 = vpack.c.b16 %v2852, %v2852
      %v2885 = vpack.c.b16 %v2853, %v2853
      %v2886 = vpack.c.b16 %v2854, %v2854
      %v2887 = vpack.c.b16 %v2855, %v2855
      %v2888 = vpack.c.b16 %v2856, %v2856
      %v2889 = vpack.c.b16 %v2857, %v2857
      %v2890 = vpack.c.b16 %v2858, %v2858
      %v2891 = vpack.c.b16 %v2859, %v2859
      %v2892 = vpack.c.b16 %v2860, %v2860
      %2925 = vst [vmem:[%s254] sm:$0xf] %v2861
      %2926 = vst [vmem:[%s254 + $0x4] sm:$0xf] %v2862
      %2927 = vst [vmem:[%s254 + $0x8] sm:$0xf] %v2863
      %2928 = vst [vmem:[%s254 + $0xc] sm:$0xf] %v2864
      %2929 = vst [vmem:[%s254 + $0x10] sm:$0xf] %v2865
      %2930 = vst [vmem:[%s254 + $0x14] sm:$0xf] %v2866
      %2931 = vst [vmem:[%s254 + $0x18] sm:$0xf] %v2867
      %2932 = vst [vmem:[%s254 + $0x1c] sm:$0xf] %v2868
      %2933 = vst [vmem:[%s254 + $0x20] sm:$0xf] %v2869
      %2934 = vst [vmem:[%s254 + $0x24] sm:$0xf] %v2870
      %2935 = vst [vmem:[%s254 + $0x28] sm:$0xf] %v2871
      %2936 = vst [vmem:[%s254 + $0x2c] sm:$0xf] %v2872
      %2937 = vst [vmem:[%s254 + $0x30] sm:$0xf] %v2873
      %2938 = vst [vmem:[%s254 + $0x34] sm:$0xf] %v2874
      %2939 = vst [vmem:[%s254 + $0x38] sm:$0xf] %v2875
      %2940 = vst [vmem:[%s254 + $0x3c] sm:$0xf] %v2876
      %2941 = vst [vmem:[%s254 + $0x40] sm:$0xf] %v2877
      %2942 = vst [vmem:[%s254 + $0x44] sm:$0xf] %v2878
      %2943 = vst [vmem:[%s254 + $0x48] sm:$0xf] %v2879
      %2944 = vst [vmem:[%s254 + $0x4c] sm:$0xf] %v2880
      %2945 = vst [vmem:[%s254 + $0x50] sm:$0xf] %v2881
      %2946 = vst [vmem:[%s254 + $0x54] sm:$0xf] %v2882
      %2947 = vst [vmem:[%s254 + $0x58] sm:$0xf] %v2883
      %2948 = vst [vmem:[%s254 + $0x5c] sm:$0xf] %v2884
      %2949 = vst [vmem:[%s254 + $0x60] sm:$0xf] %v2885
      %2950 = vst [vmem:[%s254 + $0x64] sm:$0xf] %v2886
      %2951 = vst [vmem:[%s254 + $0x68] sm:$0xf] %v2887
      %2952 = vst [vmem:[%s254 + $0x6c] sm:$0xf] %v2888
      %2953 = vst [vmem:[%s254 + $0x70] sm:$0xf] %v2889
      %2954 = vst [vmem:[%s254 + $0x74] sm:$0xf] %v2890
      %2955 = vst [vmem:[%s254 + $0x78] sm:$0xf] %v2891
      %2956 = vst [vmem:[%s254 + $0x7c] sm:$0xf] %v2892
      %s2957 = smul.u32 32, %s16
      %p2958 = scmp.lt.s32.totalorder %s2957, 63
      %s2959 = scalar_select %p2958, %s2957, 63
      %s2960 = smul.addr %s2959, 4
      %s2961 = scalar_lea.vmem %s5, %s2960
      // Predicated region
      $region41: #{backbone_2d_forward.6} parent=39 // pred_check
        %p2962 = pneg %p149
      $region42: #{backbone_2d_forward.6} parent=39 // pred_check_branch
        %2964 = sbr.rel (%p2962) target = $region44
      $region43: #{backbone_2d_forward.6} parent=39 // pred_region
        %s2965 = smul.u32 32, %s16
      $region44: #{backbone_2d_forward.6} parent=39 // pred_fallthru
        _
    $region40: #{backbone_2d_forward.6} parent=5 // pred_fallthru
      _
    %p2966 = scmp.le.s32.totalorder 2, %s11
    // Predicated region
    $region45: #{backbone_2d_forward.6} parent=5 // pred_check
      %p2967 = pneg %p2966
    $region46: #{backbone_2d_forward.6} parent=5 // pred_check_branch
      %2969 = sbr.rel (%p2967) target = $region48
    $region47: #{backbone_2d_forward.6} parent=5 // pred_region
      %s2970 = ssub.s32 %s11, 2
      // Predicated region
      $region49: #{backbone_2d_forward.6} parent=47 // pred_check
        %p2971 = pneg %p155
      $region50: #{backbone_2d_forward.6} parent=47 // pred_check_branch
        %2973 = sbr.rel (%p2971) target = $region52
      $region51: #{backbone_2d_forward.6} parent=47 // pred_region
        %s2974 = smul.u32 32, %s17
        %p2975 = scmp.lt.s32.totalorder %s2974, 63
        %s2976 = scalar_select %p2975, %s2974, 63
        %s2977 = smul.addr %s2976, 4
        %s2978 = scalar_lea.vmem %s5, %s2977
      $region52: #{backbone_2d_forward.6} parent=47 // pred_fallthru
        _
    $region48: #{backbone_2d_forward.6} parent=5 // pred_fallthru
      _
  $region6: #{backbone_2d_forward.6} parent=0 // loop_footer
    %s15 = sadd.s32 1, %s11
  $region7: #{backbone_2d_forward.6} parent=0 // loop_footer_branch
    %10 = sbr.rel target = $region3
  $region8: #{backbone_2d_forward.6} parent=0 // loop_exit
    _

// kernel: backbone_2d_forward.7
$region0: #{backbone_2d_forward.7}
  #allocation0 [shape = 'u32[]', space=smem, size = 0x4, offset = 0x4, fixed_abs, tag = 'smem constant byte address 0x4 - core index']
  #allocation1 [shape = 'u32[144,128]{1,0:T(1,128)}', space=vmem, size = 0x12000, scoped, tag = 'internal scratch']
  %s0 = inlined_call_operand.vmem [shape: bf16[128,768], index: 0, kind: input, shape index: {}]
  %s1 = inlined_call_operand.vmem [shape: bf16[128,384], index: 1, kind: input, shape index: {}]
  %s2 = inlined_call_operand.vmem [shape: bf16[768,128], index: 2, kind: input, shape index: {}]
  %s3 = inlined_call_operand.vmem [shape: bf16[384,128], index: 3, kind: input, shape index: {}]
  %s4 = inlined_call_operand.vmem [shape: f32[1,128], index: 4, kind: input, shape index: {}]
  %s5 = inlined_call_operand.vmem [shape: bf16[128,128], index: 5, kind: output, shape index: {}]
  %s6 = sld [smem:[#allocation0]]
  $region30: #{backbone_2d_forward.7} parent=0
    _
  %s8 = ssub.s32 1, %s6
  %s9 = scalar_select 0, %s8, %s6
  // Predicated region
  $region2: #{backbone_2d_forward.7} parent=0 // pred_check
    _
  $region3: #{backbone_2d_forward.7} parent=0 // pred_check_branch
    %11 = sbr.rel (0) target = $region5
  $region4: #{backbone_2d_forward.7} parent=0 // pred_region
    _
  $region5: #{backbone_2d_forward.7} parent=0 // pred_fallthru
    _
  // Predicated region
  $region6: #{backbone_2d_forward.7} parent=0 // pred_check
    _
  $region7: #{backbone_2d_forward.7} parent=0 // pred_check_branch
    %13 = sbr.rel (0) target = $region9
  $region8: #{backbone_2d_forward.7} parent=0 // pred_region
    _
  $region9: #{backbone_2d_forward.7} parent=0 // pred_fallthru
    _
  // Predicated region
  $region10: #{backbone_2d_forward.7} parent=0 // pred_check
    _
  $region11: #{backbone_2d_forward.7} parent=0 // pred_check_branch
    %15 = sbr.rel (0) target = $region13
  $region12: #{backbone_2d_forward.7} parent=0 // pred_region
    _
  $region13: #{backbone_2d_forward.7} parent=0 // pred_fallthru
    _
  // Predicated region
  $region14: #{backbone_2d_forward.7} parent=0 // pred_check
    _
  $region15: #{backbone_2d_forward.7} parent=0 // pred_check_branch
    %17 = sbr.rel (0) target = $region17
  $region16: #{backbone_2d_forward.7} parent=0 // pred_region
    _
  $region17: #{backbone_2d_forward.7} parent=0 // pred_fallthru
    _
  // Predicated region
  $region18: #{backbone_2d_forward.7} parent=0 // pred_check
    _
  $region19: #{backbone_2d_forward.7} parent=0 // pred_check_branch
    %19 = sbr.rel (0) target = $region21
  $region20: #{backbone_2d_forward.7} parent=0 // pred_region
    _
  $region21: #{backbone_2d_forward.7} parent=0 // pred_fallthru
    _
  %v21 = vld [vmem:[%s0] sm:$0xff]
  %v22 = vld [vmem:[%s0 + $0x8] sm:$0xff]
  %v23 = vld [vmem:[%s0 + $0x10] sm:$0xff]
  %v24 = vld [vmem:[%s0 + $0x18] sm:$0xff]
  %v25 = vld [vmem:[%s0 + $0x20] sm:$0xff]
  %v26 = vld [vmem:[%s0 + $0x28] sm:$0xff]
  %v27 = vld [vmem:[%s0 + $0x30] sm:$0xff]
  %v28 = vld [vmem:[%s0 + $0x38] sm:$0xff]
  %v29 = vld [vmem:[%s0 + $0x40] sm:$0xff]
  %v30 = vld [vmem:[%s0 + $0x48] sm:$0xff]
  %v31 = vld [vmem:[%s0 + $0x50] sm:$0xff]
  %v32 = vld [vmem:[%s0 + $0x58] sm:$0xff]
  %v33 = vld [vmem:[%s0 + $0x60] sm:$0xff]
  %v34 = vld [vmem:[%s0 + $0x68] sm:$0xff]
  %v35 = vld [vmem:[%s0 + $0x70] sm:$0xff]
  %v36 = vld [vmem:[%s0 + $0x78] sm:$0xff]
  %v37 = vld [vmem:[%s0 + $0x80] sm:$0xff]
  %v38 = vld [vmem:[%s0 + $0x88] sm:$0xff]
  %v39 = vld [vmem:[%s0 + $0x90] sm:$0xff]
  %v40 = vld [vmem:[%s0 + $0x98] sm:$0xff]
  %v41 = vld [vmem:[%s0 + $0xa0] sm:$0xff]
  %v42 = vld [vmem:[%s0 + $0xa8] sm:$0xff]
  %v43 = vld [vmem:[%s0 + $0xb0] sm:$0xff]
  %v44 = vld [vmem:[%s0 + $0xb8] sm:$0xff]
  %v45 = vld [vmem:[%s0 + $0xc0] sm:$0xff]
  %v46 = vld [vmem:[%s0 + $0xc8] sm:$0xff]
  %v47 = vld [vmem:[%s0 + $0xd0] sm:$0xff]
  %v48 = vld [vmem:[%s0 + $0xd8] sm:$0xff]
  %v49 = vld [vmem:[%s0 + $0xe0] sm:$0xff]
  %v50 = vld [vmem:[%s0 + $0xe8] sm:$0xff]
  %v51 = vld [vmem:[%s0 + $0xf0] sm:$0xff]
  %v52 = vld [vmem:[%s0 + $0xf8] sm:$0xff]
  %v53 = vld [vmem:[%s0 + $0x100] sm:$0xff]
  %v54 = vld [vmem:[%s0 + $0x108] sm:$0xff]
  %v55 = vld [vmem:[%s0 + $0x110] sm:$0xff]
  %v56 = vld [vmem:[%s0 + $0x118] sm:$0xff]
  %v57 = vld [vmem:[%s0 + $0x120] sm:$0xff]
  %v58 = vld [vmem:[%s0 + $0x128] sm:$0xff]
  %v59 = vld [vmem:[%s0 + $0x130] sm:$0xff]
  %v60 = vld [vmem:[%s0 + $0x138] sm:$0xff]
  %v61 = vld [vmem:[%s0 + $0x140] sm:$0xff]
  %v62 = vld [vmem:[%s0 + $0x148] sm:$0xff]
  %v63 = vld [vmem:[%s0 + $0x150] sm:$0xff]
  %v64 = vld [vmem:[%s0 + $0x158] sm:$0xff]
  %v65 = vld [vmem:[%s0 + $0x160] sm:$0xff]
  %v66 = vld [vmem:[%s0 + $0x168] sm:$0xff]
  %v67 = vld [vmem:[%s0 + $0x170] sm:$0xff]
  %v68 = vld [vmem:[%s0 + $0x178] sm:$0xff]
  %v69 = vld [vmem:[%s2] sm:$0xf]
  %v70 = vld [vmem:[%s2 + $0x4] sm:$0xf]
  %v71 = vld [vmem:[%s2 + $0x8] sm:$0xf]
  %v72 = vld [vmem:[%s2 + $0xc] sm:$0xf]
  %v73 = vld [vmem:[%s2 + $0x10] sm:$0xf]
  %v74 = vld [vmem:[%s2 + $0x14] sm:$0xf]
  %v75 = vld [vmem:[%s2 + $0x18] sm:$0xf]
  %v76 = vld [vmem:[%s2 + $0x1c] sm:$0xf]
  %v77 = vld [vmem:[%s2 + $0x20] sm:$0xf]
  %v78 = vld [vmem:[%s2 + $0x24] sm:$0xf]
  %v79 = vld [vmem:[%s2 + $0x28] sm:$0xf]
  %v80 = vld [vmem:[%s2 + $0x2c] sm:$0xf]
  %v81 = vld [vmem:[%s2 + $0x30] sm:$0xf]
  %v82 = vld [vmem:[%s2 + $0x34] sm:$0xf]
  %v83 = vld [vmem:[%s2 + $0x38] sm:$0xf]
  %v84 = vld [vmem:[%s2 + $0x3c] sm:$0xf]
  %v85 = vld [vmem:[%s2 + $0x40] sm:$0xf]
  %v86 = vld [vmem:[%s2 + $0x44] sm:$0xf]
  %v87 = vld [vmem:[%s2 + $0x48] sm:$0xf]
  %v88 = vld [vmem:[%s2 + $0x4c] sm:$0xf]
  %v89 = vld [vmem:[%s2 + $0x50] sm:$0xf]
  %v90 = vld [vmem:[%s2 + $0x54] sm:$0xf]
  %v91 = vld [vmem:[%s2 + $0x58] sm:$0xf]
  %v92 = vld [vmem:[%s2 + $0x5c] sm:$0xf]
  %v93 = vld [vmem:[%s2 + $0x60] sm:$0xf]
  %v94 = vld [vmem:[%s2 + $0x64] sm:$0xf]
  %v95 = vld [vmem:[%s2 + $0x68] sm:$0xf]
  %v96 = vld [vmem:[%s2 + $0x6c] sm:$0xf]
  %v97 = vld [vmem:[%s2 + $0x70] sm:$0xf]
  %v98 = vld [vmem:[%s2 + $0x74] sm:$0xf]
  %v99 = vld [vmem:[%s2 + $0x78] sm:$0xf]
  %v100 = vld [vmem:[%s2 + $0x7c] sm:$0xf]
  %v101 = vld [vmem:[%s2 + $0x80] sm:$0xf]
  %v102 = vld [vmem:[%s2 + $0x84] sm:$0xf]
  %v103 = vld [vmem:[%s2 + $0x88] sm:$0xf]
  %v104 = vld [vmem:[%s2 + $0x8c] sm:$0xf]
  %v105 = vld [vmem:[%s2 + $0x90] sm:$0xf]
  %v106 = vld [vmem:[%s2 + $0x94] sm:$0xf]
  %v107 = vld [vmem:[%s2 + $0x98] sm:$0xf]
  %v108 = vld [vmem:[%s2 + $0x9c] sm:$0xf]
  %v109 = vld [vmem:[%s2 + $0xa0] sm:$0xf]
  %v110 = vld [vmem:[%s2 + $0xa4] sm:$0xf]
  %v111 = vld [vmem:[%s2 + $0xa8] sm:$0xf]
  %v112 = vld [vmem:[%s2 + $0xac] sm:$0xf]
  %v113 = vld [vmem:[%s2 + $0xb0] sm:$0xf]
  %v114 = vld [vmem:[%s2 + $0xb4] sm:$0xf]
  %v115 = vld [vmem:[%s2 + $0xb8] sm:$0xf]
  %v116 = vld [vmem:[%s2 + $0xbc] sm:$0xf]
  %v117 = vld [vmem:[%s2 + $0xc0] sm:$0xf]
  %v118 = vld [vmem:[%s2 + $0xc4] sm:$0xf]
  %v119 = vld [vmem:[%s2 + $0xc8] sm:$0xf]
  %v120 = vld [vmem:[%s2 + $0xcc] sm:$0xf]
  %v121 = vld [vmem:[%s2 + $0xd0] sm:$0xf]
  %v122 = vld [vmem:[%s2 + $0xd4] sm:$0xf]
  %v123 = vld [vmem:[%s2 + $0xd8] sm:$0xf]
  %v124 = vld [vmem:[%s2 + $0xdc] sm:$0xf]
  %v125 = vld [vmem:[%s2 + $0xe0] sm:$0xf]
  %v126 = vld [vmem:[%s2 + $0xe4] sm:$0xf]
  %v127 = vld [vmem:[%s2 + $0xe8] sm:$0xf]
  %v128 = vld [vmem:[%s2 + $0xec] sm:$0xf]
  %v129 = vld [vmem:[%s2 + $0xf0] sm:$0xf]
  %v130 = vld [vmem:[%s2 + $0xf4] sm:$0xf]
  %v131 = vld [vmem:[%s2 + $0xf8] sm:$0xf]
  %v132 = vld [vmem:[%s2 + $0xfc] sm:$0xf]
  %v133 = vld [vmem:[%s2 + $0x100] sm:$0xf]
  %v134 = vld [vmem:[%s2 + $0x104] sm:$0xf]
  %v135 = vld [vmem:[%s2 + $0x108] sm:$0xf]
  %v136 = vld [vmem:[%s2 + $0x10c] sm:$0xf]
  %v137 = vld [vmem:[%s2 + $0x110] sm:$0xf]
  %v138 = vld [vmem:[%s2 + $0x114] sm:$0xf]
  %v139 = vld [vmem:[%s2 + $0x118] sm:$0xf]
  %v140 = vld [vmem:[%s2 + $0x11c] sm:$0xf]
  %v141 = vld [vmem:[%s2 + $0x120] sm:$0xf]
  %v142 = vld [vmem:[%s2 + $0x124] sm:$0xf]
  %v143 = vld [vmem:[%s2 + $0x128] sm:$0xf]
  %v144 = vld [vmem:[%s2 + $0x12c] sm:$0xf]
  %v145 = vld [vmem:[%s2 + $0x130] sm:$0xf]
  %v146 = vld [vmem:[%s2 + $0x134] sm:$0xf]
  %v147 = vld [vmem:[%s2 + $0x138] sm:$0xf]
  %v148 = vld [vmem:[%s2 + $0x13c] sm:$0xf]
  %v149 = vld [vmem:[%s2 + $0x140] sm:$0xf]
  %v150 = vld [vmem:[%s2 + $0x144] sm:$0xf]
  %v151 = vld [vmem:[%s2 + $0x148] sm:$0xf]
  %v152 = vld [vmem:[%s2 + $0x14c] sm:$0xf]
  %v153 = vld [vmem:[%s2 + $0x150] sm:$0xf]
  %v154 = vld [vmem:[%s2 + $0x154] sm:$0xf]
  %v155 = vld [vmem:[%s2 + $0x158] sm:$0xf]
  %v156 = vld [vmem:[%s2 + $0x15c] sm:$0xf]
  %v157 = vld [vmem:[%s2 + $0x160] sm:$0xf]
  %v158 = vld [vmem:[%s2 + $0x164] sm:$0xf]
  %v159 = vld [vmem:[%s2 + $0x168] sm:$0xf]
  %v160 = vld [vmem:[%s2 + $0x16c] sm:$0xf]
  %v161 = vld [vmem:[%s2 + $0x170] sm:$0xf]
  %v162 = vld [vmem:[%s2 + $0x174] sm:$0xf]
  %v163 = vld [vmem:[%s2 + $0x178] sm:$0xf]
  %v164 = vld [vmem:[%s2 + $0x17c] sm:$0xf]
  %v165 = vld [vmem:[%s1] sm:$0xff]
  %v166 = vld [vmem:[%s1 + $0x8] sm:$0xf]
  %v167 = vld [vmem:[%s1 + $0xc] sm:$0xff]
  %v168 = vld [vmem:[%s1 + $0x14] sm:$0xf]
  %v169 = vld [vmem:[%s1 + $0x18] sm:$0xff]
  %v170 = vld [vmem:[%s1 + $0x20] sm:$0xf]
  %v171 = vld [vmem:[%s1 + $0x24] sm:$0xff]
  %v172 = vld [vmem:[%s1 + $0x2c] sm:$0xf]
  %v173 = vld [vmem:[%s1 + $0x30] sm:$0xff]
  %v174 = vld [vmem:[%s1 + $0x38] sm:$0xf]
  %v175 = vld [vmem:[%s1 + $0x3c] sm:$0xff]
  %v176 = vld [vmem:[%s1 + $0x44] sm:$0xf]
  %v177 = vld [vmem:[%s1 + $0x48] sm:$0xff]
  %v178 = vld [vmem:[%s1 + $0x50] sm:$0xf]
  %v179 = vld [vmem:[%s1 + $0x54] sm:$0xff]
  %v180 = vld [vmem:[%s1 + $0x5c] sm:$0xf]
  %v181 = vld [vmem:[%s1 + $0x60] sm:$0xff]
  %v182 = vld [vmem:[%s1 + $0x68] sm:$0xf]
  %v183 = vld [vmem:[%s1 + $0x6c] sm:$0xff]
  %v184 = vld [vmem:[%s1 + $0x74] sm:$0xf]
  %v185 = vld [vmem:[%s1 + $0x78] sm:$0xff]
  %v186 = vld [vmem:[%s1 + $0x80] sm:$0xf]
  %v187 = vld [vmem:[%s1 + $0x84] sm:$0xff]
  %v188 = vld [vmem:[%s1 + $0x8c] sm:$0xf]
  %v189 = vld [vmem:[%s1 + $0x90] sm:$0xff]
  %v190 = vld [vmem:[%s1 + $0x98] sm:$0xf]
  %v191 = vld [vmem:[%s1 + $0x9c] sm:$0xff]
  %v192 = vld [vmem:[%s1 + $0xa4] sm:$0xf]
  %v193 = vld [vmem:[%s1 + $0xa8] sm:$0xff]
  %v194 = vld [vmem:[%s1 + $0xb0] sm:$0xf]
  %v195 = vld [vmem:[%s1 + $0xb4] sm:$0xff]
  %v196 = vld [vmem:[%s1 + $0xbc] sm:$0xf]
  %v197 = vld [vmem:[%s3] sm:$0xf]
  %v198 = vld [vmem:[%s3 + $0x4] sm:$0xf]
  %v199 = vld [vmem:[%s3 + $0x8] sm:$0xf]
  %v200 = vld [vmem:[%s3 + $0xc] sm:$0xf]
  %v201 = vld [vmem:[%s3 + $0x10] sm:$0xf]
  %v202 = vld [vmem:[%s3 + $0x14] sm:$0xf]
  %v203 = vld [vmem:[%s3 + $0x18] sm:$0xf]
  %v204 = vld [vmem:[%s3 + $0x1c] sm:$0xf]
  %v205 = vld [vmem:[%s3 + $0x20] sm:$0xf]
  %v206 = vld [vmem:[%s3 + $0x24] sm:$0xf]
  %v207 = vld [vmem:[%s3 + $0x28] sm:$0xf]
  %v208 = vld [vmem:[%s3 + $0x2c] sm:$0xf]
  %v209 = vld [vmem:[%s3 + $0x30] sm:$0xf]
  %v210 = vld [vmem:[%s3 + $0x34] sm:$0xf]
  %v211 = vld [vmem:[%s3 + $0x38] sm:$0xf]
  %v212 = vld [vmem:[%s3 + $0x3c] sm:$0xf]
  %v213 = vld [vmem:[%s3 + $0x40] sm:$0xf]
  %v214 = vld [vmem:[%s3 + $0x44] sm:$0xf]
  %v215 = vld [vmem:[%s3 + $0x48] sm:$0xf]
  %v216 = vld [vmem:[%s3 + $0x4c] sm:$0xf]
  %v217 = vld [vmem:[%s3 + $0x50] sm:$0xf]
  %v218 = vld [vmem:[%s3 + $0x54] sm:$0xf]
  %v219 = vld [vmem:[%s3 + $0x58] sm:$0xf]
  %v220 = vld [vmem:[%s3 + $0x5c] sm:$0xf]
  %v221 = vld [vmem:[%s3 + $0x60] sm:$0xf]
  %v222 = vld [vmem:[%s3 + $0x64] sm:$0xf]
  %v223 = vld [vmem:[%s3 + $0x68] sm:$0xf]
  %v224 = vld [vmem:[%s3 + $0x6c] sm:$0xf]
  %v225 = vld [vmem:[%s3 + $0x70] sm:$0xf]
  %v226 = vld [vmem:[%s3 + $0x74] sm:$0xf]
  %v227 = vld [vmem:[%s3 + $0x78] sm:$0xf]
  %v228 = vld [vmem:[%s3 + $0x7c] sm:$0xf]
  %v229 = vld [vmem:[%s3 + $0x80] sm:$0xf]
  %v230 = vld [vmem:[%s3 + $0x84] sm:$0xf]
  %v231 = vld [vmem:[%s3 + $0x88] sm:$0xf]
  %v232 = vld [vmem:[%s3 + $0x8c] sm:$0xf]
  %v233 = vld [vmem:[%s3 + $0x90] sm:$0xf]
  %v234 = vld [vmem:[%s3 + $0x94] sm:$0xf]
  %v235 = vld [vmem:[%s3 + $0x98] sm:$0xf]
  %v236 = vld [vmem:[%s3 + $0x9c] sm:$0xf]
  %v237 = vld [vmem:[%s3 + $0xa0] sm:$0xf]
  %v238 = vld [vmem:[%s3 + $0xa4] sm:$0xf]
  %v239 = vld [vmem:[%s3 + $0xa8] sm:$0xf]
  %v240 = vld [vmem:[%s3 + $0xac] sm:$0xf]
  %v241 = vld [vmem:[%s3 + $0xb0] sm:$0xf]
  %v242 = vld [vmem:[%s3 + $0xb4] sm:$0xf]
  %v243 = vld [vmem:[%s3 + $0xb8] sm:$0xf]
  %v244 = vld [vmem:[%s3 + $0xbc] sm:$0xf]
  %v277 = vunpack.c.l.b16 %v165
  %v278 = vunpack.c.h.b16 %v165
  %v279 = vunpack.c.l.b16 %v166
  %v280 = vunpack.c.l.b16 %v167
  %v281 = vunpack.c.h.b16 %v167
  %v282 = vunpack.c.l.b16 %v168
  %v283 = vunpack.c.l.b16 %v169
  %v284 = vunpack.c.h.b16 %v169
  %v285 = vunpack.c.l.b16 %v170
  %v286 = vunpack.c.l.b16 %v171
  %v287 = vunpack.c.h.b16 %v171
  %v288 = vunpack.c.l.b16 %v172
  %v289 = vunpack.c.l.b16 %v173
  %v290 = vunpack.c.h.b16 %v173
  %v291 = vunpack.c.l.b16 %v174
  %v292 = vunpack.c.l.b16 %v175
  %v293 = vunpack.c.h.b16 %v175
  %v294 = vunpack.c.l.b16 %v176
  %v295 = vunpack.c.l.b16 %v177
  %v296 = vunpack.c.h.b16 %v177
  %v297 = vunpack.c.l.b16 %v178
  %v298 = vunpack.c.l.b16 %v179
  %v299 = vunpack.c.h.b16 %v179
  %v300 = vunpack.c.l.b16 %v180
  %v301 = vunpack.c.l.b16 %v181
  %v302 = vunpack.c.h.b16 %v181
  %v303 = vunpack.c.l.b16 %v182
  %v304 = vunpack.c.l.b16 %v183
  %v305 = vunpack.c.h.b16 %v183
  %v306 = vunpack.c.l.b16 %v184
  %v307 = vunpack.c.l.b16 %v185
  %v308 = vunpack.c.h.b16 %v185
  %v309 = vunpack.c.l.b16 %v186
  %v310 = vunpack.c.l.b16 %v187
  %v311 = vunpack.c.h.b16 %v187
  %v312 = vunpack.c.l.b16 %v188
  %v313 = vunpack.c.l.b16 %v189
  %v314 = vunpack.c.h.b16 %v189
  %v315 = vunpack.c.l.b16 %v190
  %v316 = vunpack.c.l.b16 %v191
  %v317 = vunpack.c.h.b16 %v191
  %v318 = vunpack.c.l.b16 %v192
  %v319 = vunpack.c.l.b16 %v193
  %v320 = vunpack.c.h.b16 %v193
  %v321 = vunpack.c.l.b16 %v194
  %v322 = vunpack.c.l.b16 %v195
  %v323 = vunpack.c.h.b16 %v195
  %v324 = vunpack.c.l.b16 %v196
  %v325 = vpack.c.b16 %v280, %v277
  %v326 = vpack.c.b16 %v281, %v278
  %v327 = vpack.c.b16 %v282, %v279
  %v328 = vpack.c.b16 %v286, %v283
  %v329 = vpack.c.b16 %v287, %v284
  %v330 = vpack.c.b16 %v288, %v285
  %v331 = vpack.c.b16 %v292, %v289
  %v332 = vpack.c.b16 %v293, %v290
  %v333 = vpack.c.b16 %v294, %v291
  %v334 = vpack.c.b16 %v298, %v295
  %v335 = vpack.c.b16 %v299, %v296
  %v336 = vpack.c.b16 %v300, %v297
  %v337 = vpack.c.b16 %v304, %v301
  %v338 = vpack.c.b16 %v305, %v302
  %v339 = vpack.c.b16 %v306, %v303
  %v340 = vpack.c.b16 %v310, %v307
  %v341 = vpack.c.b16 %v311, %v308
  %v342 = vpack.c.b16 %v312, %v309
  %v343 = vpack.c.b16 %v316, %v313
  %v344 = vpack.c.b16 %v317, %v314
  %v345 = vpack.c.b16 %v318, %v315
  %v346 = vpack.c.b16 %v322, %v319
  %v347 = vpack.c.b16 %v323, %v320
  %v348 = vpack.c.b16 %v324, %v321
  %v421 = vunpack.c.l.b16 %v197
  %v422 = vunpack.c.l.b16 %v198
  %v423 = vunpack.c.l.b16 %v199
  %v424 = vunpack.c.l.b16 %v200
  %v425 = vunpack.c.l.b16 %v201
  %v426 = vunpack.c.l.b16 %v202
  %v427 = vunpack.c.l.b16 %v203
  %v428 = vunpack.c.l.b16 %v204
  %v429 = vunpack.c.l.b16 %v205
  %v430 = vunpack.c.l.b16 %v206
  %v431 = vunpack.c.l.b16 %v207
  %v432 = vunpack.c.l.b16 %v208
  %v433 = vunpack.c.l.b16 %v209
  %v434 = vunpack.c.l.b16 %v210
  %v435 = vunpack.c.l.b16 %v211
  %v436 = vunpack.c.l.b16 %v212
  %v437 = vunpack.c.l.b16 %v213
  %v438 = vunpack.c.l.b16 %v214
  %v439 = vunpack.c.l.b16 %v215
  %v440 = vunpack.c.l.b16 %v216
  %v441 = vunpack.c.l.b16 %v217
  %v442 = vunpack.c.l.b16 %v218
  %v443 = vunpack.c.l.b16 %v219
  %v444 = vunpack.c.l.b16 %v220
  %v445 = vunpack.c.l.b16 %v221
  %v446 = vunpack.c.l.b16 %v222
  %v447 = vunpack.c.l.b16 %v223
  %v448 = vunpack.c.l.b16 %v224
  %v449 = vunpack.c.l.b16 %v225
  %v450 = vunpack.c.l.b16 %v226
  %v451 = vunpack.c.l.b16 %v227
  %v452 = vunpack.c.l.b16 %v228
  %v453 = vunpack.c.l.b16 %v229
  %v454 = vunpack.c.l.b16 %v230
  %v455 = vunpack.c.l.b16 %v231
  %v456 = vunpack.c.l.b16 %v232
  %v457 = vunpack.c.l.b16 %v233
  %v458 = vunpack.c.l.b16 %v234
  %v459 = vunpack.c.l.b16 %v235
  %v460 = vunpack.c.l.b16 %v236
  %v461 = vunpack.c.l.b16 %v237
  %v462 = vunpack.c.l.b16 %v238
  %v463 = vunpack.c.l.b16 %v239
  %v464 = vunpack.c.l.b16 %v240
  %v465 = vunpack.c.l.b16 %v241
  %v466 = vunpack.c.l.b16 %v242
  %v467 = vunpack.c.l.b16 %v243
  %v468 = vunpack.c.l.b16 %v244
  %v469 = vpack.c.b16 %v422, %v421
  %v470 = vpack.c.b16 %v424, %v423
  %v471 = vpack.c.b16 %v426, %v425
  %v472 = vpack.c.b16 %v428, %v427
  %v473 = vpack.c.b16 %v430, %v429
  %v474 = vpack.c.b16 %v432, %v431
  %v475 = vpack.c.b16 %v434, %v433
  %v476 = vpack.c.b16 %v436, %v435
  %v477 = vpack.c.b16 %v438, %v437
  %v478 = vpack.c.b16 %v440, %v439
  %v479 = vpack.c.b16 %v442, %v441
  %v480 = vpack.c.b16 %v444, %v443
  %v481 = vpack.c.b16 %v446, %v445
  %v482 = vpack.c.b16 %v448, %v447
  %v483 = vpack.c.b16 %v450, %v449
  %v484 = vpack.c.b16 %v452, %v451
  %v485 = vpack.c.b16 %v454, %v453
  %v486 = vpack.c.b16 %v456, %v455
  %v487 = vpack.c.b16 %v458, %v457
  %v488 = vpack.c.b16 %v460, %v459
  %v489 = vpack.c.b16 %v462, %v461
  %v490 = vpack.c.b16 %v464, %v463
  %v491 = vpack.c.b16 %v466, %v465
  %v492 = vpack.c.b16 %v468, %v467
  %517 = vmatprep.subr.bf16.mxu0 0
  %518 = vmatpush1.bf16.msra.mxu0 %v469
  %519 = vmatprep.subr.bf16.mxu0 0
  %520 = vmatpush1.bf16.msra.mxu0 %v470
  %521 = vmatprep.subr.bf16.mxu0 0
  %522 = vmatpush1.bf16.msra.mxu0 %v471
  %523 = vmatprep.subr.bf16.mxu0 0
  %524 = vmatpush1.bf16.msra.mxu0 %v472
  %525 = vmatprep.subr.bf16.mxu0 0
  %526 = vmatpush1.bf16.msra.mxu0 %v473
  %527 = vmatprep.subr.bf16.mxu0 0
  %528 = vmatpush1.bf16.msra.mxu0 %v474
  %529 = vmatprep.subr.bf16.mxu0 0
  %530 = vmatpush1.bf16.msra.mxu0 %v475
  %531 = vmatprep.subr.bf16.mxu0 0
  %532 = vmatpush1.bf16.msra.mxu0 %v476
  %533 = vmatprep.subr.bf16.mxu0 0
  %534 = vmatpush1.bf16.msra.mxu0 %v477
  %535 = vmatprep.subr.bf16.mxu0 0
  %536 = vmatpush1.bf16.msra.mxu0 %v478
  %537 = vmatprep.subr.bf16.mxu0 0
  %538 = vmatpush1.bf16.msra.mxu0 %v479
  %539 = vmatprep.subr.bf16.mxu0 0
  %540 = vmatpush1.bf16.msra.mxu0 %v480
  %541 = vmatprep.subr.bf16.mxu0 0
  %542 = vmatpush1.bf16.msra.mxu0 %v481
  %543 = vmatprep.subr.bf16.mxu0 0
  %544 = vmatpush1.bf16.msra.mxu0 %v482
  %545 = vmatprep.subr.bf16.mxu0 0
  %546 = vmatpush1.bf16.msra.mxu0 %v483
  %547 = vmatprep.subr.bf16.mxu0 0
  %548 = vmatpush1.bf16.msra.mxu0 %v484
  %549 = vmatprep.mubr.bf16.mxu0 %v326
  %550 = vmatmul.mubr.bf16.gmra.mrb[0].mxu0 %v325
  %v551 = vpop.f32.mrb[0].mxu0
  %v552 = vadd.f32 0.0, %v551
  %v553 = vpop.f32.mrb[0].mxu0
  %v554 = vpop.f32.mrb[0].mxu0
  %v555 = vadd.f32 0.0, %v554
  %v556 = vpop.f32.mrb[0].mxu0
  %557 = vmatprep.mubr.bf16.mxu0 %v329
  %558 = vmatmul.mubr.bf16.gmra.mrb[0].mxu0 %v328
  %v559 = vpop.f32.mrb[0].mxu0
  %v560 = vadd.f32 0.0, %v559
  %v561 = vpop.f32.mrb[0].mxu0
  %v562 = vpop.f32.mrb[0].mxu0
  %v563 = vadd.f32 0.0, %v562
  %v564 = vpop.f32.mrb[0].mxu0
  %565 = vmatprep.mubr.bf16.mxu0 %v332
  %566 = vmatmul.mubr.bf16.gmra.mrb[0].mxu0 %v331
  %v567 = vpop.f32.mrb[0].mxu0
  %v568 = vadd.f32 0.0, %v567
  %v569 = vpop.f32.mrb[0].mxu0
  %v570 = vpop.f32.mrb[0].mxu0
  %v571 = vadd.f32 0.0, %v570
  %v572 = vpop.f32.mrb[0].mxu0
  %573 = vmatprep.mubr.bf16.mxu0 %v335
  %574 = vmatmul.mubr.bf16.gmra.mrb[0].mxu0 %v334
  %v575 = vpop.f32.mrb[0].mxu0
  %v576 = vadd.f32 0.0, %v575
  %v577 = vpop.f32.mrb[0].mxu0
  %v578 = vpop.f32.mrb[0].mxu0
  %v579 = vadd.f32 0.0, %v578
  %v580 = vpop.f32.mrb[0].mxu0
  %581 = vmatprep.mubr.bf16.mxu0 %v338
  %582 = vmatmul.mubr.bf16.gmra.mrb[0].mxu0 %v337
  %v583 = vpop.f32.mrb[0].mxu0
  %v584 = vadd.f32 0.0, %v583
  %v585 = vpop.f32.mrb[0].mxu0
  %v586 = vpop.f32.mrb[0].mxu0
  %v587 = vadd.f32 0.0, %v586
  %v588 = vpop.f32.mrb[0].mxu0
  %589 = vmatprep.mubr.bf16.mxu0 %v341
  %590 = vmatmul.mubr.bf16.gmra.mrb[0].mxu0 %v340
  %v591 = vpop.f32.mrb[0].mxu0
  %v592 = vadd.f32 0.0, %v591
  %v593 = vpop.f32.mrb[0].mxu0
  %v594 = vpop.f32.mrb[0].mxu0
  %v595 = vadd.f32 0.0, %v594
  %v596 = vpop.f32.mrb[0].mxu0
  %597 = vmatprep.mubr.bf16.mxu0 %v344
  %598 = vmatmul.mubr.bf16.gmra.mrb[0].mxu0 %v343
  %v599 = vpop.f32.mrb[0].mxu0
  %v600 = vadd.f32 0.0, %v599
  %v601 = vpop.f32.mrb[0].mxu0
  %v602 = vpop.f32.mrb[0].mxu0
  %v603 = vadd.f32 0.0, %v602
  %v604 = vpop.f32.mrb[0].mxu0
  %605 = vmatprep.mubr.bf16.mxu0 %v347
  %606 = vmatmul.mubr.bf16.gmra.mrb[0].mxu0 %v346
  %v607 = vpop.f32.mrb[0].mxu0
  %v608 = vadd.f32 0.0, %v607
  %v609 = vpop.f32.mrb[0].mxu0
  %v610 = vpop.f32.mrb[0].mxu0
  %v611 = vadd.f32 0.0, %v610
  %v612 = vpop.f32.mrb[0].mxu0
  %613 = vdwg.mxu0
  %614 = vmatprep.subr.bf16.mxu0 0
  %615 = vmatpush1.bf16.msra.mxu0 %v485
  %616 = vmatprep.subr.bf16.mxu0 0
  %617 = vmatpush1.bf16.msra.mxu0 %v486
  %618 = vmatprep.subr.bf16.mxu0 0
  %619 = vmatpush1.bf16.msra.mxu0 %v487
  %620 = vmatprep.subr.bf16.mxu0 0
  %621 = vmatpush1.bf16.msra.mxu0 %v488
  %622 = vmatprep.subr.bf16.mxu0 0
  %623 = vmatpush1.bf16.msra.mxu0 %v489
  %624 = vmatprep.subr.bf16.mxu0 0
  %625 = vmatpush1.bf16.msra.mxu0 %v490
  %626 = vmatprep.subr.bf16.mxu0 0
  %627 = vmatpush1.bf16.msra.mxu0 %v491
  %628 = vmatprep.subr.bf16.mxu0 0
  %629 = vmatpush1.bf16.msra.mxu0 %v492
  %630 = vmatprep.subr.bf16.mxu0 0
  %631 = vmatpush1.bf16.msra.mxu0 0
  %632 = vmatprep.subr.bf16.mxu0 0
  %633 = vmatpush1.bf16.msra.mxu0 0
  %634 = vmatprep.subr.bf16.mxu0 0
  %635 = vmatpush1.bf16.msra.mxu0 0
  %636 = vmatprep.subr.bf16.mxu0 0
  %637 = vmatpush1.bf16.msra.mxu0 0
  %638 = vmatprep.subr.bf16.mxu0 0
  %639 = vmatpush1.bf16.msra.mxu0 0
  %640 = vmatprep.subr.bf16.mxu0 0
  %641 = vmatpush1.bf16.msra.mxu0 0
  %642 = vmatprep.subr.bf16.mxu0 0
  %643 = vmatpush1.bf16.msra.mxu0 0
  %644 = vmatprep.subr.bf16.mxu0 0
  %645 = vmatpush1.bf16.msra.mxu0 0
  %646 = vmatprep.mubr.bf16.mxu0 0
  %647 = vmatmul.mubr.bf16.gmra.mrb[0].mxu0 %v327
  %v648 = vpop.f32.mrb[0].mxu0
  %v649 = vadd.f32 %v552, %v648
  %v650 = vpop.f32.mrb[0].mxu0
  %v651 = vpop.f32.mrb[0].mxu0
  %v652 = vadd.f32 %v555, %v651
  %v653 = vpop.f32.mrb[0].mxu0
  %654 = vmatprep.mubr.bf16.mxu0 0
  %655 = vmatmul.mubr.bf16.gmra.mrb[0].mxu0 %v330
  %v656 = vpop.f32.mrb[0].mxu0
  %v657 = vadd.f32 %v560, %v656
  %v658 = vpop.f32.mrb[0].mxu0
  %v659 = vpop.f32.mrb[0].mxu0
  %v660 = vadd.f32 %v563, %v659
  %v661 = vpop.f32.mrb[0].mxu0
  %662 = vmatprep.mubr.bf16.mxu0 0
  %663 = vmatmul.mubr.bf16.gmra.mrb[0].mxu0 %v333
  %v664 = vpop.f32.mrb[0].mxu0
  %v665 = vadd.f32 %v568, %v664
  %v666 = vpop.f32.mrb[0].mxu0
  %v667 = vpop.f32.mrb[0].mxu0
  %v668 = vadd.f32 %v571, %v667
  %v669 = vpop.f32.mrb[0].mxu0
  %670 = vmatprep.mubr.bf16.mxu0 0
  %671 = vmatmul.mubr.bf16.gmra.mrb[0].mxu0 %v336
  %v672 = vpop.f32.mrb[0].mxu0
  %v673 = vadd.f32 %v576, %v672
  %v674 = vpop.f32.mrb[0].mxu0
  %v675 = vpop.f32.mrb[0].mxu0
  %v676 = vadd.f32 %v579, %v675
  %v677 = vpop.f32.mrb[0].mxu0
  %678 = vmatprep.mubr.bf16.mxu0 0
  %679 = vmatmul.mubr.bf16.gmra.mrb[0].mxu0 %v339
  %v680 = vpop.f32.mrb[0].mxu0
  %v681 = vadd.f32 %v584, %v680
  %v682 = vpop.f32.mrb[0].mxu0
  %v683 = vpop.f32.mrb[0].mxu0
  %v684 = vadd.f32 %v587, %v683
  %v685 = vpop.f32.mrb[0].mxu0
  %686 = vmatprep.mubr.bf16.mxu0 0
  %687 = vmatmul.mubr.bf16.gmra.mrb[0].mxu0 %v342
  %v688 = vpop.f32.mrb[0].mxu0
  %v689 = vadd.f32 %v592, %v688
  %v690 = vpop.f32.mrb[0].mxu0
  %v691 = vpop.f32.mrb[0].mxu0
  %v692 = vadd.f32 %v595, %v691
  %v693 = vpop.f32.mrb[0].mxu0
  %694 = vmatprep.mubr.bf16.mxu0 0
  %695 = vmatmul.mubr.bf16.gmra.mrb[0].mxu0 %v345
  %v696 = vpop.f32.mrb[0].mxu0
  %v697 = vadd.f32 %v600, %v696
  %v698 = vpop.f32.mrb[0].mxu0
  %v699 = vpop.f32.mrb[0].mxu0
  %v700 = vadd.f32 %v603, %v699
  %v701 = vpop.f32.mrb[0].mxu0
  %702 = vmatprep.mubr.bf16.mxu0 0
  %703 = vmatmul.mubr.bf16.gmra.mrb[0].mxu0 %v348
  %v704 = vpop.f32.mrb[0].mxu0
  %v705 = vadd.f32 %v608, %v704
  %v706 = vpop.f32.mrb[0].mxu0
  %v707 = vpop.f32.mrb[0].mxu0
  %v708 = vadd.f32 %v611, %v707
  %v709 = vpop.f32.mrb[0].mxu0
  %710 = vdwg.mxu0
  %v759 = vunpack.c.l.b16 %v21
  %v760 = vunpack.c.h.b16 %v21
  %v761 = vunpack.c.l.b16 %v22
  %v762 = vunpack.c.h.b16 %v22
  %v763 = vunpack.c.l.b16 %v23
  %v764 = vunpack.c.h.b16 %v23
  %v765 = vunpack.c.l.b16 %v24
  %v766 = vunpack.c.h.b16 %v24
  %v767 = vunpack.c.l.b16 %v25
  %v768 = vunpack.c.h.b16 %v25
  %v769 = vunpack.c.l.b16 %v26
  %v770 = vunpack.c.h.b16 %v26
  %v771 = vunpack.c.l.b16 %v27
  %v772 = vunpack.c.h.b16 %v27
  %v773 = vunpack.c.l.b16 %v28
  %v774 = vunpack.c.h.b16 %v28
  %v775 = vunpack.c.l.b16 %v29
  %v776 = vunpack.c.h.b16 %v29
  %v777 = vunpack.c.l.b16 %v30
  %v778 = vunpack.c.h.b16 %v30
  %v779 = vunpack.c.l.b16 %v31
  %v780 = vunpack.c.h.b16 %v31
  %v781 = vunpack.c.l.b16 %v32
  %v782 = vunpack.c.h.b16 %v32
  %v783 = vunpack.c.l.b16 %v33
  %v784 = vunpack.c.h.b16 %v33
  %v785 = vunpack.c.l.b16 %v34
  %v786 = vunpack.c.h.b16 %v34
  %v787 = vunpack.c.l.b16 %v35
  %v788 = vunpack.c.h.b16 %v35
  %v789 = vunpack.c.l.b16 %v36
  %v790 = vunpack.c.h.b16 %v36
  %v791 = vunpack.c.l.b16 %v37
  %v792 = vunpack.c.h.b16 %v37
  %v793 = vunpack.c.l.b16 %v38
  %v794 = vunpack.c.h.b16 %v38
  %v795 = vunpack.c.l.b16 %v39
  %v796 = vunpack.c.h.b16 %v39
  %v797 = vunpack.c.l.b16 %v40
  %v798 = vunpack.c.h.b16 %v40
  %v799 = vunpack.c.l.b16 %v41
  %v800 = vunpack.c.h.b16 %v41
  %v801 = vunpack.c.l.b16 %v42
  %v802 = vunpack.c.h.b16 %v42
  %v803 = vunpack.c.l.b16 %v43
  %v804 = vunpack.c.h.b16 %v43
  %v805 = vunpack.c.l.b16 %v44
  %v806 = vunpack.c.h.b16 %v44
  %v807 = vunpack.c.l.b16 %v45
  %v808 = vunpack.c.h.b16 %v45
  %v809 = vunpack.c.l.b16 %v46
  %v810 = vunpack.c.h.b16 %v46
  %v811 = vunpack.c.l.b16 %v47
  %v812 = vunpack.c.h.b16 %v47
  %v813 = vunpack.c.l.b16 %v48
  %v814 = vunpack.c.h.b16 %v48
  %v815 = vunpack.c.l.b16 %v49
  %v816 = vunpack.c.h.b16 %v49
  %v817 = vunpack.c.l.b16 %v50
  %v818 = vunpack.c.h.b16 %v50
  %v819 = vunpack.c.l.b16 %v51
  %v820 = vunpack.c.h.b16 %v51
  %v821 = vunpack.c.l.b16 %v52
  %v822 = vunpack.c.h.b16 %v52
  %v823 = vunpack.c.l.b16 %v53
  %v824 = vunpack.c.h.b16 %v53
  %v825 = vunpack.c.l.b16 %v54
  %v826 = vunpack.c.h.b16 %v54
  %v827 = vunpack.c.l.b16 %v55
  %v828 = vunpack.c.h.b16 %v55
  %v829 = vunpack.c.l.b16 %v56
  %v830 = vunpack.c.h.b16 %v56
  %v831 = vunpack.c.l.b16 %v57
  %v832 = vunpack.c.h.b16 %v57
  %v833 = vunpack.c.l.b16 %v58
  %v834 = vunpack.c.h.b16 %v58
  %v835 = vunpack.c.l.b16 %v59
  %v836 = vunpack.c.h.b16 %v59
  %v837 = vunpack.c.l.b16 %v60
  %v838 = vunpack.c.h.b16 %v60
  %v839 = vunpack.c.l.b16 %v61
  %v840 = vunpack.c.h.b16 %v61
  %v841 = vunpack.c.l.b16 %v62
  %v842 = vunpack.c.h.b16 %v62
  %v843 = vunpack.c.l.b16 %v63
  %v844 = vunpack.c.h.b16 %v63
  %v845 = vunpack.c.l.b16 %v64
  %v846 = vunpack.c.h.b16 %v64
  %v847 = vunpack.c.l.b16 %v65
  %v848 = vunpack.c.h.b16 %v65
  %v849 = vunpack.c.l.b16 %v66
  %v850 = vunpack.c.h.b16 %v66
  %v851 = vunpack.c.l.b16 %v67
  %v852 = vunpack.c.h.b16 %v67
  %v853 = vunpack.c.l.b16 %v68
  %v854 = vunpack.c.h.b16 %v68
  %v855 = vpack.c.b16 %v765, %v759
  %v856 = vpack.c.b16 %v766, %v760
  %v857 = vpack.c.b16 %v767, %v761
  %v858 = vpack.c.b16 %v768, %v762
  %v859 = vpack.c.b16 %v769, %v763
  %v860 = vpack.c.b16 %v770, %v764
  %v861 = vpack.c.b16 %v777, %v771
  %v862 = vpack.c.b16 %v778, %v772
  %v863 = vpack.c.b16 %v779, %v773
  %v864 = vpack.c.b16 %v780, %v774
  %v865 = vpack.c.b16 %v781, %v775
  %v866 = vpack.c.b16 %v782, %v776
  %v867 = vpack.c.b16 %v789, %v783
  %v868 = vpack.c.b16 %v790, %v784
  %v869 = vpack.c.b16 %v791, %v785
  %v870 = vpack.c.b16 %v792, %v786
  %v871 = vpack.c.b16 %v793, %v787
  %v872 = vpack.c.b16 %v794, %v788
  %v873 = vpack.c.b16 %v801, %v795
  %v874 = vpack.c.b16 %v802, %v796
  %v875 = vpack.c.b16 %v803, %v797
  %v876 = vpack.c.b16 %v804, %v798
  %v877 = vpack.c.b16 %v805, %v799
  %v878 = vpack.c.b16 %v806, %v800
  %v879 = vpack.c.b16 %v813, %v807
  %v880 = vpack.c.b16 %v814, %v808
  %v881 = vpack.c.b16 %v815, %v809
  %v882 = vpack.c.b16 %v816, %v810
  %v883 = vpack.c.b16 %v817, %v811
  %v884 = vpack.c.b16 %v818, %v812
  %v885 = vpack.c.b16 %v825, %v819
  %v886 = vpack.c.b16 %v826, %v820
  %v887 = vpack.c.b16 %v827, %v821
  %v888 = vpack.c.b16 %v828, %v822
  %v889 = vpack.c.b16 %v829, %v823
  %v890 = vpack.c.b16 %v830, %v824
  %v891 = vpack.c.b16 %v837, %v831
  %v892 = vpack.c.b16 %v838, %v832
  %v893 = vpack.c.b16 %v839, %v833
  %v894 = vpack.c.b16 %v840, %v834
  %v895 = vpack.c.b16 %v841, %v835
  %v896 = vpack.c.b16 %v842, %v836
  %v897 = vpack.c.b16 %v849, %v843
  %v898 = vpack.c.b16 %v850, %v844
  %v899 = vpack.c.b16 %v851, %v845
  %v900 = vpack.c.b16 %v852, %v846
  %v901 = vpack.c.b16 %v853, %v847
  %v902 = vpack.c.b16 %v854, %v848
  %v1047 = vunpack.c.l.b16 %v69
  %v1048 = vunpack.c.l.b16 %v70
  %v1049 = vunpack.c.l.b16 %v71
  %v1050 = vunpack.c.l.b16 %v72
  %v1051 = vunpack.c.l.b16 %v73
  %v1052 = vunpack.c.l.b16 %v74
  %v1053 = vunpack.c.l.b16 %v75
  %v1054 = vunpack.c.l.b16 %v76
  %v1055 = vunpack.c.l.b16 %v77
  %v1056 = vunpack.c.l.b16 %v78
  %v1057 = vunpack.c.l.b16 %v79
  %v1058 = vunpack.c.l.b16 %v80
  %v1059 = vunpack.c.l.b16 %v81
  %v1060 = vunpack.c.l.b16 %v82
  %v1061 = vunpack.c.l.b16 %v83
  %v1062 = vunpack.c.l.b16 %v84
  %v1063 = vunpack.c.l.b16 %v85
  %v1064 = vunpack.c.l.b16 %v86
  %v1065 = vunpack.c.l.b16 %v87
  %v1066 = vunpack.c.l.b16 %v88
  %v1067 = vunpack.c.l.b16 %v89
  %v1068 = vunpack.c.l.b16 %v90
  %v1069 = vunpack.c.l.b16 %v91
  %v1070 = vunpack.c.l.b16 %v92
  %v1071 = vunpack.c.l.b16 %v93
  %v1072 = vunpack.c.l.b16 %v94
  %v1073 = vunpack.c.l.b16 %v95
  %v1074 = vunpack.c.l.b16 %v96
  %v1075 = vunpack.c.l.b16 %v97
  %v1076 = vunpack.c.l.b16 %v98
  %v1077 = vunpack.c.l.b16 %v99
  %v1078 = vunpack.c.l.b16 %v100
  %v1079 = vunpack.c.l.b16 %v101
  %v1080 = vunpack.c.l.b16 %v102
  %v1081 = vunpack.c.l.b16 %v103
  %v1082 = vunpack.c.l.b16 %v104
  %v1083 = vunpack.c.l.b16 %v105
  %v1084 = vunpack.c.l.b16 %v106
  %v1085 = vunpack.c.l.b16 %v107
  %v1086 = vunpack.c.l.b16 %v108
  %v1087 = vunpack.c.l.b16 %v109
  %v1088 = vunpack.c.l.b16 %v110
  %v1089 = vunpack.c.l.b16 %v111
  %v1090 = vunpack.c.l.b16 %v112
  %v1091 = vunpack.c.l.b16 %v113
  %v1092 = vunpack.c.l.b16 %v114
  %v1093 = vunpack.c.l.b16 %v115
  %v1094 = vunpack.c.l.b16 %v116
  %v1095 = vunpack.c.l.b16 %v117
  %v1096 = vunpack.c.l.b16 %v118
  %v1097 = vunpack.c.l.b16 %v119
  %v1098 = vunpack.c.l.b16 %v120
  %v1099 = vunpack.c.l.b16 %v121
  %v1100 = vunpack.c.l.b16 %v122
  %v1101 = vunpack.c.l.b16 %v123
  %v1102 = vunpack.c.l.b16 %v124
  %v1103 = vunpack.c.l.b16 %v125
  %v1104 = vunpack.c.l.b16 %v126
  %v1105 = vunpack.c.l.b16 %v127
  %v1106 = vunpack.c.l.b16 %v128
  %v1107 = vunpack.c.l.b16 %v129
  %v1108 = vunpack.c.l.b16 %v130
  %v1109 = vunpack.c.l.b16 %v131
  %v1110 = vunpack.c.l.b16 %v132
  %v1111 = vunpack.c.l.b16 %v133
  %v1112 = vunpack.c.l.b16 %v134
  %v1113 = vunpack.c.l.b16 %v135
  %v1114 = vunpack.c.l.b16 %v136
  %v1115 = vunpack.c.l.b16 %v137
  %v1116 = vunpack.c.l.b16 %v138
  %v1117 = vunpack.c.l.b16 %v139
  %v1118 = vunpack.c.l.b16 %v140
  %v1119 = vunpack.c.l.b16 %v141
  %v1120 = vunpack.c.l.b16 %v142
  %v1121 = vunpack.c.l.b16 %v143
  %v1122 = vunpack.c.l.b16 %v144
  %v1123 = vunpack.c.l.b16 %v145
  %v1124 = vunpack.c.l.b16 %v146
  %v1125 = vunpack.c.l.b16 %v147
  %v1126 = vunpack.c.l.b16 %v148
  %v1127 = vunpack.c.l.b16 %v149
  %v1128 = vunpack.c.l.b16 %v150
  %v1129 = vunpack.c.l.b16 %v151
  %v1130 = vunpack.c.l.b16 %v152
  %v1131 = vunpack.c.l.b16 %v153
  %v1132 = vunpack.c.l.b16 %v154
  %v1133 = vunpack.c.l.b16 %v155
  %v1134 = vunpack.c.l.b16 %v156
  %v1135 = vunpack.c.l.b16 %v157
  %v1136 = vunpack.c.l.b16 %v158
  %v1137 = vunpack.c.l.b16 %v159
  %v1138 = vunpack.c.l.b16 %v160
  %v1139 = vunpack.c.l.b16 %v161
  %v1140 = vunpack.c.l.b16 %v162
  %v1141 = vunpack.c.l.b16 %v163
  %v1142 = vunpack.c.l.b16 %v164
  %v1143 = vpack.c.b16 %v1048, %v1047
  %v1144 = vpack.c.b16 %v1050, %v1049
  %v1145 = vpack.c.b16 %v1052, %v1051
  %v1146 = vpack.c.b16 %v1054, %v1053
  %v1147 = vpack.c.b16 %v1056, %v1055
  %v1148 = vpack.c.b16 %v1058, %v1057
  %v1149 = vpack.c.b16 %v1060, %v1059
  %v1150 = vpack.c.b16 %v1062, %v1061
  %v1151 = vpack.c.b16 %v1064, %v1063
  %v1152 = vpack.c.b16 %v1066, %v1065
  %v1153 = vpack.c.b16 %v1068, %v1067
  %v1154 = vpack.c.b16 %v1070, %v1069
  %v1155 = vpack.c.b16 %v1072, %v1071
  %v1156 = vpack.c.b16 %v1074, %v1073
  %v1157 = vpack.c.b16 %v1076, %v1075
  %v1158 = vpack.c.b16 %v1078, %v1077
  %v1159 = vpack.c.b16 %v1080, %v1079
  %v1160 = vpack.c.b16 %v1082, %v1081
  %v1161 = vpack.c.b16 %v1084, %v1083
  %v1162 = vpack.c.b16 %v1086, %v1085
  %v1163 = vpack.c.b16 %v1088, %v1087
  %v1164 = vpack.c.b16 %v1090, %v1089
  %v1165 = vpack.c.b16 %v1092, %v1091
  %v1166 = vpack.c.b16 %v1094, %v1093
  %v1167 = vpack.c.b16 %v1096, %v1095
  %v1168 = vpack.c.b16 %v1098, %v1097
  %v1169 = vpack.c.b16 %v1100, %v1099
  %v1170 = vpack.c.b16 %v1102, %v1101
  %v1171 = vpack.c.b16 %v1104, %v1103
  %v1172 = vpack.c.b16 %v1106, %v1105
  %v1173 = vpack.c.b16 %v1108, %v1107
  %v1174 = vpack.c.b16 %v1110, %v1109
  %v1175 = vpack.c.b16 %v1112, %v1111
  %v1176 = vpack.c.b16 %v1114, %v1113
  %v1177 = vpack.c.b16 %v1116, %v1115
  %v1178 = vpack.c.b16 %v1118, %v1117
  %v1179 = vpack.c.b16 %v1120, %v1119
  %v1180 = vpack.c.b16 %v1122, %v1121
  %v1181 = vpack.c.b16 %v1124, %v1123
  %v1182 = vpack.c.b16 %v1126, %v1125
  %v1183 = vpack.c.b16 %v1128, %v1127
  %v1184 = vpack.c.b16 %v1130, %v1129
  %v1185 = vpack.c.b16 %v1132, %v1131
  %v1186 = vpack.c.b16 %v1134, %v1133
  %v1187 = vpack.c.b16 %v1136, %v1135
  %v1188 = vpack.c.b16 %v1138, %v1137
  %v1189 = vpack.c.b16 %v1140, %v1139
  %v1190 = vpack.c.b16 %v1142, %v1141
  %1239 = vmatprep.subr.bf16.mxu0 0
  %1240 = vmatpush1.bf16.msra.mxu0 %v1143
  %1241 = vmatprep.subr.bf16.mxu0 0
  %1242 = vmatpush1.bf16.msra.mxu0 %v1144
  %1243 = vmatprep.subr.bf16.mxu0 0
  %1244 = vmatpush1.bf16.msra.mxu0 %v1145
  %1245 = vmatprep.subr.bf16.mxu0 0
  %1246 = vmatpush1.bf16.msra.mxu0 %v1146
  %1247 = vmatprep.subr.bf16.mxu0 0
  %1248 = vmatpush1.bf16.msra.mxu0 %v1147
  %1249 = vmatprep.subr.bf16.mxu0 0
  %1250 = vmatpush1.bf16.msra.mxu0 %v1148
  %1251 = vmatprep.subr.bf16.mxu0 0
  %1252 = vmatpush1.bf16.msra.mxu0 %v1149
  %1253 = vmatprep.subr.bf16.mxu0 0
  %1254 = vmatpush1.bf16.msra.mxu0 %v1150
  %1255 = vmatprep.subr.bf16.mxu0 0
  %1256 = vmatpush1.bf16.msra.mxu0 %v1151
  %1257 = vmatprep.subr.bf16.mxu0 0
  %1258 = vmatpush1.bf16.msra.mxu0 %v1152
  %1259 = vmatprep.subr.bf16.mxu0 0
  %1260 = vmatpush1.bf16.msra.mxu0 %v1153
  %1261 = vmatprep.subr.bf16.mxu0 0
  %1262 = vmatpush1.bf16.msra.mxu0 %v1154
  %1263 = vmatprep.subr.bf16.mxu0 0
  %1264 = vmatpush1.bf16.msra.mxu0 %v1155
  %1265 = vmatprep.subr.bf16.mxu0 0
  %1266 = vmatpush1.bf16.msra.mxu0 %v1156
  %1267 = vmatprep.subr.bf16.mxu0 0
  %1268 = vmatpush1.bf16.msra.mxu0 %v1157
  %1269 = vmatprep.subr.bf16.mxu0 0
  %1270 = vmatpush1.bf16.msra.mxu0 %v1158
  %1271 = vmatprep.mubr.bf16.mxu0 %v856
  %1272 = vmatmul.mubr.bf16.gmra.mrb[0].mxu0 %v855
  %v1273 = vpop.f32.mrb[0].mxu0
  %v1274 = vadd.f32 %v649, %v1273
  %v1275 = vpop.f32.mrb[0].mxu0
  %v1276 = vpop.f32.mrb[0].mxu0
  %v1277 = vadd.f32 %v652, %v1276
  %v1278 = vpop.f32.mrb[0].mxu0
  %1279 = vmatprep.mubr.bf16.mxu0 %v862
  %1280 = vmatmul.mubr.bf16.gmra.mrb[0].mxu0 %v861
  %v1281 = vpop.f32.mrb[0].mxu0
  %v1282 = vadd.f32 %v657, %v1281
  %v1283 = vpop.f32.mrb[0].mxu0
  %v1284 = vpop.f32.mrb[0].mxu0
  %v1285 = vadd.f32 %v660, %v1284
  %v1286 = vpop.f32.mrb[0].mxu0
  %1287 = vmatprep.mubr.bf16.mxu0 %v868
  %1288 = vmatmul.mubr.bf16.gmra.mrb[0].mxu0 %v867
  %v1289 = vpop.f32.mrb[0].mxu0
  %v1290 = vadd.f32 %v665, %v1289
  %v1291 = vpop.f32.mrb[0].mxu0
  %v1292 = vpop.f32.mrb[0].mxu0
  %v1293 = vadd.f32 %v668, %v1292
  %v1294 = vpop.f32.mrb[0].mxu0
  %1295 = vmatprep.mubr.bf16.mxu0 %v874
  %1296 = vmatmul.mubr.bf16.gmra.mrb[0].mxu0 %v873
  %v1297 = vpop.f32.mrb[0].mxu0
  %v1298 = vadd.f32 %v673, %v1297
  %v1299 = vpop.f32.mrb[0].mxu0
  %v1300 = vpop.f32.mrb[0].mxu0
  %v1301 = vadd.f32 %v676, %v1300
  %v1302 = vpop.f32.mrb[0].mxu0
  %1303 = vmatprep.mubr.bf16.mxu0 %v880
  %1304 = vmatmul.mubr.bf16.gmra.mrb[0].mxu0 %v879
  %v1305 = vpop.f32.mrb[0].mxu0
  %v1306 = vadd.f32 %v681, %v1305
  %v1307 = vpop.f32.mrb[0].mxu0
  %v1308 = vpop.f32.mrb[0].mxu0
  %v1309 = vadd.f32 %v684, %v1308
  %v1310 = vpop.f32.mrb[0].mxu0
  %1311 = vmatprep.mubr.bf16.mxu0 %v886
  %1312 = vmatmul.mubr.bf16.gmra.mrb[0].mxu0 %v885
  %v1313 = vpop.f32.mrb[0].mxu0
  %v1314 = vadd.f32 %v689, %v1313
  %v1315 = vpop.f32.mrb[0].mxu0
  %v1316 = vpop.f32.mrb[0].mxu0
  %v1317 = vadd.f32 %v692, %v1316
  %v1318 = vpop.f32.mrb[0].mxu0
  %1319 = vmatprep.mubr.bf16.mxu0 %v892
  %1320 = vmatmul.mubr.bf16.gmra.mrb[0].mxu0 %v891
  %v1321 = vpop.f32.mrb[0].mxu0
  %v1322 = vadd.f32 %v697, %v1321
  %v1323 = vpop.f32.mrb[0].mxu0
  %v1324 = vpop.f32.mrb[0].mxu0
  %v1325 = vadd.f32 %v700, %v1324
  %v1326 = vpop.f32.mrb[0].mxu0
  %1327 = vmatprep.mubr.bf16.mxu0 %v898
  %1328 = vmatmul.mubr.bf16.gmra.mrb[0].mxu0 %v897
  %v1329 = vpop.f32.mrb[0].mxu0
  %v1330 = vadd.f32 %v705, %v1329
  %v1331 = vpop.f32.mrb[0].mxu0
  %v1332 = vpop.f32.mrb[0].mxu0
  %v1333 = vadd.f32 %v708, %v1332
  %v1334 = vpop.f32.mrb[0].mxu0
  %1335 = vdwg.mxu0
  %1336 = vmatprep.subr.bf16.mxu0 0
  %1337 = vmatpush1.bf16.msra.mxu0 %v1159
  %1338 = vmatprep.subr.bf16.mxu0 0
  %1339 = vmatpush1.bf16.msra.mxu0 %v1160
  %1340 = vmatprep.subr.bf16.mxu0 0
  %1341 = vmatpush1.bf16.msra.mxu0 %v1161
  %1342 = vmatprep.subr.bf16.mxu0 0
  %1343 = vmatpush1.bf16.msra.mxu0 %v1162
  %1344 = vmatprep.subr.bf16.mxu0 0
  %1345 = vmatpush1.bf16.msra.mxu0 %v1163
  %1346 = vmatprep.subr.bf16.mxu0 0
  %1347 = vmatpush1.bf16.msra.mxu0 %v1164
  %1348 = vmatprep.subr.bf16.mxu0 0
  %1349 = vmatpush1.bf16.msra.mxu0 %v1165
  %1350 = vmatprep.subr.bf16.mxu0 0
  %1351 = vmatpush1.bf16.msra.mxu0 %v1166
  %1352 = vmatprep.subr.bf16.mxu0 0
  %1353 = vmatpush1.bf16.msra.mxu0 %v1167
  %1354 = vmatprep.subr.bf16.mxu0 0
  %1355 = vmatpush1.bf16.msra.mxu0 %v1168
  %1356 = vmatprep.subr.bf16.mxu0 0
  %1357 = vmatpush1.bf16.msra.mxu0 %v1169
  %1358 = vmatprep.subr.bf16.mxu0 0
  %1359 = vmatpush1.bf16.msra.mxu0 %v1170
  %1360 = vmatprep.subr.bf16.mxu0 0
  %1361 = vmatpush1.bf16.msra.mxu0 %v1171
  %1362 = vmatprep.subr.bf16.mxu0 0
  %1363 = vmatpush1.bf16.msra.mxu0 %v1172
  %1364 = vmatprep.subr.bf16.mxu0 0
  %1365 = vmatpush1.bf16.msra.mxu0 %v1173
  %1366 = vmatprep.subr.bf16.mxu0 0
  %1367 = vmatpush1.bf16.msra.mxu0 %v1174
  %1368 = vmatprep.mubr.bf16.mxu0 %v858
  %1369 = vmatmul.mubr.bf16.gmra.mrb[0].mxu0 %v857
  %v1370 = vpop.f32.mrb[0].mxu0
  %v1371 = vadd.f32 %v1274, %v1370
  %v1372 = vpop.f32.mrb[0].mxu0
  %v1373 = vpop.f32.mrb[0].mxu0
  %v1374 = vadd.f32 %v1277, %v1373
  %v1375 = vpop.f32.mrb[0].mxu0
  %1376 = vmatprep.mubr.bf16.mxu0 %v864
  %1377 = vmatmul.mubr.bf16.gmra.mrb[0].mxu0 %v863
  %v1378 = vpop.f32.mrb[0].mxu0
  %v1379 = vadd.f32 %v1282, %v1378
  %v1380 = vpop.f32.mrb[0].mxu0
  %v1381 = vpop.f32.mrb[0].mxu0
  %v1382 = vadd.f32 %v1285, %v1381
  %v1383 = vpop.f32.mrb[0].mxu0
  %1384 = vmatprep.mubr.bf16.mxu0 %v870
  %1385 = vmatmul.mubr.bf16.gmra.mrb[0].mxu0 %v869
  %v1386 = vpop.f32.mrb[0].mxu0
  %v1387 = vadd.f32 %v1290, %v1386
  %v1388 = vpop.f32.mrb[0].mxu0
  %v1389 = vpop.f32.mrb[0].mxu0
  %v1390 = vadd.f32 %v1293, %v1389
  %v1391 = vpop.f32.mrb[0].mxu0
  %1392 = vmatprep.mubr.bf16.mxu0 %v876
  %1393 = vmatmul.mubr.bf16.gmra.mrb[0].mxu0 %v875
  %v1394 = vpop.f32.mrb[0].mxu0
  %v1395 = vadd.f32 %v1298, %v1394
  %v1396 = vpop.f32.mrb[0].mxu0
  %v1397 = vpop.f32.mrb[0].mxu0
  %v1398 = vadd.f32 %v1301, %v1397
  %v1399 = vpop.f32.mrb[0].mxu0
  %1400 = vmatprep.mubr.bf16.mxu0 %v882
  %1401 = vmatmul.mubr.bf16.gmra.mrb[0].mxu0 %v881
  %v1402 = vpop.f32.mrb[0].mxu0
  %v1403 = vadd.f32 %v1306, %v1402
  %v1404 = vpop.f32.mrb[0].mxu0
  %v1405 = vpop.f32.mrb[0].mxu0
  %v1406 = vadd.f32 %v1309, %v1405
  %v1407 = vpop.f32.mrb[0].mxu0
  %1408 = vmatprep.mubr.bf16.mxu0 %v888
  %1409 = vmatmul.mubr.bf16.gmra.mrb[0].mxu0 %v887
  %v1410 = vpop.f32.mrb[0].mxu0
  %v1411 = vadd.f32 %v1314, %v1410
  %v1412 = vpop.f32.mrb[0].mxu0
  %v1413 = vpop.f32.mrb[0].mxu0
  %v1414 = vadd.f32 %v1317, %v1413
  %v1415 = vpop.f32.mrb[0].mxu0
  %1416 = vmatprep.mubr.bf16.mxu0 %v894
  %1417 = vmatmul.mubr.bf16.gmra.mrb[0].mxu0 %v893
  %v1418 = vpop.f32.mrb[0].mxu0
  %v1419 = vadd.f32 %v1322, %v1418
  %v1420 = vpop.f32.mrb[0].mxu0
  %v1421 = vpop.f32.mrb[0].mxu0
  %v1422 = vadd.f32 %v1325, %v1421
  %v1423 = vpop.f32.mrb[0].mxu0
  %1424 = vmatprep.mubr.bf16.mxu0 %v900
  %1425 = vmatmul.mubr.bf16.gmra.mrb[0].mxu0 %v899
  %v1426 = vpop.f32.mrb[0].mxu0
  %v1427 = vadd.f32 %v1330, %v1426
  %v1428 = vpop.f32.mrb[0].mxu0
  %v1429 = vpop.f32.mrb[0].mxu0
  %v1430 = vadd.f32 %v1333, %v1429
  %v1431 = vpop.f32.mrb[0].mxu0
  %1432 = vdwg.mxu0
  %1433 = vmatprep.subr.bf16.mxu0 0
  %1434 = vmatpush1.bf16.msra.mxu0 %v1175
  %1435 = vmatprep.subr.bf16.mxu0 0
  %1436 = vmatpush1.bf16.msra.mxu0 %v1176
  %1437 = vmatprep.subr.bf16.mxu0 0
  %1438 = vmatpush1.bf16.msra.mxu0 %v1177
  %1439 = vmatprep.subr.bf16.mxu0 0
  %1440 = vmatpush1.bf16.msra.mxu0 %v1178
  %1441 = vmatprep.subr.bf16.mxu0 0
  %1442 = vmatpush1.bf16.msra.mxu0 %v1179
  %1443 = vmatprep.subr.bf16.mxu0 0
  %1444 = vmatpush1.bf16.msra.mxu0 %v1180
  %1445 = vmatprep.subr.bf16.mxu0 0
  %1446 = vmatpush1.bf16.msra.mxu0 %v1181
  %1447 = vmatprep.subr.bf16.mxu0 0
  %1448 = vmatpush1.bf16.msra.mxu0 %v1182
  %1449 = vmatprep.subr.bf16.mxu0 0
  %1450 = vmatpush1.bf16.msra.mxu0 %v1183
  %1451 = vmatprep.subr.bf16.mxu0 0
  %1452 = vmatpush1.bf16.msra.mxu0 %v1184
  %1453 = vmatprep.subr.bf16.mxu0 0
  %1454 = vmatpush1.bf16.msra.mxu0 %v1185
  %1455 = vmatprep.subr.bf16.mxu0 0
  %1456 = vmatpush1.bf16.msra.mxu0 %v1186
  %1457 = vmatprep.subr.bf16.mxu0 0
  %1458 = vmatpush1.bf16.msra.mxu0 %v1187
  %1459 = vmatprep.subr.bf16.mxu0 0
  %1460 = vmatpush1.bf16.msra.mxu0 %v1188
  %1461 = vmatprep.subr.bf16.mxu0 0
  %1462 = vmatpush1.bf16.msra.mxu0 %v1189
  %1463 = vmatprep.subr.bf16.mxu0 0
  %1464 = vmatpush1.bf16.msra.mxu0 %v1190
  %1465 = vmatprep.mubr.bf16.mxu0 %v860
  %1466 = vmatmul.mubr.bf16.gmra.mrb[0].mxu0 %v859
  %v1467 = vpop.f32.mrb[0].mxu0
  %v1468 = vadd.f32 %v1371, %v1467
  %v1469 = vpop.f32.mrb[0].mxu0
  %v1470 = vpop.f32.mrb[0].mxu0
  %v1471 = vadd.f32 %v1374, %v1470
  %v1472 = vpop.f32.mrb[0].mxu0
  %1473 = vmatprep.mubr.bf16.mxu0 %v866
  %1474 = vmatmul.mubr.bf16.gmra.mrb[0].mxu0 %v865
  %v1475 = vpop.f32.mrb[0].mxu0
  %v1476 = vadd.f32 %v1379, %v1475
  %v1477 = vpop.f32.mrb[0].mxu0
  %v1478 = vpop.f32.mrb[0].mxu0
  %v1479 = vadd.f32 %v1382, %v1478
  %v1480 = vpop.f32.mrb[0].mxu0
  %1481 = vmatprep.mubr.bf16.mxu0 %v872
  %1482 = vmatmul.mubr.bf16.gmra.mrb[0].mxu0 %v871
  %v1483 = vpop.f32.mrb[0].mxu0
  %v1484 = vadd.f32 %v1387, %v1483
  %v1485 = vpop.f32.mrb[0].mxu0
  %v1486 = vpop.f32.mrb[0].mxu0
  %v1487 = vadd.f32 %v1390, %v1486
  %v1488 = vpop.f32.mrb[0].mxu0
  %1489 = vmatprep.mubr.bf16.mxu0 %v878
  %1490 = vmatmul.mubr.bf16.gmra.mrb[0].mxu0 %v877
  %v1491 = vpop.f32.mrb[0].mxu0
  %v1492 = vadd.f32 %v1395, %v1491
  %v1493 = vpop.f32.mrb[0].mxu0
  %v1494 = vpop.f32.mrb[0].mxu0
  %v1495 = vadd.f32 %v1398, %v1494
  %v1496 = vpop.f32.mrb[0].mxu0
  %1497 = vmatprep.mubr.bf16.mxu0 %v884
  %1498 = vmatmul.mubr.bf16.gmra.mrb[0].mxu0 %v883
  %v1499 = vpop.f32.mrb[0].mxu0
  %v1500 = vadd.f32 %v1403, %v1499
  %v1501 = vpop.f32.mrb[0].mxu0
  %v1502 = vpop.f32.mrb[0].mxu0
  %v1503 = vadd.f32 %v1406, %v1502
  %v1504 = vpop.f32.mrb[0].mxu0
  %1505 = vmatprep.mubr.bf16.mxu0 %v890
  %1506 = vmatmul.mubr.bf16.gmra.mrb[0].mxu0 %v889
  %v1507 = vpop.f32.mrb[0].mxu0
  %v1508 = vadd.f32 %v1411, %v1507
  %v1509 = vpop.f32.mrb[0].mxu0
  %v1510 = vpop.f32.mrb[0].mxu0
  %v1511 = vadd.f32 %v1414, %v1510
  %v1512 = vpop.f32.mrb[0].mxu0
  %1513 = vmatprep.mubr.bf16.mxu0 %v896
  %1514 = vmatmul.mubr.bf16.gmra.mrb[0].mxu0 %v895
  %v1515 = vpop.f32.mrb[0].mxu0
  %v1516 = vadd.f32 %v1419, %v1515
  %v1517 = vpop.f32.mrb[0].mxu0
  %v1518 = vpop.f32.mrb[0].mxu0
  %v1519 = vadd.f32 %v1422, %v1518
  %v1520 = vpop.f32.mrb[0].mxu0
  %1521 = vmatprep.mubr.bf16.mxu0 %v902
  %1522 = vmatmul.mubr.bf16.gmra.mrb[0].mxu0 %v901
  %v1523 = vpop.f32.mrb[0].mxu0
  %v1524 = vadd.f32 %v1427, %v1523
  %v1525 = vpop.f32.mrb[0].mxu0
  %v1526 = vpop.f32.mrb[0].mxu0
  %v1527 = vadd.f32 %v1430, %v1526
  %v1528 = vpop.f32.mrb[0].mxu0
  %1529 = vdwg.mxu0
  %v1530 = vld [vmem:[%s4] sm:$0x1]
  %v1532 = vlaneseq
  %v1533 = vshrl.u32 %v1532, 7
  %v1534 = vsub.s32 0, %v1533
  %v1535 = vrot.slane %v1530, %v1534
  %v1537 = vadd.f32 %v1468, %v1535
  %v1538 = vadd.f32 %v1471, %v1535
  %v1539 = vadd.f32 %v1476, %v1535
  %v1540 = vadd.f32 %v1479, %v1535
  %v1541 = vadd.f32 %v1484, %v1535
  %v1542 = vadd.f32 %v1487, %v1535
  %v1543 = vadd.f32 %v1492, %v1535
  %v1544 = vadd.f32 %v1495, %v1535
  %v1545 = vadd.f32 %v1500, %v1535
  %v1546 = vadd.f32 %v1503, %v1535
  %v1547 = vadd.f32 %v1508, %v1535
  %v1548 = vadd.f32 %v1511, %v1535
  %v1549 = vadd.f32 %v1516, %v1535
  %v1550 = vadd.f32 %v1519, %v1535
  %v1551 = vadd.f32 %v1524, %v1535
  %v1552 = vadd.f32 %v1527, %v1535
  %v1553 = vxor.u32 %v1537, 2147483648
  %v1554 = vxor.u32 %v1538, 2147483648
  %v1555 = vxor.u32 %v1539, 2147483648
  %v1556 = vxor.u32 %v1540, 2147483648
  %v1557 = vxor.u32 %v1541, 2147483648
  %v1558 = vxor.u32 %v1542, 2147483648
  %v1559 = vxor.u32 %v1543, 2147483648
  %v1560 = vxor.u32 %v1544, 2147483648
  %v1561 = vxor.u32 %v1545, 2147483648
  %v1562 = vxor.u32 %v1546, 2147483648
  %v1563 = vxor.u32 %v1547, 2147483648
  %v1564 = vxor.u32 %v1548, 2147483648
  %v1565 = vxor.u32 %v1549, 2147483648
  %v1566 = vxor.u32 %v1550, 2147483648
  %v1567 = vxor.u32 %v1551, 2147483648
  %v1568 = vxor.u32 %v1552, 2147483648
  %v1569 = vmul.f32 %v1553, 1.442695
  %v1570 = vpow.pop %v1569
  %v1571 = vmul.f32 %v1554, 1.442695
  %v1572 = vpow.pop %v1571
  %v1573 = vmul.f32 %v1555, 1.442695
  %v1574 = vpow.pop %v1573
  %v1575 = vmul.f32 %v1556, 1.442695
  %v1576 = vpow.pop %v1575
  %v1577 = vmul.f32 %v1557, 1.442695
  %v1578 = vpow.pop %v1577
  %v1579 = vmul.f32 %v1558, 1.442695
  %v1580 = vpow.pop %v1579
  %v1581 = vmul.f32 %v1559, 1.442695
  %v1582 = vpow.pop %v1581
  %v1583 = vmul.f32 %v1560, 1.442695
  %v1584 = vpow.pop %v1583
  %v1585 = vmul.f32 %v1561, 1.442695
  %v1586 = vpow.pop %v1585
  %v1587 = vmul.f32 %v1562, 1.442695
  %v1588 = vpow.pop %v1587
  %v1589 = vmul.f32 %v1563, 1.442695
  %v1590 = vpow.pop %v1589
  %v1591 = vmul.f32 %v1564, 1.442695
  %v1592 = vpow.pop %v1591
  %v1593 = vmul.f32 %v1565, 1.442695
  %v1594 = vpow.pop %v1593
  %v1595 = vmul.f32 %v1566, 1.442695
  %v1596 = vpow.pop %v1595
  %v1597 = vmul.f32 %v1567, 1.442695
  %v1598 = vpow.pop %v1597
  %v1599 = vmul.f32 %v1568, 1.442695
  %v1600 = vpow.pop %v1599
  %v1601 = vadd.f32 %v1570, 1.0
  %v1602 = vadd.f32 %v1572, 1.0
  %v1603 = vadd.f32 %v1574, 1.0
  %v1604 = vadd.f32 %v1576, 1.0
  %v1605 = vadd.f32 %v1578, 1.0
  %v1606 = vadd.f32 %v1580, 1.0
  %v1607 = vadd.f32 %v1582, 1.0
  %v1608 = vadd.f32 %v1584, 1.0
  %v1609 = vadd.f32 %v1586, 1.0
  %v1610 = vadd.f32 %v1588, 1.0
  %v1611 = vadd.f32 %v1590, 1.0
  %v1612 = vadd.f32 %v1592, 1.0
  %v1613 = vadd.f32 %v1594, 1.0
  %v1614 = vadd.f32 %v1596, 1.0
  %v1615 = vadd.f32 %v1598, 1.0
  %v1616 = vadd.f32 %v1600, 1.0
  %v1617 = vrcp.pop %v1601
  %v1618 = vmul.f32 1.0, %v1617
  %v1619 = vrcp.pop %v1602
  %v1620 = vmul.f32 1.0, %v1619
  %v1621 = vrcp.pop %v1603
  %v1622 = vmul.f32 1.0, %v1621
  %v1623 = vrcp.pop %v1604
  %v1624 = vmul.f32 1.0, %v1623
  %v1625 = vrcp.pop %v1605
  %v1626 = vmul.f32 1.0, %v1625
  %v1627 = vrcp.pop %v1606
  %v1628 = vmul.f32 1.0, %v1627
  %v1629 = vrcp.pop %v1607
  %v1630 = vmul.f32 1.0, %v1629
  %v1631 = vrcp.pop %v1608
  %v1632 = vmul.f32 1.0, %v1631
  %v1633 = vrcp.pop %v1609
  %v1634 = vmul.f32 1.0, %v1633
  %v1635 = vrcp.pop %v1610
  %v1636 = vmul.f32 1.0, %v1635
  %v1637 = vrcp.pop %v1611
  %v1638 = vmul.f32 1.0, %v1637
  %v1639 = vrcp.pop %v1612
  %v1640 = vmul.f32 1.0, %v1639
  %v1641 = vrcp.pop %v1613
  %v1642 = vmul.f32 1.0, %v1641
  %v1643 = vrcp.pop %v1614
  %v1644 = vmul.f32 1.0, %v1643
  %v1645 = vrcp.pop %v1615
  %v1646 = vmul.f32 1.0, %v1645
  %v1647 = vrcp.pop %v1616
  %v1648 = vmul.f32 1.0, %v1647
  %v1649 = vmul.f32 %v1537, %v1618
  %v1650 = vmul.f32 %v1538, %v1620
  %v1651 = vmul.f32 %v1539, %v1622
  %v1652 = vmul.f32 %v1540, %v1624
  %v1653 = vmul.f32 %v1541, %v1626
  %v1654 = vmul.f32 %v1542, %v1628
  %v1655 = vmul.f32 %v1543, %v1630
  %v1656 = vmul.f32 %v1544, %v1632
  %v1657 = vmul.f32 %v1545, %v1634
  %v1658 = vmul.f32 %v1546, %v1636
  %v1659 = vmul.f32 %v1547, %v1638
  %v1660 = vmul.f32 %v1548, %v1640
  %v1661 = vmul.f32 %v1549, %v1642
  %v1662 = vmul.f32 %v1550, %v1644
  %v1663 = vmul.f32 %v1551, %v1646
  %v1664 = vmul.f32 %v1552, %v1648
  %v1665 = vpack.c.bf16 %v1650, %v1649
  %v1666 = vpack.c.bf16 %v1652, %v1651
  %v1667 = vpack.c.bf16 %v1654, %v1653
  %v1668 = vpack.c.bf16 %v1656, %v1655
  %v1669 = vpack.c.bf16 %v1658, %v1657
  %v1670 = vpack.c.bf16 %v1660, %v1659
  %v1671 = vpack.c.bf16 %v1662, %v1661
  %v1672 = vpack.c.bf16 %v1664, %v1663
  %v1681 = vunpack.c.l.b16 %v1665
  %v1682 = vunpack.c.h.b16 %v1665
  %v1683 = vunpack.c.l.b16 %v1666
  %v1684 = vunpack.c.h.b16 %v1666
  %v1685 = vunpack.c.l.b16 %v1667
  %v1686 = vunpack.c.h.b16 %v1667
  %v1687 = vunpack.c.l.b16 %v1668
  %v1688 = vunpack.c.h.b16 %v1668
  %v1689 = vunpack.c.l.b16 %v1669
  %v1690 = vunpack.c.h.b16 %v1669
  %v1691 = vunpack.c.l.b16 %v1670
  %v1692 = vunpack.c.h.b16 %v1670
  %v1693 = vunpack.c.l.b16 %v1671
  %v1694 = vunpack.c.h.b16 %v1671
  %v1695 = vunpack.c.l.b16 %v1672
  %v1696 = vunpack.c.h.b16 %v1672
  %v1697 = vpack.c.b16 %v1681, %v1681
  %v1698 = vpack.c.b16 %v1682, %v1682
  %v1699 = vpack.c.b16 %v1683, %v1683
  %v1700 = vpack.c.b16 %v1684, %v1684
  %v1701 = vpack.c.b16 %v1685, %v1685
  %v1702 = vpack.c.b16 %v1686, %v1686
  %v1703 = vpack.c.b16 %v1687, %v1687
  %v1704 = vpack.c.b16 %v1688, %v1688
  %v1705 = vpack.c.b16 %v1689, %v1689
  %v1706 = vpack.c.b16 %v1690, %v1690
  %v1707 = vpack.c.b16 %v1691, %v1691
  %v1708 = vpack.c.b16 %v1692, %v1692
  %v1709 = vpack.c.b16 %v1693, %v1693
  %v1710 = vpack.c.b16 %v1694, %v1694
  %v1711 = vpack.c.b16 %v1695, %v1695
  %v1712 = vpack.c.b16 %v1696, %v1696
  %1729 = vst [vmem:[%s5] sm:$0xf] %v1697
  %1730 = vst [vmem:[%s5 + $0x4] sm:$0xf] %v1698
  %1731 = vst [vmem:[%s5 + $0x8] sm:$0xf] %v1699
  %1732 = vst [vmem:[%s5 + $0xc] sm:$0xf] %v1700
  %1733 = vst [vmem:[%s5 + $0x10] sm:$0xf] %v1701
  %1734 = vst [vmem:[%s5 + $0x14] sm:$0xf] %v1702
  %1735 = vst [vmem:[%s5 + $0x18] sm:$0xf] %v1703
  %1736 = vst [vmem:[%s5 + $0x1c] sm:$0xf] %v1704
  %1737 = vst [vmem:[%s5 + $0x20] sm:$0xf] %v1705
  %1738 = vst [vmem:[%s5 + $0x24] sm:$0xf] %v1706
  %1739 = vst [vmem:[%s5 + $0x28] sm:$0xf] %v1707
  %1740 = vst [vmem:[%s5 + $0x2c] sm:$0xf] %v1708
  %1741 = vst [vmem:[%s5 + $0x30] sm:$0xf] %v1709
  %1742 = vst [vmem:[%s5 + $0x34] sm:$0xf] %v1710
  %1743 = vst [vmem:[%s5 + $0x38] sm:$0xf] %v1711
  %1744 = vst [vmem:[%s5 + $0x3c] sm:$0xf] %v1712
  // Predicated region
  $region22: #{backbone_2d_forward.7} parent=0 // pred_check
    _
  $region23: #{backbone_2d_forward.7} parent=0 // pred_check_branch
    %1746 = sbr.rel (0) target = $region25
  $region24: #{backbone_2d_forward.7} parent=0 // pred_region
    _
  $region25: #{backbone_2d_forward.7} parent=0 // pred_fallthru
    _
  // Predicated region
  $region26: #{backbone_2d_forward.7} parent=0 // pred_check
    _
  $region27: #{backbone_2d_forward.7} parent=0 // pred_check_branch
    %1748 = sbr.rel (0) target = $region29
  $region28: #{backbone_2d_forward.7} parent=0 // pred_region
    _
  $region29: #{backbone_2d_forward.7} parent=0 // pred_fallthru
    _

// kernel: backbone_2d_forward.8
$region0: #{backbone_2d_forward.8}
  #allocation0 [shape = 'u32[]', space=smem, size = 0x4, offset = 0x4, fixed_abs, tag = 'smem constant byte address 0x4 - core index']
  #allocation1 [shape = 'u32[144,128]{1,0:T(1,128)}', space=vmem, size = 0x12000, scoped, tag = 'internal scratch']
  %s0 = inlined_call_operand.vmem [shape: bf16[32,768], index: 0, kind: input, shape index: {}]
  %s1 = inlined_call_operand.vmem [shape: bf16[32,384], index: 1, kind: input, shape index: {}]
  %s2 = inlined_call_operand.vmem [shape: bf16[768,128], index: 2, kind: input, shape index: {}]
  %s3 = inlined_call_operand.vmem [shape: bf16[384,128], index: 3, kind: input, shape index: {}]
  %s4 = inlined_call_operand.vmem [shape: f32[1,128], index: 4, kind: input, shape index: {}]
  %s5 = inlined_call_operand.vmem [shape: bf16[32,128], index: 5, kind: output, shape index: {}]
  %s6 = sld [smem:[#allocation0]]
  $region30: #{backbone_2d_forward.8} parent=0
    _
  %s8 = ssub.s32 1, %s6
  %s9 = scalar_select 0, %s8, %s6
  // Predicated region
  $region2: #{backbone_2d_forward.8} parent=0 // pred_check
    _
  $region3: #{backbone_2d_forward.8} parent=0 // pred_check_branch
    %11 = sbr.rel (0) target = $region5
  $region4: #{backbone_2d_forward.8} parent=0 // pred_region
    _
  $region5: #{backbone_2d_forward.8} parent=0 // pred_fallthru
    _
  // Predicated region
  $region6: #{backbone_2d_forward.8} parent=0 // pred_check
    _
  $region7: #{backbone_2d_forward.8} parent=0 // pred_check_branch
    %13 = sbr.rel (0) target = $region9
  $region8: #{backbone_2d_forward.8} parent=0 // pred_region
    _
  $region9: #{backbone_2d_forward.8} parent=0 // pred_fallthru
    _
  // Predicated region
  $region10: #{backbone_2d_forward.8} parent=0 // pred_check
    _
  $region11: #{backbone_2d_forward.8} parent=0 // pred_check_branch
    %15 = sbr.rel (0) target = $region13
  $region12: #{backbone_2d_forward.8} parent=0 // pred_region
    _
  $region13: #{backbone_2d_forward.8} parent=0 // pred_fallthru
    _
  // Predicated region
  $region14: #{backbone_2d_forward.8} parent=0 // pred_check
    _
  $region15: #{backbone_2d_forward.8} parent=0 // pred_check_branch
    %17 = sbr.rel (0) target = $region17
  $region16: #{backbone_2d_forward.8} parent=0 // pred_region
    _
  $region17: #{backbone_2d_forward.8} parent=0 // pred_fallthru
    _
  // Predicated region
  $region18: #{backbone_2d_forward.8} parent=0 // pred_check
    _
  $region19: #{backbone_2d_forward.8} parent=0 // pred_check_branch
    %19 = sbr.rel (0) target = $region21
  $region20: #{backbone_2d_forward.8} parent=0 // pred_region
    _
  $region21: #{backbone_2d_forward.8} parent=0 // pred_fallthru
    _
  %v21 = vld [vmem:[%s0] sm:$0xff]
  %v22 = vld [vmem:[%s0 + $0x8] sm:$0xff]
  %v23 = vld [vmem:[%s0 + $0x10] sm:$0xff]
  %v24 = vld [vmem:[%s0 + $0x18] sm:$0xff]
  %v25 = vld [vmem:[%s0 + $0x20] sm:$0xff]
  %v26 = vld [vmem:[%s0 + $0x28] sm:$0xff]
  %v27 = vld [vmem:[%s0 + $0x30] sm:$0xff]
  %v28 = vld [vmem:[%s0 + $0x38] sm:$0xff]
  %v29 = vld [vmem:[%s0 + $0x40] sm:$0xff]
  %v30 = vld [vmem:[%s0 + $0x48] sm:$0xff]
  %v31 = vld [vmem:[%s0 + $0x50] sm:$0xff]
  %v32 = vld [vmem:[%s0 + $0x58] sm:$0xff]
  %v33 = vld [vmem:[%s2] sm:$0xf]
  %v34 = vld [vmem:[%s2 + $0x4] sm:$0xf]
  %v35 = vld [vmem:[%s2 + $0x8] sm:$0xf]
  %v36 = vld [vmem:[%s2 + $0xc] sm:$0xf]
  %v37 = vld [vmem:[%s2 + $0x10] sm:$0xf]
  %v38 = vld [vmem:[%s2 + $0x14] sm:$0xf]
  %v39 = vld [vmem:[%s2 + $0x18] sm:$0xf]
  %v40 = vld [vmem:[%s2 + $0x1c] sm:$0xf]
  %v41 = vld [vmem:[%s2 + $0x20] sm:$0xf]
  %v42 = vld [vmem:[%s2 + $0x24] sm:$0xf]
  %v43 = vld [vmem:[%s2 + $0x28] sm:$0xf]
  %v44 = vld [vmem:[%s2 + $0x2c] sm:$0xf]
  %v45 = vld [vmem:[%s2 + $0x30] sm:$0xf]
  %v46 = vld [vmem:[%s2 + $0x34] sm:$0xf]
  %v47 = vld [vmem:[%s2 + $0x38] sm:$0xf]
  %v48 = vld [vmem:[%s2 + $0x3c] sm:$0xf]
  %v49 = vld [vmem:[%s2 + $0x40] sm:$0xf]
  %v50 = vld [vmem:[%s2 + $0x44] sm:$0xf]
  %v51 = vld [vmem:[%s2 + $0x48] sm:$0xf]
  %v52 = vld [vmem:[%s2 + $0x4c] sm:$0xf]
  %v53 = vld [vmem:[%s2 + $0x50] sm:$0xf]
  %v54 = vld [vmem:[%s2 + $0x54] sm:$0xf]
  %v55 = vld [vmem:[%s2 + $0x58] sm:$0xf]
  %v56 = vld [vmem:[%s2 + $0x5c] sm:$0xf]
  %v57 = vld [vmem:[%s2 + $0x60] sm:$0xf]
  %v58 = vld [vmem:[%s2 + $0x64] sm:$0xf]
  %v59 = vld [vmem:[%s2 + $0x68] sm:$0xf]
  %v60 = vld [vmem:[%s2 + $0x6c] sm:$0xf]
  %v61 = vld [vmem:[%s2 + $0x70] sm:$0xf]
  %v62 = vld [vmem:[%s2 + $0x74] sm:$0xf]
  %v63 = vld [vmem:[%s2 + $0x78] sm:$0xf]
  %v64 = vld [vmem:[%s2 + $0x7c] sm:$0xf]
  %v65 = vld [vmem:[%s2 + $0x80] sm:$0xf]
  %v66 = vld [vmem:[%s2 + $0x84] sm:$0xf]
  %v67 = vld [vmem:[%s2 + $0x88] sm:$0xf]
  %v68 = vld [vmem:[%s2 + $0x8c] sm:$0xf]
  %v69 = vld [vmem:[%s2 + $0x90] sm:$0xf]
  %v70 = vld [vmem:[%s2 + $0x94] sm:$0xf]
  %v71 = vld [vmem:[%s2 + $0x98] sm:$0xf]
  %v72 = vld [vmem:[%s2 + $0x9c] sm:$0xf]
  %v73 = vld [vmem:[%s2 + $0xa0] sm:$0xf]
  %v74 = vld [vmem:[%s2 + $0xa4] sm:$0xf]
  %v75 = vld [vmem:[%s2 + $0xa8] sm:$0xf]
  %v76 = vld [vmem:[%s2 + $0xac] sm:$0xf]
  %v77 = vld [vmem:[%s2 + $0xb0] sm:$0xf]
  %v78 = vld [vmem:[%s2 + $0xb4] sm:$0xf]
  %v79 = vld [vmem:[%s2 + $0xb8] sm:$0xf]
  %v80 = vld [vmem:[%s2 + $0xbc] sm:$0xf]
  %v81 = vld [vmem:[%s2 + $0xc0] sm:$0xf]
  %v82 = vld [vmem:[%s2 + $0xc4] sm:$0xf]
  %v83 = vld [vmem:[%s2 + $0xc8] sm:$0xf]
  %v84 = vld [vmem:[%s2 + $0xcc] sm:$0xf]
  %v85 = vld [vmem:[%s2 + $0xd0] sm:$0xf]
  %v86 = vld [vmem:[%s2 + $0xd4] sm:$0xf]
  %v87 = vld [vmem:[%s2 + $0xd8] sm:$0xf]
  %v88 = vld [vmem:[%s2 + $0xdc] sm:$0xf]
  %v89 = vld [vmem:[%s2 + $0xe0] sm:$0xf]
  %v90 = vld [vmem:[%s2 + $0xe4] sm:$0xf]
  %v91 = vld [vmem:[%s2 + $0xe8] sm:$0xf]
  %v92 = vld [vmem:[%s2 + $0xec] sm:$0xf]
  %v93 = vld [vmem:[%s2 + $0xf0] sm:$0xf]
  %v94 = vld [vmem:[%s2 + $0xf4] sm:$0xf]
  %v95 = vld [vmem:[%s2 + $0xf8] sm:$0xf]
  %v96 = vld [vmem:[%s2 + $0xfc] sm:$0xf]
  %v97 = vld [vmem:[%s2 + $0x100] sm:$0xf]
  %v98 = vld [vmem:[%s2 + $0x104] sm:$0xf]
  %v99 = vld [vmem:[%s2 + $0x108] sm:$0xf]
  %v100 = vld [vmem:[%s2 + $0x10c] sm:$0xf]
  %v101 = vld [vmem:[%s2 + $0x110] sm:$0xf]
  %v102 = vld [vmem:[%s2 + $0x114] sm:$0xf]
  %v103 = vld [vmem:[%s2 + $0x118] sm:$0xf]
  %v104 = vld [vmem:[%s2 + $0x11c] sm:$0xf]
  %v105 = vld [vmem:[%s2 + $0x120] sm:$0xf]
  %v106 = vld [vmem:[%s2 + $0x124] sm:$0xf]
  %v107 = vld [vmem:[%s2 + $0x128] sm:$0xf]
  %v108 = vld [vmem:[%s2 + $0x12c] sm:$0xf]
  %v109 = vld [vmem:[%s2 + $0x130] sm:$0xf]
  %v110 = vld [vmem:[%s2 + $0x134] sm:$0xf]
  %v111 = vld [vmem:[%s2 + $0x138] sm:$0xf]
  %v112 = vld [vmem:[%s2 + $0x13c] sm:$0xf]
  %v113 = vld [vmem:[%s2 + $0x140] sm:$0xf]
  %v114 = vld [vmem:[%s2 + $0x144] sm:$0xf]
  %v115 = vld [vmem:[%s2 + $0x148] sm:$0xf]
  %v116 = vld [vmem:[%s2 + $0x14c] sm:$0xf]
  %v117 = vld [vmem:[%s2 + $0x150] sm:$0xf]
  %v118 = vld [vmem:[%s2 + $0x154] sm:$0xf]
  %v119 = vld [vmem:[%s2 + $0x158] sm:$0xf]
  %v120 = vld [vmem:[%s2 + $0x15c] sm:$0xf]
  %v121 = vld [vmem:[%s2 + $0x160] sm:$0xf]
  %v122 = vld [vmem:[%s2 + $0x164] sm:$0xf]
  %v123 = vld [vmem:[%s2 + $0x168] sm:$0xf]
  %v124 = vld [vmem:[%s2 + $0x16c] sm:$0xf]
  %v125 = vld [vmem:[%s2 + $0x170] sm:$0xf]
  %v126 = vld [vmem:[%s2 + $0x174] sm:$0xf]
  %v127 = vld [vmem:[%s2 + $0x178] sm:$0xf]
  %v128 = vld [vmem:[%s2 + $0x17c] sm:$0xf]
  %v129 = vld [vmem:[%s1] sm:$0xff]
  %v130 = vld [vmem:[%s1 + $0x8] sm:$0xf]
  %v131 = vld [vmem:[%s1 + $0xc] sm:$0xff]
  %v132 = vld [vmem:[%s1 + $0x14] sm:$0xf]
  %v133 = vld [vmem:[%s1 + $0x18] sm:$0xff]
  %v134 = vld [vmem:[%s1 + $0x20] sm:$0xf]
  %v135 = vld [vmem:[%s1 + $0x24] sm:$0xff]
  %v136 = vld [vmem:[%s1 + $0x2c] sm:$0xf]
  %v137 = vld [vmem:[%s3] sm:$0xf]
  %v138 = vld [vmem:[%s3 + $0x4] sm:$0xf]
  %v139 = vld [vmem:[%s3 + $0x8] sm:$0xf]
  %v140 = vld [vmem:[%s3 + $0xc] sm:$0xf]
  %v141 = vld [vmem:[%s3 + $0x10] sm:$0xf]
  %v142 = vld [vmem:[%s3 + $0x14] sm:$0xf]
  %v143 = vld [vmem:[%s3 + $0x18] sm:$0xf]
  %v144 = vld [vmem:[%s3 + $0x1c] sm:$0xf]
  %v145 = vld [vmem:[%s3 + $0x20] sm:$0xf]
  %v146 = vld [vmem:[%s3 + $0x24] sm:$0xf]
  %v147 = vld [vmem:[%s3 + $0x28] sm:$0xf]
  %v148 = vld [vmem:[%s3 + $0x2c] sm:$0xf]
  %v149 = vld [vmem:[%s3 + $0x30] sm:$0xf]
  %v150 = vld [vmem:[%s3 + $0x34] sm:$0xf]
  %v151 = vld [vmem:[%s3 + $0x38] sm:$0xf]
  %v152 = vld [vmem:[%s3 + $0x3c] sm:$0xf]
  %v153 = vld [vmem:[%s3 + $0x40] sm:$0xf]
  %v154 = vld [vmem:[%s3 + $0x44] sm:$0xf]
  %v155 = vld [vmem:[%s3 + $0x48] sm:$0xf]
  %v156 = vld [vmem:[%s3 + $0x4c] sm:$0xf]
  %v157 = vld [vmem:[%s3 + $0x50] sm:$0xf]
  %v158 = vld [vmem:[%s3 + $0x54] sm:$0xf]
  %v159 = vld [vmem:[%s3 + $0x58] sm:$0xf]
  %v160 = vld [vmem:[%s3 + $0x5c] sm:$0xf]
  %v161 = vld [vmem:[%s3 + $0x60] sm:$0xf]
  %v162 = vld [vmem:[%s3 + $0x64] sm:$0xf]
  %v163 = vld [vmem:[%s3 + $0x68] sm:$0xf]
  %v164 = vld [vmem:[%s3 + $0x6c] sm:$0xf]
  %v165 = vld [vmem:[%s3 + $0x70] sm:$0xf]
  %v166 = vld [vmem:[%s3 + $0x74] sm:$0xf]
  %v167 = vld [vmem:[%s3 + $0x78] sm:$0xf]
  %v168 = vld [vmem:[%s3 + $0x7c] sm:$0xf]
  %v169 = vld [vmem:[%s3 + $0x80] sm:$0xf]
  %v170 = vld [vmem:[%s3 + $0x84] sm:$0xf]
  %v171 = vld [vmem:[%s3 + $0x88] sm:$0xf]
  %v172 = vld [vmem:[%s3 + $0x8c] sm:$0xf]
  %v173 = vld [vmem:[%s3 + $0x90] sm:$0xf]
  %v174 = vld [vmem:[%s3 + $0x94] sm:$0xf]
  %v175 = vld [vmem:[%s3 + $0x98] sm:$0xf]
  %v176 = vld [vmem:[%s3 + $0x9c] sm:$0xf]
  %v177 = vld [vmem:[%s3 + $0xa0] sm:$0xf]
  %v178 = vld [vmem:[%s3 + $0xa4] sm:$0xf]
  %v179 = vld [vmem:[%s3 + $0xa8] sm:$0xf]
  %v180 = vld [vmem:[%s3 + $0xac] sm:$0xf]
  %v181 = vld [vmem:[%s3 + $0xb0] sm:$0xf]
  %v182 = vld [vmem:[%s3 + $0xb4] sm:$0xf]
  %v183 = vld [vmem:[%s3 + $0xb8] sm:$0xf]
  %v184 = vld [vmem:[%s3 + $0xbc] sm:$0xf]
  %v193 = vunpack.c.l.b16 %v129
  %v194 = vunpack.c.h.b16 %v129
  %v195 = vunpack.c.l.b16 %v130
  %v196 = vunpack.c.l.b16 %v131
  %v197 = vunpack.c.h.b16 %v131
  %v198 = vunpack.c.l.b16 %v132
  %v199 = vunpack.c.l.b16 %v133
  %v200 = vunpack.c.h.b16 %v133
  %v201 = vunpack.c.l.b16 %v134
  %v202 = vunpack.c.l.b16 %v135
  %v203 = vunpack.c.h.b16 %v135
  %v204 = vunpack.c.l.b16 %v136
  %v205 = vpack.c.b16 %v196, %v193
  %v206 = vpack.c.b16 %v197, %v194
  %v207 = vpack.c.b16 %v198, %v195
  %v208 = vpack.c.b16 %v202, %v199
  %v209 = vpack.c.b16 %v203, %v200
  %v210 = vpack.c.b16 %v204, %v201
  %v265 = vunpack.c.l.b16 %v137
  %v266 = vunpack.c.l.b16 %v138
  %v267 = vunpack.c.l.b16 %v139
  %v268 = vunpack.c.l.b16 %v140
  %v269 = vunpack.c.l.b16 %v141
  %v270 = vunpack.c.l.b16 %v142
  %v271 = vunpack.c.l.b16 %v143
  %v272 = vunpack.c.l.b16 %v144
  %v273 = vunpack.c.l.b16 %v145
  %v274 = vunpack.c.l.b16 %v146
  %v275 = vunpack.c.l.b16 %v147
  %v276 = vunpack.c.l.b16 %v148
  %v277 = vunpack.c.l.b16 %v149
  %v278 = vunpack.c.l.b16 %v150
  %v279 = vunpack.c.l.b16 %v151
  %v280 = vunpack.c.l.b16 %v152
  %v281 = vunpack.c.l.b16 %v153
  %v282 = vunpack.c.l.b16 %v154
  %v283 = vunpack.c.l.b16 %v155
  %v284 = vunpack.c.l.b16 %v156
  %v285 = vunpack.c.l.b16 %v157
  %v286 = vunpack.c.l.b16 %v158
  %v287 = vunpack.c.l.b16 %v159
  %v288 = vunpack.c.l.b16 %v160
  %v289 = vunpack.c.l.b16 %v161
  %v290 = vunpack.c.l.b16 %v162
  %v291 = vunpack.c.l.b16 %v163
  %v292 = vunpack.c.l.b16 %v164
  %v293 = vunpack.c.l.b16 %v165
  %v294 = vunpack.c.l.b16 %v166
  %v295 = vunpack.c.l.b16 %v167
  %v296 = vunpack.c.l.b16 %v168
  %v297 = vunpack.c.l.b16 %v169
  %v298 = vunpack.c.l.b16 %v170
  %v299 = vunpack.c.l.b16 %v171
  %v300 = vunpack.c.l.b16 %v172
  %v301 = vunpack.c.l.b16 %v173
  %v302 = vunpack.c.l.b16 %v174
  %v303 = vunpack.c.l.b16 %v175
  %v304 = vunpack.c.l.b16 %v176
  %v305 = vunpack.c.l.b16 %v177
  %v306 = vunpack.c.l.b16 %v178
  %v307 = vunpack.c.l.b16 %v179
  %v308 = vunpack.c.l.b16 %v180
  %v309 = vunpack.c.l.b16 %v181
  %v310 = vunpack.c.l.b16 %v182
  %v311 = vunpack.c.l.b16 %v183
  %v312 = vunpack.c.l.b16 %v184
  %v313 = vpack.c.b16 %v266, %v265
  %v314 = vpack.c.b16 %v268, %v267
  %v315 = vpack.c.b16 %v270, %v269
  %v316 = vpack.c.b16 %v272, %v271
  %v317 = vpack.c.b16 %v274, %v273
  %v318 = vpack.c.b16 %v276, %v275
  %v319 = vpack.c.b16 %v278, %v277
  %v320 = vpack.c.b16 %v280, %v279
  %v321 = vpack.c.b16 %v282, %v281
  %v322 = vpack.c.b16 %v284, %v283
  %v323 = vpack.c.b16 %v286, %v285
  %v324 = vpack.c.b16 %v288, %v287
  %v325 = vpack.c.b16 %v290, %v289
  %v326 = vpack.c.b16 %v292, %v291
  %v327 = vpack.c.b16 %v294, %v293
  %v328 = vpack.c.b16 %v296, %v295
  %v329 = vpack.c.b16 %v298, %v297
  %v330 = vpack.c.b16 %v300, %v299
  %v331 = vpack.c.b16 %v302, %v301
  %v332 = vpack.c.b16 %v304, %v303
  %v333 = vpack.c.b16 %v306, %v305
  %v334 = vpack.c.b16 %v308, %v307
  %v335 = vpack.c.b16 %v310, %v309
  %v336 = vpack.c.b16 %v312, %v311
  %361 = vmatprep.subr.bf16.mxu0 0
  %362 = vmatpush1.bf16.msra.mxu0 %v313
  %363 = vmatprep.subr.bf16.mxu0 0
  %364 = vmatpush1.bf16.msra.mxu0 %v314
  %365 = vmatprep.subr.bf16.mxu0 0
  %366 = vmatpush1.bf16.msra.mxu0 %v315
  %367 = vmatprep.subr.bf16.mxu0 0
  %368 = vmatpush1.bf16.msra.mxu0 %v316
  %369 = vmatprep.subr.bf16.mxu0 0
  %370 = vmatpush1.bf16.msra.mxu0 %v317
  %371 = vmatprep.subr.bf16.mxu0 0
  %372 = vmatpush1.bf16.msra.mxu0 %v318
  %373 = vmatprep.subr.bf16.mxu0 0
  %374 = vmatpush1.bf16.msra.mxu0 %v319
  %375 = vmatprep.subr.bf16.mxu0 0
  %376 = vmatpush1.bf16.msra.mxu0 %v320
  %377 = vmatprep.subr.bf16.mxu0 0
  %378 = vmatpush1.bf16.msra.mxu0 %v321
  %379 = vmatprep.subr.bf16.mxu0 0
  %380 = vmatpush1.bf16.msra.mxu0 %v322
  %381 = vmatprep.subr.bf16.mxu0 0
  %382 = vmatpush1.bf16.msra.mxu0 %v323
  %383 = vmatprep.subr.bf16.mxu0 0
  %384 = vmatpush1.bf16.msra.mxu0 %v324
  %385 = vmatprep.subr.bf16.mxu0 0
  %386 = vmatpush1.bf16.msra.mxu0 %v325
  %387 = vmatprep.subr.bf16.mxu0 0
  %388 = vmatpush1.bf16.msra.mxu0 %v326
  %389 = vmatprep.subr.bf16.mxu0 0
  %390 = vmatpush1.bf16.msra.mxu0 %v327
  %391 = vmatprep.subr.bf16.mxu0 0
  %392 = vmatpush1.bf16.msra.mxu0 %v328
  %393 = vmatprep.mubr.bf16.mxu0 %v206
  %394 = vmatmul.mubr.bf16.gmra.mrb[0].mxu0 %v205
  %v395 = vpop.f32.mrb[0].mxu0
  %v396 = vadd.f32 0.0, %v395
  %v397 = vpop.f32.mrb[0].mxu0
  %v398 = vpop.f32.mrb[0].mxu0
  %v399 = vadd.f32 0.0, %v398
  %v400 = vpop.f32.mrb[0].mxu0
  %401 = vmatprep.mubr.bf16.mxu0 %v209
  %402 = vmatmul.mubr.bf16.gmra.mrb[0].mxu0 %v208
  %v403 = vpop.f32.mrb[0].mxu0
  %v404 = vadd.f32 0.0, %v403
  %v405 = vpop.f32.mrb[0].mxu0
  %v406 = vpop.f32.mrb[0].mxu0
  %v407 = vadd.f32 0.0, %v406
  %v408 = vpop.f32.mrb[0].mxu0
  %409 = vdwg.mxu0
  %410 = vmatprep.subr.bf16.mxu0 0
  %411 = vmatpush1.bf16.msra.mxu0 %v329
  %412 = vmatprep.subr.bf16.mxu0 0
  %413 = vmatpush1.bf16.msra.mxu0 %v330
  %414 = vmatprep.subr.bf16.mxu0 0
  %415 = vmatpush1.bf16.msra.mxu0 %v331
  %416 = vmatprep.subr.bf16.mxu0 0
  %417 = vmatpush1.bf16.msra.mxu0 %v332
  %418 = vmatprep.subr.bf16.mxu0 0
  %419 = vmatpush1.bf16.msra.mxu0 %v333
  %420 = vmatprep.subr.bf16.mxu0 0
  %421 = vmatpush1.bf16.msra.mxu0 %v334
  %422 = vmatprep.subr.bf16.mxu0 0
  %423 = vmatpush1.bf16.msra.mxu0 %v335
  %424 = vmatprep.subr.bf16.mxu0 0
  %425 = vmatpush1.bf16.msra.mxu0 %v336
  %426 = vmatprep.subr.bf16.mxu0 0
  %427 = vmatpush1.bf16.msra.mxu0 0
  %428 = vmatprep.subr.bf16.mxu0 0
  %429 = vmatpush1.bf16.msra.mxu0 0
  %430 = vmatprep.subr.bf16.mxu0 0
  %431 = vmatpush1.bf16.msra.mxu0 0
  %432 = vmatprep.subr.bf16.mxu0 0
  %433 = vmatpush1.bf16.msra.mxu0 0
  %434 = vmatprep.subr.bf16.mxu0 0
  %435 = vmatpush1.bf16.msra.mxu0 0
  %436 = vmatprep.subr.bf16.mxu0 0
  %437 = vmatpush1.bf16.msra.mxu0 0
  %438 = vmatprep.subr.bf16.mxu0 0
  %439 = vmatpush1.bf16.msra.mxu0 0
  %440 = vmatprep.subr.bf16.mxu0 0
  %441 = vmatpush1.bf16.msra.mxu0 0
  %442 = vmatprep.mubr.bf16.mxu0 0
  %443 = vmatmul.mubr.bf16.gmra.mrb[0].mxu0 %v207
  %v444 = vpop.f32.mrb[0].mxu0
  %v445 = vadd.f32 %v396, %v444
  %v446 = vpop.f32.mrb[0].mxu0
  %v447 = vpop.f32.mrb[0].mxu0
  %v448 = vadd.f32 %v399, %v447
  %v449 = vpop.f32.mrb[0].mxu0
  %450 = vmatprep.mubr.bf16.mxu0 0
  %451 = vmatmul.mubr.bf16.gmra.mrb[0].mxu0 %v210
  %v452 = vpop.f32.mrb[0].mxu0
  %v453 = vadd.f32 %v404, %v452
  %v454 = vpop.f32.mrb[0].mxu0
  %v455 = vpop.f32.mrb[0].mxu0
  %v456 = vadd.f32 %v407, %v455
  %v457 = vpop.f32.mrb[0].mxu0
  %458 = vdwg.mxu0
  %v471 = vunpack.c.l.b16 %v21
  %v472 = vunpack.c.h.b16 %v21
  %v473 = vunpack.c.l.b16 %v22
  %v474 = vunpack.c.h.b16 %v22
  %v475 = vunpack.c.l.b16 %v23
  %v476 = vunpack.c.h.b16 %v23
  %v477 = vunpack.c.l.b16 %v24
  %v478 = vunpack.c.h.b16 %v24
  %v479 = vunpack.c.l.b16 %v25
  %v480 = vunpack.c.h.b16 %v25
  %v481 = vunpack.c.l.b16 %v26
  %v482 = vunpack.c.h.b16 %v26
  %v483 = vunpack.c.l.b16 %v27
  %v484 = vunpack.c.h.b16 %v27
  %v485 = vunpack.c.l.b16 %v28
  %v486 = vunpack.c.h.b16 %v28
  %v487 = vunpack.c.l.b16 %v29
  %v488 = vunpack.c.h.b16 %v29
  %v489 = vunpack.c.l.b16 %v30
  %v490 = vunpack.c.h.b16 %v30
  %v491 = vunpack.c.l.b16 %v31
  %v492 = vunpack.c.h.b16 %v31
  %v493 = vunpack.c.l.b16 %v32
  %v494 = vunpack.c.h.b16 %v32
  %v495 = vpack.c.b16 %v477, %v471
  %v496 = vpack.c.b16 %v478, %v472
  %v497 = vpack.c.b16 %v479, %v473
  %v498 = vpack.c.b16 %v480, %v474
  %v499 = vpack.c.b16 %v481, %v475
  %v500 = vpack.c.b16 %v482, %v476
  %v501 = vpack.c.b16 %v489, %v483
  %v502 = vpack.c.b16 %v490, %v484
  %v503 = vpack.c.b16 %v491, %v485
  %v504 = vpack.c.b16 %v492, %v486
  %v505 = vpack.c.b16 %v493, %v487
  %v506 = vpack.c.b16 %v494, %v488
  %v615 = vunpack.c.l.b16 %v33
  %v616 = vunpack.c.l.b16 %v34
  %v617 = vunpack.c.l.b16 %v35
  %v618 = vunpack.c.l.b16 %v36
  %v619 = vunpack.c.l.b16 %v37
  %v620 = vunpack.c.l.b16 %v38
  %v621 = vunpack.c.l.b16 %v39
  %v622 = vunpack.c.l.b16 %v40
  %v623 = vunpack.c.l.b16 %v41
  %v624 = vunpack.c.l.b16 %v42
  %v625 = vunpack.c.l.b16 %v43
  %v626 = vunpack.c.l.b16 %v44
  %v627 = vunpack.c.l.b16 %v45
  %v628 = vunpack.c.l.b16 %v46
  %v629 = vunpack.c.l.b16 %v47
  %v630 = vunpack.c.l.b16 %v48
  %v631 = vunpack.c.l.b16 %v49
  %v632 = vunpack.c.l.b16 %v50
  %v633 = vunpack.c.l.b16 %v51
  %v634 = vunpack.c.l.b16 %v52
  %v635 = vunpack.c.l.b16 %v53
  %v636 = vunpack.c.l.b16 %v54
  %v637 = vunpack.c.l.b16 %v55
  %v638 = vunpack.c.l.b16 %v56
  %v639 = vunpack.c.l.b16 %v57
  %v640 = vunpack.c.l.b16 %v58
  %v641 = vunpack.c.l.b16 %v59
  %v642 = vunpack.c.l.b16 %v60
  %v643 = vunpack.c.l.b16 %v61
  %v644 = vunpack.c.l.b16 %v62
  %v645 = vunpack.c.l.b16 %v63
  %v646 = vunpack.c.l.b16 %v64
  %v647 = vunpack.c.l.b16 %v65
  %v648 = vunpack.c.l.b16 %v66
  %v649 = vunpack.c.l.b16 %v67
  %v650 = vunpack.c.l.b16 %v68
  %v651 = vunpack.c.l.b16 %v69
  %v652 = vunpack.c.l.b16 %v70
  %v653 = vunpack.c.l.b16 %v71
  %v654 = vunpack.c.l.b16 %v72
  %v655 = vunpack.c.l.b16 %v73
  %v656 = vunpack.c.l.b16 %v74
  %v657 = vunpack.c.l.b16 %v75
  %v658 = vunpack.c.l.b16 %v76
  %v659 = vunpack.c.l.b16 %v77
  %v660 = vunpack.c.l.b16 %v78
  %v661 = vunpack.c.l.b16 %v79
  %v662 = vunpack.c.l.b16 %v80
  %v663 = vunpack.c.l.b16 %v81
  %v664 = vunpack.c.l.b16 %v82
  %v665 = vunpack.c.l.b16 %v83
  %v666 = vunpack.c.l.b16 %v84
  %v667 = vunpack.c.l.b16 %v85
  %v668 = vunpack.c.l.b16 %v86
  %v669 = vunpack.c.l.b16 %v87
  %v670 = vunpack.c.l.b16 %v88
  %v671 = vunpack.c.l.b16 %v89
  %v672 = vunpack.c.l.b16 %v90
  %v673 = vunpack.c.l.b16 %v91
  %v674 = vunpack.c.l.b16 %v92
  %v675 = vunpack.c.l.b16 %v93
  %v676 = vunpack.c.l.b16 %v94
  %v677 = vunpack.c.l.b16 %v95
  %v678 = vunpack.c.l.b16 %v96
  %v679 = vunpack.c.l.b16 %v97
  %v680 = vunpack.c.l.b16 %v98
  %v681 = vunpack.c.l.b16 %v99
  %v682 = vunpack.c.l.b16 %v100
  %v683 = vunpack.c.l.b16 %v101
  %v684 = vunpack.c.l.b16 %v102
  %v685 = vunpack.c.l.b16 %v103
  %v686 = vunpack.c.l.b16 %v104
  %v687 = vunpack.c.l.b16 %v105
  %v688 = vunpack.c.l.b16 %v106
  %v689 = vunpack.c.l.b16 %v107
  %v690 = vunpack.c.l.b16 %v108
  %v691 = vunpack.c.l.b16 %v109
  %v692 = vunpack.c.l.b16 %v110
  %v693 = vunpack.c.l.b16 %v111
  %v694 = vunpack.c.l.b16 %v112
  %v695 = vunpack.c.l.b16 %v113
  %v696 = vunpack.c.l.b16 %v114
  %v697 = vunpack.c.l.b16 %v115
  %v698 = vunpack.c.l.b16 %v116
  %v699 = vunpack.c.l.b16 %v117
  %v700 = vunpack.c.l.b16 %v118
  %v701 = vunpack.c.l.b16 %v119
  %v702 = vunpack.c.l.b16 %v120
  %v703 = vunpack.c.l.b16 %v121
  %v704 = vunpack.c.l.b16 %v122
  %v705 = vunpack.c.l.b16 %v123
  %v706 = vunpack.c.l.b16 %v124
  %v707 = vunpack.c.l.b16 %v125
  %v708 = vunpack.c.l.b16 %v126
  %v709 = vunpack.c.l.b16 %v127
  %v710 = vunpack.c.l.b16 %v128
  %v711 = vpack.c.b16 %v616, %v615
  %v712 = vpack.c.b16 %v618, %v617
  %v713 = vpack.c.b16 %v620, %v619
  %v714 = vpack.c.b16 %v622, %v621
  %v715 = vpack.c.b16 %v624, %v623
  %v716 = vpack.c.b16 %v626, %v625
  %v717 = vpack.c.b16 %v628, %v627
  %v718 = vpack.c.b16 %v630, %v629
  %v719 = vpack.c.b16 %v632, %v631
  %v720 = vpack.c.b16 %v634, %v633
  %v721 = vpack.c.b16 %v636, %v635
  %v722 = vpack.c.b16 %v638, %v637
  %v723 = vpack.c.b16 %v640, %v639
  %v724 = vpack.c.b16 %v642, %v641
  %v725 = vpack.c.b16 %v644, %v643
  %v726 = vpack.c.b16 %v646, %v645
  %v727 = vpack.c.b16 %v648, %v647
  %v728 = vpack.c.b16 %v650, %v649
  %v729 = vpack.c.b16 %v652, %v651
  %v730 = vpack.c.b16 %v654, %v653
  %v731 = vpack.c.b16 %v656, %v655
  %v732 = vpack.c.b16 %v658, %v657
  %v733 = vpack.c.b16 %v660, %v659
  %v734 = vpack.c.b16 %v662, %v661
  %v735 = vpack.c.b16 %v664, %v663
  %v736 = vpack.c.b16 %v666, %v665
  %v737 = vpack.c.b16 %v668, %v667
  %v738 = vpack.c.b16 %v670, %v669
  %v739 = vpack.c.b16 %v672, %v671
  %v740 = vpack.c.b16 %v674, %v673
  %v741 = vpack.c.b16 %v676, %v675
  %v742 = vpack.c.b16 %v678, %v677
  %v743 = vpack.c.b16 %v680, %v679
  %v744 = vpack.c.b16 %v682, %v681
  %v745 = vpack.c.b16 %v684, %v683
  %v746 = vpack.c.b16 %v686, %v685
  %v747 = vpack.c.b16 %v688, %v687
  %v748 = vpack.c.b16 %v690, %v689
  %v749 = vpack.c.b16 %v692, %v691
  %v750 = vpack.c.b16 %v694, %v693
  %v751 = vpack.c.b16 %v696, %v695
  %v752 = vpack.c.b16 %v698, %v697
  %v753 = vpack.c.b16 %v700, %v699
  %v754 = vpack.c.b16 %v702, %v701
  %v755 = vpack.c.b16 %v704, %v703
  %v756 = vpack.c.b16 %v706, %v705
  %v757 = vpack.c.b16 %v708, %v707
  %v758 = vpack.c.b16 %v710, %v709
  %807 = vmatprep.subr.bf16.mxu0 0
  %808 = vmatpush1.bf16.msra.mxu0 %v711
  %809 = vmatprep.subr.bf16.mxu0 0
  %810 = vmatpush1.bf16.msra.mxu0 %v712
  %811 = vmatprep.subr.bf16.mxu0 0
  %812 = vmatpush1.bf16.msra.mxu0 %v713
  %813 = vmatprep.subr.bf16.mxu0 0
  %814 = vmatpush1.bf16.msra.mxu0 %v714
  %815 = vmatprep.subr.bf16.mxu0 0
  %816 = vmatpush1.bf16.msra.mxu0 %v715
  %817 = vmatprep.subr.bf16.mxu0 0
  %818 = vmatpush1.bf16.msra.mxu0 %v716
  %819 = vmatprep.subr.bf16.mxu0 0
  %820 = vmatpush1.bf16.msra.mxu0 %v717
  %821 = vmatprep.subr.bf16.mxu0 0
  %822 = vmatpush1.bf16.msra.mxu0 %v718
  %823 = vmatprep.subr.bf16.mxu0 0
  %824 = vmatpush1.bf16.msra.mxu0 %v719
  %825 = vmatprep.subr.bf16.mxu0 0
  %826 = vmatpush1.bf16.msra.mxu0 %v720
  %827 = vmatprep.subr.bf16.mxu0 0
  %828 = vmatpush1.bf16.msra.mxu0 %v721
  %829 = vmatprep.subr.bf16.mxu0 0
  %830 = vmatpush1.bf16.msra.mxu0 %v722
  %831 = vmatprep.subr.bf16.mxu0 0
  %832 = vmatpush1.bf16.msra.mxu0 %v723
  %833 = vmatprep.subr.bf16.mxu0 0
  %834 = vmatpush1.bf16.msra.mxu0 %v724
  %835 = vmatprep.subr.bf16.mxu0 0
  %836 = vmatpush1.bf16.msra.mxu0 %v725
  %837 = vmatprep.subr.bf16.mxu0 0
  %838 = vmatpush1.bf16.msra.mxu0 %v726
  %839 = vmatprep.mubr.bf16.mxu0 %v496
  %840 = vmatmul.mubr.bf16.gmra.mrb[0].mxu0 %v495
  %v841 = vpop.f32.mrb[0].mxu0
  %v842 = vadd.f32 %v445, %v841
  %v843 = vpop.f32.mrb[0].mxu0
  %v844 = vpop.f32.mrb[0].mxu0
  %v845 = vadd.f32 %v448, %v844
  %v846 = vpop.f32.mrb[0].mxu0
  %847 = vmatprep.mubr.bf16.mxu0 %v502
  %848 = vmatmul.mubr.bf16.gmra.mrb[0].mxu0 %v501
  %v849 = vpop.f32.mrb[0].mxu0
  %v850 = vadd.f32 %v453, %v849
  %v851 = vpop.f32.mrb[0].mxu0
  %v852 = vpop.f32.mrb[0].mxu0
  %v853 = vadd.f32 %v456, %v852
  %v854 = vpop.f32.mrb[0].mxu0
  %855 = vdwg.mxu0
  %856 = vmatprep.subr.bf16.mxu0 0
  %857 = vmatpush1.bf16.msra.mxu0 %v727
  %858 = vmatprep.subr.bf16.mxu0 0
  %859 = vmatpush1.bf16.msra.mxu0 %v728
  %860 = vmatprep.subr.bf16.mxu0 0
  %861 = vmatpush1.bf16.msra.mxu0 %v729
  %862 = vmatprep.subr.bf16.mxu0 0
  %863 = vmatpush1.bf16.msra.mxu0 %v730
  %864 = vmatprep.subr.bf16.mxu0 0
  %865 = vmatpush1.bf16.msra.mxu0 %v731
  %866 = vmatprep.subr.bf16.mxu0 0
  %867 = vmatpush1.bf16.msra.mxu0 %v732
  %868 = vmatprep.subr.bf16.mxu0 0
  %869 = vmatpush1.bf16.msra.mxu0 %v733
  %870 = vmatprep.subr.bf16.mxu0 0
  %871 = vmatpush1.bf16.msra.mxu0 %v734
  %872 = vmatprep.subr.bf16.mxu0 0
  %873 = vmatpush1.bf16.msra.mxu0 %v735
  %874 = vmatprep.subr.bf16.mxu0 0
  %875 = vmatpush1.bf16.msra.mxu0 %v736
  %876 = vmatprep.subr.bf16.mxu0 0
  %877 = vmatpush1.bf16.msra.mxu0 %v737
  %878 = vmatprep.subr.bf16.mxu0 0
  %879 = vmatpush1.bf16.msra.mxu0 %v738
  %880 = vmatprep.subr.bf16.mxu0 0
  %881 = vmatpush1.bf16.msra.mxu0 %v739
  %882 = vmatprep.subr.bf16.mxu0 0
  %883 = vmatpush1.bf16.msra.mxu0 %v740
  %884 = vmatprep.subr.bf16.mxu0 0
  %885 = vmatpush1.bf16.msra.mxu0 %v741
  %886 = vmatprep.subr.bf16.mxu0 0
  %887 = vmatpush1.bf16.msra.mxu0 %v742
  %888 = vmatprep.mubr.bf16.mxu0 %v498
  %889 = vmatmul.mubr.bf16.gmra.mrb[0].mxu0 %v497
  %v890 = vpop.f32.mrb[0].mxu0
  %v891 = vadd.f32 %v842, %v890
  %v892 = vpop.f32.mrb[0].mxu0
  %v893 = vpop.f32.mrb[0].mxu0
  %v894 = vadd.f32 %v845, %v893
  %v895 = vpop.f32.mrb[0].mxu0
  %896 = vmatprep.mubr.bf16.mxu0 %v504
  %897 = vmatmul.mubr.bf16.gmra.mrb[0].mxu0 %v503
  %v898 = vpop.f32.mrb[0].mxu0
  %v899 = vadd.f32 %v850, %v898
  %v900 = vpop.f32.mrb[0].mxu0
  %v901 = vpop.f32.mrb[0].mxu0
  %v902 = vadd.f32 %v853, %v901
  %v903 = vpop.f32.mrb[0].mxu0
  %904 = vdwg.mxu0
  %905 = vmatprep.subr.bf16.mxu0 0
  %906 = vmatpush1.bf16.msra.mxu0 %v743
  %907 = vmatprep.subr.bf16.mxu0 0
  %908 = vmatpush1.bf16.msra.mxu0 %v744
  %909 = vmatprep.subr.bf16.mxu0 0
  %910 = vmatpush1.bf16.msra.mxu0 %v745
  %911 = vmatprep.subr.bf16.mxu0 0
  %912 = vmatpush1.bf16.msra.mxu0 %v746
  %913 = vmatprep.subr.bf16.mxu0 0
  %914 = vmatpush1.bf16.msra.mxu0 %v747
  %915 = vmatprep.subr.bf16.mxu0 0
  %916 = vmatpush1.bf16.msra.mxu0 %v748
  %917 = vmatprep.subr.bf16.mxu0 0
  %918 = vmatpush1.bf16.msra.mxu0 %v749
  %919 = vmatprep.subr.bf16.mxu0 0
  %920 = vmatpush1.bf16.msra.mxu0 %v750
  %921 = vmatprep.subr.bf16.mxu0 0
  %922 = vmatpush1.bf16.msra.mxu0 %v751
  %923 = vmatprep.subr.bf16.mxu0 0
  %924 = vmatpush1.bf16.msra.mxu0 %v752
  %925 = vmatprep.subr.bf16.mxu0 0
  %926 = vmatpush1.bf16.msra.mxu0 %v753
  %927 = vmatprep.subr.bf16.mxu0 0
  %928 = vmatpush1.bf16.msra.mxu0 %v754
  %929 = vmatprep.subr.bf16.mxu0 0
  %930 = vmatpush1.bf16.msra.mxu0 %v755
  %931 = vmatprep.subr.bf16.mxu0 0
  %932 = vmatpush1.bf16.msra.mxu0 %v756
  %933 = vmatprep.subr.bf16.mxu0 0
  %934 = vmatpush1.bf16.msra.mxu0 %v757
  %935 = vmatprep.subr.bf16.mxu0 0
  %936 = vmatpush1.bf16.msra.mxu0 %v758
  %937 = vmatprep.mubr.bf16.mxu0 %v500
  %938 = vmatmul.mubr.bf16.gmra.mrb[0].mxu0 %v499
  %v939 = vpop.f32.mrb[0].mxu0
  %v940 = vadd.f32 %v891, %v939
  %v941 = vpop.f32.mrb[0].mxu0
  %v942 = vpop.f32.mrb[0].mxu0
  %v943 = vadd.f32 %v894, %v942
  %v944 = vpop.f32.mrb[0].mxu0
  %945 = vmatprep.mubr.bf16.mxu0 %v506
  %946 = vmatmul.mubr.bf16.gmra.mrb[0].mxu0 %v505
  %v947 = vpop.f32.mrb[0].mxu0
  %v948 = vadd.f32 %v899, %v947
  %v949 = vpop.f32.mrb[0].mxu0
  %v950 = vpop.f32.mrb[0].mxu0
  %v951 = vadd.f32 %v902, %v950
  %v952 = vpop.f32.mrb[0].mxu0
  %953 = vdwg.mxu0
  %v954 = vld [vmem:[%s4] sm:$0x1]
  %v956 = vlaneseq
  %v957 = vshrl.u32 %v956, 7
  %v958 = vsub.s32 0, %v957
  %v959 = vrot.slane %v954, %v958
  %v961 = vadd.f32 %v940, %v959
  %v962 = vadd.f32 %v943, %v959
  %v963 = vadd.f32 %v948, %v959
  %v964 = vadd.f32 %v951, %v959
  %v965 = vxor.u32 %v961, 2147483648
  %v966 = vxor.u32 %v962, 2147483648
  %v967 = vxor.u32 %v963, 2147483648
  %v968 = vxor.u32 %v964, 2147483648
  %v969 = vmul.f32 %v965, 1.442695
  %v970 = vpow.pop %v969
  %v971 = vmul.f32 %v966, 1.442695
  %v972 = vpow.pop %v971
  %v973 = vmul.f32 %v967, 1.442695
  %v974 = vpow.pop %v973
  %v975 = vmul.f32 %v968, 1.442695
  %v976 = vpow.pop %v975
  %v977 = vadd.f32 %v970, 1.0
  %v978 = vadd.f32 %v972, 1.0
  %v979 = vadd.f32 %v974, 1.0
  %v980 = vadd.f32 %v976, 1.0
  %v981 = vrcp.pop %v977
  %v982 = vmul.f32 1.0, %v981
  %v983 = vrcp.pop %v978
  %v984 = vmul.f32 1.0, %v983
  %v985 = vrcp.pop %v979
  %v986 = vmul.f32 1.0, %v985
  %v987 = vrcp.pop %v980
  %v988 = vmul.f32 1.0, %v987
  %v989 = vmul.f32 %v961, %v982
  %v990 = vmul.f32 %v962, %v984
  %v991 = vmul.f32 %v963, %v986
  %v992 = vmul.f32 %v964, %v988
  %v993 = vpack.c.bf16 %v990, %v989
  %v994 = vpack.c.bf16 %v992, %v991
  %v997 = vunpack.c.l.b16 %v993
  %v998 = vunpack.c.h.b16 %v993
  %v999 = vunpack.c.l.b16 %v994
  %v1000 = vunpack.c.h.b16 %v994
  %v1001 = vpack.c.b16 %v997, %v997
  %v1002 = vpack.c.b16 %v998, %v998
  %v1003 = vpack.c.b16 %v999, %v999
  %v1004 = vpack.c.b16 %v1000, %v1000
  %1009 = vst [vmem:[%s5] sm:$0xf] %v1001
  %1010 = vst [vmem:[%s5 + $0x4] sm:$0xf] %v1002
  %1011 = vst [vmem:[%s5 + $0x8] sm:$0xf] %v1003
  %1012 = vst [vmem:[%s5 + $0xc] sm:$0xf] %v1004
  // Predicated region
  $region22: #{backbone_2d_forward.8} parent=0 // pred_check
    _
  $region23: #{backbone_2d_forward.8} parent=0 // pred_check_branch
    %1014 = sbr.rel (0) target = $region25
  $region24: #{backbone_2d_forward.8} parent=0 // pred_region
    _
  $region25: #{backbone_2d_forward.8} parent=0 // pred_fallthru
    _
  // Predicated region
  $region26: #{backbone_2d_forward.8} parent=0 // pred_check
    _
  $region27: #{backbone_2d_forward.8} parent=0 // pred_check_branch
    %1016 = sbr.rel (0) target = $region29
  $region28: #{backbone_2d_forward.8} parent=0 // pred_region
    _
  $region29: #{backbone_2d_forward.8} parent=0 // pred_fallthru
    _

// kernel: backbone_2d_forward.9
$region0: #{backbone_2d_forward.9}
  #allocation0 [shape = 'u32[]', space=smem, size = 0x4, offset = 0x4, fixed_abs, tag = 'smem constant byte address 0x4 - core index']
  #allocation1 [shape = 'u32[144,128]{1,0:T(1,128)}', space=vmem, size = 0x12000, scoped, tag = 'internal scratch']
  %s0 = inlined_call_operand.vmem [shape: bf16[8,768], index: 0, kind: input, shape index: {}]
  %s1 = inlined_call_operand.vmem [shape: bf16[8,384], index: 1, kind: input, shape index: {}]
  %s2 = inlined_call_operand.vmem [shape: bf16[768,128], index: 2, kind: input, shape index: {}]
  %s3 = inlined_call_operand.vmem [shape: bf16[384,128], index: 3, kind: input, shape index: {}]
  %s4 = inlined_call_operand.vmem [shape: f32[1,128], index: 4, kind: input, shape index: {}]
  %s5 = inlined_call_operand.vmem [shape: bf16[8,128], index: 5, kind: output, shape index: {}]
  %s6 = sld [smem:[#allocation0]]
  $region30: #{backbone_2d_forward.9} parent=0
    _
  %s8 = ssub.s32 1, %s6
  %s9 = scalar_select 0, %s8, %s6
  // Predicated region
  $region2: #{backbone_2d_forward.9} parent=0 // pred_check
    _
  $region3: #{backbone_2d_forward.9} parent=0 // pred_check_branch
    %11 = sbr.rel (0) target = $region5
  $region4: #{backbone_2d_forward.9} parent=0 // pred_region
    _
  $region5: #{backbone_2d_forward.9} parent=0 // pred_fallthru
    _
  // Predicated region
  $region6: #{backbone_2d_forward.9} parent=0 // pred_check
    _
  $region7: #{backbone_2d_forward.9} parent=0 // pred_check_branch
    %13 = sbr.rel (0) target = $region9
  $region8: #{backbone_2d_forward.9} parent=0 // pred_region
    _
  $region9: #{backbone_2d_forward.9} parent=0 // pred_fallthru
    _
  // Predicated region
  $region10: #{backbone_2d_forward.9} parent=0 // pred_check
    _
  $region11: #{backbone_2d_forward.9} parent=0 // pred_check_branch
    %15 = sbr.rel (0) target = $region13
  $region12: #{backbone_2d_forward.9} parent=0 // pred_region
    _
  $region13: #{backbone_2d_forward.9} parent=0 // pred_fallthru
    _
  // Predicated region
  $region14: #{backbone_2d_forward.9} parent=0 // pred_check
    _
  $region15: #{backbone_2d_forward.9} parent=0 // pred_check_branch
    %17 = sbr.rel (0) target = $region17
  $region16: #{backbone_2d_forward.9} parent=0 // pred_region
    _
  $region17: #{backbone_2d_forward.9} parent=0 // pred_fallthru
    _
  // Predicated region
  $region18: #{backbone_2d_forward.9} parent=0 // pred_check
    _
  $region19: #{backbone_2d_forward.9} parent=0 // pred_check_branch
    %19 = sbr.rel (0) target = $region21
  $region20: #{backbone_2d_forward.9} parent=0 // pred_region
    _
  $region21: #{backbone_2d_forward.9} parent=0 // pred_fallthru
    _
  %v21 = vld [vmem:[%s0] sm:$0xff]
  %v22 = vld [vmem:[%s0 + $0x8] sm:$0xff]
  %v23 = vld [vmem:[%s0 + $0x10] sm:$0xff]
  %v24 = vld [vmem:[%s2] sm:$0xf]
  %v25 = vld [vmem:[%s2 + $0x4] sm:$0xf]
  %v26 = vld [vmem:[%s2 + $0x8] sm:$0xf]
  %v27 = vld [vmem:[%s2 + $0xc] sm:$0xf]
  %v28 = vld [vmem:[%s2 + $0x10] sm:$0xf]
  %v29 = vld [vmem:[%s2 + $0x14] sm:$0xf]
  %v30 = vld [vmem:[%s2 + $0x18] sm:$0xf]
  %v31 = vld [vmem:[%s2 + $0x1c] sm:$0xf]
  %v32 = vld [vmem:[%s2 + $0x20] sm:$0xf]
  %v33 = vld [vmem:[%s2 + $0x24] sm:$0xf]
  %v34 = vld [vmem:[%s2 + $0x28] sm:$0xf]
  %v35 = vld [vmem:[%s2 + $0x2c] sm:$0xf]
  %v36 = vld [vmem:[%s2 + $0x30] sm:$0xf]
  %v37 = vld [vmem:[%s2 + $0x34] sm:$0xf]
  %v38 = vld [vmem:[%s2 + $0x38] sm:$0xf]
  %v39 = vld [vmem:[%s2 + $0x3c] sm:$0xf]
  %v40 = vld [vmem:[%s2 + $0x40] sm:$0xf]
  %v41 = vld [vmem:[%s2 + $0x44] sm:$0xf]
  %v42 = vld [vmem:[%s2 + $0x48] sm:$0xf]
  %v43 = vld [vmem:[%s2 + $0x4c] sm:$0xf]
  %v44 = vld [vmem:[%s2 + $0x50] sm:$0xf]
  %v45 = vld [vmem:[%s2 + $0x54] sm:$0xf]
  %v46 = vld [vmem:[%s2 + $0x58] sm:$0xf]
  %v47 = vld [vmem:[%s2 + $0x5c] sm:$0xf]
  %v48 = vld [vmem:[%s2 + $0x60] sm:$0xf]
  %v49 = vld [vmem:[%s2 + $0x64] sm:$0xf]
  %v50 = vld [vmem:[%s2 + $0x68] sm:$0xf]
  %v51 = vld [vmem:[%s2 + $0x6c] sm:$0xf]
  %v52 = vld [vmem:[%s2 + $0x70] sm:$0xf]
  %v53 = vld [vmem:[%s2 + $0x74] sm:$0xf]
  %v54 = vld [vmem:[%s2 + $0x78] sm:$0xf]
  %v55 = vld [vmem:[%s2 + $0x7c] sm:$0xf]
  %v56 = vld [vmem:[%s2 + $0x80] sm:$0xf]
  %v57 = vld [vmem:[%s2 + $0x84] sm:$0xf]
  %v58 = vld [vmem:[%s2 + $0x88] sm:$0xf]
  %v59 = vld [vmem:[%s2 + $0x8c] sm:$0xf]
  %v60 = vld [vmem:[%s2 + $0x90] sm:$0xf]
  %v61 = vld [vmem:[%s2 + $0x94] sm:$0xf]
  %v62 = vld [vmem:[%s2 + $0x98] sm:$0xf]
  %v63 = vld [vmem:[%s2 + $0x9c] sm:$0xf]
  %v64 = vld [vmem:[%s2 + $0xa0] sm:$0xf]
  %v65 = vld [vmem:[%s2 + $0xa4] sm:$0xf]
  %v66 = vld [vmem:[%s2 + $0xa8] sm:$0xf]
  %v67 = vld [vmem:[%s2 + $0xac] sm:$0xf]
  %v68 = vld [vmem:[%s2 + $0xb0] sm:$0xf]
  %v69 = vld [vmem:[%s2 + $0xb4] sm:$0xf]
  %v70 = vld [vmem:[%s2 + $0xb8] sm:$0xf]
  %v71 = vld [vmem:[%s2 + $0xbc] sm:$0xf]
  %v72 = vld [vmem:[%s2 + $0xc0] sm:$0xf]
  %v73 = vld [vmem:[%s2 + $0xc4] sm:$0xf]
  %v74 = vld [vmem:[%s2 + $0xc8] sm:$0xf]
  %v75 = vld [vmem:[%s2 + $0xcc] sm:$0xf]
  %v76 = vld [vmem:[%s2 + $0xd0] sm:$0xf]
  %v77 = vld [vmem:[%s2 + $0xd4] sm:$0xf]
  %v78 = vld [vmem:[%s2 + $0xd8] sm:$0xf]
  %v79 = vld [vmem:[%s2 + $0xdc] sm:$0xf]
  %v80 = vld [vmem:[%s2 + $0xe0] sm:$0xf]
  %v81 = vld [vmem:[%s2 + $0xe4] sm:$0xf]
  %v82 = vld [vmem:[%s2 + $0xe8] sm:$0xf]
  %v83 = vld [vmem:[%s2 + $0xec] sm:$0xf]
  %v84 = vld [vmem:[%s2 + $0xf0] sm:$0xf]
  %v85 = vld [vmem:[%s2 + $0xf4] sm:$0xf]
  %v86 = vld [vmem:[%s2 + $0xf8] sm:$0xf]
  %v87 = vld [vmem:[%s2 + $0xfc] sm:$0xf]
  %v88 = vld [vmem:[%s2 + $0x100] sm:$0xf]
  %v89 = vld [vmem:[%s2 + $0x104] sm:$0xf]
  %v90 = vld [vmem:[%s2 + $0x108] sm:$0xf]
  %v91 = vld [vmem:[%s2 + $0x10c] sm:$0xf]
  %v92 = vld [vmem:[%s2 + $0x110] sm:$0xf]
  %v93 = vld [vmem:[%s2 + $0x114] sm:$0xf]
  %v94 = vld [vmem:[%s2 + $0x118] sm:$0xf]
  %v95 = vld [vmem:[%s2 + $0x11c] sm:$0xf]
  %v96 = vld [vmem:[%s2 + $0x120] sm:$0xf]
  %v97 = vld [vmem:[%s2 + $0x124] sm:$0xf]
  %v98 = vld [vmem:[%s2 + $0x128] sm:$0xf]
  %v99 = vld [vmem:[%s2 + $0x12c] sm:$0xf]
  %v100 = vld [vmem:[%s2 + $0x130] sm:$0xf]
  %v101 = vld [vmem:[%s2 + $0x134] sm:$0xf]
  %v102 = vld [vmem:[%s2 + $0x138] sm:$0xf]
  %v103 = vld [vmem:[%s2 + $0x13c] sm:$0xf]
  %v104 = vld [vmem:[%s2 + $0x140] sm:$0xf]
  %v105 = vld [vmem:[%s2 + $0x144] sm:$0xf]
  %v106 = vld [vmem:[%s2 + $0x148] sm:$0xf]
  %v107 = vld [vmem:[%s2 + $0x14c] sm:$0xf]
  %v108 = vld [vmem:[%s2 + $0x150] sm:$0xf]
  %v109 = vld [vmem:[%s2 + $0x154] sm:$0xf]
  %v110 = vld [vmem:[%s2 + $0x158] sm:$0xf]
  %v111 = vld [vmem:[%s2 + $0x15c] sm:$0xf]
  %v112 = vld [vmem:[%s2 + $0x160] sm:$0xf]
  %v113 = vld [vmem:[%s2 + $0x164] sm:$0xf]
  %v114 = vld [vmem:[%s2 + $0x168] sm:$0xf]
  %v115 = vld [vmem:[%s2 + $0x16c] sm:$0xf]
  %v116 = vld [vmem:[%s2 + $0x170] sm:$0xf]
  %v117 = vld [vmem:[%s2 + $0x174] sm:$0xf]
  %v118 = vld [vmem:[%s2 + $0x178] sm:$0xf]
  %v119 = vld [vmem:[%s2 + $0x17c] sm:$0xf]
  %v120 = vld [vmem:[%s1] sm:$0xff]
  %v121 = vld [vmem:[%s1 + $0x8] sm:$0xf]
  %v122 = vld [vmem:[%s3] sm:$0xf]
  %v123 = vld [vmem:[%s3 + $0x4] sm:$0xf]
  %v124 = vld [vmem:[%s3 + $0x8] sm:$0xf]
  %v125 = vld [vmem:[%s3 + $0xc] sm:$0xf]
  %v126 = vld [vmem:[%s3 + $0x10] sm:$0xf]
  %v127 = vld [vmem:[%s3 + $0x14] sm:$0xf]
  %v128 = vld [vmem:[%s3 + $0x18] sm:$0xf]
  %v129 = vld [vmem:[%s3 + $0x1c] sm:$0xf]
  %v130 = vld [vmem:[%s3 + $0x20] sm:$0xf]
  %v131 = vld [vmem:[%s3 + $0x24] sm:$0xf]
  %v132 = vld [vmem:[%s3 + $0x28] sm:$0xf]
  %v133 = vld [vmem:[%s3 + $0x2c] sm:$0xf]
  %v134 = vld [vmem:[%s3 + $0x30] sm:$0xf]
  %v135 = vld [vmem:[%s3 + $0x34] sm:$0xf]
  %v136 = vld [vmem:[%s3 + $0x38] sm:$0xf]
  %v137 = vld [vmem:[%s3 + $0x3c] sm:$0xf]
  %v138 = vld [vmem:[%s3 + $0x40] sm:$0xf]
  %v139 = vld [vmem:[%s3 + $0x44] sm:$0xf]
  %v140 = vld [vmem:[%s3 + $0x48] sm:$0xf]
  %v141 = vld [vmem:[%s3 + $0x4c] sm:$0xf]
  %v142 = vld [vmem:[%s3 + $0x50] sm:$0xf]
  %v143 = vld [vmem:[%s3 + $0x54] sm:$0xf]
  %v144 = vld [vmem:[%s3 + $0x58] sm:$0xf]
  %v145 = vld [vmem:[%s3 + $0x5c] sm:$0xf]
  %v146 = vld [vmem:[%s3 + $0x60] sm:$0xf]
  %v147 = vld [vmem:[%s3 + $0x64] sm:$0xf]
  %v148 = vld [vmem:[%s3 + $0x68] sm:$0xf]
  %v149 = vld [vmem:[%s3 + $0x6c] sm:$0xf]
  %v150 = vld [vmem:[%s3 + $0x70] sm:$0xf]
  %v151 = vld [vmem:[%s3 + $0x74] sm:$0xf]
  %v152 = vld [vmem:[%s3 + $0x78] sm:$0xf]
  %v153 = vld [vmem:[%s3 + $0x7c] sm:$0xf]
  %v154 = vld [vmem:[%s3 + $0x80] sm:$0xf]
  %v155 = vld [vmem:[%s3 + $0x84] sm:$0xf]
  %v156 = vld [vmem:[%s3 + $0x88] sm:$0xf]
  %v157 = vld [vmem:[%s3 + $0x8c] sm:$0xf]
  %v158 = vld [vmem:[%s3 + $0x90] sm:$0xf]
  %v159 = vld [vmem:[%s3 + $0x94] sm:$0xf]
  %v160 = vld [vmem:[%s3 + $0x98] sm:$0xf]
  %v161 = vld [vmem:[%s3 + $0x9c] sm:$0xf]
  %v162 = vld [vmem:[%s3 + $0xa0] sm:$0xf]
  %v163 = vld [vmem:[%s3 + $0xa4] sm:$0xf]
  %v164 = vld [vmem:[%s3 + $0xa8] sm:$0xf]
  %v165 = vld [vmem:[%s3 + $0xac] sm:$0xf]
  %v166 = vld [vmem:[%s3 + $0xb0] sm:$0xf]
  %v167 = vld [vmem:[%s3 + $0xb4] sm:$0xf]
  %v168 = vld [vmem:[%s3 + $0xb8] sm:$0xf]
  %v169 = vld [vmem:[%s3 + $0xbc] sm:$0xf]
  %v172 = vunpack.c.l.b16 %v120
  %v173 = vunpack.c.h.b16 %v120
  %v174 = vunpack.c.l.b16 %v121
  %v175 = vpack.c.b16 %v172, %v172
  %v176 = vpack.c.b16 %v173, %v173
  %v177 = vpack.c.b16 %v174, %v174
  %v229 = vunpack.c.l.b16 %v122
  %v230 = vunpack.c.l.b16 %v123
  %v231 = vunpack.c.l.b16 %v124
  %v232 = vunpack.c.l.b16 %v125
  %v233 = vunpack.c.l.b16 %v126
  %v234 = vunpack.c.l.b16 %v127
  %v235 = vunpack.c.l.b16 %v128
  %v236 = vunpack.c.l.b16 %v129
  %v237 = vunpack.c.l.b16 %v130
  %v238 = vunpack.c.l.b16 %v131
  %v239 = vunpack.c.l.b16 %v132
  %v240 = vunpack.c.l.b16 %v133
  %v241 = vunpack.c.l.b16 %v134
  %v242 = vunpack.c.l.b16 %v135
  %v243 = vunpack.c.l.b16 %v136
  %v244 = vunpack.c.l.b16 %v137
  %v245 = vunpack.c.l.b16 %v138
  %v246 = vunpack.c.l.b16 %v139
  %v247 = vunpack.c.l.b16 %v140
  %v248 = vunpack.c.l.b16 %v141
  %v249 = vunpack.c.l.b16 %v142
  %v250 = vunpack.c.l.b16 %v143
  %v251 = vunpack.c.l.b16 %v144
  %v252 = vunpack.c.l.b16 %v145
  %v253 = vunpack.c.l.b16 %v146
  %v254 = vunpack.c.l.b16 %v147
  %v255 = vunpack.c.l.b16 %v148
  %v256 = vunpack.c.l.b16 %v149
  %v257 = vunpack.c.l.b16 %v150
  %v258 = vunpack.c.l.b16 %v151
  %v259 = vunpack.c.l.b16 %v152
  %v260 = vunpack.c.l.b16 %v153
  %v261 = vunpack.c.l.b16 %v154
  %v262 = vunpack.c.l.b16 %v155
  %v263 = vunpack.c.l.b16 %v156
  %v264 = vunpack.c.l.b16 %v157
  %v265 = vunpack.c.l.b16 %v158
  %v266 = vunpack.c.l.b16 %v159
  %v267 = vunpack.c.l.b16 %v160
  %v268 = vunpack.c.l.b16 %v161
  %v269 = vunpack.c.l.b16 %v162
  %v270 = vunpack.c.l.b16 %v163
  %v271 = vunpack.c.l.b16 %v164
  %v272 = vunpack.c.l.b16 %v165
  %v273 = vunpack.c.l.b16 %v166
  %v274 = vunpack.c.l.b16 %v167
  %v275 = vunpack.c.l.b16 %v168
  %v276 = vunpack.c.l.b16 %v169
  %v277 = vpack.c.b16 %v230, %v229
  %v278 = vpack.c.b16 %v232, %v231
  %v279 = vpack.c.b16 %v234, %v233
  %v280 = vpack.c.b16 %v236, %v235
  %v281 = vpack.c.b16 %v238, %v237
  %v282 = vpack.c.b16 %v240, %v239
  %v283 = vpack.c.b16 %v242, %v241
  %v284 = vpack.c.b16 %v244, %v243
  %v285 = vpack.c.b16 %v246, %v245
  %v286 = vpack.c.b16 %v248, %v247
  %v287 = vpack.c.b16 %v250, %v249
  %v288 = vpack.c.b16 %v252, %v251
  %v289 = vpack.c.b16 %v254, %v253
  %v290 = vpack.c.b16 %v256, %v255
  %v291 = vpack.c.b16 %v258, %v257
  %v292 = vpack.c.b16 %v260, %v259
  %v293 = vpack.c.b16 %v262, %v261
  %v294 = vpack.c.b16 %v264, %v263
  %v295 = vpack.c.b16 %v266, %v265
  %v296 = vpack.c.b16 %v268, %v267
  %v297 = vpack.c.b16 %v270, %v269
  %v298 = vpack.c.b16 %v272, %v271
  %v299 = vpack.c.b16 %v274, %v273
  %v300 = vpack.c.b16 %v276, %v275
  %325 = vmatprep.subr.bf16.mxu0 0
  %326 = vmatpush1.bf16.msra.mxu0 %v277
  %327 = vmatprep.subr.bf16.mxu0 0
  %328 = vmatpush1.bf16.msra.mxu0 %v278
  %329 = vmatprep.subr.bf16.mxu0 0
  %330 = vmatpush1.bf16.msra.mxu0 %v279
  %331 = vmatprep.subr.bf16.mxu0 0
  %332 = vmatpush1.bf16.msra.mxu0 %v280
  %333 = vmatprep.subr.bf16.mxu0 0
  %334 = vmatpush1.bf16.msra.mxu0 %v281
  %335 = vmatprep.subr.bf16.mxu0 0
  %336 = vmatpush1.bf16.msra.mxu0 %v282
  %337 = vmatprep.subr.bf16.mxu0 0
  %338 = vmatpush1.bf16.msra.mxu0 %v283
  %339 = vmatprep.subr.bf16.mxu0 0
  %340 = vmatpush1.bf16.msra.mxu0 %v284
  %341 = vmatprep.subr.bf16.mxu0 0
  %342 = vmatpush1.bf16.msra.mxu0 %v285
  %343 = vmatprep.subr.bf16.mxu0 0
  %344 = vmatpush1.bf16.msra.mxu0 %v286
  %345 = vmatprep.subr.bf16.mxu0 0
  %346 = vmatpush1.bf16.msra.mxu0 %v287
  %347 = vmatprep.subr.bf16.mxu0 0
  %348 = vmatpush1.bf16.msra.mxu0 %v288
  %349 = vmatprep.subr.bf16.mxu0 0
  %350 = vmatpush1.bf16.msra.mxu0 %v289
  %351 = vmatprep.subr.bf16.mxu0 0
  %352 = vmatpush1.bf16.msra.mxu0 %v290
  %353 = vmatprep.subr.bf16.mxu0 0
  %354 = vmatpush1.bf16.msra.mxu0 %v291
  %355 = vmatprep.subr.bf16.mxu0 0
  %356 = vmatpush1.bf16.msra.mxu0 %v292
  %357 = vmatprep.mubr.bf16.mxu0 %v176
  %358 = vmatmul.mubr.bf16.gmra.mrb[0].mxu0 %v175
  %v359 = vpop.f32.mrb[0].mxu0
  %v360 = vadd.f32 0.0, %v359
  %v361 = vpop.f32.mrb[0].mxu0
  %v362 = vpop.f32.mrb[0].mxu0
  %v363 = vpop.f32.mrb[0].mxu0
  %364 = vdwg.mxu0
  %365 = vmatprep.subr.bf16.mxu0 0
  %366 = vmatpush1.bf16.msra.mxu0 %v293
  %367 = vmatprep.subr.bf16.mxu0 0
  %368 = vmatpush1.bf16.msra.mxu0 %v294
  %369 = vmatprep.subr.bf16.mxu0 0
  %370 = vmatpush1.bf16.msra.mxu0 %v295
  %371 = vmatprep.subr.bf16.mxu0 0
  %372 = vmatpush1.bf16.msra.mxu0 %v296
  %373 = vmatprep.subr.bf16.mxu0 0
  %374 = vmatpush1.bf16.msra.mxu0 %v297
  %375 = vmatprep.subr.bf16.mxu0 0
  %376 = vmatpush1.bf16.msra.mxu0 %v298
  %377 = vmatprep.subr.bf16.mxu0 0
  %378 = vmatpush1.bf16.msra.mxu0 %v299
  %379 = vmatprep.subr.bf16.mxu0 0
  %380 = vmatpush1.bf16.msra.mxu0 %v300
  %381 = vmatprep.subr.bf16.mxu0 0
  %382 = vmatpush1.bf16.msra.mxu0 0
  %383 = vmatprep.subr.bf16.mxu0 0
  %384 = vmatpush1.bf16.msra.mxu0 0
  %385 = vmatprep.subr.bf16.mxu0 0
  %386 = vmatpush1.bf16.msra.mxu0 0
  %387 = vmatprep.subr.bf16.mxu0 0
  %388 = vmatpush1.bf16.msra.mxu0 0
  %389 = vmatprep.subr.bf16.mxu0 0
  %390 = vmatpush1.bf16.msra.mxu0 0
  %391 = vmatprep.subr.bf16.mxu0 0
  %392 = vmatpush1.bf16.msra.mxu0 0
  %393 = vmatprep.subr.bf16.mxu0 0
  %394 = vmatpush1.bf16.msra.mxu0 0
  %395 = vmatprep.subr.bf16.mxu0 0
  %396 = vmatpush1.bf16.msra.mxu0 0
  %397 = vmatprep.mubr.bf16.mxu0 0
  %398 = vmatmul.mubr.bf16.gmra.mrb[0].mxu0 %v177
  %v399 = vpop.f32.mrb[0].mxu0
  %v400 = vadd.f32 %v360, %v399
  %v401 = vpop.f32.mrb[0].mxu0
  %v402 = vpop.f32.mrb[0].mxu0
  %v403 = vpop.f32.mrb[0].mxu0
  %404 = vdwg.mxu0
  %v408 = vunpack.c.l.b16 %v21
  %v409 = vunpack.c.h.b16 %v21
  %v410 = vunpack.c.l.b16 %v22
  %v411 = vunpack.c.h.b16 %v22
  %v412 = vunpack.c.l.b16 %v23
  %v413 = vunpack.c.h.b16 %v23
  %v414 = vpack.c.b16 %v408, %v408
  %v415 = vpack.c.b16 %v409, %v409
  %v416 = vpack.c.b16 %v410, %v410
  %v417 = vpack.c.b16 %v411, %v411
  %v418 = vpack.c.b16 %v412, %v412
  %v419 = vpack.c.b16 %v413, %v413
  %v522 = vunpack.c.l.b16 %v24
  %v523 = vunpack.c.l.b16 %v25
  %v524 = vunpack.c.l.b16 %v26
  %v525 = vunpack.c.l.b16 %v27
  %v526 = vunpack.c.l.b16 %v28
  %v527 = vunpack.c.l.b16 %v29
  %v528 = vunpack.c.l.b16 %v30
  %v529 = vunpack.c.l.b16 %v31
  %v530 = vunpack.c.l.b16 %v32
  %v531 = vunpack.c.l.b16 %v33
  %v532 = vunpack.c.l.b16 %v34
  %v533 = vunpack.c.l.b16 %v35
  %v534 = vunpack.c.l.b16 %v36
  %v535 = vunpack.c.l.b16 %v37
  %v536 = vunpack.c.l.b16 %v38
  %v537 = vunpack.c.l.b16 %v39
  %v538 = vunpack.c.l.b16 %v40
  %v539 = vunpack.c.l.b16 %v41
  %v540 = vunpack.c.l.b16 %v42
  %v541 = vunpack.c.l.b16 %v43
  %v542 = vunpack.c.l.b16 %v44
  %v543 = vunpack.c.l.b16 %v45
  %v544 = vunpack.c.l.b16 %v46
  %v545 = vunpack.c.l.b16 %v47
  %v546 = vunpack.c.l.b16 %v48
  %v547 = vunpack.c.l.b16 %v49
  %v548 = vunpack.c.l.b16 %v50
  %v549 = vunpack.c.l.b16 %v51
  %v550 = vunpack.c.l.b16 %v52
  %v551 = vunpack.c.l.b16 %v53
  %v552 = vunpack.c.l.b16 %v54
  %v553 = vunpack.c.l.b16 %v55
  %v554 = vunpack.c.l.b16 %v56
  %v555 = vunpack.c.l.b16 %v57
  %v556 = vunpack.c.l.b16 %v58
  %v557 = vunpack.c.l.b16 %v59
  %v558 = vunpack.c.l.b16 %v60
  %v559 = vunpack.c.l.b16 %v61
  %v560 = vunpack.c.l.b16 %v62
  %v561 = vunpack.c.l.b16 %v63
  %v562 = vunpack.c.l.b16 %v64
  %v563 = vunpack.c.l.b16 %v65
  %v564 = vunpack.c.l.b16 %v66
  %v565 = vunpack.c.l.b16 %v67
  %v566 = vunpack.c.l.b16 %v68
  %v567 = vunpack.c.l.b16 %v69
  %v568 = vunpack.c.l.b16 %v70
  %v569 = vunpack.c.l.b16 %v71
  %v570 = vunpack.c.l.b16 %v72
  %v571 = vunpack.c.l.b16 %v73
  %v572 = vunpack.c.l.b16 %v74
  %v573 = vunpack.c.l.b16 %v75
  %v574 = vunpack.c.l.b16 %v76
  %v575 = vunpack.c.l.b16 %v77
  %v576 = vunpack.c.l.b16 %v78
  %v577 = vunpack.c.l.b16 %v79
  %v578 = vunpack.c.l.b16 %v80
  %v579 = vunpack.c.l.b16 %v81
  %v580 = vunpack.c.l.b16 %v82
  %v581 = vunpack.c.l.b16 %v83
  %v582 = vunpack.c.l.b16 %v84
  %v583 = vunpack.c.l.b16 %v85
  %v584 = vunpack.c.l.b16 %v86
  %v585 = vunpack.c.l.b16 %v87
  %v586 = vunpack.c.l.b16 %v88
  %v587 = vunpack.c.l.b16 %v89
  %v588 = vunpack.c.l.b16 %v90
  %v589 = vunpack.c.l.b16 %v91
  %v590 = vunpack.c.l.b16 %v92
  %v591 = vunpack.c.l.b16 %v93
  %v592 = vunpack.c.l.b16 %v94
  %v593 = vunpack.c.l.b16 %v95
  %v594 = vunpack.c.l.b16 %v96
  %v595 = vunpack.c.l.b16 %v97
  %v596 = vunpack.c.l.b16 %v98
  %v597 = vunpack.c.l.b16 %v99
  %v598 = vunpack.c.l.b16 %v100
  %v599 = vunpack.c.l.b16 %v101
  %v600 = vunpack.c.l.b16 %v102
  %v601 = vunpack.c.l.b16 %v103
  %v602 = vunpack.c.l.b16 %v104
  %v603 = vunpack.c.l.b16 %v105
  %v604 = vunpack.c.l.b16 %v106
  %v605 = vunpack.c.l.b16 %v107
  %v606 = vunpack.c.l.b16 %v108
  %v607 = vunpack.c.l.b16 %v109
  %v608 = vunpack.c.l.b16 %v110
  %v609 = vunpack.c.l.b16 %v111
  %v610 = vunpack.c.l.b16 %v112
  %v611 = vunpack.c.l.b16 %v113
  %v612 = vunpack.c.l.b16 %v114
  %v613 = vunpack.c.l.b16 %v115
  %v614 = vunpack.c.l.b16 %v116
  %v615 = vunpack.c.l.b16 %v117
  %v616 = vunpack.c.l.b16 %v118
  %v617 = vunpack.c.l.b16 %v119
  %v618 = vpack.c.b16 %v523, %v522
  %v619 = vpack.c.b16 %v525, %v524
  %v620 = vpack.c.b16 %v527, %v526
  %v621 = vpack.c.b16 %v529, %v528
  %v622 = vpack.c.b16 %v531, %v530
  %v623 = vpack.c.b16 %v533, %v532
  %v624 = vpack.c.b16 %v535, %v534
  %v625 = vpack.c.b16 %v537, %v536
  %v626 = vpack.c.b16 %v539, %v538
  %v627 = vpack.c.b16 %v541, %v540
  %v628 = vpack.c.b16 %v543, %v542
  %v629 = vpack.c.b16 %v545, %v544
  %v630 = vpack.c.b16 %v547, %v546
  %v631 = vpack.c.b16 %v549, %v548
  %v632 = vpack.c.b16 %v551, %v550
  %v633 = vpack.c.b16 %v553, %v552
  %v634 = vpack.c.b16 %v555, %v554
  %v635 = vpack.c.b16 %v557, %v556
  %v636 = vpack.c.b16 %v559, %v558
  %v637 = vpack.c.b16 %v561, %v560
  %v638 = vpack.c.b16 %v563, %v562
  %v639 = vpack.c.b16 %v565, %v564
  %v640 = vpack.c.b16 %v567, %v566
  %v641 = vpack.c.b16 %v569, %v568
  %v642 = vpack.c.b16 %v571, %v570
  %v643 = vpack.c.b16 %v573, %v572
  %v644 = vpack.c.b16 %v575, %v574
  %v645 = vpack.c.b16 %v577, %v576
  %v646 = vpack.c.b16 %v579, %v578
  %v647 = vpack.c.b16 %v581, %v580
  %v648 = vpack.c.b16 %v583, %v582
  %v649 = vpack.c.b16 %v585, %v584
  %v650 = vpack.c.b16 %v587, %v586
  %v651 = vpack.c.b16 %v589, %v588
  %v652 = vpack.c.b16 %v591, %v590
  %v653 = vpack.c.b16 %v593, %v592
  %v654 = vpack.c.b16 %v595, %v594
  %v655 = vpack.c.b16 %v597, %v596
  %v656 = vpack.c.b16 %v599, %v598
  %v657 = vpack.c.b16 %v601, %v600
  %v658 = vpack.c.b16 %v603, %v602
  %v659 = vpack.c.b16 %v605, %v604
  %v660 = vpack.c.b16 %v607, %v606
  %v661 = vpack.c.b16 %v609, %v608
  %v662 = vpack.c.b16 %v611, %v610
  %v663 = vpack.c.b16 %v613, %v612
  %v664 = vpack.c.b16 %v615, %v614
  %v665 = vpack.c.b16 %v617, %v616
  %714 = vmatprep.subr.bf16.mxu0 0
  %715 = vmatpush1.bf16.msra.mxu0 %v618
  %716 = vmatprep.subr.bf16.mxu0 0
  %717 = vmatpush1.bf16.msra.mxu0 %v619
  %718 = vmatprep.subr.bf16.mxu0 0
  %719 = vmatpush1.bf16.msra.mxu0 %v620
  %720 = vmatprep.subr.bf16.mxu0 0
  %721 = vmatpush1.bf16.msra.mxu0 %v621
  %722 = vmatprep.subr.bf16.mxu0 0
  %723 = vmatpush1.bf16.msra.mxu0 %v622
  %724 = vmatprep.subr.bf16.mxu0 0
  %725 = vmatpush1.bf16.msra.mxu0 %v623
  %726 = vmatprep.subr.bf16.mxu0 0
  %727 = vmatpush1.bf16.msra.mxu0 %v624
  %728 = vmatprep.subr.bf16.mxu0 0
  %729 = vmatpush1.bf16.msra.mxu0 %v625
  %730 = vmatprep.subr.bf16.mxu0 0
  %731 = vmatpush1.bf16.msra.mxu0 %v626
  %732 = vmatprep.subr.bf16.mxu0 0
  %733 = vmatpush1.bf16.msra.mxu0 %v627
  %734 = vmatprep.subr.bf16.mxu0 0
  %735 = vmatpush1.bf16.msra.mxu0 %v628
  %736 = vmatprep.subr.bf16.mxu0 0
  %737 = vmatpush1.bf16.msra.mxu0 %v629
  %738 = vmatprep.subr.bf16.mxu0 0
  %739 = vmatpush1.bf16.msra.mxu0 %v630
  %740 = vmatprep.subr.bf16.mxu0 0
  %741 = vmatpush1.bf16.msra.mxu0 %v631
  %742 = vmatprep.subr.bf16.mxu0 0
  %743 = vmatpush1.bf16.msra.mxu0 %v632
  %744 = vmatprep.subr.bf16.mxu0 0
  %745 = vmatpush1.bf16.msra.mxu0 %v633
  %746 = vmatprep.mubr.bf16.mxu0 %v415
  %747 = vmatmul.mubr.bf16.gmra.mrb[0].mxu0 %v414
  %v748 = vpop.f32.mrb[0].mxu0
  %v749 = vadd.f32 %v400, %v748
  %v750 = vpop.f32.mrb[0].mxu0
  %v751 = vpop.f32.mrb[0].mxu0
  %v752 = vpop.f32.mrb[0].mxu0
  %753 = vdwg.mxu0
  %754 = vmatprep.subr.bf16.mxu0 0
  %755 = vmatpush1.bf16.msra.mxu0 %v634
  %756 = vmatprep.subr.bf16.mxu0 0
  %757 = vmatpush1.bf16.msra.mxu0 %v635
  %758 = vmatprep.subr.bf16.mxu0 0
  %759 = vmatpush1.bf16.msra.mxu0 %v636
  %760 = vmatprep.subr.bf16.mxu0 0
  %761 = vmatpush1.bf16.msra.mxu0 %v637
  %762 = vmatprep.subr.bf16.mxu0 0
  %763 = vmatpush1.bf16.msra.mxu0 %v638
  %764 = vmatprep.subr.bf16.mxu0 0
  %765 = vmatpush1.bf16.msra.mxu0 %v639
  %766 = vmatprep.subr.bf16.mxu0 0
  %767 = vmatpush1.bf16.msra.mxu0 %v640
  %768 = vmatprep.subr.bf16.mxu0 0
  %769 = vmatpush1.bf16.msra.mxu0 %v641
  %770 = vmatprep.subr.bf16.mxu0 0
  %771 = vmatpush1.bf16.msra.mxu0 %v642
  %772 = vmatprep.subr.bf16.mxu0 0
  %773 = vmatpush1.bf16.msra.mxu0 %v643
  %774 = vmatprep.subr.bf16.mxu0 0
  %775 = vmatpush1.bf16.msra.mxu0 %v644
  %776 = vmatprep.subr.bf16.mxu0 0
  %777 = vmatpush1.bf16.msra.mxu0 %v645
  %778 = vmatprep.subr.bf16.mxu0 0
  %779 = vmatpush1.bf16.msra.mxu0 %v646
  %780 = vmatprep.subr.bf16.mxu0 0
  %781 = vmatpush1.bf16.msra.mxu0 %v647
  %782 = vmatprep.subr.bf16.mxu0 0
  %783 = vmatpush1.bf16.msra.mxu0 %v648
  %784 = vmatprep.subr.bf16.mxu0 0
  %785 = vmatpush1.bf16.msra.mxu0 %v649
  %786 = vmatprep.mubr.bf16.mxu0 %v417
  %787 = vmatmul.mubr.bf16.gmra.mrb[0].mxu0 %v416
  %v788 = vpop.f32.mrb[0].mxu0
  %v789 = vadd.f32 %v749, %v788
  %v790 = vpop.f32.mrb[0].mxu0
  %v791 = vpop.f32.mrb[0].mxu0
  %v792 = vpop.f32.mrb[0].mxu0
  %793 = vdwg.mxu0
  %794 = vmatprep.subr.bf16.mxu0 0
  %795 = vmatpush1.bf16.msra.mxu0 %v650
  %796 = vmatprep.subr.bf16.mxu0 0
  %797 = vmatpush1.bf16.msra.mxu0 %v651
  %798 = vmatprep.subr.bf16.mxu0 0
  %799 = vmatpush1.bf16.msra.mxu0 %v652
  %800 = vmatprep.subr.bf16.mxu0 0
  %801 = vmatpush1.bf16.msra.mxu0 %v653
  %802 = vmatprep.subr.bf16.mxu0 0
  %803 = vmatpush1.bf16.msra.mxu0 %v654
  %804 = vmatprep.subr.bf16.mxu0 0
  %805 = vmatpush1.bf16.msra.mxu0 %v655
  %806 = vmatprep.subr.bf16.mxu0 0
  %807 = vmatpush1.bf16.msra.mxu0 %v656
  %808 = vmatprep.subr.bf16.mxu0 0
  %809 = vmatpush1.bf16.msra.mxu0 %v657
  %810 = vmatprep.subr.bf16.mxu0 0
  %811 = vmatpush1.bf16.msra.mxu0 %v658
  %812 = vmatprep.subr.bf16.mxu0 0
  %813 = vmatpush1.bf16.msra.mxu0 %v659
  %814 = vmatprep.subr.bf16.mxu0 0
  %815 = vmatpush1.bf16.msra.mxu0 %v660
  %816 = vmatprep.subr.bf16.mxu0 0
  %817 = vmatpush1.bf16.msra.mxu0 %v661
  %818 = vmatprep.subr.bf16.mxu0 0
  %819 = vmatpush1.bf16.msra.mxu0 %v662
  %820 = vmatprep.subr.bf16.mxu0 0
  %821 = vmatpush1.bf16.msra.mxu0 %v663
  %822 = vmatprep.subr.bf16.mxu0 0
  %823 = vmatpush1.bf16.msra.mxu0 %v664
  %824 = vmatprep.subr.bf16.mxu0 0
  %825 = vmatpush1.bf16.msra.mxu0 %v665
  %826 = vmatprep.mubr.bf16.mxu0 %v419
  %827 = vmatmul.mubr.bf16.gmra.mrb[0].mxu0 %v418
  %v828 = vpop.f32.mrb[0].mxu0
  %v829 = vadd.f32 %v789, %v828
  %v830 = vpop.f32.mrb[0].mxu0
  %v831 = vpop.f32.mrb[0].mxu0
  %v832 = vpop.f32.mrb[0].mxu0
  %833 = vdwg.mxu0
  %v834 = vld [vmem:[%s4] sm:$0x1]
  %v836 = vlaneseq
  %v837 = vshrl.u32 %v836, 7
  %v838 = vsub.s32 0, %v837
  %v839 = vrot.slane %v834, %v838
  %v841 = vadd.f32 %v829, %v839
  %v842 = vxor.u32 %v841, 2147483648
  %v843 = vmul.f32 %v842, 1.442695
  %v844 = vpow.pop %v843
  %v845 = vadd.f32 %v844, 1.0
  %v846 = vrcp.pop %v845
  %v847 = vmul.f32 1.0, %v846
  %v848 = vmul.f32 %v841, %v847
  %v849 = vpack.c.bf16 %v848, %v848
  %850 = vst [vmem:[%s5] sm:$0xf] %v849
  // Predicated region
  $region22: #{backbone_2d_forward.9} parent=0 // pred_check
    _
  $region23: #{backbone_2d_forward.9} parent=0 // pred_check_branch
    %852 = sbr.rel (0) target = $region25
  $region24: #{backbone_2d_forward.9} parent=0 // pred_region
    _
  $region25: #{backbone_2d_forward.9} parent=0 // pred_fallthru
    _
  // Predicated region
  $region26: #{backbone_2d_forward.9} parent=0 // pred_check
    _
  $region27: #{backbone_2d_forward.9} parent=0 // pred_check_branch
    %854 = sbr.rel (0) target = $region29
  $region28: #{backbone_2d_forward.9} parent=0 // pred_region
    _
  $region29: #{backbone_2d_forward.9} parent=0 // pred_fallthru
    _

</llo_original>
